<compile_context>
chip_gen: v7x
topology: tpu7x:2x2x1
jax: 0.10.0
libtpu: 0.0.40
codegen_flags: <defaults>
</compile_context>

<pallas_src>
import numpy as np
import jax
import jax.numpy as jnp
from jax.experimental import pallas as pl
from jax.experimental.pallas import tpu as pltpu


TB = 8  # batch tile per grid step (batch is zero-padded up to a multiple)


# ----------------------------------------------------------------------------
# Fused kernel: whole forward pass for a tile of TB images.
# ----------------------------------------------------------------------------
def _fused_kernel(xp_ref, t1_ref, w2_ref, b2f_ref, wfc1_ref, bfc1_ref,
                  wfc2_ref, bfc2_ref, o_ref, m2_ref):
    f32 = jnp.float32
    tb = xp_ref.shape[1] // 16          # images in this tile

    # ---- Stage 1: conv1 (5x5, 1->10) + bias + 2x2 maxpool + ReLU ------------
    # xp_ref[a] holds rows x[b, 4q+a, :] (plus a ones column for the bias).
    # One MXU matmul per row-phase against the width-Toeplitz matrix T1 gives
    # every horizontal partial sum; vertical taps are row-shifted adds and the
    # pool is a max over the 4 (d1i,d1j) accumulators.
    t1 = t1_ref[...]                                        # [29, 1200]
    z3 = []
    for a in range(4):
        xa = xp_ref[a]                                      # [tb*16, 29]
        z = jnp.dot(xa, t1, preferred_element_type=f32)     # [tb*16, 1200]
        z3.append(z.reshape(tb, 16, 1200))

    y1 = []   # per output-row-phase pr: [tb, 8, 120]; lane = pc*60 + qw*10 + c
    for pr in range(2):
        taps = []
        for d1i in range(2):
            for d1j in range(2):
                acc = None
                for ki in range(5):
                    u = 2 * pr + d1i + ki
                    a, ro = u % 4, u // 4
                    c0 = (ki * 4 + d1j * 2) * 60
                    blk = z3[a][:, ro:ro + 8, c0:c0 + 120]  # [tb, 8, 120]
                    acc = blk if acc is None else acc + blk
                taps.append(acc)
        m = jnp.maximum(jnp.maximum(taps[0], taps[1]),
                        jnp.maximum(taps[2], taps[3]))
        y1.append(jnp.maximum(m, 0.0))      # relu(maxpool2(conv1 + b1))

    # ---- Stage 2: conv2 (5x5, 10->20) + 2x2 maxpool (bias/ReLU after) -------
    # Horizontal taps + channel mixing live in the block-structured W2big
    # matmul; vertical taps are row-shifted adds; pool is a max of 4 accs.
    w2 = w2_ref[...]                                        # [120, 800]
    g3 = []
    for pr in range(2):
        y2d = y1[pr].reshape(tb * 8, 120)
        g = jnp.dot(y2d, w2, preferred_element_type=f32)    # [tb*8, 800]
        g3.append(g.reshape(tb, 8, 800))

    a2 = []
    for d2i in range(2):
        for d2j in range(2):
            acc = None
            for k2i in range(5):
                pr = (d2i + k2i) % 2
                sr = (d2i + k2i) // 2
                c0 = (k2i * 2 + d2j) * 80
                blk = g3[pr][:, sr:sr + 4, c0:c0 + 80]      # [tb, 4, 80]
                acc = blk if acc is None else acc + blk
            a2.append(acc)
    m2 = jnp.maximum(jnp.maximum(a2[0], a2[1]),
                     jnp.maximum(a2[2], a2[3]))             # [tb, 4, 80]

    # ---- Flatten (move the 4 pooled rows into lanes) via a tiny VMEM bounce -
    m2_ref[...] = m2
    flat = jnp.concatenate([m2_ref[:, rh, :] for rh in range(4)], axis=-1)
    # conv2 bias commutes with the max above; add it now, then ReLU.
    feat = jnp.maximum(flat + b2f_ref[...], 0.0)            # [tb, 320]

    # ---- fc1 + ReLU -> fc2 -> log_softmax (all on the same tile) ------------
    h = jnp.dot(feat, wfc1_ref[...], preferred_element_type=f32) + bfc1_ref[...]
    h = jnp.maximum(h, 0.0)
    logits = jnp.dot(h, wfc2_ref[...], preferred_element_type=f32) + bfc2_ref[...]
    s = logits - jnp.max(logits, axis=-1, keepdims=True)
    lse = jnp.log(jnp.sum(jnp.exp(s), axis=-1, keepdims=True))
    o_ref[...] = (s - lse).astype(o_ref.dtype)


# ----------------------------------------------------------------------------
# Host-side parameter preparation (one-time): structured conv weights, tiled
# biases, fc1 row permutation (replaces the per-call NHWC->NCHW transpose).
# ----------------------------------------------------------------------------
def prepare_params(params):
    w1 = np.asarray(params["conv1_w"], np.float32)     # [5,5,1,10]
    b1 = np.asarray(params["conv1_b"], np.float32)     # [10]
    w2 = np.asarray(params["conv2_w"], np.float32)     # [5,5,10,20]
    b2 = np.asarray(params["conv2_b"], np.float32)     # [20]
    fc1w = np.asarray(params["fc1_w"], np.float32)     # [320,50] (NCHW-flat rows)
    fc1b = np.asarray(params["fc1_b"], np.float32)
    fc2w = np.asarray(params["fc2_w"], np.float32)
    fc2b = np.asarray(params["fc2_b"], np.float32)

    # conv1 width-Toeplitz matrix (+ bias row fed by the input's ones column).
    # column = (ki*4 + d1j*2 + pc)*60 + qw*10 + c
    t1 = np.zeros((29, 1200), np.float32)
    for ki in range(5):
        for d1j in range(2):
            for pc in range(2):
                blk = (ki * 4 + d1j * 2 + pc) * 60
                for qw in range(6):
                    col = blk + qw * 10
                    for kj in range(5):
                        w_in = 4 * qw + 2 * pc + d1j + kj
                        t1[w_in, col:col + 10] += w1[ki, kj, 0, :]
                    if ki == 0:
                        t1[28, col:col + 10] = b1

    # conv2 block-structured weights: rows = (pc, qw, ci) lanes of y1p,
    # columns = (k2i, d2j) blocks of (c2, rw).
    w2big = np.zeros((120, 800), np.float32)
    for k2i in range(5):
        for d2j in range(2):
            cblk = (k2i * 2 + d2j) * 80
            for pc in range(2):
                for qw in range(6):
                    for rw in range(4):
                        k2j = 2 * (qw - rw) + pc - d2j
                        if 0 <= k2j < 5:
                            r0 = pc * 60 + qw * 10
                            w2big[r0:r0 + 10, cblk + rw:cblk + 80:4] = \
                                w2[k2i, k2j, :, :]

    # conv2 bias tiled to the kernel's flat order f = rh*80 + c2*4 + rw.
    b2flat = np.tile(np.repeat(b2, 4), 4).reshape(1, 320)

    # fc1 rows permuted: kernel flat order -> PyTorch NCHW flatten order.
    f = np.arange(320)
    rh, c2, rw = f // 80, (f % 80) // 4, f % 4
    perm = c2 * 16 + rh * 4 + rw
    wfc1p = fc1w[perm, :]

    return {
        "t1": jnp.asarray(t1),
        "w2big": jnp.asarray(w2big),
        "b2flat": jnp.asarray(b2flat),
        "wfc1": jnp.asarray(wfc1p),
        "bfc1": jnp.asarray(fc1b.reshape(1, 50)),
        "wfc2": jnp.asarray(fc2w),
        "bfc2": jnp.asarray(fc2b.reshape(1, 10)),
    }


# ----------------------------------------------------------------------------
# Input prep: 4-phase row decomposition (rows padded to 16/image) + ones col.
# ----------------------------------------------------------------------------
def _prep_input(x, tb):
    B = x.shape[0]
    Bp = -(-B // tb) * tb
    x = x.astype(jnp.float32).reshape(B, 28, 28)
    if Bp > B:
        x = jnp.pad(x, ((0, Bp - B), (0, 0), (0, 0)))
    xr = x.reshape(Bp, 7, 4, 28)                         # [b, q, a, w], h = 4q+a
    xr = jnp.pad(xr, ((0, 0), (0, 9), (0, 0), (0, 0)))   # pad q: 7 -> 16
    xo = jnp.concatenate([xr, jnp.ones((Bp, 16, 4, 1), jnp.float32)], axis=-1)
    xp = jnp.transpose(xo, (2, 0, 1, 3)).reshape(4, Bp * 16, 29)
    return xp, Bp


def mnist_comparator_forward(prep, x):
    # TODO(synk): mc.save(...) is an external debug/comparator hook with no
    # compute semantics; intermediate activations are not recorded here.
    B = x.shape[0]
    xp, Bp = _prep_input(x, TB)
    grid = (Bp // TB,)

    out = pl.pallas_call(
        _fused_kernel,
        out_shape=jax.ShapeDtypeStruct((Bp, 10), jnp.float32),
        grid_spec=pltpu.PrefetchScalarGridSpec(
            num_scalar_prefetch=0,
            grid=grid,
            in_specs=[
                pl.BlockSpec((4, TB * 16, 29), lambda i: (0, i, 0)),  # input
                pl.BlockSpec((29, 1200), lambda i: (0, 0)),           # T1
                pl.BlockSpec((120, 800), lambda i: (0, 0)),           # W2big
                pl.BlockSpec((1, 320), lambda i: (0, 0)),             # b2 (flat)
                pl.BlockSpec((320, 50), lambda i: (0, 0)),            # fc1 w
                pl.BlockSpec((1, 50), lambda i: (0, 0)),              # fc1 b
                pl.BlockSpec((50, 10), lambda i: (0, 0)),             # fc2 w
                pl.BlockSpec((1, 10), lambda i: (0, 0)),              # fc2 b
            ],
            out_specs=pl.BlockSpec((TB, 10), lambda i: (i, 0)),
            scratch_shapes=[pltpu.VMEM((TB, 4, 80), jnp.float32)],
        ),
        compiler_params=pltpu.CompilerParams(
            dimension_semantics=("parallel",)),
    )(xp, prep["t1"], prep["w2big"], prep["b2flat"], prep["wfc1"],
      prep["bfc1"], prep["wfc2"], prep["bfc2"])
    return out[:B]


# ----------------------------------------------------------------------------
# Parameters (deterministic, synthetic) and a pure-JAX reference for checking.
# ----------------------------------------------------------------------------
def init_params(key):
    ks = jax.random.split(key, 8)

    def norm(k, shape, fan_in):
        return jax.random.normal(k, shape, jnp.float32) / jnp.sqrt(fan_in)

    return {
        "conv1_w": norm(ks[0], (5, 5, 1, 10), 25),
        "conv1_b": norm(ks[1], (10,), 25),
        "conv2_w": norm(ks[2], (5, 5, 10, 20), 250),
        "conv2_b": norm(ks[3], (20,), 250),
        "fc1_w": norm(ks[4], (320, 50), 320),   # rows in PyTorch NCHW-flat order
        "fc1_b": norm(ks[5], (50,), 320),
        "fc2_w": norm(ks[6], (50, 10), 50),
        "fc2_b": norm(ks[7], (10,), 50),
    }


def reference_forward(params, x):
    hi = jax.lax.Precision.HIGHEST
    B = x.shape[0]
    y = jnp.transpose(x.astype(jnp.float32), (0, 2, 3, 1))        # NHWC
    y = jax.lax.conv_general_dilated(
        y, params["conv1_w"], (1, 1), "VALID",
        dimension_numbers=("NHWC", "HWIO", "NHWC"), precision=hi)
    y = y + params["conv1_b"]
    y = jax.lax.reduce_window(y, -jnp.inf, jax.lax.max,
                              (1, 2, 2, 1), (1, 2, 2, 1), "VALID")
    y = jnp.maximum(y, 0.0)
    y = jax.lax.conv_general_dilated(
        y, params["conv2_w"], (1, 1), "VALID",
        dimension_numbers=("NHWC", "HWIO", "NHWC"), precision=hi)
    y = y + params["conv2_b"]
    y = jax.lax.reduce_window(y, -jnp.inf, jax.lax.max,
                              (1, 2, 2, 1), (1, 2, 2, 1), "VALID")
    y = jnp.maximum(y, 0.0)
    flat = jnp.transpose(y, (0, 3, 1, 2)).reshape(B, 320)         # NCHW flatten
    h = jnp.maximum(jnp.dot(flat, params["fc1_w"], precision=hi)
                    + params["fc1_b"], 0.0)
    logits = jnp.dot(h, params["fc2_w"], precision=hi) + params["fc2_b"]
    return jax.nn.log_softmax(logits, axis=-1)


if __name__ == "__main__":
    key = jax.random.PRNGKey(0)
    pkey, xkey = jax.random.split(key)
    params = init_params(pkey)
    prep = prepare_params(params)

    # MNIST-shaped input (B, C, H, W) = (2, 1, 28, 28); 28x28 is required so
    # that the flattened feature size is 20*4*4 = 320, matching fc1.
    x = jax.random.normal(xkey, (2, 1, 28, 28), jnp.float32)

    fwd = jax.jit(mnist_comparator_forward)
    out = jax.block_until_ready(fwd(prep, x))

    assert out.shape == (2, 10), out.shape
    assert bool(jnp.all(jnp.isfinite(out)))
    # log_softmax rows must exponentiate-sum to ~1
    assert bool(jnp.allclose(jnp.sum(jnp.exp(out), axis=1), 1.0, atol=1e-4))
    # Check against a pure-JAX/XLA reference of the original module.
    ref = reference_forward(params, x)
    assert bool(jnp.allclose(out, ref, atol=1e-3, rtol=1e-3)), (
        float(jnp.max(jnp.abs(out - ref))))
    print("KERNEL_OK")
</pallas_src>

<mosaic_0001>
module attributes {stable_mosaic.version = 11 : i64} {
  func.func @_fused_kernel(%arg0: i32, %arg1: memref<4x128x29xf32, #tpu.memory_space<vmem>>, %arg2: memref<29x1200xf32, #tpu.memory_space<vmem>>, %arg3: memref<120x800xf32, #tpu.memory_space<vmem>>, %arg4: memref<1x320xf32, #tpu.memory_space<vmem>>, %arg5: memref<320x50xf32, #tpu.memory_space<vmem>>, %arg6: memref<1x50xf32, #tpu.memory_space<vmem>>, %arg7: memref<50x10xf32, #tpu.memory_space<vmem>>, %arg8: memref<1x10xf32, #tpu.memory_space<vmem>>, %arg9: memref<8x10xf32, #tpu.memory_space<vmem>>, %arg10: memref<8x4x80xf32, #tpu.memory_space<vmem>>) attributes {dimension_semantics = [#tpu.dimension_semantics<parallel>], iteration_bounds = array<i64: 1>, scalar_prefetch = 0 : i64, scratch_operands = 1 : i64, tpu.core_type = #tpu.core_type<tc>, window_params = [{transform_indices = @transform_0, window_bounds = array<i64: 4, 128, 29>}, {pipeline_mode = #tpu.pipeline_mode<synchronous>, transform_indices = @transform_1, window_bounds = array<i64: 29, 1200>}, {pipeline_mode = #tpu.pipeline_mode<synchronous>, transform_indices = @transform_2, window_bounds = array<i64: 120, 800>}, {pipeline_mode = #tpu.pipeline_mode<synchronous>, transform_indices = @transform_3, window_bounds = array<i64: 1, 320>}, {pipeline_mode = #tpu.pipeline_mode<synchronous>, transform_indices = @transform_4, window_bounds = array<i64: 320, 50>}, {pipeline_mode = #tpu.pipeline_mode<synchronous>, transform_indices = @transform_5, window_bounds = array<i64: 1, 50>}, {pipeline_mode = #tpu.pipeline_mode<synchronous>, transform_indices = @transform_6, window_bounds = array<i64: 50, 10>}, {pipeline_mode = #tpu.pipeline_mode<synchronous>, transform_indices = @transform_7, window_bounds = array<i64: 1, 10>}, {transform_indices = @transform_8, window_bounds = array<i64: 8, 10>}]} {
    %c0 = arith.constant 0 : index
    %c0_0 = arith.constant 0 : index
    %0 = vector.load %arg2[%c0, %c0_0] : memref<29x1200xf32, #tpu.memory_space<vmem>>, vector<29x1200xf32>
    %c0_1 = arith.constant 0 : index
    %c0_2 = arith.constant 0 : index
    %c0_3 = arith.constant 0 : index
    %1 = vector.load %arg1[%c0_1, %c0_2, %c0_3] : memref<4x128x29xf32, #tpu.memory_space<vmem>>, vector<1x128x29xf32>
    %2 = vector.shape_cast %1 : vector<1x128x29xf32> to vector<128x29xf32>
    %cst = arith.constant dense<0.000000e+00> : vector<128x1200xf32>
    %3 = tpu.matmul %2, %0, %cst {dimension_numbers = #tpu.dot_dimension_numbers<[1], [0], [0], [1], [0, 0, 1, 1], [], []>} : vector<128x29xf32>, vector<29x1200xf32>, vector<128x1200xf32> -> vector<128x1200xf32>
    %4 = vector.shape_cast %3 : vector<128x1200xf32> to vector<8x16x1200xf32>
    %c1 = arith.constant 1 : index
    %c0_4 = arith.constant 0 : index
    %c0_5 = arith.constant 0 : index
    %5 = vector.load %arg1[%c1, %c0_4, %c0_5] : memref<4x128x29xf32, #tpu.memory_space<vmem>>, vector<1x128x29xf32>
    %6 = vector.shape_cast %5 : vector<1x128x29xf32> to vector<128x29xf32>
    %cst_6 = arith.constant dense<0.000000e+00> : vector<128x1200xf32>
    %7 = tpu.matmul %6, %0, %cst_6 {dimension_numbers = #tpu.dot_dimension_numbers<[1], [0], [0], [1], [0, 0, 1, 1], [], []>} : vector<128x29xf32>, vector<29x1200xf32>, vector<128x1200xf32> -> vector<128x1200xf32>
    %8 = vector.shape_cast %7 : vector<128x1200xf32> to vector<8x16x1200xf32>
    %c2 = arith.constant 2 : index
    %c0_7 = arith.constant 0 : index
    %c0_8 = arith.constant 0 : index
    %9 = vector.load %arg1[%c2, %c0_7, %c0_8] : memref<4x128x29xf32, #tpu.memory_space<vmem>>, vector<1x128x29xf32>
    %10 = vector.shape_cast %9 : vector<1x128x29xf32> to vector<128x29xf32>
    %cst_9 = arith.constant dense<0.000000e+00> : vector<128x1200xf32>
    %11 = tpu.matmul %10, %0, %cst_9 {dimension_numbers = #tpu.dot_dimension_numbers<[1], [0], [0], [1], [0, 0, 1, 1], [], []>} : vector<128x29xf32>, vector<29x1200xf32>, vector<128x1200xf32> -> vector<128x1200xf32>
    %12 = vector.shape_cast %11 : vector<128x1200xf32> to vector<8x16x1200xf32>
    %c3 = arith.constant 3 : index
    %c0_10 = arith.constant 0 : index
    %c0_11 = arith.constant 0 : index
    %13 = vector.load %arg1[%c3, %c0_10, %c0_11] : memref<4x128x29xf32, #tpu.memory_space<vmem>>, vector<1x128x29xf32>
    %14 = vector.shape_cast %13 : vector<1x128x29xf32> to vector<128x29xf32>
    %cst_12 = arith.constant dense<0.000000e+00> : vector<128x1200xf32>
    %15 = tpu.matmul %14, %0, %cst_12 {dimension_numbers = #tpu.dot_dimension_numbers<[1], [0], [0], [1], [0, 0, 1, 1], [], []>} : vector<128x29xf32>, vector<29x1200xf32>, vector<128x1200xf32> -> vector<128x1200xf32>
    %16 = vector.shape_cast %15 : vector<128x1200xf32> to vector<8x16x1200xf32>
    %17 = vector.extract_strided_slice %4 {offsets = [0, 0, 0], sizes = [8, 8, 120], strides = [1, 1, 1]} : vector<8x16x1200xf32> to vector<8x8x120xf32>
    %18 = vector.extract_strided_slice %8 {offsets = [0, 0, 240], sizes = [8, 8, 120], strides = [1, 1, 1]} : vector<8x16x1200xf32> to vector<8x8x120xf32>
    %19 = arith.addf %17, %18 : vector<8x8x120xf32>
    %20 = vector.extract_strided_slice %12 {offsets = [0, 0, 480], sizes = [8, 8, 120], strides = [1, 1, 1]} : vector<8x16x1200xf32> to vector<8x8x120xf32>
    %21 = arith.addf %19, %20 : vector<8x8x120xf32>
    %22 = vector.extract_strided_slice %16 {offsets = [0, 0, 720], sizes = [8, 8, 120], strides = [1, 1, 1]} : vector<8x16x1200xf32> to vector<8x8x120xf32>
    %23 = arith.addf %21, %22 : vector<8x8x120xf32>
    %24 = vector.extract_strided_slice %4 {offsets = [0, 1, 960], sizes = [8, 8, 120], strides = [1, 1, 1]} : vector<8x16x1200xf32> to vector<8x8x120xf32>
    %25 = arith.addf %23, %24 : vector<8x8x120xf32>
    %26 = vector.extract_strided_slice %4 {offsets = [0, 0, 120], sizes = [8, 8, 120], strides = [1, 1, 1]} : vector<8x16x1200xf32> to vector<8x8x120xf32>
    %27 = vector.extract_strided_slice %8 {offsets = [0, 0, 360], sizes = [8, 8, 120], strides = [1, 1, 1]} : vector<8x16x1200xf32> to vector<8x8x120xf32>
    %28 = arith.addf %26, %27 : vector<8x8x120xf32>
    %29 = vector.extract_strided_slice %12 {offsets = [0, 0, 600], sizes = [8, 8, 120], strides = [1, 1, 1]} : vector<8x16x1200xf32> to vector<8x8x120xf32>
    %30 = arith.addf %28, %29 : vector<8x8x120xf32>
    %31 = vector.extract_strided_slice %16 {offsets = [0, 0, 840], sizes = [8, 8, 120], strides = [1, 1, 1]} : vector<8x16x1200xf32> to vector<8x8x120xf32>
    %32 = arith.addf %30, %31 : vector<8x8x120xf32>
    %33 = vector.extract_strided_slice %4 {offsets = [0, 1, 1080], sizes = [8, 8, 120], strides = [1, 1, 1]} : vector<8x16x1200xf32> to vector<8x8x120xf32>
    %34 = arith.addf %32, %33 : vector<8x8x120xf32>
    %35 = vector.extract_strided_slice %8 {offsets = [0, 0, 0], sizes = [8, 8, 120], strides = [1, 1, 1]} : vector<8x16x1200xf32> to vector<8x8x120xf32>
    %36 = vector.extract_strided_slice %12 {offsets = [0, 0, 240], sizes = [8, 8, 120], strides = [1, 1, 1]} : vector<8x16x1200xf32> to vector<8x8x120xf32>
    %37 = arith.addf %35, %36 : vector<8x8x120xf32>
    %38 = vector.extract_strided_slice %16 {offsets = [0, 0, 480], sizes = [8, 8, 120], strides = [1, 1, 1]} : vector<8x16x1200xf32> to vector<8x8x120xf32>
    %39 = arith.addf %37, %38 : vector<8x8x120xf32>
    %40 = vector.extract_strided_slice %4 {offsets = [0, 1, 720], sizes = [8, 8, 120], strides = [1, 1, 1]} : vector<8x16x1200xf32> to vector<8x8x120xf32>
    %41 = arith.addf %39, %40 : vector<8x8x120xf32>
    %42 = vector.extract_strided_slice %8 {offsets = [0, 1, 960], sizes = [8, 8, 120], strides = [1, 1, 1]} : vector<8x16x1200xf32> to vector<8x8x120xf32>
    %43 = arith.addf %41, %42 : vector<8x8x120xf32>
    %44 = vector.extract_strided_slice %8 {offsets = [0, 0, 120], sizes = [8, 8, 120], strides = [1, 1, 1]} : vector<8x16x1200xf32> to vector<8x8x120xf32>
    %45 = vector.extract_strided_slice %12 {offsets = [0, 0, 360], sizes = [8, 8, 120], strides = [1, 1, 1]} : vector<8x16x1200xf32> to vector<8x8x120xf32>
    %46 = arith.addf %44, %45 : vector<8x8x120xf32>
    %47 = vector.extract_strided_slice %16 {offsets = [0, 0, 600], sizes = [8, 8, 120], strides = [1, 1, 1]} : vector<8x16x1200xf32> to vector<8x8x120xf32>
    %48 = arith.addf %46, %47 : vector<8x8x120xf32>
    %49 = vector.extract_strided_slice %4 {offsets = [0, 1, 840], sizes = [8, 8, 120], strides = [1, 1, 1]} : vector<8x16x1200xf32> to vector<8x8x120xf32>
    %50 = arith.addf %48, %49 : vector<8x8x120xf32>
    %51 = vector.extract_strided_slice %8 {offsets = [0, 1, 1080], sizes = [8, 8, 120], strides = [1, 1, 1]} : vector<8x16x1200xf32> to vector<8x8x120xf32>
    %52 = arith.addf %50, %51 : vector<8x8x120xf32>
    %53 = arith.maximumf %25, %34 : vector<8x8x120xf32>
    %54 = arith.maximumf %43, %52 : vector<8x8x120xf32>
    %55 = arith.maximumf %53, %54 : vector<8x8x120xf32>
    %cst_13 = arith.constant 0.000000e+00 : f32
    %56 = vector.broadcast %cst_13 : f32 to vector<8x8x120xf32>
    %57 = arith.maximumf %55, %56 : vector<8x8x120xf32>
    %58 = vector.extract_strided_slice %12 {offsets = [0, 0, 0], sizes = [8, 8, 120], strides = [1, 1, 1]} : vector<8x16x1200xf32> to vector<8x8x120xf32>
    %59 = vector.extract_strided_slice %16 {offsets = [0, 0, 240], sizes = [8, 8, 120], strides = [1, 1, 1]} : vector<8x16x1200xf32> to vector<8x8x120xf32>
    %60 = arith.addf %58, %59 : vector<8x8x120xf32>
    %61 = vector.extract_strided_slice %4 {offsets = [0, 1, 480], sizes = [8, 8, 120], strides = [1, 1, 1]} : vector<8x16x1200xf32> to vector<8x8x120xf32>
    %62 = arith.addf %60, %61 : vector<8x8x120xf32>
    %63 = vector.extract_strided_slice %8 {offsets = [0, 1, 720], sizes = [8, 8, 120], strides = [1, 1, 1]} : vector<8x16x1200xf32> to vector<8x8x120xf32>
    %64 = arith.addf %62, %63 : vector<8x8x120xf32>
    %65 = vector.extract_strided_slice %12 {offsets = [0, 1, 960], sizes = [8, 8, 120], strides = [1, 1, 1]} : vector<8x16x1200xf32> to vector<8x8x120xf32>
    %66 = arith.addf %64, %65 : vector<8x8x120xf32>
    %67 = vector.extract_strided_slice %12 {offsets = [0, 0, 120], sizes = [8, 8, 120], strides = [1, 1, 1]} : vector<8x16x1200xf32> to vector<8x8x120xf32>
    %68 = vector.extract_strided_slice %16 {offsets = [0, 0, 360], sizes = [8, 8, 120], strides = [1, 1, 1]} : vector<8x16x1200xf32> to vector<8x8x120xf32>
    %69 = arith.addf %67, %68 : vector<8x8x120xf32>
    %70 = vector.extract_strided_slice %4 {offsets = [0, 1, 600], sizes = [8, 8, 120], strides = [1, 1, 1]} : vector<8x16x1200xf32> to vector<8x8x120xf32>
    %71 = arith.addf %69, %70 : vector<8x8x120xf32>
    %72 = vector.extract_strided_slice %8 {offsets = [0, 1, 840], sizes = [8, 8, 120], strides = [1, 1, 1]} : vector<8x16x1200xf32> to vector<8x8x120xf32>
    %73 = arith.addf %71, %72 : vector<8x8x120xf32>
    %74 = vector.extract_strided_slice %12 {offsets = [0, 1, 1080], sizes = [8, 8, 120], strides = [1, 1, 1]} : vector<8x16x1200xf32> to vector<8x8x120xf32>
    %75 = arith.addf %73, %74 : vector<8x8x120xf32>
    %76 = vector.extract_strided_slice %16 {offsets = [0, 0, 0], sizes = [8, 8, 120], strides = [1, 1, 1]} : vector<8x16x1200xf32> to vector<8x8x120xf32>
    %77 = vector.extract_strided_slice %4 {offsets = [0, 1, 240], sizes = [8, 8, 120], strides = [1, 1, 1]} : vector<8x16x1200xf32> to vector<8x8x120xf32>
    %78 = arith.addf %76, %77 : vector<8x8x120xf32>
    %79 = vector.extract_strided_slice %8 {offsets = [0, 1, 480], sizes = [8, 8, 120], strides = [1, 1, 1]} : vector<8x16x1200xf32> to vector<8x8x120xf32>
    %80 = arith.addf %78, %79 : vector<8x8x120xf32>
    %81 = vector.extract_strided_slice %12 {offsets = [0, 1, 720], sizes = [8, 8, 120], strides = [1, 1, 1]} : vector<8x16x1200xf32> to vector<8x8x120xf32>
    %82 = arith.addf %80, %81 : vector<8x8x120xf32>
    %83 = vector.extract_strided_slice %16 {offsets = [0, 1, 960], sizes = [8, 8, 120], strides = [1, 1, 1]} : vector<8x16x1200xf32> to vector<8x8x120xf32>
    %84 = arith.addf %82, %83 : vector<8x8x120xf32>
    %85 = vector.extract_strided_slice %16 {offsets = [0, 0, 120], sizes = [8, 8, 120], strides = [1, 1, 1]} : vector<8x16x1200xf32> to vector<8x8x120xf32>
    %86 = vector.extract_strided_slice %4 {offsets = [0, 1, 360], sizes = [8, 8, 120], strides = [1, 1, 1]} : vector<8x16x1200xf32> to vector<8x8x120xf32>
    %87 = arith.addf %85, %86 : vector<8x8x120xf32>
    %88 = vector.extract_strided_slice %8 {offsets = [0, 1, 600], sizes = [8, 8, 120], strides = [1, 1, 1]} : vector<8x16x1200xf32> to vector<8x8x120xf32>
    %89 = arith.addf %87, %88 : vector<8x8x120xf32>
    %90 = vector.extract_strided_slice %12 {offsets = [0, 1, 840], sizes = [8, 8, 120], strides = [1, 1, 1]} : vector<8x16x1200xf32> to vector<8x8x120xf32>
    %91 = arith.addf %89, %90 : vector<8x8x120xf32>
    %92 = vector.extract_strided_slice %16 {offsets = [0, 1, 1080], sizes = [8, 8, 120], strides = [1, 1, 1]} : vector<8x16x1200xf32> to vector<8x8x120xf32>
    %93 = arith.addf %91, %92 : vector<8x8x120xf32>
    %94 = arith.maximumf %66, %75 : vector<8x8x120xf32>
    %95 = arith.maximumf %84, %93 : vector<8x8x120xf32>
    %96 = arith.maximumf %94, %95 : vector<8x8x120xf32>
    %cst_14 = arith.constant 0.000000e+00 : f32
    %97 = vector.broadcast %cst_14 : f32 to vector<8x8x120xf32>
    %98 = arith.maximumf %96, %97 : vector<8x8x120xf32>
    %c0_15 = arith.constant 0 : index
    %c0_16 = arith.constant 0 : index
    %99 = vector.load %arg3[%c0_15, %c0_16] : memref<120x800xf32, #tpu.memory_space<vmem>>, vector<120x800xf32>
    %100 = vector.shape_cast %57 : vector<8x8x120xf32> to vector<64x120xf32>
    %cst_17 = arith.constant dense<0.000000e+00> : vector<64x800xf32>
    %101 = tpu.matmul %100, %99, %cst_17 {dimension_numbers = #tpu.dot_dimension_numbers<[1], [0], [0], [1], [0, 0, 1, 1], [], []>} : vector<64x120xf32>, vector<120x800xf32>, vector<64x800xf32> -> vector<64x800xf32>
    %102 = vector.shape_cast %101 : vector<64x800xf32> to vector<8x8x800xf32>
    %103 = vector.shape_cast %98 : vector<8x8x120xf32> to vector<64x120xf32>
    %cst_18 = arith.constant dense<0.000000e+00> : vector<64x800xf32>
    %104 = tpu.matmul %103, %99, %cst_18 {dimension_numbers = #tpu.dot_dimension_numbers<[1], [0], [0], [1], [0, 0, 1, 1], [], []>} : vector<64x120xf32>, vector<120x800xf32>, vector<64x800xf32> -> vector<64x800xf32>
    %105 = vector.shape_cast %104 : vector<64x800xf32> to vector<8x8x800xf32>
    %106 = vector.extract_strided_slice %102 {offsets = [0, 0, 0], sizes = [8, 4, 80], strides = [1, 1, 1]} : vector<8x8x800xf32> to vector<8x4x80xf32>
    %107 = vector.extract_strided_slice %105 {offsets = [0, 0, 160], sizes = [8, 4, 80], strides = [1, 1, 1]} : vector<8x8x800xf32> to vector<8x4x80xf32>
    %108 = arith.addf %106, %107 : vector<8x4x80xf32>
    %109 = vector.extract_strided_slice %102 {offsets = [0, 1, 320], sizes = [8, 4, 80], strides = [1, 1, 1]} : vector<8x8x800xf32> to vector<8x4x80xf32>
    %110 = arith.addf %108, %109 : vector<8x4x80xf32>
    %111 = vector.extract_strided_slice %105 {offsets = [0, 1, 480], sizes = [8, 4, 80], strides = [1, 1, 1]} : vector<8x8x800xf32> to vector<8x4x80xf32>
    %112 = arith.addf %110, %111 : vector<8x4x80xf32>
    %113 = vector.extract_strided_slice %102 {offsets = [0, 2, 640], sizes = [8, 4, 80], strides = [1, 1, 1]} : vector<8x8x800xf32> to vector<8x4x80xf32>
    %114 = arith.addf %112, %113 : vector<8x4x80xf32>
    %115 = vector.extract_strided_slice %102 {offsets = [0, 0, 80], sizes = [8, 4, 80], strides = [1, 1, 1]} : vector<8x8x800xf32> to vector<8x4x80xf32>
    %116 = vector.extract_strided_slice %105 {offsets = [0, 0, 240], sizes = [8, 4, 80], strides = [1, 1, 1]} : vector<8x8x800xf32> to vector<8x4x80xf32>
    %117 = arith.addf %115, %116 : vector<8x4x80xf32>
    %118 = vector.extract_strided_slice %102 {offsets = [0, 1, 400], sizes = [8, 4, 80], strides = [1, 1, 1]} : vector<8x8x800xf32> to vector<8x4x80xf32>
    %119 = arith.addf %117, %118 : vector<8x4x80xf32>
    %120 = vector.extract_strided_slice %105 {offsets = [0, 1, 560], sizes = [8, 4, 80], strides = [1, 1, 1]} : vector<8x8x800xf32> to vector<8x4x80xf32>
    %121 = arith.addf %119, %120 : vector<8x4x80xf32>
    %122 = vector.extract_strided_slice %102 {offsets = [0, 2, 720], sizes = [8, 4, 80], strides = [1, 1, 1]} : vector<8x8x800xf32> to vector<8x4x80xf32>
    %123 = arith.addf %121, %122 : vector<8x4x80xf32>
    %124 = vector.extract_strided_slice %105 {offsets = [0, 0, 0], sizes = [8, 4, 80], strides = [1, 1, 1]} : vector<8x8x800xf32> to vector<8x4x80xf32>
    %125 = vector.extract_strided_slice %102 {offsets = [0, 1, 160], sizes = [8, 4, 80], strides = [1, 1, 1]} : vector<8x8x800xf32> to vector<8x4x80xf32>
    %126 = arith.addf %124, %125 : vector<8x4x80xf32>
    %127 = vector.extract_strided_slice %105 {offsets = [0, 1, 320], sizes = [8, 4, 80], strides = [1, 1, 1]} : vector<8x8x800xf32> to vector<8x4x80xf32>
    %128 = arith.addf %126, %127 : vector<8x4x80xf32>
    %129 = vector.extract_strided_slice %102 {offsets = [0, 2, 480], sizes = [8, 4, 80], strides = [1, 1, 1]} : vector<8x8x800xf32> to vector<8x4x80xf32>
    %130 = arith.addf %128, %129 : vector<8x4x80xf32>
    %131 = vector.extract_strided_slice %105 {offsets = [0, 2, 640], sizes = [8, 4, 80], strides = [1, 1, 1]} : vector<8x8x800xf32> to vector<8x4x80xf32>
    %132 = arith.addf %130, %131 : vector<8x4x80xf32>
    %133 = vector.extract_strided_slice %105 {offsets = [0, 0, 80], sizes = [8, 4, 80], strides = [1, 1, 1]} : vector<8x8x800xf32> to vector<8x4x80xf32>
    %134 = vector.extract_strided_slice %102 {offsets = [0, 1, 240], sizes = [8, 4, 80], strides = [1, 1, 1]} : vector<8x8x800xf32> to vector<8x4x80xf32>
    %135 = arith.addf %133, %134 : vector<8x4x80xf32>
    %136 = vector.extract_strided_slice %105 {offsets = [0, 1, 400], sizes = [8, 4, 80], strides = [1, 1, 1]} : vector<8x8x800xf32> to vector<8x4x80xf32>
    %137 = arith.addf %135, %136 : vector<8x4x80xf32>
    %138 = vector.extract_strided_slice %102 {offsets = [0, 2, 560], sizes = [8, 4, 80], strides = [1, 1, 1]} : vector<8x8x800xf32> to vector<8x4x80xf32>
    %139 = arith.addf %137, %138 : vector<8x4x80xf32>
    %140 = vector.extract_strided_slice %105 {offsets = [0, 2, 720], sizes = [8, 4, 80], strides = [1, 1, 1]} : vector<8x8x800xf32> to vector<8x4x80xf32>
    %141 = arith.addf %139, %140 : vector<8x4x80xf32>
    %142 = arith.maximumf %114, %123 : vector<8x4x80xf32>
    %143 = arith.maximumf %132, %141 : vector<8x4x80xf32>
    %144 = arith.maximumf %142, %143 : vector<8x4x80xf32>
    %c0_19 = arith.constant 0 : index
    %c0_20 = arith.constant 0 : index
    %c0_21 = arith.constant 0 : index
    %145 = vector.load %arg10[%c0_19, %c0_20, %c0_21] : memref<8x4x80xf32, #tpu.memory_space<vmem>>, vector<8x4x80xf32>
    tpu.vector_store %arg10[%c0_19, %c0_20, %c0_21], %144 {strides = array<i32>} : memref<8x4x80xf32, #tpu.memory_space<vmem>>, vector<8x4x80xf32>,
    %c0_22 = arith.constant 0 : index
    %c0_23 = arith.constant 0 : index
    %c0_24 = arith.constant 0 : index
    %146 = vector.load %arg10[%c0_22, %c0_23, %c0_24] : memref<8x4x80xf32, #tpu.memory_space<vmem>>, vector<8x1x80xf32>
    %147 = vector.shape_cast %146 : vector<8x1x80xf32> to vector<8x80xf32>
    %c0_25 = arith.constant 0 : index
    %c1_26 = arith.constant 1 : index
    %c0_27 = arith.constant 0 : index
    %148 = vector.load %arg10[%c0_25, %c1_26, %c0_27] : memref<8x4x80xf32, #tpu.memory_space<vmem>>, vector<8x1x80xf32>
    %149 = vector.shape_cast %148 : vector<8x1x80xf32> to vector<8x80xf32>
    %c0_28 = arith.constant 0 : index
    %c2_29 = arith.constant 2 : index
    %c0_30 = arith.constant 0 : index
    %150 = vector.load %arg10[%c0_28, %c2_29, %c0_30] : memref<8x4x80xf32, #tpu.memory_space<vmem>>, vector<8x1x80xf32>
    %151 = vector.shape_cast %150 : vector<8x1x80xf32> to vector<8x80xf32>
    %c0_31 = arith.constant 0 : index
    %c3_32 = arith.constant 3 : index
    %c0_33 = arith.constant 0 : index
    %152 = vector.load %arg10[%c0_31, %c3_32, %c0_33] : memref<8x4x80xf32, #tpu.memory_space<vmem>>, vector<8x1x80xf32>
    %153 = vector.shape_cast %152 : vector<8x1x80xf32> to vector<8x80xf32>
    %154 = tpu.concatenate %147, %149, %151, %153 in 1 : vector<8x80xf32>, vector<8x80xf32>, vector<8x80xf32>, vector<8x80xf32> -> vector<8x320xf32>
    %c0_34 = arith.constant 0 : index
    %c0_35 = arith.constant 0 : index
    %155 = vector.load %arg4[%c0_34, %c0_35] : memref<1x320xf32, #tpu.memory_space<vmem>>, vector<1x320xf32>
    %156 = vector.broadcast %155 : vector<1x320xf32> to vector<8x320xf32>
    %157 = arith.addf %154, %156 : vector<8x320xf32>
    %cst_36 = arith.constant 0.000000e+00 : f32
    %158 = vector.broadcast %cst_36 : f32 to vector<8x320xf32>
    %159 = arith.maximumf %157, %158 : vector<8x320xf32>
    %c0_37 = arith.constant 0 : index
    %c0_38 = arith.constant 0 : index
    %160 = vector.load %arg5[%c0_37, %c0_38] : memref<320x50xf32, #tpu.memory_space<vmem>>, vector<320x50xf32>
    %cst_39 = arith.constant dense<0.000000e+00> : vector<8x50xf32>
    %161 = tpu.matmul %159, %160, %cst_39 {dimension_numbers = #tpu.dot_dimension_numbers<[1], [0], [0], [1], [0, 0, 1, 1], [], []>} : vector<8x320xf32>, vector<320x50xf32>, vector<8x50xf32> -> vector<8x50xf32>
    %c0_40 = arith.constant 0 : index
    %c0_41 = arith.constant 0 : index
    %162 = vector.load %arg6[%c0_40, %c0_41] : memref<1x50xf32, #tpu.memory_space<vmem>>, vector<1x50xf32>
    %163 = vector.broadcast %162 : vector<1x50xf32> to vector<8x50xf32>
    %164 = arith.addf %161, %163 : vector<8x50xf32>
    %cst_42 = arith.constant 0.000000e+00 : f32
    %165 = vector.broadcast %cst_42 : f32 to vector<8x50xf32>
    %166 = arith.maximumf %164, %165 : vector<8x50xf32>
    %c0_43 = arith.constant 0 : index
    %c0_44 = arith.constant 0 : index
    %167 = vector.load %arg7[%c0_43, %c0_44] : memref<50x10xf32, #tpu.memory_space<vmem>>, vector<50x10xf32>
    %cst_45 = arith.constant dense<0.000000e+00> : vector<8x10xf32>
    %168 = tpu.matmul %166, %167, %cst_45 {dimension_numbers = #tpu.dot_dimension_numbers<[1], [0], [0], [1], [0, 0, 1, 1], [], []>} : vector<8x50xf32>, vector<50x10xf32>, vector<8x10xf32> -> vector<8x10xf32>
    %c0_46 = arith.constant 0 : index
    %c0_47 = arith.constant 0 : index
    %169 = vector.load %arg8[%c0_46, %c0_47] : memref<1x10xf32, #tpu.memory_space<vmem>>, vector<1x10xf32>
    %170 = vector.broadcast %169 : vector<1x10xf32> to vector<8x10xf32>
    %171 = arith.addf %168, %170 : vector<8x10xf32>
    %cst_48 = arith.constant dense<0xFF800000> : vector<8xf32>
    %172 = vector.multi_reduction <maximumf>, %171, %cst_48 [1] : vector<8x10xf32> to vector<8xf32>
    %173 = vector.shape_cast %172 : vector<8xf32> to vector<8x1xf32>
    %174 = vector.broadcast %173 : vector<8x1xf32> to vector<8x10xf32>
    %175 = arith.subf %171, %174 : vector<8x10xf32>
    %176 = math.exp %175 : vector<8x10xf32>
    %cst_49 = arith.constant dense<0.000000e+00> : vector<8xf32>
    %177 = vector.multi_reduction <add>, %176, %cst_49 [1] : vector<8x10xf32> to vector<8xf32>
    %178 = vector.shape_cast %177 : vector<8xf32> to vector<8x1xf32>
    %179 = math.log %178 : vector<8x1xf32>
    %180 = vector.broadcast %179 : vector<8x1xf32> to vector<8x10xf32>
    %181 = arith.subf %175, %180 : vector<8x10xf32>
    %c0_50 = arith.constant 0 : index
    %c0_51 = arith.constant 0 : index
    %182 = vector.load %arg9[%c0_50, %c0_51] : memref<8x10xf32, #tpu.memory_space<vmem>>, vector<8x10xf32>
    tpu.vector_store %arg9[%c0_50, %c0_51], %181 {strides = array<i32>} : memref<8x10xf32, #tpu.memory_space<vmem>>, vector<8x10xf32>,
    return
  }
  func.func @transform_0(%arg0: i32) -> (i32, i32, i32) {
    %c0_i32 = arith.constant 0 : i32
    %c0_i32_0 = arith.constant 0 : i32
    %c0_i32_1 = arith.constant 0 : i32
    return %c0_i32, %arg0, %c0_i32_0 : i32, i32, i32
  }
  func.func @transform_1(%arg0: i32) -> (i32, i32) {
    %c0_i32 = arith.constant 0 : i32
    %c0_i32_0 = arith.constant 0 : i32
    %c0_i32_1 = arith.constant 0 : i32
    return %c0_i32, %c0_i32_0 : i32, i32
  }
  func.func @transform_2(%arg0: i32) -> (i32, i32) {
    %c0_i32 = arith.constant 0 : i32
    %c0_i32_0 = arith.constant 0 : i32
    %c0_i32_1 = arith.constant 0 : i32
    return %c0_i32, %c0_i32_0 : i32, i32
  }
  func.func @transform_3(%arg0: i32) -> (i32, i32) {
    %c0_i32 = arith.constant 0 : i32
    %c0_i32_0 = arith.constant 0 : i32
    %c0_i32_1 = arith.constant 0 : i32
    return %c0_i32, %c0_i32_0 : i32, i32
  }
  func.func @transform_4(%arg0: i32) -> (i32, i32) {
    %c0_i32 = arith.constant 0 : i32
    %c0_i32_0 = arith.constant 0 : i32
    %c0_i32_1 = arith.constant 0 : i32
    return %c0_i32, %c0_i32_0 : i32, i32
  }
  func.func @transform_5(%arg0: i32) -> (i32, i32) {
    %c0_i32 = arith.constant 0 : i32
    %c0_i32_0 = arith.constant 0 : i32
    %c0_i32_1 = arith.constant 0 : i32
    return %c0_i32, %c0_i32_0 : i32, i32
  }
  func.func @transform_6(%arg0: i32) -> (i32, i32) {
    %c0_i32 = arith.constant 0 : i32
    %c0_i32_0 = arith.constant 0 : i32
    %c0_i32_1 = arith.constant 0 : i32
    return %c0_i32, %c0_i32_0 : i32, i32
  }
  func.func @transform_7(%arg0: i32) -> (i32, i32) {
    %c0_i32 = arith.constant 0 : i32
    %c0_i32_0 = arith.constant 0 : i32
    %c0_i32_1 = arith.constant 0 : i32
    return %c0_i32, %c0_i32_0 : i32, i32
  }
  func.func @transform_8(%arg0: i32) -> (i32, i32) {
    %c0_i32 = arith.constant 0 : i32
    %c0_i32_0 = arith.constant 0 : i32
    return %arg0, %c0_i32 : i32, i32
  }
}

</mosaic_0001>

<llo_original>
// kernel: mnist_comparator_forward.1
$region0: #{mnist_comparator_forward.1}
  #allocation0 [shape = 'u32[]', space=smem, size = 0x4, offset = 0x4, fixed_abs, tag = 'smem constant byte address 0x4 - core index']
  #allocation1 [shape = 'u32[144,128]{1,0:T(1,128)}', space=vmem, size = 0x12000, scoped, tag = 'internal scratch']
  #allocation2 [shape = 'f32[8,4,80]{2,1,0:T(4,128)}', space=vmem, size = 0x4000, scoped, tag = 'scratch operand']
  %s0 = inlined_call_operand.vmem [shape: f32[4,128,29], index: 0, kind: input, shape index: {}]
  %s1 = inlined_call_operand.vmem [shape: f32[29,1200], index: 1, kind: input, shape index: {}]
  %s2 = inlined_call_operand.vmem [shape: f32[120,800], index: 2, kind: input, shape index: {}]
  %s3 = inlined_call_operand.vmem [shape: f32[1,320], index: 3, kind: input, shape index: {}]
  %s4 = inlined_call_operand.vmem [shape: f32[320,50], index: 4, kind: input, shape index: {}]
  %s5 = inlined_call_operand.vmem [shape: f32[1,50], index: 5, kind: input, shape index: {}]
  %s6 = inlined_call_operand.vmem [shape: f32[50,10], index: 6, kind: input, shape index: {}]
  %s7 = inlined_call_operand.vmem [shape: f32[1,10], index: 7, kind: input, shape index: {}]
  %s8 = inlined_call_operand.vmem [shape: f32[8,10], index: 8, kind: output, shape index: {}]
  %s9 = sld [smem:[#allocation0]]
  $region42: #{mnist_comparator_forward.1} parent=0
    _
  %s11 = ssub.s32 1, %s9
  %s12 = scalar_select 0, %s11, %s9
  // Predicated region
  $region2: #{mnist_comparator_forward.1} parent=0 // pred_check
    _
  $region3: #{mnist_comparator_forward.1} parent=0 // pred_check_branch
    %14 = sbr.rel (0) target = $region5
  $region4: #{mnist_comparator_forward.1} parent=0 // pred_region
    _
  $region5: #{mnist_comparator_forward.1} parent=0 // pred_fallthru
    _
  // Predicated region
  $region6: #{mnist_comparator_forward.1} parent=0 // pred_check
    _
  $region7: #{mnist_comparator_forward.1} parent=0 // pred_check_branch
    %16 = sbr.rel (0) target = $region9
  $region8: #{mnist_comparator_forward.1} parent=0 // pred_region
    _
  $region9: #{mnist_comparator_forward.1} parent=0 // pred_fallthru
    _
  // Predicated region
  $region10: #{mnist_comparator_forward.1} parent=0 // pred_check
    _
  $region11: #{mnist_comparator_forward.1} parent=0 // pred_check_branch
    %18 = sbr.rel (0) target = $region13
  $region12: #{mnist_comparator_forward.1} parent=0 // pred_region
    _
  $region13: #{mnist_comparator_forward.1} parent=0 // pred_fallthru
    _
  // Predicated region
  $region14: #{mnist_comparator_forward.1} parent=0 // pred_check
    _
  $region15: #{mnist_comparator_forward.1} parent=0 // pred_check_branch
    %20 = sbr.rel (0) target = $region17
  $region16: #{mnist_comparator_forward.1} parent=0 // pred_region
    _
  $region17: #{mnist_comparator_forward.1} parent=0 // pred_fallthru
    _
  // Predicated region
  $region18: #{mnist_comparator_forward.1} parent=0 // pred_check
    _
  $region19: #{mnist_comparator_forward.1} parent=0 // pred_check_branch
    %22 = sbr.rel (0) target = $region21
  $region20: #{mnist_comparator_forward.1} parent=0 // pred_region
    _
  $region21: #{mnist_comparator_forward.1} parent=0 // pred_fallthru
    _
  // Predicated region
  $region22: #{mnist_comparator_forward.1} parent=0 // pred_check
    _
  $region23: #{mnist_comparator_forward.1} parent=0 // pred_check_branch
    %24 = sbr.rel (0) target = $region25
  $region24: #{mnist_comparator_forward.1} parent=0 // pred_region
    _
  $region25: #{mnist_comparator_forward.1} parent=0 // pred_fallthru
    _
  // Predicated region
  $region26: #{mnist_comparator_forward.1} parent=0 // pred_check
    _
  $region27: #{mnist_comparator_forward.1} parent=0 // pred_check_branch
    %26 = sbr.rel (0) target = $region29
  $region28: #{mnist_comparator_forward.1} parent=0 // pred_region
    _
  $region29: #{mnist_comparator_forward.1} parent=0 // pred_fallthru
    _
  // Predicated region
  $region30: #{mnist_comparator_forward.1} parent=0 // pred_check
    _
  $region31: #{mnist_comparator_forward.1} parent=0 // pred_check_branch
    %28 = sbr.rel (0) target = $region33
  $region32: #{mnist_comparator_forward.1} parent=0 // pred_region
    _
  $region33: #{mnist_comparator_forward.1} parent=0 // pred_fallthru
    _
  %v29 = vld [vmem:[%s1] sm:$0xff]
  %v30 = vld [vmem:[%s1 + $0x8] sm:$0xff]
  %v31 = vld [vmem:[%s1 + $0x10] sm:$0xff]
  %v32 = vld [vmem:[%s1 + $0x18] sm:$0xff]
  %v33 = vld [vmem:[%s1 + $0x20] sm:$0xff]
  %v34 = vld [vmem:[%s1 + $0x28] sm:$0xff]
  %v35 = vld [vmem:[%s1 + $0x30] sm:$0xff]
  %v36 = vld [vmem:[%s1 + $0x38] sm:$0xff]
  %v37 = vld [vmem:[%s1 + $0x40] sm:$0xff]
  %v38 = vld [vmem:[%s1 + $0x48] sm:$0xff]
  %v39 = vld [vmem:[%s1 + $0x50] sm:$0xff]
  %v40 = vld [vmem:[%s1 + $0x58] sm:$0xff]
  %v41 = vld [vmem:[%s1 + $0x60] sm:$0xff]
  %v42 = vld [vmem:[%s1 + $0x68] sm:$0xff]
  %v43 = vld [vmem:[%s1 + $0x70] sm:$0xff]
  %v44 = vld [vmem:[%s1 + $0x78] sm:$0xff]
  %v45 = vld [vmem:[%s1 + $0x80] sm:$0xff]
  %v46 = vld [vmem:[%s1 + $0x88] sm:$0xff]
  %v47 = vld [vmem:[%s1 + $0x90] sm:$0xff]
  %v48 = vld [vmem:[%s1 + $0x98] sm:$0xff]
  %v49 = vld [vmem:[%s1 + $0xa0] sm:$0xff]
  %v50 = vld [vmem:[%s1 + $0xa8] sm:$0xff]
  %v51 = vld [vmem:[%s1 + $0xb0] sm:$0xff]
  %v52 = vld [vmem:[%s1 + $0xb8] sm:$0xff]
  %v53 = vld [vmem:[%s1 + $0xc0] sm:$0xff]
  %v54 = vld [vmem:[%s1 + $0xc8] sm:$0xff]
  %v55 = vld [vmem:[%s1 + $0xd0] sm:$0xff]
  %v56 = vld [vmem:[%s1 + $0xd8] sm:$0xff]
  %v57 = vld [vmem:[%s1 + $0xe0] sm:$0xff]
  %v58 = vld [vmem:[%s1 + $0xe8] sm:$0xff]
  %v59 = vld [vmem:[%s1 + $0xf0] sm:$0x1f]
  %v60 = vld [vmem:[%s1 + $0xf8] sm:$0x1f]
  %v61 = vld [vmem:[%s1 + $0x100] sm:$0x1f]
  %v62 = vld [vmem:[%s1 + $0x108] sm:$0x1f]
  %v63 = vld [vmem:[%s1 + $0x110] sm:$0x1f]
  %v64 = vld [vmem:[%s1 + $0x118] sm:$0x1f]
  %v65 = vld [vmem:[%s1 + $0x120] sm:$0x1f]
  %v66 = vld [vmem:[%s1 + $0x128] sm:$0x1f]
  %v67 = vld [vmem:[%s1 + $0x130] sm:$0x1f]
  %v68 = vld [vmem:[%s1 + $0x138] sm:$0x1f]
  %v69 = vld [vmem:[%s0] sm:$0xff]
  %v70 = vld [vmem:[%s0 + $0x8] sm:$0xff]
  %v71 = vld [vmem:[%s0 + $0x10] sm:$0xff]
  %v72 = vld [vmem:[%s0 + $0x18] sm:$0xff]
  %v73 = vld [vmem:[%s0 + $0x20] sm:$0xff]
  %v74 = vld [vmem:[%s0 + $0x28] sm:$0xff]
  %v75 = vld [vmem:[%s0 + $0x30] sm:$0xff]
  %v76 = vld [vmem:[%s0 + $0x38] sm:$0xff]
  %v77 = vld [vmem:[%s0 + $0x40] sm:$0xff]
  %v78 = vld [vmem:[%s0 + $0x48] sm:$0xff]
  %v79 = vld [vmem:[%s0 + $0x50] sm:$0xff]
  %v80 = vld [vmem:[%s0 + $0x58] sm:$0xff]
  %v81 = vld [vmem:[%s0 + $0x60] sm:$0xff]
  %v82 = vld [vmem:[%s0 + $0x68] sm:$0xff]
  %v83 = vld [vmem:[%s0 + $0x70] sm:$0xff]
  %v84 = vld [vmem:[%s0 + $0x78] sm:$0xff]
  %vm85 = vcmask 236544
  %v87 = vsel %vm85, %v69, 0
  %v90 = vsel %vm85, %v70, 0
  %v93 = vsel %vm85, %v71, 0
  %v96 = vsel %vm85, %v72, 0
  %v99 = vsel %vm85, %v73, 0
  %v102 = vsel %vm85, %v74, 0
  %v105 = vsel %vm85, %v75, 0
  %v108 = vsel %vm85, %v76, 0
  %v111 = vsel %vm85, %v77, 0
  %v114 = vsel %vm85, %v78, 0
  %v117 = vsel %vm85, %v79, 0
  %v120 = vsel %vm85, %v80, 0
  %v123 = vsel %vm85, %v81, 0
  %v126 = vsel %vm85, %v82, 0
  %v129 = vsel %vm85, %v83, 0
  %v132 = vsel %vm85, %v84, 0
  %vm134 = vcmask 1044480
  %v136 = vsel %vm134, %v59, 0
  %v139 = vsel %vm134, %v60, 0
  %v142 = vsel %vm134, %v61, 0
  %v145 = vsel %vm134, %v62, 0
  %v148 = vsel %vm134, %v63, 0
  %v151 = vsel %vm134, %v64, 0
  %v154 = vsel %vm134, %v65, 0
  %v157 = vsel %vm134, %v66, 0
  %v160 = vsel %vm134, %v67, 0
  %v163 = vsel %vm134, %v68, 0
  %165 = vmatprep.subr.mxu0 %v30
  %166 = vmatpush1.msra.mxu0 %v29
  %167 = vmatprep.subr.mxu0 %v40
  %168 = vmatpush1.msra.mxu0 %v39
  %169 = vmatprep.subr.mxu0 %v50
  %170 = vmatpush1.msra.mxu0 %v49
  %171 = vmatprep.subr.mxu0 %v139
  %172 = vmatpush1.msra.mxu0 %v136
  %173 = vmatprep.subr.mxu0 0.0
  %174 = vmatpush1.msra.mxu0 0.0
  %175 = vmatprep.subr.mxu0 0.0
  %176 = vmatpush1.msra.mxu0 0.0
  %177 = vmatprep.subr.mxu0 0.0
  %178 = vmatpush1.msra.mxu0 0.0
  %179 = vmatprep.subr.mxu0 0.0
  %180 = vmatpush1.msra.mxu0 0.0
  %181 = vmatprep.subr.mxu0 0.0
  %182 = vmatpush1.msra.mxu0 0.0
  %183 = vmatprep.subr.mxu0 0.0
  %184 = vmatpush1.msra.mxu0 0.0
  %185 = vmatprep.subr.mxu0 0.0
  %186 = vmatpush1.msra.mxu0 0.0
  %187 = vmatprep.subr.mxu0 0.0
  %188 = vmatpush1.msra.mxu0 0.0
  %189 = vmatprep.subr.mxu0 0.0
  %190 = vmatpush1.msra.mxu0 0.0
  %191 = vmatprep.subr.mxu0 0.0
  %192 = vmatpush1.msra.mxu0 0.0
  %193 = vmatprep.subr.mxu0 0.0
  %194 = vmatpush1.msra.mxu0 0.0
  %195 = vmatprep.subr.mxu0 0.0
  %196 = vmatpush1.msra.mxu0 0.0
  %197 = vmatprep.subr.mxu0 0.0
  %198 = vmatpush1.msra.mxu0 0.0
  %199 = vmatprep.subr.mxu0 0.0
  %200 = vmatpush1.msra.mxu0 0.0
  %201 = vmatprep.subr.mxu0 0.0
  %202 = vmatpush1.msra.mxu0 0.0
  %203 = vmatprep.subr.mxu0 0.0
  %204 = vmatpush1.msra.mxu0 0.0
  %205 = vmatprep.subr.mxu0 0.0
  %206 = vmatpush1.msra.mxu0 0.0
  %207 = vmatprep.subr.mxu0 0.0
  %208 = vmatpush1.msra.mxu0 0.0
  %209 = vmatprep.subr.mxu0 0.0
  %210 = vmatpush1.msra.mxu0 0.0
  %211 = vmatprep.subr.mxu0 0.0
  %212 = vmatpush1.msra.mxu0 0.0
  %213 = vmatprep.subr.mxu0 0.0
  %214 = vmatpush1.msra.mxu0 0.0
  %215 = vmatprep.subr.mxu0 0.0
  %216 = vmatpush1.msra.mxu0 0.0
  %217 = vmatprep.subr.mxu0 0.0
  %218 = vmatpush1.msra.mxu0 0.0
  %219 = vmatprep.subr.mxu0 0.0
  %220 = vmatpush1.msra.mxu0 0.0
  %221 = vmatprep.subr.mxu0 0.0
  %222 = vmatpush1.msra.mxu0 0.0
  %223 = vmatprep.subr.mxu0 0.0
  %224 = vmatpush1.msra.mxu0 0.0
  %225 = vmatprep.subr.mxu0 0.0
  %226 = vmatpush1.msra.mxu0 0.0
  %227 = vmatprep.subr.mxu0 0.0
  %228 = vmatpush1.msra.mxu0 0.0
  %229 = vmatprep.mubr.f32.mxu0 0.0
  %230 = vmatmul.mubr.f32.gmra.mrb[0].mxu0 %v87
  %v231 = vpop.f32.mrb[0].mxu0
  %v232 = vadd.f32 0.0, %v231
  %v233 = vpop.f32.mrb[0].mxu0
  %v234 = vadd.f32 0.0, %v233
  %235 = vmatprep.mubr.f32.mxu0 0.0
  %236 = vmatmul.mubr.f32.gmra.mrb[0].mxu0 %v90
  %v237 = vpop.f32.mrb[0].mxu0
  %v238 = vpop.f32.mrb[0].mxu0
  %v239 = vadd.f32 0.0, %v238
  %240 = vmatprep.mubr.f32.mxu0 0.0
  %241 = vmatmul.mubr.f32.gmra.mrb[0].mxu0 %v93
  %v242 = vpop.f32.mrb[0].mxu0
  %v243 = vadd.f32 0.0, %v242
  %v244 = vpop.f32.mrb[0].mxu0
  %v245 = vadd.f32 0.0, %v244
  %246 = vmatprep.mubr.f32.mxu0 0.0
  %247 = vmatmul.mubr.f32.gmra.mrb[0].mxu0 %v96
  %v248 = vpop.f32.mrb[0].mxu0
  %v249 = vpop.f32.mrb[0].mxu0
  %v250 = vadd.f32 0.0, %v249
  %251 = vmatprep.mubr.f32.mxu0 0.0
  %252 = vmatmul.mubr.f32.gmra.mrb[0].mxu0 %v99
  %v253 = vpop.f32.mrb[0].mxu0
  %v254 = vadd.f32 0.0, %v253
  %v255 = vpop.f32.mrb[0].mxu0
  %v256 = vadd.f32 0.0, %v255
  %257 = vmatprep.mubr.f32.mxu0 0.0
  %258 = vmatmul.mubr.f32.gmra.mrb[0].mxu0 %v102
  %v259 = vpop.f32.mrb[0].mxu0
  %v260 = vpop.f32.mrb[0].mxu0
  %v261 = vadd.f32 0.0, %v260
  %262 = vmatprep.mubr.f32.mxu0 0.0
  %263 = vmatmul.mubr.f32.gmra.mrb[0].mxu0 %v105
  %v264 = vpop.f32.mrb[0].mxu0
  %v265 = vadd.f32 0.0, %v264
  %v266 = vpop.f32.mrb[0].mxu0
  %v267 = vadd.f32 0.0, %v266
  %268 = vmatprep.mubr.f32.mxu0 0.0
  %269 = vmatmul.mubr.f32.gmra.mrb[0].mxu0 %v108
  %v270 = vpop.f32.mrb[0].mxu0
  %v271 = vpop.f32.mrb[0].mxu0
  %v272 = vadd.f32 0.0, %v271
  %273 = vmatprep.mubr.f32.mxu0 0.0
  %274 = vmatmul.mubr.f32.gmra.mrb[0].mxu0 %v111
  %v275 = vpop.f32.mrb[0].mxu0
  %v276 = vadd.f32 0.0, %v275
  %v277 = vpop.f32.mrb[0].mxu0
  %v278 = vadd.f32 0.0, %v277
  %279 = vmatprep.mubr.f32.mxu0 0.0
  %280 = vmatmul.mubr.f32.gmra.mrb[0].mxu0 %v114
  %v281 = vpop.f32.mrb[0].mxu0
  %v282 = vpop.f32.mrb[0].mxu0
  %v283 = vadd.f32 0.0, %v282
  %284 = vmatprep.mubr.f32.mxu0 0.0
  %285 = vmatmul.mubr.f32.gmra.mrb[0].mxu0 %v117
  %v286 = vpop.f32.mrb[0].mxu0
  %v287 = vadd.f32 0.0, %v286
  %v288 = vpop.f32.mrb[0].mxu0
  %v289 = vadd.f32 0.0, %v288
  %290 = vmatprep.mubr.f32.mxu0 0.0
  %291 = vmatmul.mubr.f32.gmra.mrb[0].mxu0 %v120
  %v292 = vpop.f32.mrb[0].mxu0
  %v293 = vpop.f32.mrb[0].mxu0
  %v294 = vadd.f32 0.0, %v293
  %295 = vmatprep.mubr.f32.mxu0 0.0
  %296 = vmatmul.mubr.f32.gmra.mrb[0].mxu0 %v123
  %v297 = vpop.f32.mrb[0].mxu0
  %v298 = vadd.f32 0.0, %v297
  %v299 = vpop.f32.mrb[0].mxu0
  %v300 = vadd.f32 0.0, %v299
  %301 = vmatprep.mubr.f32.mxu0 0.0
  %302 = vmatmul.mubr.f32.gmra.mrb[0].mxu0 %v126
  %v303 = vpop.f32.mrb[0].mxu0
  %v304 = vpop.f32.mrb[0].mxu0
  %v305 = vadd.f32 0.0, %v304
  %306 = vmatprep.mubr.f32.mxu0 0.0
  %307 = vmatmul.mubr.f32.gmra.mrb[0].mxu0 %v129
  %v308 = vpop.f32.mrb[0].mxu0
  %v309 = vadd.f32 0.0, %v308
  %v310 = vpop.f32.mrb[0].mxu0
  %v311 = vadd.f32 0.0, %v310
  %312 = vmatprep.mubr.f32.mxu0 0.0
  %313 = vmatmul.mubr.f32.gmra.mrb[0].mxu0 %v132
  %v314 = vpop.f32.mrb[0].mxu0
  %v315 = vpop.f32.mrb[0].mxu0
  %v316 = vadd.f32 0.0, %v315
  %317 = vdwg.mxu0
  %318 = vmatprep.subr.mxu0 %v32
  %319 = vmatpush1.msra.mxu0 %v31
  %320 = vmatprep.subr.mxu0 %v42
  %321 = vmatpush1.msra.mxu0 %v41
  %322 = vmatprep.subr.mxu0 %v52
  %323 = vmatpush1.msra.mxu0 %v51
  %324 = vmatprep.subr.mxu0 %v145
  %325 = vmatpush1.msra.mxu0 %v142
  %326 = vmatprep.subr.mxu0 0.0
  %327 = vmatpush1.msra.mxu0 0.0
  %328 = vmatprep.subr.mxu0 0.0
  %329 = vmatpush1.msra.mxu0 0.0
  %330 = vmatprep.subr.mxu0 0.0
  %331 = vmatpush1.msra.mxu0 0.0
  %332 = vmatprep.subr.mxu0 0.0
  %333 = vmatpush1.msra.mxu0 0.0
  %334 = vmatprep.subr.mxu0 0.0
  %335 = vmatpush1.msra.mxu0 0.0
  %336 = vmatprep.subr.mxu0 0.0
  %337 = vmatpush1.msra.mxu0 0.0
  %338 = vmatprep.subr.mxu0 0.0
  %339 = vmatpush1.msra.mxu0 0.0
  %340 = vmatprep.subr.mxu0 0.0
  %341 = vmatpush1.msra.mxu0 0.0
  %342 = vmatprep.subr.mxu0 0.0
  %343 = vmatpush1.msra.mxu0 0.0
  %344 = vmatprep.subr.mxu0 0.0
  %345 = vmatpush1.msra.mxu0 0.0
  %346 = vmatprep.subr.mxu0 0.0
  %347 = vmatpush1.msra.mxu0 0.0
  %348 = vmatprep.subr.mxu0 0.0
  %349 = vmatpush1.msra.mxu0 0.0
  %350 = vmatprep.subr.mxu0 0.0
  %351 = vmatpush1.msra.mxu0 0.0
  %352 = vmatprep.subr.mxu0 0.0
  %353 = vmatpush1.msra.mxu0 0.0
  %354 = vmatprep.subr.mxu0 0.0
  %355 = vmatpush1.msra.mxu0 0.0
  %356 = vmatprep.subr.mxu0 0.0
  %357 = vmatpush1.msra.mxu0 0.0
  %358 = vmatprep.subr.mxu0 0.0
  %359 = vmatpush1.msra.mxu0 0.0
  %360 = vmatprep.subr.mxu0 0.0
  %361 = vmatpush1.msra.mxu0 0.0
  %362 = vmatprep.subr.mxu0 0.0
  %363 = vmatpush1.msra.mxu0 0.0
  %364 = vmatprep.subr.mxu0 0.0
  %365 = vmatpush1.msra.mxu0 0.0
  %366 = vmatprep.subr.mxu0 0.0
  %367 = vmatpush1.msra.mxu0 0.0
  %368 = vmatprep.subr.mxu0 0.0
  %369 = vmatpush1.msra.mxu0 0.0
  %370 = vmatprep.subr.mxu0 0.0
  %371 = vmatpush1.msra.mxu0 0.0
  %372 = vmatprep.subr.mxu0 0.0
  %373 = vmatpush1.msra.mxu0 0.0
  %374 = vmatprep.subr.mxu0 0.0
  %375 = vmatpush1.msra.mxu0 0.0
  %376 = vmatprep.subr.mxu0 0.0
  %377 = vmatpush1.msra.mxu0 0.0
  %378 = vmatprep.subr.mxu0 0.0
  %379 = vmatpush1.msra.mxu0 0.0
  %380 = vmatprep.subr.mxu0 0.0
  %381 = vmatpush1.msra.mxu0 0.0
  %382 = vmatprep.mubr.f32.mxu0 0.0
  %383 = vmatmul.mubr.f32.gmra.mrb[0].mxu0 %v87
  %v384 = vpop.f32.mrb[0].mxu0
  %v385 = vadd.f32 0.0, %v384
  %v386 = vpop.f32.mrb[0].mxu0
  %v387 = vadd.f32 0.0, %v386
  %388 = vmatprep.mubr.f32.mxu0 0.0
  %389 = vmatmul.mubr.f32.gmra.mrb[0].mxu0 %v90
  %v390 = vpop.f32.mrb[0].mxu0
  %v391 = vadd.f32 0.0, %v390
  %v392 = vpop.f32.mrb[0].mxu0
  %v393 = vadd.f32 0.0, %v392
  %394 = vmatprep.mubr.f32.mxu0 0.0
  %395 = vmatmul.mubr.f32.gmra.mrb[0].mxu0 %v93
  %v396 = vpop.f32.mrb[0].mxu0
  %v397 = vadd.f32 0.0, %v396
  %v398 = vpop.f32.mrb[0].mxu0
  %v399 = vadd.f32 0.0, %v398
  %400 = vmatprep.mubr.f32.mxu0 0.0
  %401 = vmatmul.mubr.f32.gmra.mrb[0].mxu0 %v96
  %v402 = vpop.f32.mrb[0].mxu0
  %v403 = vadd.f32 0.0, %v402
  %v404 = vpop.f32.mrb[0].mxu0
  %v405 = vadd.f32 0.0, %v404
  %406 = vmatprep.mubr.f32.mxu0 0.0
  %407 = vmatmul.mubr.f32.gmra.mrb[0].mxu0 %v99
  %v408 = vpop.f32.mrb[0].mxu0
  %v409 = vadd.f32 0.0, %v408
  %v410 = vpop.f32.mrb[0].mxu0
  %v411 = vadd.f32 0.0, %v410
  %412 = vmatprep.mubr.f32.mxu0 0.0
  %413 = vmatmul.mubr.f32.gmra.mrb[0].mxu0 %v102
  %v414 = vpop.f32.mrb[0].mxu0
  %v415 = vadd.f32 0.0, %v414
  %v416 = vpop.f32.mrb[0].mxu0
  %v417 = vadd.f32 0.0, %v416
  %418 = vmatprep.mubr.f32.mxu0 0.0
  %419 = vmatmul.mubr.f32.gmra.mrb[0].mxu0 %v105
  %v420 = vpop.f32.mrb[0].mxu0
  %v421 = vadd.f32 0.0, %v420
  %v422 = vpop.f32.mrb[0].mxu0
  %v423 = vadd.f32 0.0, %v422
  %424 = vmatprep.mubr.f32.mxu0 0.0
  %425 = vmatmul.mubr.f32.gmra.mrb[0].mxu0 %v108
  %v426 = vpop.f32.mrb[0].mxu0
  %v427 = vadd.f32 0.0, %v426
  %v428 = vpop.f32.mrb[0].mxu0
  %v429 = vadd.f32 0.0, %v428
  %430 = vmatprep.mubr.f32.mxu0 0.0
  %431 = vmatmul.mubr.f32.gmra.mrb[0].mxu0 %v111
  %v432 = vpop.f32.mrb[0].mxu0
  %v433 = vadd.f32 0.0, %v432
  %v434 = vpop.f32.mrb[0].mxu0
  %v435 = vadd.f32 0.0, %v434
  %436 = vmatprep.mubr.f32.mxu0 0.0
  %437 = vmatmul.mubr.f32.gmra.mrb[0].mxu0 %v114
  %v438 = vpop.f32.mrb[0].mxu0
  %v439 = vadd.f32 0.0, %v438
  %v440 = vpop.f32.mrb[0].mxu0
  %v441 = vadd.f32 0.0, %v440
  %442 = vmatprep.mubr.f32.mxu0 0.0
  %443 = vmatmul.mubr.f32.gmra.mrb[0].mxu0 %v117
  %v444 = vpop.f32.mrb[0].mxu0
  %v445 = vadd.f32 0.0, %v444
  %v446 = vpop.f32.mrb[0].mxu0
  %v447 = vadd.f32 0.0, %v446
  %448 = vmatprep.mubr.f32.mxu0 0.0
  %449 = vmatmul.mubr.f32.gmra.mrb[0].mxu0 %v120
  %v450 = vpop.f32.mrb[0].mxu0
  %v451 = vadd.f32 0.0, %v450
  %v452 = vpop.f32.mrb[0].mxu0
  %v453 = vadd.f32 0.0, %v452
  %454 = vmatprep.mubr.f32.mxu0 0.0
  %455 = vmatmul.mubr.f32.gmra.mrb[0].mxu0 %v123
  %v456 = vpop.f32.mrb[0].mxu0
  %v457 = vadd.f32 0.0, %v456
  %v458 = vpop.f32.mrb[0].mxu0
  %v459 = vadd.f32 0.0, %v458
  %460 = vmatprep.mubr.f32.mxu0 0.0
  %461 = vmatmul.mubr.f32.gmra.mrb[0].mxu0 %v126
  %v462 = vpop.f32.mrb[0].mxu0
  %v463 = vadd.f32 0.0, %v462
  %v464 = vpop.f32.mrb[0].mxu0
  %v465 = vadd.f32 0.0, %v464
  %466 = vmatprep.mubr.f32.mxu0 0.0
  %467 = vmatmul.mubr.f32.gmra.mrb[0].mxu0 %v129
  %v468 = vpop.f32.mrb[0].mxu0
  %v469 = vadd.f32 0.0, %v468
  %v470 = vpop.f32.mrb[0].mxu0
  %v471 = vadd.f32 0.0, %v470
  %472 = vmatprep.mubr.f32.mxu0 0.0
  %473 = vmatmul.mubr.f32.gmra.mrb[0].mxu0 %v132
  %v474 = vpop.f32.mrb[0].mxu0
  %v475 = vadd.f32 0.0, %v474
  %v476 = vpop.f32.mrb[0].mxu0
  %v477 = vadd.f32 0.0, %v476
  %478 = vdwg.mxu0
  %479 = vmatprep.subr.mxu0 %v34
  %480 = vmatpush1.msra.mxu0 %v33
  %481 = vmatprep.subr.mxu0 %v44
  %482 = vmatpush1.msra.mxu0 %v43
  %483 = vmatprep.subr.mxu0 %v54
  %484 = vmatpush1.msra.mxu0 %v53
  %485 = vmatprep.subr.mxu0 %v151
  %486 = vmatpush1.msra.mxu0 %v148
  %487 = vmatprep.subr.mxu0 0.0
  %488 = vmatpush1.msra.mxu0 0.0
  %489 = vmatprep.subr.mxu0 0.0
  %490 = vmatpush1.msra.mxu0 0.0
  %491 = vmatprep.subr.mxu0 0.0
  %492 = vmatpush1.msra.mxu0 0.0
  %493 = vmatprep.subr.mxu0 0.0
  %494 = vmatpush1.msra.mxu0 0.0
  %495 = vmatprep.subr.mxu0 0.0
  %496 = vmatpush1.msra.mxu0 0.0
  %497 = vmatprep.subr.mxu0 0.0
  %498 = vmatpush1.msra.mxu0 0.0
  %499 = vmatprep.subr.mxu0 0.0
  %500 = vmatpush1.msra.mxu0 0.0
  %501 = vmatprep.subr.mxu0 0.0
  %502 = vmatpush1.msra.mxu0 0.0
  %503 = vmatprep.subr.mxu0 0.0
  %504 = vmatpush1.msra.mxu0 0.0
  %505 = vmatprep.subr.mxu0 0.0
  %506 = vmatpush1.msra.mxu0 0.0
  %507 = vmatprep.subr.mxu0 0.0
  %508 = vmatpush1.msra.mxu0 0.0
  %509 = vmatprep.subr.mxu0 0.0
  %510 = vmatpush1.msra.mxu0 0.0
  %511 = vmatprep.subr.mxu0 0.0
  %512 = vmatpush1.msra.mxu0 0.0
  %513 = vmatprep.subr.mxu0 0.0
  %514 = vmatpush1.msra.mxu0 0.0
  %515 = vmatprep.subr.mxu0 0.0
  %516 = vmatpush1.msra.mxu0 0.0
  %517 = vmatprep.subr.mxu0 0.0
  %518 = vmatpush1.msra.mxu0 0.0
  %519 = vmatprep.subr.mxu0 0.0
  %520 = vmatpush1.msra.mxu0 0.0
  %521 = vmatprep.subr.mxu0 0.0
  %522 = vmatpush1.msra.mxu0 0.0
  %523 = vmatprep.subr.mxu0 0.0
  %524 = vmatpush1.msra.mxu0 0.0
  %525 = vmatprep.subr.mxu0 0.0
  %526 = vmatpush1.msra.mxu0 0.0
  %527 = vmatprep.subr.mxu0 0.0
  %528 = vmatpush1.msra.mxu0 0.0
  %529 = vmatprep.subr.mxu0 0.0
  %530 = vmatpush1.msra.mxu0 0.0
  %531 = vmatprep.subr.mxu0 0.0
  %532 = vmatpush1.msra.mxu0 0.0
  %533 = vmatprep.subr.mxu0 0.0
  %534 = vmatpush1.msra.mxu0 0.0
  %535 = vmatprep.subr.mxu0 0.0
  %536 = vmatpush1.msra.mxu0 0.0
  %537 = vmatprep.subr.mxu0 0.0
  %538 = vmatpush1.msra.mxu0 0.0
  %539 = vmatprep.subr.mxu0 0.0
  %540 = vmatpush1.msra.mxu0 0.0
  %541 = vmatprep.subr.mxu0 0.0
  %542 = vmatpush1.msra.mxu0 0.0
  %543 = vmatprep.mubr.f32.mxu0 0.0
  %544 = vmatmul.mubr.f32.gmra.mrb[0].mxu0 %v87
  %v545 = vpop.f32.mrb[0].mxu0
  %v546 = vadd.f32 0.0, %v545
  %v547 = vpop.f32.mrb[0].mxu0
  %v548 = vadd.f32 0.0, %v547
  %549 = vmatprep.mubr.f32.mxu0 0.0
  %550 = vmatmul.mubr.f32.gmra.mrb[0].mxu0 %v90
  %v551 = vpop.f32.mrb[0].mxu0
  %v552 = vadd.f32 0.0, %v551
  %v553 = vpop.f32.mrb[0].mxu0
  %v554 = vadd.f32 0.0, %v553
  %555 = vmatprep.mubr.f32.mxu0 0.0
  %556 = vmatmul.mubr.f32.gmra.mrb[0].mxu0 %v93
  %v557 = vpop.f32.mrb[0].mxu0
  %v558 = vadd.f32 0.0, %v557
  %v559 = vpop.f32.mrb[0].mxu0
  %v560 = vadd.f32 0.0, %v559
  %561 = vmatprep.mubr.f32.mxu0 0.0
  %562 = vmatmul.mubr.f32.gmra.mrb[0].mxu0 %v96
  %v563 = vpop.f32.mrb[0].mxu0
  %v564 = vadd.f32 0.0, %v563
  %v565 = vpop.f32.mrb[0].mxu0
  %v566 = vadd.f32 0.0, %v565
  %567 = vmatprep.mubr.f32.mxu0 0.0
  %568 = vmatmul.mubr.f32.gmra.mrb[0].mxu0 %v99
  %v569 = vpop.f32.mrb[0].mxu0
  %v570 = vadd.f32 0.0, %v569
  %v571 = vpop.f32.mrb[0].mxu0
  %v572 = vadd.f32 0.0, %v571
  %573 = vmatprep.mubr.f32.mxu0 0.0
  %574 = vmatmul.mubr.f32.gmra.mrb[0].mxu0 %v102
  %v575 = vpop.f32.mrb[0].mxu0
  %v576 = vadd.f32 0.0, %v575
  %v577 = vpop.f32.mrb[0].mxu0
  %v578 = vadd.f32 0.0, %v577
  %579 = vmatprep.mubr.f32.mxu0 0.0
  %580 = vmatmul.mubr.f32.gmra.mrb[0].mxu0 %v105
  %v581 = vpop.f32.mrb[0].mxu0
  %v582 = vadd.f32 0.0, %v581
  %v583 = vpop.f32.mrb[0].mxu0
  %v584 = vadd.f32 0.0, %v583
  %585 = vmatprep.mubr.f32.mxu0 0.0
  %586 = vmatmul.mubr.f32.gmra.mrb[0].mxu0 %v108
  %v587 = vpop.f32.mrb[0].mxu0
  %v588 = vadd.f32 0.0, %v587
  %v589 = vpop.f32.mrb[0].mxu0
  %v590 = vadd.f32 0.0, %v589
  %591 = vmatprep.mubr.f32.mxu0 0.0
  %592 = vmatmul.mubr.f32.gmra.mrb[0].mxu0 %v111
  %v593 = vpop.f32.mrb[0].mxu0
  %v594 = vadd.f32 0.0, %v593
  %v595 = vpop.f32.mrb[0].mxu0
  %v596 = vadd.f32 0.0, %v595
  %597 = vmatprep.mubr.f32.mxu0 0.0
  %598 = vmatmul.mubr.f32.gmra.mrb[0].mxu0 %v114
  %v599 = vpop.f32.mrb[0].mxu0
  %v600 = vadd.f32 0.0, %v599
  %v601 = vpop.f32.mrb[0].mxu0
  %v602 = vadd.f32 0.0, %v601
  %603 = vmatprep.mubr.f32.mxu0 0.0
  %604 = vmatmul.mubr.f32.gmra.mrb[0].mxu0 %v117
  %v605 = vpop.f32.mrb[0].mxu0
  %v606 = vadd.f32 0.0, %v605
  %v607 = vpop.f32.mrb[0].mxu0
  %v608 = vadd.f32 0.0, %v607
  %609 = vmatprep.mubr.f32.mxu0 0.0
  %610 = vmatmul.mubr.f32.gmra.mrb[0].mxu0 %v120
  %v611 = vpop.f32.mrb[0].mxu0
  %v612 = vadd.f32 0.0, %v611
  %v613 = vpop.f32.mrb[0].mxu0
  %v614 = vadd.f32 0.0, %v613
  %615 = vmatprep.mubr.f32.mxu0 0.0
  %616 = vmatmul.mubr.f32.gmra.mrb[0].mxu0 %v123
  %v617 = vpop.f32.mrb[0].mxu0
  %v618 = vadd.f32 0.0, %v617
  %v619 = vpop.f32.mrb[0].mxu0
  %v620 = vadd.f32 0.0, %v619
  %621 = vmatprep.mubr.f32.mxu0 0.0
  %622 = vmatmul.mubr.f32.gmra.mrb[0].mxu0 %v126
  %v623 = vpop.f32.mrb[0].mxu0
  %v624 = vadd.f32 0.0, %v623
  %v625 = vpop.f32.mrb[0].mxu0
  %v626 = vadd.f32 0.0, %v625
  %627 = vmatprep.mubr.f32.mxu0 0.0
  %628 = vmatmul.mubr.f32.gmra.mrb[0].mxu0 %v129
  %v629 = vpop.f32.mrb[0].mxu0
  %v630 = vadd.f32 0.0, %v629
  %v631 = vpop.f32.mrb[0].mxu0
  %v632 = vadd.f32 0.0, %v631
  %633 = vmatprep.mubr.f32.mxu0 0.0
  %634 = vmatmul.mubr.f32.gmra.mrb[0].mxu0 %v132
  %v635 = vpop.f32.mrb[0].mxu0
  %v636 = vadd.f32 0.0, %v635
  %v637 = vpop.f32.mrb[0].mxu0
  %v638 = vadd.f32 0.0, %v637
  %639 = vdwg.mxu0
  %640 = vmatprep.subr.mxu0 %v36
  %641 = vmatpush1.msra.mxu0 %v35
  %642 = vmatprep.subr.mxu0 %v46
  %643 = vmatpush1.msra.mxu0 %v45
  %644 = vmatprep.subr.mxu0 %v56
  %645 = vmatpush1.msra.mxu0 %v55
  %646 = vmatprep.subr.mxu0 %v157
  %647 = vmatpush1.msra.mxu0 %v154
  %648 = vmatprep.subr.mxu0 0.0
  %649 = vmatpush1.msra.mxu0 0.0
  %650 = vmatprep.subr.mxu0 0.0
  %651 = vmatpush1.msra.mxu0 0.0
  %652 = vmatprep.subr.mxu0 0.0
  %653 = vmatpush1.msra.mxu0 0.0
  %654 = vmatprep.subr.mxu0 0.0
  %655 = vmatpush1.msra.mxu0 0.0
  %656 = vmatprep.subr.mxu0 0.0
  %657 = vmatpush1.msra.mxu0 0.0
  %658 = vmatprep.subr.mxu0 0.0
  %659 = vmatpush1.msra.mxu0 0.0
  %660 = vmatprep.subr.mxu0 0.0
  %661 = vmatpush1.msra.mxu0 0.0
  %662 = vmatprep.subr.mxu0 0.0
  %663 = vmatpush1.msra.mxu0 0.0
  %664 = vmatprep.subr.mxu0 0.0
  %665 = vmatpush1.msra.mxu0 0.0
  %666 = vmatprep.subr.mxu0 0.0
  %667 = vmatpush1.msra.mxu0 0.0
  %668 = vmatprep.subr.mxu0 0.0
  %669 = vmatpush1.msra.mxu0 0.0
  %670 = vmatprep.subr.mxu0 0.0
  %671 = vmatpush1.msra.mxu0 0.0
  %672 = vmatprep.subr.mxu0 0.0
  %673 = vmatpush1.msra.mxu0 0.0
  %674 = vmatprep.subr.mxu0 0.0
  %675 = vmatpush1.msra.mxu0 0.0
  %676 = vmatprep.subr.mxu0 0.0
  %677 = vmatpush1.msra.mxu0 0.0
  %678 = vmatprep.subr.mxu0 0.0
  %679 = vmatpush1.msra.mxu0 0.0
  %680 = vmatprep.subr.mxu0 0.0
  %681 = vmatpush1.msra.mxu0 0.0
  %682 = vmatprep.subr.mxu0 0.0
  %683 = vmatpush1.msra.mxu0 0.0
  %684 = vmatprep.subr.mxu0 0.0
  %685 = vmatpush1.msra.mxu0 0.0
  %686 = vmatprep.subr.mxu0 0.0
  %687 = vmatpush1.msra.mxu0 0.0
  %688 = vmatprep.subr.mxu0 0.0
  %689 = vmatpush1.msra.mxu0 0.0
  %690 = vmatprep.subr.mxu0 0.0
  %691 = vmatpush1.msra.mxu0 0.0
  %692 = vmatprep.subr.mxu0 0.0
  %693 = vmatpush1.msra.mxu0 0.0
  %694 = vmatprep.subr.mxu0 0.0
  %695 = vmatpush1.msra.mxu0 0.0
  %696 = vmatprep.subr.mxu0 0.0
  %697 = vmatpush1.msra.mxu0 0.0
  %698 = vmatprep.subr.mxu0 0.0
  %699 = vmatpush1.msra.mxu0 0.0
  %700 = vmatprep.subr.mxu0 0.0
  %701 = vmatpush1.msra.mxu0 0.0
  %702 = vmatprep.subr.mxu0 0.0
  %703 = vmatpush1.msra.mxu0 0.0
  %704 = vmatprep.mubr.f32.mxu0 0.0
  %705 = vmatmul.mubr.f32.gmra.mrb[0].mxu0 %v87
  %v706 = vpop.f32.mrb[0].mxu0
  %v707 = vadd.f32 0.0, %v706
  %v708 = vpop.f32.mrb[0].mxu0
  %v709 = vadd.f32 0.0, %v708
  %710 = vmatprep.mubr.f32.mxu0 0.0
  %711 = vmatmul.mubr.f32.gmra.mrb[0].mxu0 %v90
  %v712 = vpop.f32.mrb[0].mxu0
  %v713 = vadd.f32 0.0, %v712
  %v714 = vpop.f32.mrb[0].mxu0
  %v715 = vadd.f32 0.0, %v714
  %716 = vmatprep.mubr.f32.mxu0 0.0
  %717 = vmatmul.mubr.f32.gmra.mrb[0].mxu0 %v93
  %v718 = vpop.f32.mrb[0].mxu0
  %v719 = vadd.f32 0.0, %v718
  %v720 = vpop.f32.mrb[0].mxu0
  %v721 = vadd.f32 0.0, %v720
  %722 = vmatprep.mubr.f32.mxu0 0.0
  %723 = vmatmul.mubr.f32.gmra.mrb[0].mxu0 %v96
  %v724 = vpop.f32.mrb[0].mxu0
  %v725 = vadd.f32 0.0, %v724
  %v726 = vpop.f32.mrb[0].mxu0
  %v727 = vadd.f32 0.0, %v726
  %728 = vmatprep.mubr.f32.mxu0 0.0
  %729 = vmatmul.mubr.f32.gmra.mrb[0].mxu0 %v99
  %v730 = vpop.f32.mrb[0].mxu0
  %v731 = vadd.f32 0.0, %v730
  %v732 = vpop.f32.mrb[0].mxu0
  %v733 = vadd.f32 0.0, %v732
  %734 = vmatprep.mubr.f32.mxu0 0.0
  %735 = vmatmul.mubr.f32.gmra.mrb[0].mxu0 %v102
  %v736 = vpop.f32.mrb[0].mxu0
  %v737 = vadd.f32 0.0, %v736
  %v738 = vpop.f32.mrb[0].mxu0
  %v739 = vadd.f32 0.0, %v738
  %740 = vmatprep.mubr.f32.mxu0 0.0
  %741 = vmatmul.mubr.f32.gmra.mrb[0].mxu0 %v105
  %v742 = vpop.f32.mrb[0].mxu0
  %v743 = vadd.f32 0.0, %v742
  %v744 = vpop.f32.mrb[0].mxu0
  %v745 = vadd.f32 0.0, %v744
  %746 = vmatprep.mubr.f32.mxu0 0.0
  %747 = vmatmul.mubr.f32.gmra.mrb[0].mxu0 %v108
  %v748 = vpop.f32.mrb[0].mxu0
  %v749 = vadd.f32 0.0, %v748
  %v750 = vpop.f32.mrb[0].mxu0
  %v751 = vadd.f32 0.0, %v750
  %752 = vmatprep.mubr.f32.mxu0 0.0
  %753 = vmatmul.mubr.f32.gmra.mrb[0].mxu0 %v111
  %v754 = vpop.f32.mrb[0].mxu0
  %v755 = vadd.f32 0.0, %v754
  %v756 = vpop.f32.mrb[0].mxu0
  %v757 = vadd.f32 0.0, %v756
  %758 = vmatprep.mubr.f32.mxu0 0.0
  %759 = vmatmul.mubr.f32.gmra.mrb[0].mxu0 %v114
  %v760 = vpop.f32.mrb[0].mxu0
  %v761 = vadd.f32 0.0, %v760
  %v762 = vpop.f32.mrb[0].mxu0
  %v763 = vadd.f32 0.0, %v762
  %764 = vmatprep.mubr.f32.mxu0 0.0
  %765 = vmatmul.mubr.f32.gmra.mrb[0].mxu0 %v117
  %v766 = vpop.f32.mrb[0].mxu0
  %v767 = vadd.f32 0.0, %v766
  %v768 = vpop.f32.mrb[0].mxu0
  %v769 = vadd.f32 0.0, %v768
  %770 = vmatprep.mubr.f32.mxu0 0.0
  %771 = vmatmul.mubr.f32.gmra.mrb[0].mxu0 %v120
  %v772 = vpop.f32.mrb[0].mxu0
  %v773 = vadd.f32 0.0, %v772
  %v774 = vpop.f32.mrb[0].mxu0
  %v775 = vadd.f32 0.0, %v774
  %776 = vmatprep.mubr.f32.mxu0 0.0
  %777 = vmatmul.mubr.f32.gmra.mrb[0].mxu0 %v123
  %v778 = vpop.f32.mrb[0].mxu0
  %v779 = vadd.f32 0.0, %v778
  %v780 = vpop.f32.mrb[0].mxu0
  %v781 = vadd.f32 0.0, %v780
  %782 = vmatprep.mubr.f32.mxu0 0.0
  %783 = vmatmul.mubr.f32.gmra.mrb[0].mxu0 %v126
  %v784 = vpop.f32.mrb[0].mxu0
  %v785 = vadd.f32 0.0, %v784
  %v786 = vpop.f32.mrb[0].mxu0
  %v787 = vadd.f32 0.0, %v786
  %788 = vmatprep.mubr.f32.mxu0 0.0
  %789 = vmatmul.mubr.f32.gmra.mrb[0].mxu0 %v129
  %v790 = vpop.f32.mrb[0].mxu0
  %v791 = vadd.f32 0.0, %v790
  %v792 = vpop.f32.mrb[0].mxu0
  %v793 = vadd.f32 0.0, %v792
  %794 = vmatprep.mubr.f32.mxu0 0.0
  %795 = vmatmul.mubr.f32.gmra.mrb[0].mxu0 %v132
  %v796 = vpop.f32.mrb[0].mxu0
  %v797 = vadd.f32 0.0, %v796
  %v798 = vpop.f32.mrb[0].mxu0
  %v799 = vadd.f32 0.0, %v798
  %800 = vdwg.mxu0
  %801 = vmatprep.subr.mxu0 %v38
  %802 = vmatpush1.msra.mxu0 %v37
  %803 = vmatprep.subr.mxu0 %v48
  %804 = vmatpush1.msra.mxu0 %v47
  %805 = vmatprep.subr.mxu0 %v58
  %806 = vmatpush1.msra.mxu0 %v57
  %807 = vmatprep.subr.mxu0 %v163
  %808 = vmatpush1.msra.mxu0 %v160
  %809 = vmatprep.subr.mxu0 0.0
  %810 = vmatpush1.msra.mxu0 0.0
  %811 = vmatprep.subr.mxu0 0.0
  %812 = vmatpush1.msra.mxu0 0.0
  %813 = vmatprep.subr.mxu0 0.0
  %814 = vmatpush1.msra.mxu0 0.0
  %815 = vmatprep.subr.mxu0 0.0
  %816 = vmatpush1.msra.mxu0 0.0
  %817 = vmatprep.subr.mxu0 0.0
  %818 = vmatpush1.msra.mxu0 0.0
  %819 = vmatprep.subr.mxu0 0.0
  %820 = vmatpush1.msra.mxu0 0.0
  %821 = vmatprep.subr.mxu0 0.0
  %822 = vmatpush1.msra.mxu0 0.0
  %823 = vmatprep.subr.mxu0 0.0
  %824 = vmatpush1.msra.mxu0 0.0
  %825 = vmatprep.subr.mxu0 0.0
  %826 = vmatpush1.msra.mxu0 0.0
  %827 = vmatprep.subr.mxu0 0.0
  %828 = vmatpush1.msra.mxu0 0.0
  %829 = vmatprep.subr.mxu0 0.0
  %830 = vmatpush1.msra.mxu0 0.0
  %831 = vmatprep.subr.mxu0 0.0
  %832 = vmatpush1.msra.mxu0 0.0
  %833 = vmatprep.subr.mxu0 0.0
  %834 = vmatpush1.msra.mxu0 0.0
  %835 = vmatprep.subr.mxu0 0.0
  %836 = vmatpush1.msra.mxu0 0.0
  %837 = vmatprep.subr.mxu0 0.0
  %838 = vmatpush1.msra.mxu0 0.0
  %839 = vmatprep.subr.mxu0 0.0
  %840 = vmatpush1.msra.mxu0 0.0
  %841 = vmatprep.subr.mxu0 0.0
  %842 = vmatpush1.msra.mxu0 0.0
  %843 = vmatprep.subr.mxu0 0.0
  %844 = vmatpush1.msra.mxu0 0.0
  %845 = vmatprep.subr.mxu0 0.0
  %846 = vmatpush1.msra.mxu0 0.0
  %847 = vmatprep.subr.mxu0 0.0
  %848 = vmatpush1.msra.mxu0 0.0
  %849 = vmatprep.subr.mxu0 0.0
  %850 = vmatpush1.msra.mxu0 0.0
  %851 = vmatprep.subr.mxu0 0.0
  %852 = vmatpush1.msra.mxu0 0.0
  %853 = vmatprep.subr.mxu0 0.0
  %854 = vmatpush1.msra.mxu0 0.0
  %855 = vmatprep.subr.mxu0 0.0
  %856 = vmatpush1.msra.mxu0 0.0
  %857 = vmatprep.subr.mxu0 0.0
  %858 = vmatpush1.msra.mxu0 0.0
  %859 = vmatprep.subr.mxu0 0.0
  %860 = vmatpush1.msra.mxu0 0.0
  %861 = vmatprep.subr.mxu0 0.0
  %862 = vmatpush1.msra.mxu0 0.0
  %863 = vmatprep.subr.mxu0 0.0
  %864 = vmatpush1.msra.mxu0 0.0
  %865 = vmatprep.mubr.f32.mxu0 0.0
  %866 = vmatmul.mubr.f32.gmra.mrb[0].mxu0 %v87
  %v867 = vpop.f32.mrb[0].mxu0
  %v868 = vadd.f32 0.0, %v867
  %v869 = vpop.f32.mrb[0].mxu0
  %v870 = vadd.f32 0.0, %v869
  %871 = vmatprep.mubr.f32.mxu0 0.0
  %872 = vmatmul.mubr.f32.gmra.mrb[0].mxu0 %v90
  %v873 = vpop.f32.mrb[0].mxu0
  %v874 = vadd.f32 0.0, %v873
  %v875 = vpop.f32.mrb[0].mxu0
  %v876 = vadd.f32 0.0, %v875
  %877 = vmatprep.mubr.f32.mxu0 0.0
  %878 = vmatmul.mubr.f32.gmra.mrb[0].mxu0 %v93
  %v879 = vpop.f32.mrb[0].mxu0
  %v880 = vadd.f32 0.0, %v879
  %v881 = vpop.f32.mrb[0].mxu0
  %v882 = vadd.f32 0.0, %v881
  %883 = vmatprep.mubr.f32.mxu0 0.0
  %884 = vmatmul.mubr.f32.gmra.mrb[0].mxu0 %v96
  %v885 = vpop.f32.mrb[0].mxu0
  %v886 = vadd.f32 0.0, %v885
  %v887 = vpop.f32.mrb[0].mxu0
  %v888 = vadd.f32 0.0, %v887
  %889 = vmatprep.mubr.f32.mxu0 0.0
  %890 = vmatmul.mubr.f32.gmra.mrb[0].mxu0 %v99
  %v891 = vpop.f32.mrb[0].mxu0
  %v892 = vadd.f32 0.0, %v891
  %v893 = vpop.f32.mrb[0].mxu0
  %v894 = vadd.f32 0.0, %v893
  %895 = vmatprep.mubr.f32.mxu0 0.0
  %896 = vmatmul.mubr.f32.gmra.mrb[0].mxu0 %v102
  %v897 = vpop.f32.mrb[0].mxu0
  %v898 = vadd.f32 0.0, %v897
  %v899 = vpop.f32.mrb[0].mxu0
  %v900 = vadd.f32 0.0, %v899
  %901 = vmatprep.mubr.f32.mxu0 0.0
  %902 = vmatmul.mubr.f32.gmra.mrb[0].mxu0 %v105
  %v903 = vpop.f32.mrb[0].mxu0
  %v904 = vadd.f32 0.0, %v903
  %v905 = vpop.f32.mrb[0].mxu0
  %v906 = vadd.f32 0.0, %v905
  %907 = vmatprep.mubr.f32.mxu0 0.0
  %908 = vmatmul.mubr.f32.gmra.mrb[0].mxu0 %v108
  %v909 = vpop.f32.mrb[0].mxu0
  %v910 = vadd.f32 0.0, %v909
  %v911 = vpop.f32.mrb[0].mxu0
  %v912 = vadd.f32 0.0, %v911
  %913 = vmatprep.mubr.f32.mxu0 0.0
  %914 = vmatmul.mubr.f32.gmra.mrb[0].mxu0 %v111
  %v915 = vpop.f32.mrb[0].mxu0
  %v916 = vadd.f32 0.0, %v915
  %v917 = vpop.f32.mrb[0].mxu0
  %v918 = vadd.f32 0.0, %v917
  %919 = vmatprep.mubr.f32.mxu0 0.0
  %920 = vmatmul.mubr.f32.gmra.mrb[0].mxu0 %v114
  %v921 = vpop.f32.mrb[0].mxu0
  %v922 = vadd.f32 0.0, %v921
  %v923 = vpop.f32.mrb[0].mxu0
  %v924 = vadd.f32 0.0, %v923
  %925 = vmatprep.mubr.f32.mxu0 0.0
  %926 = vmatmul.mubr.f32.gmra.mrb[0].mxu0 %v117
  %v927 = vpop.f32.mrb[0].mxu0
  %v928 = vadd.f32 0.0, %v927
  %v929 = vpop.f32.mrb[0].mxu0
  %v930 = vadd.f32 0.0, %v929
  %931 = vmatprep.mubr.f32.mxu0 0.0
  %932 = vmatmul.mubr.f32.gmra.mrb[0].mxu0 %v120
  %v933 = vpop.f32.mrb[0].mxu0
  %v934 = vadd.f32 0.0, %v933
  %v935 = vpop.f32.mrb[0].mxu0
  %v936 = vadd.f32 0.0, %v935
  %937 = vmatprep.mubr.f32.mxu0 0.0
  %938 = vmatmul.mubr.f32.gmra.mrb[0].mxu0 %v123
  %v939 = vpop.f32.mrb[0].mxu0
  %v940 = vadd.f32 0.0, %v939
  %v941 = vpop.f32.mrb[0].mxu0
  %v942 = vadd.f32 0.0, %v941
  %943 = vmatprep.mubr.f32.mxu0 0.0
  %944 = vmatmul.mubr.f32.gmra.mrb[0].mxu0 %v126
  %v945 = vpop.f32.mrb[0].mxu0
  %v946 = vadd.f32 0.0, %v945
  %v947 = vpop.f32.mrb[0].mxu0
  %v948 = vadd.f32 0.0, %v947
  %949 = vmatprep.mubr.f32.mxu0 0.0
  %950 = vmatmul.mubr.f32.gmra.mrb[0].mxu0 %v129
  %v951 = vpop.f32.mrb[0].mxu0
  %v952 = vadd.f32 0.0, %v951
  %v953 = vpop.f32.mrb[0].mxu0
  %v954 = vadd.f32 0.0, %v953
  %955 = vmatprep.mubr.f32.mxu0 0.0
  %956 = vmatmul.mubr.f32.gmra.mrb[0].mxu0 %v132
  %v957 = vpop.f32.mrb[0].mxu0
  %v958 = vadd.f32 0.0, %v957
  %v959 = vpop.f32.mrb[0].mxu0
  %v960 = vadd.f32 0.0, %v959
  %961 = vdwg.mxu0
  %s962 = scalar_lea.vmem %s0, 128
  %v963 = vld [vmem:[%s962] sm:$0xff]
  %v964 = vld [vmem:[%s962 + $0x8] sm:$0xff]
  %v965 = vld [vmem:[%s962 + $0x10] sm:$0xff]
  %v966 = vld [vmem:[%s962 + $0x18] sm:$0xff]
  %v967 = vld [vmem:[%s962 + $0x20] sm:$0xff]
  %v968 = vld [vmem:[%s962 + $0x28] sm:$0xff]
  %v969 = vld [vmem:[%s962 + $0x30] sm:$0xff]
  %v970 = vld [vmem:[%s962 + $0x38] sm:$0xff]
  %v971 = vld [vmem:[%s962 + $0x40] sm:$0xff]
  %v972 = vld [vmem:[%s962 + $0x48] sm:$0xff]
  %v973 = vld [vmem:[%s962 + $0x50] sm:$0xff]
  %v974 = vld [vmem:[%s962 + $0x58] sm:$0xff]
  %v975 = vld [vmem:[%s962 + $0x60] sm:$0xff]
  %v976 = vld [vmem:[%s962 + $0x68] sm:$0xff]
  %v977 = vld [vmem:[%s962 + $0x70] sm:$0xff]
  %v978 = vld [vmem:[%s962 + $0x78] sm:$0xff]
  %v980 = vsel %vm85, %v963, 0
  %v983 = vsel %vm85, %v964, 0
  %v986 = vsel %vm85, %v965, 0
  %v989 = vsel %vm85, %v966, 0
  %v992 = vsel %vm85, %v967, 0
  %v995 = vsel %vm85, %v968, 0
  %v998 = vsel %vm85, %v969, 0
  %v1001 = vsel %vm85, %v970, 0
  %v1004 = vsel %vm85, %v971, 0
  %v1007 = vsel %vm85, %v972, 0
  %v1010 = vsel %vm85, %v973, 0
  %v1013 = vsel %vm85, %v974, 0
  %v1016 = vsel %vm85, %v975, 0
  %v1019 = vsel %vm85, %v976, 0
  %v1022 = vsel %vm85, %v977, 0
  %v1025 = vsel %vm85, %v978, 0
  %1027 = vmatprep.subr.mxu0 %v30
  %1028 = vmatpush1.msra.mxu0 %v29
  %1029 = vmatprep.subr.mxu0 %v40
  %1030 = vmatpush1.msra.mxu0 %v39
  %1031 = vmatprep.subr.mxu0 %v50
  %1032 = vmatpush1.msra.mxu0 %v49
  %1033 = vmatprep.subr.mxu0 %v139
  %1034 = vmatpush1.msra.mxu0 %v136
  %1035 = vmatprep.subr.mxu0 0.0
  %1036 = vmatpush1.msra.mxu0 0.0
  %1037 = vmatprep.subr.mxu0 0.0
  %1038 = vmatpush1.msra.mxu0 0.0
  %1039 = vmatprep.subr.mxu0 0.0
  %1040 = vmatpush1.msra.mxu0 0.0
  %1041 = vmatprep.subr.mxu0 0.0
  %1042 = vmatpush1.msra.mxu0 0.0
  %1043 = vmatprep.subr.mxu0 0.0
  %1044 = vmatpush1.msra.mxu0 0.0
  %1045 = vmatprep.subr.mxu0 0.0
  %1046 = vmatpush1.msra.mxu0 0.0
  %1047 = vmatprep.subr.mxu0 0.0
  %1048 = vmatpush1.msra.mxu0 0.0
  %1049 = vmatprep.subr.mxu0 0.0
  %1050 = vmatpush1.msra.mxu0 0.0
  %1051 = vmatprep.subr.mxu0 0.0
  %1052 = vmatpush1.msra.mxu0 0.0
  %1053 = vmatprep.subr.mxu0 0.0
  %1054 = vmatpush1.msra.mxu0 0.0
  %1055 = vmatprep.subr.mxu0 0.0
  %1056 = vmatpush1.msra.mxu0 0.0
  %1057 = vmatprep.subr.mxu0 0.0
  %1058 = vmatpush1.msra.mxu0 0.0
  %1059 = vmatprep.subr.mxu0 0.0
  %1060 = vmatpush1.msra.mxu0 0.0
  %1061 = vmatprep.subr.mxu0 0.0
  %1062 = vmatpush1.msra.mxu0 0.0
  %1063 = vmatprep.subr.mxu0 0.0
  %1064 = vmatpush1.msra.mxu0 0.0
  %1065 = vmatprep.subr.mxu0 0.0
  %1066 = vmatpush1.msra.mxu0 0.0
  %1067 = vmatprep.subr.mxu0 0.0
  %1068 = vmatpush1.msra.mxu0 0.0
  %1069 = vmatprep.subr.mxu0 0.0
  %1070 = vmatpush1.msra.mxu0 0.0
  %1071 = vmatprep.subr.mxu0 0.0
  %1072 = vmatpush1.msra.mxu0 0.0
  %1073 = vmatprep.subr.mxu0 0.0
  %1074 = vmatpush1.msra.mxu0 0.0
  %1075 = vmatprep.subr.mxu0 0.0
  %1076 = vmatpush1.msra.mxu0 0.0
  %1077 = vmatprep.subr.mxu0 0.0
  %1078 = vmatpush1.msra.mxu0 0.0
  %1079 = vmatprep.subr.mxu0 0.0
  %1080 = vmatpush1.msra.mxu0 0.0
  %1081 = vmatprep.subr.mxu0 0.0
  %1082 = vmatpush1.msra.mxu0 0.0
  %1083 = vmatprep.subr.mxu0 0.0
  %1084 = vmatpush1.msra.mxu0 0.0
  %1085 = vmatprep.subr.mxu0 0.0
  %1086 = vmatpush1.msra.mxu0 0.0
  %1087 = vmatprep.subr.mxu0 0.0
  %1088 = vmatpush1.msra.mxu0 0.0
  %1089 = vmatprep.subr.mxu0 0.0
  %1090 = vmatpush1.msra.mxu0 0.0
  %1091 = vmatprep.mubr.f32.mxu0 0.0
  %1092 = vmatmul.mubr.f32.gmra.mrb[0].mxu0 %v980
  %v1093 = vpop.f32.mrb[0].mxu0
  %v1094 = vadd.f32 0.0, %v1093
  %v1095 = vpop.f32.mrb[0].mxu0
  %v1096 = vadd.f32 0.0, %v1095
  %1097 = vmatprep.mubr.f32.mxu0 0.0
  %1098 = vmatmul.mubr.f32.gmra.mrb[0].mxu0 %v983
  %v1099 = vpop.f32.mrb[0].mxu0
  %v1100 = vpop.f32.mrb[0].mxu0
  %1101 = vmatprep.mubr.f32.mxu0 0.0
  %1102 = vmatmul.mubr.f32.gmra.mrb[0].mxu0 %v986
  %v1103 = vpop.f32.mrb[0].mxu0
  %v1104 = vadd.f32 0.0, %v1103
  %v1105 = vpop.f32.mrb[0].mxu0
  %v1106 = vadd.f32 0.0, %v1105
  %1107 = vmatprep.mubr.f32.mxu0 0.0
  %1108 = vmatmul.mubr.f32.gmra.mrb[0].mxu0 %v989
  %v1109 = vpop.f32.mrb[0].mxu0
  %v1110 = vpop.f32.mrb[0].mxu0
  %1111 = vmatprep.mubr.f32.mxu0 0.0
  %1112 = vmatmul.mubr.f32.gmra.mrb[0].mxu0 %v992
  %v1113 = vpop.f32.mrb[0].mxu0
  %v1114 = vadd.f32 0.0, %v1113
  %v1115 = vpop.f32.mrb[0].mxu0
  %v1116 = vadd.f32 0.0, %v1115
  %1117 = vmatprep.mubr.f32.mxu0 0.0
  %1118 = vmatmul.mubr.f32.gmra.mrb[0].mxu0 %v995
  %v1119 = vpop.f32.mrb[0].mxu0
  %v1120 = vpop.f32.mrb[0].mxu0
  %1121 = vmatprep.mubr.f32.mxu0 0.0
  %1122 = vmatmul.mubr.f32.gmra.mrb[0].mxu0 %v998
  %v1123 = vpop.f32.mrb[0].mxu0
  %v1124 = vadd.f32 0.0, %v1123
  %v1125 = vpop.f32.mrb[0].mxu0
  %v1126 = vadd.f32 0.0, %v1125
  %1127 = vmatprep.mubr.f32.mxu0 0.0
  %1128 = vmatmul.mubr.f32.gmra.mrb[0].mxu0 %v1001
  %v1129 = vpop.f32.mrb[0].mxu0
  %v1130 = vpop.f32.mrb[0].mxu0
  %1131 = vmatprep.mubr.f32.mxu0 0.0
  %1132 = vmatmul.mubr.f32.gmra.mrb[0].mxu0 %v1004
  %v1133 = vpop.f32.mrb[0].mxu0
  %v1134 = vadd.f32 0.0, %v1133
  %v1135 = vpop.f32.mrb[0].mxu0
  %v1136 = vadd.f32 0.0, %v1135
  %1137 = vmatprep.mubr.f32.mxu0 0.0
  %1138 = vmatmul.mubr.f32.gmra.mrb[0].mxu0 %v1007
  %v1139 = vpop.f32.mrb[0].mxu0
  %v1140 = vpop.f32.mrb[0].mxu0
  %1141 = vmatprep.mubr.f32.mxu0 0.0
  %1142 = vmatmul.mubr.f32.gmra.mrb[0].mxu0 %v1010
  %v1143 = vpop.f32.mrb[0].mxu0
  %v1144 = vadd.f32 0.0, %v1143
  %v1145 = vpop.f32.mrb[0].mxu0
  %v1146 = vadd.f32 0.0, %v1145
  %1147 = vmatprep.mubr.f32.mxu0 0.0
  %1148 = vmatmul.mubr.f32.gmra.mrb[0].mxu0 %v1013
  %v1149 = vpop.f32.mrb[0].mxu0
  %v1150 = vpop.f32.mrb[0].mxu0
  %1151 = vmatprep.mubr.f32.mxu0 0.0
  %1152 = vmatmul.mubr.f32.gmra.mrb[0].mxu0 %v1016
  %v1153 = vpop.f32.mrb[0].mxu0
  %v1154 = vadd.f32 0.0, %v1153
  %v1155 = vpop.f32.mrb[0].mxu0
  %v1156 = vadd.f32 0.0, %v1155
  %1157 = vmatprep.mubr.f32.mxu0 0.0
  %1158 = vmatmul.mubr.f32.gmra.mrb[0].mxu0 %v1019
  %v1159 = vpop.f32.mrb[0].mxu0
  %v1160 = vpop.f32.mrb[0].mxu0
  %1161 = vmatprep.mubr.f32.mxu0 0.0
  %1162 = vmatmul.mubr.f32.gmra.mrb[0].mxu0 %v1022
  %v1163 = vpop.f32.mrb[0].mxu0
  %v1164 = vadd.f32 0.0, %v1163
  %v1165 = vpop.f32.mrb[0].mxu0
  %v1166 = vadd.f32 0.0, %v1165
  %1167 = vmatprep.mubr.f32.mxu0 0.0
  %1168 = vmatmul.mubr.f32.gmra.mrb[0].mxu0 %v1025
  %v1169 = vpop.f32.mrb[0].mxu0
  %v1170 = vpop.f32.mrb[0].mxu0
  %1171 = vdwg.mxu0
  %1172 = vmatprep.subr.mxu0 %v32
  %1173 = vmatpush1.msra.mxu0 %v31
  %1174 = vmatprep.subr.mxu0 %v42
  %1175 = vmatpush1.msra.mxu0 %v41
  %1176 = vmatprep.subr.mxu0 %v52
  %1177 = vmatpush1.msra.mxu0 %v51
  %1178 = vmatprep.subr.mxu0 %v145
  %1179 = vmatpush1.msra.mxu0 %v142
  %1180 = vmatprep.subr.mxu0 0.0
  %1181 = vmatpush1.msra.mxu0 0.0
  %1182 = vmatprep.subr.mxu0 0.0
  %1183 = vmatpush1.msra.mxu0 0.0
  %1184 = vmatprep.subr.mxu0 0.0
  %1185 = vmatpush1.msra.mxu0 0.0
  %1186 = vmatprep.subr.mxu0 0.0
  %1187 = vmatpush1.msra.mxu0 0.0
  %1188 = vmatprep.subr.mxu0 0.0
  %1189 = vmatpush1.msra.mxu0 0.0
  %1190 = vmatprep.subr.mxu0 0.0
  %1191 = vmatpush1.msra.mxu0 0.0
  %1192 = vmatprep.subr.mxu0 0.0
  %1193 = vmatpush1.msra.mxu0 0.0
  %1194 = vmatprep.subr.mxu0 0.0
  %1195 = vmatpush1.msra.mxu0 0.0
  %1196 = vmatprep.subr.mxu0 0.0
  %1197 = vmatpush1.msra.mxu0 0.0
  %1198 = vmatprep.subr.mxu0 0.0
  %1199 = vmatpush1.msra.mxu0 0.0
  %1200 = vmatprep.subr.mxu0 0.0
  %1201 = vmatpush1.msra.mxu0 0.0
  %1202 = vmatprep.subr.mxu0 0.0
  %1203 = vmatpush1.msra.mxu0 0.0
  %1204 = vmatprep.subr.mxu0 0.0
  %1205 = vmatpush1.msra.mxu0 0.0
  %1206 = vmatprep.subr.mxu0 0.0
  %1207 = vmatpush1.msra.mxu0 0.0
  %1208 = vmatprep.subr.mxu0 0.0
  %1209 = vmatpush1.msra.mxu0 0.0
  %1210 = vmatprep.subr.mxu0 0.0
  %1211 = vmatpush1.msra.mxu0 0.0
  %1212 = vmatprep.subr.mxu0 0.0
  %1213 = vmatpush1.msra.mxu0 0.0
  %1214 = vmatprep.subr.mxu0 0.0
  %1215 = vmatpush1.msra.mxu0 0.0
  %1216 = vmatprep.subr.mxu0 0.0
  %1217 = vmatpush1.msra.mxu0 0.0
  %1218 = vmatprep.subr.mxu0 0.0
  %1219 = vmatpush1.msra.mxu0 0.0
  %1220 = vmatprep.subr.mxu0 0.0
  %1221 = vmatpush1.msra.mxu0 0.0
  %1222 = vmatprep.subr.mxu0 0.0
  %1223 = vmatpush1.msra.mxu0 0.0
  %1224 = vmatprep.subr.mxu0 0.0
  %1225 = vmatpush1.msra.mxu0 0.0
  %1226 = vmatprep.subr.mxu0 0.0
  %1227 = vmatpush1.msra.mxu0 0.0
  %1228 = vmatprep.subr.mxu0 0.0
  %1229 = vmatpush1.msra.mxu0 0.0
  %1230 = vmatprep.subr.mxu0 0.0
  %1231 = vmatpush1.msra.mxu0 0.0
  %1232 = vmatprep.subr.mxu0 0.0
  %1233 = vmatpush1.msra.mxu0 0.0
  %1234 = vmatprep.subr.mxu0 0.0
  %1235 = vmatpush1.msra.mxu0 0.0
  %1236 = vmatprep.mubr.f32.mxu0 0.0
  %1237 = vmatmul.mubr.f32.gmra.mrb[0].mxu0 %v980
  %v1238 = vpop.f32.mrb[0].mxu0
  %v1239 = vadd.f32 0.0, %v1238
  %v1240 = vpop.f32.mrb[0].mxu0
  %v1241 = vadd.f32 0.0, %v1240
  %1242 = vmatprep.mubr.f32.mxu0 0.0
  %1243 = vmatmul.mubr.f32.gmra.mrb[0].mxu0 %v983
  %v1244 = vpop.f32.mrb[0].mxu0
  %v1245 = vpop.f32.mrb[0].mxu0
  %v1246 = vadd.f32 0.0, %v1245
  %1247 = vmatprep.mubr.f32.mxu0 0.0
  %1248 = vmatmul.mubr.f32.gmra.mrb[0].mxu0 %v986
  %v1249 = vpop.f32.mrb[0].mxu0
  %v1250 = vadd.f32 0.0, %v1249
  %v1251 = vpop.f32.mrb[0].mxu0
  %v1252 = vadd.f32 0.0, %v1251
  %1253 = vmatprep.mubr.f32.mxu0 0.0
  %1254 = vmatmul.mubr.f32.gmra.mrb[0].mxu0 %v989
  %v1255 = vpop.f32.mrb[0].mxu0
  %v1256 = vpop.f32.mrb[0].mxu0
  %v1257 = vadd.f32 0.0, %v1256
  %1258 = vmatprep.mubr.f32.mxu0 0.0
  %1259 = vmatmul.mubr.f32.gmra.mrb[0].mxu0 %v992
  %v1260 = vpop.f32.mrb[0].mxu0
  %v1261 = vadd.f32 0.0, %v1260
  %v1262 = vpop.f32.mrb[0].mxu0
  %v1263 = vadd.f32 0.0, %v1262
  %1264 = vmatprep.mubr.f32.mxu0 0.0
  %1265 = vmatmul.mubr.f32.gmra.mrb[0].mxu0 %v995
  %v1266 = vpop.f32.mrb[0].mxu0
  %v1267 = vpop.f32.mrb[0].mxu0
  %v1268 = vadd.f32 0.0, %v1267
  %1269 = vmatprep.mubr.f32.mxu0 0.0
  %1270 = vmatmul.mubr.f32.gmra.mrb[0].mxu0 %v998
  %v1271 = vpop.f32.mrb[0].mxu0
  %v1272 = vadd.f32 0.0, %v1271
  %v1273 = vpop.f32.mrb[0].mxu0
  %v1274 = vadd.f32 0.0, %v1273
  %1275 = vmatprep.mubr.f32.mxu0 0.0
  %1276 = vmatmul.mubr.f32.gmra.mrb[0].mxu0 %v1001
  %v1277 = vpop.f32.mrb[0].mxu0
  %v1278 = vpop.f32.mrb[0].mxu0
  %v1279 = vadd.f32 0.0, %v1278
  %1280 = vmatprep.mubr.f32.mxu0 0.0
  %1281 = vmatmul.mubr.f32.gmra.mrb[0].mxu0 %v1004
  %v1282 = vpop.f32.mrb[0].mxu0
  %v1283 = vadd.f32 0.0, %v1282
  %v1284 = vpop.f32.mrb[0].mxu0
  %v1285 = vadd.f32 0.0, %v1284
  %1286 = vmatprep.mubr.f32.mxu0 0.0
  %1287 = vmatmul.mubr.f32.gmra.mrb[0].mxu0 %v1007
  %v1288 = vpop.f32.mrb[0].mxu0
  %v1289 = vpop.f32.mrb[0].mxu0
  %v1290 = vadd.f32 0.0, %v1289
  %1291 = vmatprep.mubr.f32.mxu0 0.0
  %1292 = vmatmul.mubr.f32.gmra.mrb[0].mxu0 %v1010
  %v1293 = vpop.f32.mrb[0].mxu0
  %v1294 = vadd.f32 0.0, %v1293
  %v1295 = vpop.f32.mrb[0].mxu0
  %v1296 = vadd.f32 0.0, %v1295
  %1297 = vmatprep.mubr.f32.mxu0 0.0
  %1298 = vmatmul.mubr.f32.gmra.mrb[0].mxu0 %v1013
  %v1299 = vpop.f32.mrb[0].mxu0
  %v1300 = vpop.f32.mrb[0].mxu0
  %v1301 = vadd.f32 0.0, %v1300
  %1302 = vmatprep.mubr.f32.mxu0 0.0
  %1303 = vmatmul.mubr.f32.gmra.mrb[0].mxu0 %v1016
  %v1304 = vpop.f32.mrb[0].mxu0
  %v1305 = vadd.f32 0.0, %v1304
  %v1306 = vpop.f32.mrb[0].mxu0
  %v1307 = vadd.f32 0.0, %v1306
  %1308 = vmatprep.mubr.f32.mxu0 0.0
  %1309 = vmatmul.mubr.f32.gmra.mrb[0].mxu0 %v1019
  %v1310 = vpop.f32.mrb[0].mxu0
  %v1311 = vpop.f32.mrb[0].mxu0
  %v1312 = vadd.f32 0.0, %v1311
  %1313 = vmatprep.mubr.f32.mxu0 0.0
  %1314 = vmatmul.mubr.f32.gmra.mrb[0].mxu0 %v1022
  %v1315 = vpop.f32.mrb[0].mxu0
  %v1316 = vadd.f32 0.0, %v1315
  %v1317 = vpop.f32.mrb[0].mxu0
  %v1318 = vadd.f32 0.0, %v1317
  %1319 = vmatprep.mubr.f32.mxu0 0.0
  %1320 = vmatmul.mubr.f32.gmra.mrb[0].mxu0 %v1025
  %v1321 = vpop.f32.mrb[0].mxu0
  %v1322 = vpop.f32.mrb[0].mxu0
  %v1323 = vadd.f32 0.0, %v1322
  %1324 = vdwg.mxu0
  %1325 = vmatprep.subr.mxu0 %v34
  %1326 = vmatpush1.msra.mxu0 %v33
  %1327 = vmatprep.subr.mxu0 %v44
  %1328 = vmatpush1.msra.mxu0 %v43
  %1329 = vmatprep.subr.mxu0 %v54
  %1330 = vmatpush1.msra.mxu0 %v53
  %1331 = vmatprep.subr.mxu0 %v151
  %1332 = vmatpush1.msra.mxu0 %v148
  %1333 = vmatprep.subr.mxu0 0.0
  %1334 = vmatpush1.msra.mxu0 0.0
  %1335 = vmatprep.subr.mxu0 0.0
  %1336 = vmatpush1.msra.mxu0 0.0
  %1337 = vmatprep.subr.mxu0 0.0
  %1338 = vmatpush1.msra.mxu0 0.0
  %1339 = vmatprep.subr.mxu0 0.0
  %1340 = vmatpush1.msra.mxu0 0.0
  %1341 = vmatprep.subr.mxu0 0.0
  %1342 = vmatpush1.msra.mxu0 0.0
  %1343 = vmatprep.subr.mxu0 0.0
  %1344 = vmatpush1.msra.mxu0 0.0
  %1345 = vmatprep.subr.mxu0 0.0
  %1346 = vmatpush1.msra.mxu0 0.0
  %1347 = vmatprep.subr.mxu0 0.0
  %1348 = vmatpush1.msra.mxu0 0.0
  %1349 = vmatprep.subr.mxu0 0.0
  %1350 = vmatpush1.msra.mxu0 0.0
  %1351 = vmatprep.subr.mxu0 0.0
  %1352 = vmatpush1.msra.mxu0 0.0
  %1353 = vmatprep.subr.mxu0 0.0
  %1354 = vmatpush1.msra.mxu0 0.0
  %1355 = vmatprep.subr.mxu0 0.0
  %1356 = vmatpush1.msra.mxu0 0.0
  %1357 = vmatprep.subr.mxu0 0.0
  %1358 = vmatpush1.msra.mxu0 0.0
  %1359 = vmatprep.subr.mxu0 0.0
  %1360 = vmatpush1.msra.mxu0 0.0
  %1361 = vmatprep.subr.mxu0 0.0
  %1362 = vmatpush1.msra.mxu0 0.0
  %1363 = vmatprep.subr.mxu0 0.0
  %1364 = vmatpush1.msra.mxu0 0.0
  %1365 = vmatprep.subr.mxu0 0.0
  %1366 = vmatpush1.msra.mxu0 0.0
  %1367 = vmatprep.subr.mxu0 0.0
  %1368 = vmatpush1.msra.mxu0 0.0
  %1369 = vmatprep.subr.mxu0 0.0
  %1370 = vmatpush1.msra.mxu0 0.0
  %1371 = vmatprep.subr.mxu0 0.0
  %1372 = vmatpush1.msra.mxu0 0.0
  %1373 = vmatprep.subr.mxu0 0.0
  %1374 = vmatpush1.msra.mxu0 0.0
  %1375 = vmatprep.subr.mxu0 0.0
  %1376 = vmatpush1.msra.mxu0 0.0
  %1377 = vmatprep.subr.mxu0 0.0
  %1378 = vmatpush1.msra.mxu0 0.0
  %1379 = vmatprep.subr.mxu0 0.0
  %1380 = vmatpush1.msra.mxu0 0.0
  %1381 = vmatprep.subr.mxu0 0.0
  %1382 = vmatpush1.msra.mxu0 0.0
  %1383 = vmatprep.subr.mxu0 0.0
  %1384 = vmatpush1.msra.mxu0 0.0
  %1385 = vmatprep.subr.mxu0 0.0
  %1386 = vmatpush1.msra.mxu0 0.0
  %1387 = vmatprep.subr.mxu0 0.0
  %1388 = vmatpush1.msra.mxu0 0.0
  %1389 = vmatprep.mubr.f32.mxu0 0.0
  %1390 = vmatmul.mubr.f32.gmra.mrb[0].mxu0 %v980
  %v1391 = vpop.f32.mrb[0].mxu0
  %v1392 = vadd.f32 0.0, %v1391
  %v1393 = vpop.f32.mrb[0].mxu0
  %v1394 = vadd.f32 0.0, %v1393
  %1395 = vmatprep.mubr.f32.mxu0 0.0
  %1396 = vmatmul.mubr.f32.gmra.mrb[0].mxu0 %v983
  %v1397 = vpop.f32.mrb[0].mxu0
  %v1398 = vadd.f32 0.0, %v1397
  %v1399 = vpop.f32.mrb[0].mxu0
  %v1400 = vadd.f32 0.0, %v1399
  %1401 = vmatprep.mubr.f32.mxu0 0.0
  %1402 = vmatmul.mubr.f32.gmra.mrb[0].mxu0 %v986
  %v1403 = vpop.f32.mrb[0].mxu0
  %v1404 = vadd.f32 0.0, %v1403
  %v1405 = vpop.f32.mrb[0].mxu0
  %v1406 = vadd.f32 0.0, %v1405
  %1407 = vmatprep.mubr.f32.mxu0 0.0
  %1408 = vmatmul.mubr.f32.gmra.mrb[0].mxu0 %v989
  %v1409 = vpop.f32.mrb[0].mxu0
  %v1410 = vadd.f32 0.0, %v1409
  %v1411 = vpop.f32.mrb[0].mxu0
  %v1412 = vadd.f32 0.0, %v1411
  %1413 = vmatprep.mubr.f32.mxu0 0.0
  %1414 = vmatmul.mubr.f32.gmra.mrb[0].mxu0 %v992
  %v1415 = vpop.f32.mrb[0].mxu0
  %v1416 = vadd.f32 0.0, %v1415
  %v1417 = vpop.f32.mrb[0].mxu0
  %v1418 = vadd.f32 0.0, %v1417
  %1419 = vmatprep.mubr.f32.mxu0 0.0
  %1420 = vmatmul.mubr.f32.gmra.mrb[0].mxu0 %v995
  %v1421 = vpop.f32.mrb[0].mxu0
  %v1422 = vadd.f32 0.0, %v1421
  %v1423 = vpop.f32.mrb[0].mxu0
  %v1424 = vadd.f32 0.0, %v1423
  %1425 = vmatprep.mubr.f32.mxu0 0.0
  %1426 = vmatmul.mubr.f32.gmra.mrb[0].mxu0 %v998
  %v1427 = vpop.f32.mrb[0].mxu0
  %v1428 = vadd.f32 0.0, %v1427
  %v1429 = vpop.f32.mrb[0].mxu0
  %v1430 = vadd.f32 0.0, %v1429
  %1431 = vmatprep.mubr.f32.mxu0 0.0
  %1432 = vmatmul.mubr.f32.gmra.mrb[0].mxu0 %v1001
  %v1433 = vpop.f32.mrb[0].mxu0
  %v1434 = vadd.f32 0.0, %v1433
  %v1435 = vpop.f32.mrb[0].mxu0
  %v1436 = vadd.f32 0.0, %v1435
  %1437 = vmatprep.mubr.f32.mxu0 0.0
  %1438 = vmatmul.mubr.f32.gmra.mrb[0].mxu0 %v1004
  %v1439 = vpop.f32.mrb[0].mxu0
  %v1440 = vadd.f32 0.0, %v1439
  %v1441 = vpop.f32.mrb[0].mxu0
  %v1442 = vadd.f32 0.0, %v1441
  %1443 = vmatprep.mubr.f32.mxu0 0.0
  %1444 = vmatmul.mubr.f32.gmra.mrb[0].mxu0 %v1007
  %v1445 = vpop.f32.mrb[0].mxu0
  %v1446 = vadd.f32 0.0, %v1445
  %v1447 = vpop.f32.mrb[0].mxu0
  %v1448 = vadd.f32 0.0, %v1447
  %1449 = vmatprep.mubr.f32.mxu0 0.0
  %1450 = vmatmul.mubr.f32.gmra.mrb[0].mxu0 %v1010
  %v1451 = vpop.f32.mrb[0].mxu0
  %v1452 = vadd.f32 0.0, %v1451
  %v1453 = vpop.f32.mrb[0].mxu0
  %v1454 = vadd.f32 0.0, %v1453
  %1455 = vmatprep.mubr.f32.mxu0 0.0
  %1456 = vmatmul.mubr.f32.gmra.mrb[0].mxu0 %v1013
  %v1457 = vpop.f32.mrb[0].mxu0
  %v1458 = vadd.f32 0.0, %v1457
  %v1459 = vpop.f32.mrb[0].mxu0
  %v1460 = vadd.f32 0.0, %v1459
  %1461 = vmatprep.mubr.f32.mxu0 0.0
  %1462 = vmatmul.mubr.f32.gmra.mrb[0].mxu0 %v1016
  %v1463 = vpop.f32.mrb[0].mxu0
  %v1464 = vadd.f32 0.0, %v1463
  %v1465 = vpop.f32.mrb[0].mxu0
  %v1466 = vadd.f32 0.0, %v1465
  %1467 = vmatprep.mubr.f32.mxu0 0.0
  %1468 = vmatmul.mubr.f32.gmra.mrb[0].mxu0 %v1019
  %v1469 = vpop.f32.mrb[0].mxu0
  %v1470 = vadd.f32 0.0, %v1469
  %v1471 = vpop.f32.mrb[0].mxu0
  %v1472 = vadd.f32 0.0, %v1471
  %1473 = vmatprep.mubr.f32.mxu0 0.0
  %1474 = vmatmul.mubr.f32.gmra.mrb[0].mxu0 %v1022
  %v1475 = vpop.f32.mrb[0].mxu0
  %v1476 = vadd.f32 0.0, %v1475
  %v1477 = vpop.f32.mrb[0].mxu0
  %v1478 = vadd.f32 0.0, %v1477
  %1479 = vmatprep.mubr.f32.mxu0 0.0
  %1480 = vmatmul.mubr.f32.gmra.mrb[0].mxu0 %v1025
  %v1481 = vpop.f32.mrb[0].mxu0
  %v1482 = vadd.f32 0.0, %v1481
  %v1483 = vpop.f32.mrb[0].mxu0
  %v1484 = vadd.f32 0.0, %v1483
  %1485 = vdwg.mxu0
  %1486 = vmatprep.subr.mxu0 %v36
  %1487 = vmatpush1.msra.mxu0 %v35
  %1488 = vmatprep.subr.mxu0 %v46
  %1489 = vmatpush1.msra.mxu0 %v45
  %1490 = vmatprep.subr.mxu0 %v56
  %1491 = vmatpush1.msra.mxu0 %v55
  %1492 = vmatprep.subr.mxu0 %v157
  %1493 = vmatpush1.msra.mxu0 %v154
  %1494 = vmatprep.subr.mxu0 0.0
  %1495 = vmatpush1.msra.mxu0 0.0
  %1496 = vmatprep.subr.mxu0 0.0
  %1497 = vmatpush1.msra.mxu0 0.0
  %1498 = vmatprep.subr.mxu0 0.0
  %1499 = vmatpush1.msra.mxu0 0.0
  %1500 = vmatprep.subr.mxu0 0.0
  %1501 = vmatpush1.msra.mxu0 0.0
  %1502 = vmatprep.subr.mxu0 0.0
  %1503 = vmatpush1.msra.mxu0 0.0
  %1504 = vmatprep.subr.mxu0 0.0
  %1505 = vmatpush1.msra.mxu0 0.0
  %1506 = vmatprep.subr.mxu0 0.0
  %1507 = vmatpush1.msra.mxu0 0.0
  %1508 = vmatprep.subr.mxu0 0.0
  %1509 = vmatpush1.msra.mxu0 0.0
  %1510 = vmatprep.subr.mxu0 0.0
  %1511 = vmatpush1.msra.mxu0 0.0
  %1512 = vmatprep.subr.mxu0 0.0
  %1513 = vmatpush1.msra.mxu0 0.0
  %1514 = vmatprep.subr.mxu0 0.0
  %1515 = vmatpush1.msra.mxu0 0.0
  %1516 = vmatprep.subr.mxu0 0.0
  %1517 = vmatpush1.msra.mxu0 0.0
  %1518 = vmatprep.subr.mxu0 0.0
  %1519 = vmatpush1.msra.mxu0 0.0
  %1520 = vmatprep.subr.mxu0 0.0
  %1521 = vmatpush1.msra.mxu0 0.0
  %1522 = vmatprep.subr.mxu0 0.0
  %1523 = vmatpush1.msra.mxu0 0.0
  %1524 = vmatprep.subr.mxu0 0.0
  %1525 = vmatpush1.msra.mxu0 0.0
  %1526 = vmatprep.subr.mxu0 0.0
  %1527 = vmatpush1.msra.mxu0 0.0
  %1528 = vmatprep.subr.mxu0 0.0
  %1529 = vmatpush1.msra.mxu0 0.0
  %1530 = vmatprep.subr.mxu0 0.0
  %1531 = vmatpush1.msra.mxu0 0.0
  %1532 = vmatprep.subr.mxu0 0.0
  %1533 = vmatpush1.msra.mxu0 0.0
  %1534 = vmatprep.subr.mxu0 0.0
  %1535 = vmatpush1.msra.mxu0 0.0
  %1536 = vmatprep.subr.mxu0 0.0
  %1537 = vmatpush1.msra.mxu0 0.0
  %1538 = vmatprep.subr.mxu0 0.0
  %1539 = vmatpush1.msra.mxu0 0.0
  %1540 = vmatprep.subr.mxu0 0.0
  %1541 = vmatpush1.msra.mxu0 0.0
  %1542 = vmatprep.subr.mxu0 0.0
  %1543 = vmatpush1.msra.mxu0 0.0
  %1544 = vmatprep.subr.mxu0 0.0
  %1545 = vmatpush1.msra.mxu0 0.0
  %1546 = vmatprep.subr.mxu0 0.0
  %1547 = vmatpush1.msra.mxu0 0.0
  %1548 = vmatprep.subr.mxu0 0.0
  %1549 = vmatpush1.msra.mxu0 0.0
  %1550 = vmatprep.mubr.f32.mxu0 0.0
  %1551 = vmatmul.mubr.f32.gmra.mrb[0].mxu0 %v980
  %v1552 = vpop.f32.mrb[0].mxu0
  %v1553 = vadd.f32 0.0, %v1552
  %v1554 = vpop.f32.mrb[0].mxu0
  %v1555 = vadd.f32 0.0, %v1554
  %1556 = vmatprep.mubr.f32.mxu0 0.0
  %1557 = vmatmul.mubr.f32.gmra.mrb[0].mxu0 %v983
  %v1558 = vpop.f32.mrb[0].mxu0
  %v1559 = vadd.f32 0.0, %v1558
  %v1560 = vpop.f32.mrb[0].mxu0
  %v1561 = vadd.f32 0.0, %v1560
  %1562 = vmatprep.mubr.f32.mxu0 0.0
  %1563 = vmatmul.mubr.f32.gmra.mrb[0].mxu0 %v986
  %v1564 = vpop.f32.mrb[0].mxu0
  %v1565 = vadd.f32 0.0, %v1564
  %v1566 = vpop.f32.mrb[0].mxu0
  %v1567 = vadd.f32 0.0, %v1566
  %1568 = vmatprep.mubr.f32.mxu0 0.0
  %1569 = vmatmul.mubr.f32.gmra.mrb[0].mxu0 %v989
  %v1570 = vpop.f32.mrb[0].mxu0
  %v1571 = vadd.f32 0.0, %v1570
  %v1572 = vpop.f32.mrb[0].mxu0
  %v1573 = vadd.f32 0.0, %v1572
  %1574 = vmatprep.mubr.f32.mxu0 0.0
  %1575 = vmatmul.mubr.f32.gmra.mrb[0].mxu0 %v992
  %v1576 = vpop.f32.mrb[0].mxu0
  %v1577 = vadd.f32 0.0, %v1576
  %v1578 = vpop.f32.mrb[0].mxu0
  %v1579 = vadd.f32 0.0, %v1578
  %1580 = vmatprep.mubr.f32.mxu0 0.0
  %1581 = vmatmul.mubr.f32.gmra.mrb[0].mxu0 %v995
  %v1582 = vpop.f32.mrb[0].mxu0
  %v1583 = vadd.f32 0.0, %v1582
  %v1584 = vpop.f32.mrb[0].mxu0
  %v1585 = vadd.f32 0.0, %v1584
  %1586 = vmatprep.mubr.f32.mxu0 0.0
  %1587 = vmatmul.mubr.f32.gmra.mrb[0].mxu0 %v998
  %v1588 = vpop.f32.mrb[0].mxu0
  %v1589 = vadd.f32 0.0, %v1588
  %v1590 = vpop.f32.mrb[0].mxu0
  %v1591 = vadd.f32 0.0, %v1590
  %1592 = vmatprep.mubr.f32.mxu0 0.0
  %1593 = vmatmul.mubr.f32.gmra.mrb[0].mxu0 %v1001
  %v1594 = vpop.f32.mrb[0].mxu0
  %v1595 = vadd.f32 0.0, %v1594
  %v1596 = vpop.f32.mrb[0].mxu0
  %v1597 = vadd.f32 0.0, %v1596
  %1598 = vmatprep.mubr.f32.mxu0 0.0
  %1599 = vmatmul.mubr.f32.gmra.mrb[0].mxu0 %v1004
  %v1600 = vpop.f32.mrb[0].mxu0
  %v1601 = vadd.f32 0.0, %v1600
  %v1602 = vpop.f32.mrb[0].mxu0
  %v1603 = vadd.f32 0.0, %v1602
  %1604 = vmatprep.mubr.f32.mxu0 0.0
  %1605 = vmatmul.mubr.f32.gmra.mrb[0].mxu0 %v1007
  %v1606 = vpop.f32.mrb[0].mxu0
  %v1607 = vadd.f32 0.0, %v1606
  %v1608 = vpop.f32.mrb[0].mxu0
  %v1609 = vadd.f32 0.0, %v1608
  %1610 = vmatprep.mubr.f32.mxu0 0.0
  %1611 = vmatmul.mubr.f32.gmra.mrb[0].mxu0 %v1010
  %v1612 = vpop.f32.mrb[0].mxu0
  %v1613 = vadd.f32 0.0, %v1612
  %v1614 = vpop.f32.mrb[0].mxu0
  %v1615 = vadd.f32 0.0, %v1614
  %1616 = vmatprep.mubr.f32.mxu0 0.0
  %1617 = vmatmul.mubr.f32.gmra.mrb[0].mxu0 %v1013
  %v1618 = vpop.f32.mrb[0].mxu0
  %v1619 = vadd.f32 0.0, %v1618
  %v1620 = vpop.f32.mrb[0].mxu0
  %v1621 = vadd.f32 0.0, %v1620
  %1622 = vmatprep.mubr.f32.mxu0 0.0
  %1623 = vmatmul.mubr.f32.gmra.mrb[0].mxu0 %v1016
  %v1624 = vpop.f32.mrb[0].mxu0
  %v1625 = vadd.f32 0.0, %v1624
  %v1626 = vpop.f32.mrb[0].mxu0
  %v1627 = vadd.f32 0.0, %v1626
  %1628 = vmatprep.mubr.f32.mxu0 0.0
  %1629 = vmatmul.mubr.f32.gmra.mrb[0].mxu0 %v1019
  %v1630 = vpop.f32.mrb[0].mxu0
  %v1631 = vadd.f32 0.0, %v1630
  %v1632 = vpop.f32.mrb[0].mxu0
  %v1633 = vadd.f32 0.0, %v1632
  %1634 = vmatprep.mubr.f32.mxu0 0.0
  %1635 = vmatmul.mubr.f32.gmra.mrb[0].mxu0 %v1022
  %v1636 = vpop.f32.mrb[0].mxu0
  %v1637 = vadd.f32 0.0, %v1636
  %v1638 = vpop.f32.mrb[0].mxu0
  %v1639 = vadd.f32 0.0, %v1638
  %1640 = vmatprep.mubr.f32.mxu0 0.0
  %1641 = vmatmul.mubr.f32.gmra.mrb[0].mxu0 %v1025
  %v1642 = vpop.f32.mrb[0].mxu0
  %v1643 = vadd.f32 0.0, %v1642
  %v1644 = vpop.f32.mrb[0].mxu0
  %v1645 = vadd.f32 0.0, %v1644
  %1646 = vdwg.mxu0
  %1647 = vmatprep.subr.mxu0 %v38
  %1648 = vmatpush1.msra.mxu0 %v37
  %1649 = vmatprep.subr.mxu0 %v48
  %1650 = vmatpush1.msra.mxu0 %v47
  %1651 = vmatprep.subr.mxu0 %v58
  %1652 = vmatpush1.msra.mxu0 %v57
  %1653 = vmatprep.subr.mxu0 %v163
  %1654 = vmatpush1.msra.mxu0 %v160
  %1655 = vmatprep.subr.mxu0 0.0
  %1656 = vmatpush1.msra.mxu0 0.0
  %1657 = vmatprep.subr.mxu0 0.0
  %1658 = vmatpush1.msra.mxu0 0.0
  %1659 = vmatprep.subr.mxu0 0.0
  %1660 = vmatpush1.msra.mxu0 0.0
  %1661 = vmatprep.subr.mxu0 0.0
  %1662 = vmatpush1.msra.mxu0 0.0
  %1663 = vmatprep.subr.mxu0 0.0
  %1664 = vmatpush1.msra.mxu0 0.0
  %1665 = vmatprep.subr.mxu0 0.0
  %1666 = vmatpush1.msra.mxu0 0.0
  %1667 = vmatprep.subr.mxu0 0.0
  %1668 = vmatpush1.msra.mxu0 0.0
  %1669 = vmatprep.subr.mxu0 0.0
  %1670 = vmatpush1.msra.mxu0 0.0
  %1671 = vmatprep.subr.mxu0 0.0
  %1672 = vmatpush1.msra.mxu0 0.0
  %1673 = vmatprep.subr.mxu0 0.0
  %1674 = vmatpush1.msra.mxu0 0.0
  %1675 = vmatprep.subr.mxu0 0.0
  %1676 = vmatpush1.msra.mxu0 0.0
  %1677 = vmatprep.subr.mxu0 0.0
  %1678 = vmatpush1.msra.mxu0 0.0
  %1679 = vmatprep.subr.mxu0 0.0
  %1680 = vmatpush1.msra.mxu0 0.0
  %1681 = vmatprep.subr.mxu0 0.0
  %1682 = vmatpush1.msra.mxu0 0.0
  %1683 = vmatprep.subr.mxu0 0.0
  %1684 = vmatpush1.msra.mxu0 0.0
  %1685 = vmatprep.subr.mxu0 0.0
  %1686 = vmatpush1.msra.mxu0 0.0
  %1687 = vmatprep.subr.mxu0 0.0
  %1688 = vmatpush1.msra.mxu0 0.0
  %1689 = vmatprep.subr.mxu0 0.0
  %1690 = vmatpush1.msra.mxu0 0.0
  %1691 = vmatprep.subr.mxu0 0.0
  %1692 = vmatpush1.msra.mxu0 0.0
  %1693 = vmatprep.subr.mxu0 0.0
  %1694 = vmatpush1.msra.mxu0 0.0
  %1695 = vmatprep.subr.mxu0 0.0
  %1696 = vmatpush1.msra.mxu0 0.0
  %1697 = vmatprep.subr.mxu0 0.0
  %1698 = vmatpush1.msra.mxu0 0.0
  %1699 = vmatprep.subr.mxu0 0.0
  %1700 = vmatpush1.msra.mxu0 0.0
  %1701 = vmatprep.subr.mxu0 0.0
  %1702 = vmatpush1.msra.mxu0 0.0
  %1703 = vmatprep.subr.mxu0 0.0
  %1704 = vmatpush1.msra.mxu0 0.0
  %1705 = vmatprep.subr.mxu0 0.0
  %1706 = vmatpush1.msra.mxu0 0.0
  %1707 = vmatprep.subr.mxu0 0.0
  %1708 = vmatpush1.msra.mxu0 0.0
  %1709 = vmatprep.subr.mxu0 0.0
  %1710 = vmatpush1.msra.mxu0 0.0
  %1711 = vmatprep.mubr.f32.mxu0 0.0
  %1712 = vmatmul.mubr.f32.gmra.mrb[0].mxu0 %v980
  %v1713 = vpop.f32.mrb[0].mxu0
  %v1714 = vadd.f32 0.0, %v1713
  %v1715 = vpop.f32.mrb[0].mxu0
  %v1716 = vadd.f32 0.0, %v1715
  %1717 = vmatprep.mubr.f32.mxu0 0.0
  %1718 = vmatmul.mubr.f32.gmra.mrb[0].mxu0 %v983
  %v1719 = vpop.f32.mrb[0].mxu0
  %v1720 = vadd.f32 0.0, %v1719
  %v1721 = vpop.f32.mrb[0].mxu0
  %v1722 = vadd.f32 0.0, %v1721
  %1723 = vmatprep.mubr.f32.mxu0 0.0
  %1724 = vmatmul.mubr.f32.gmra.mrb[0].mxu0 %v986
  %v1725 = vpop.f32.mrb[0].mxu0
  %v1726 = vadd.f32 0.0, %v1725
  %v1727 = vpop.f32.mrb[0].mxu0
  %v1728 = vadd.f32 0.0, %v1727
  %1729 = vmatprep.mubr.f32.mxu0 0.0
  %1730 = vmatmul.mubr.f32.gmra.mrb[0].mxu0 %v989
  %v1731 = vpop.f32.mrb[0].mxu0
  %v1732 = vadd.f32 0.0, %v1731
  %v1733 = vpop.f32.mrb[0].mxu0
  %v1734 = vadd.f32 0.0, %v1733
  %1735 = vmatprep.mubr.f32.mxu0 0.0
  %1736 = vmatmul.mubr.f32.gmra.mrb[0].mxu0 %v992
  %v1737 = vpop.f32.mrb[0].mxu0
  %v1738 = vadd.f32 0.0, %v1737
  %v1739 = vpop.f32.mrb[0].mxu0
  %v1740 = vadd.f32 0.0, %v1739
  %1741 = vmatprep.mubr.f32.mxu0 0.0
  %1742 = vmatmul.mubr.f32.gmra.mrb[0].mxu0 %v995
  %v1743 = vpop.f32.mrb[0].mxu0
  %v1744 = vadd.f32 0.0, %v1743
  %v1745 = vpop.f32.mrb[0].mxu0
  %v1746 = vadd.f32 0.0, %v1745
  %1747 = vmatprep.mubr.f32.mxu0 0.0
  %1748 = vmatmul.mubr.f32.gmra.mrb[0].mxu0 %v998
  %v1749 = vpop.f32.mrb[0].mxu0
  %v1750 = vadd.f32 0.0, %v1749
  %v1751 = vpop.f32.mrb[0].mxu0
  %v1752 = vadd.f32 0.0, %v1751
  %1753 = vmatprep.mubr.f32.mxu0 0.0
  %1754 = vmatmul.mubr.f32.gmra.mrb[0].mxu0 %v1001
  %v1755 = vpop.f32.mrb[0].mxu0
  %v1756 = vadd.f32 0.0, %v1755
  %v1757 = vpop.f32.mrb[0].mxu0
  %v1758 = vadd.f32 0.0, %v1757
  %1759 = vmatprep.mubr.f32.mxu0 0.0
  %1760 = vmatmul.mubr.f32.gmra.mrb[0].mxu0 %v1004
  %v1761 = vpop.f32.mrb[0].mxu0
  %v1762 = vadd.f32 0.0, %v1761
  %v1763 = vpop.f32.mrb[0].mxu0
  %v1764 = vadd.f32 0.0, %v1763
  %1765 = vmatprep.mubr.f32.mxu0 0.0
  %1766 = vmatmul.mubr.f32.gmra.mrb[0].mxu0 %v1007
  %v1767 = vpop.f32.mrb[0].mxu0
  %v1768 = vadd.f32 0.0, %v1767
  %v1769 = vpop.f32.mrb[0].mxu0
  %v1770 = vadd.f32 0.0, %v1769
  %1771 = vmatprep.mubr.f32.mxu0 0.0
  %1772 = vmatmul.mubr.f32.gmra.mrb[0].mxu0 %v1010
  %v1773 = vpop.f32.mrb[0].mxu0
  %v1774 = vadd.f32 0.0, %v1773
  %v1775 = vpop.f32.mrb[0].mxu0
  %v1776 = vadd.f32 0.0, %v1775
  %1777 = vmatprep.mubr.f32.mxu0 0.0
  %1778 = vmatmul.mubr.f32.gmra.mrb[0].mxu0 %v1013
  %v1779 = vpop.f32.mrb[0].mxu0
  %v1780 = vadd.f32 0.0, %v1779
  %v1781 = vpop.f32.mrb[0].mxu0
  %v1782 = vadd.f32 0.0, %v1781
  %1783 = vmatprep.mubr.f32.mxu0 0.0
  %1784 = vmatmul.mubr.f32.gmra.mrb[0].mxu0 %v1016
  %v1785 = vpop.f32.mrb[0].mxu0
  %v1786 = vadd.f32 0.0, %v1785
  %v1787 = vpop.f32.mrb[0].mxu0
  %v1788 = vadd.f32 0.0, %v1787
  %1789 = vmatprep.mubr.f32.mxu0 0.0
  %1790 = vmatmul.mubr.f32.gmra.mrb[0].mxu0 %v1019
  %v1791 = vpop.f32.mrb[0].mxu0
  %v1792 = vadd.f32 0.0, %v1791
  %v1793 = vpop.f32.mrb[0].mxu0
  %v1794 = vadd.f32 0.0, %v1793
  %1795 = vmatprep.mubr.f32.mxu0 0.0
  %1796 = vmatmul.mubr.f32.gmra.mrb[0].mxu0 %v1022
  %v1797 = vpop.f32.mrb[0].mxu0
  %v1798 = vadd.f32 0.0, %v1797
  %v1799 = vpop.f32.mrb[0].mxu0
  %v1800 = vadd.f32 0.0, %v1799
  %1801 = vmatprep.mubr.f32.mxu0 0.0
  %1802 = vmatmul.mubr.f32.gmra.mrb[0].mxu0 %v1025
  %v1803 = vpop.f32.mrb[0].mxu0
  %v1804 = vadd.f32 0.0, %v1803
  %v1805 = vpop.f32.mrb[0].mxu0
  %v1806 = vadd.f32 0.0, %v1805
  %1807 = vdwg.mxu0
  %s1808 = scalar_lea.vmem %s0, 256
  %v1809 = vld [vmem:[%s1808] sm:$0xff]
  %v1810 = vld [vmem:[%s1808 + $0x8] sm:$0xff]
  %v1811 = vld [vmem:[%s1808 + $0x10] sm:$0xff]
  %v1812 = vld [vmem:[%s1808 + $0x18] sm:$0xff]
  %v1813 = vld [vmem:[%s1808 + $0x20] sm:$0xff]
  %v1814 = vld [vmem:[%s1808 + $0x28] sm:$0xff]
  %v1815 = vld [vmem:[%s1808 + $0x30] sm:$0xff]
  %v1816 = vld [vmem:[%s1808 + $0x38] sm:$0xff]
  %v1817 = vld [vmem:[%s1808 + $0x40] sm:$0xff]
  %v1818 = vld [vmem:[%s1808 + $0x48] sm:$0xff]
  %v1819 = vld [vmem:[%s1808 + $0x50] sm:$0xff]
  %v1820 = vld [vmem:[%s1808 + $0x58] sm:$0xff]
  %v1821 = vld [vmem:[%s1808 + $0x60] sm:$0xff]
  %v1822 = vld [vmem:[%s1808 + $0x68] sm:$0xff]
  %v1823 = vld [vmem:[%s1808 + $0x70] sm:$0xff]
  %v1824 = vld [vmem:[%s1808 + $0x78] sm:$0xff]
  %v1826 = vsel %vm85, %v1809, 0
  %v1829 = vsel %vm85, %v1810, 0
  %v1832 = vsel %vm85, %v1811, 0
  %v1835 = vsel %vm85, %v1812, 0
  %v1838 = vsel %vm85, %v1813, 0
  %v1841 = vsel %vm85, %v1814, 0
  %v1844 = vsel %vm85, %v1815, 0
  %v1847 = vsel %vm85, %v1816, 0
  %v1850 = vsel %vm85, %v1817, 0
  %v1853 = vsel %vm85, %v1818, 0
  %v1856 = vsel %vm85, %v1819, 0
  %v1859 = vsel %vm85, %v1820, 0
  %v1862 = vsel %vm85, %v1821, 0
  %v1865 = vsel %vm85, %v1822, 0
  %v1868 = vsel %vm85, %v1823, 0
  %v1871 = vsel %vm85, %v1824, 0
  %1873 = vmatprep.subr.mxu0 %v30
  %1874 = vmatpush1.msra.mxu0 %v29
  %1875 = vmatprep.subr.mxu0 %v40
  %1876 = vmatpush1.msra.mxu0 %v39
  %1877 = vmatprep.subr.mxu0 %v50
  %1878 = vmatpush1.msra.mxu0 %v49
  %1879 = vmatprep.subr.mxu0 %v139
  %1880 = vmatpush1.msra.mxu0 %v136
  %1881 = vmatprep.subr.mxu0 0.0
  %1882 = vmatpush1.msra.mxu0 0.0
  %1883 = vmatprep.subr.mxu0 0.0
  %1884 = vmatpush1.msra.mxu0 0.0
  %1885 = vmatprep.subr.mxu0 0.0
  %1886 = vmatpush1.msra.mxu0 0.0
  %1887 = vmatprep.subr.mxu0 0.0
  %1888 = vmatpush1.msra.mxu0 0.0
  %1889 = vmatprep.subr.mxu0 0.0
  %1890 = vmatpush1.msra.mxu0 0.0
  %1891 = vmatprep.subr.mxu0 0.0
  %1892 = vmatpush1.msra.mxu0 0.0
  %1893 = vmatprep.subr.mxu0 0.0
  %1894 = vmatpush1.msra.mxu0 0.0
  %1895 = vmatprep.subr.mxu0 0.0
  %1896 = vmatpush1.msra.mxu0 0.0
  %1897 = vmatprep.subr.mxu0 0.0
  %1898 = vmatpush1.msra.mxu0 0.0
  %1899 = vmatprep.subr.mxu0 0.0
  %1900 = vmatpush1.msra.mxu0 0.0
  %1901 = vmatprep.subr.mxu0 0.0
  %1902 = vmatpush1.msra.mxu0 0.0
  %1903 = vmatprep.subr.mxu0 0.0
  %1904 = vmatpush1.msra.mxu0 0.0
  %1905 = vmatprep.subr.mxu0 0.0
  %1906 = vmatpush1.msra.mxu0 0.0
  %1907 = vmatprep.subr.mxu0 0.0
  %1908 = vmatpush1.msra.mxu0 0.0
  %1909 = vmatprep.subr.mxu0 0.0
  %1910 = vmatpush1.msra.mxu0 0.0
  %1911 = vmatprep.subr.mxu0 0.0
  %1912 = vmatpush1.msra.mxu0 0.0
  %1913 = vmatprep.subr.mxu0 0.0
  %1914 = vmatpush1.msra.mxu0 0.0
  %1915 = vmatprep.subr.mxu0 0.0
  %1916 = vmatpush1.msra.mxu0 0.0
  %1917 = vmatprep.subr.mxu0 0.0
  %1918 = vmatpush1.msra.mxu0 0.0
  %1919 = vmatprep.subr.mxu0 0.0
  %1920 = vmatpush1.msra.mxu0 0.0
  %1921 = vmatprep.subr.mxu0 0.0
  %1922 = vmatpush1.msra.mxu0 0.0
  %1923 = vmatprep.subr.mxu0 0.0
  %1924 = vmatpush1.msra.mxu0 0.0
  %1925 = vmatprep.subr.mxu0 0.0
  %1926 = vmatpush1.msra.mxu0 0.0
  %1927 = vmatprep.subr.mxu0 0.0
  %1928 = vmatpush1.msra.mxu0 0.0
  %1929 = vmatprep.subr.mxu0 0.0
  %1930 = vmatpush1.msra.mxu0 0.0
  %1931 = vmatprep.subr.mxu0 0.0
  %1932 = vmatpush1.msra.mxu0 0.0
  %1933 = vmatprep.subr.mxu0 0.0
  %1934 = vmatpush1.msra.mxu0 0.0
  %1935 = vmatprep.subr.mxu0 0.0
  %1936 = vmatpush1.msra.mxu0 0.0
  %1937 = vmatprep.mubr.f32.mxu0 0.0
  %1938 = vmatmul.mubr.f32.gmra.mrb[0].mxu0 %v1826
  %v1939 = vpop.f32.mrb[0].mxu0
  %v1940 = vadd.f32 0.0, %v1939
  %v1941 = vpop.f32.mrb[0].mxu0
  %v1942 = vadd.f32 0.0, %v1941
  %1943 = vmatprep.mubr.f32.mxu0 0.0
  %1944 = vmatmul.mubr.f32.gmra.mrb[0].mxu0 %v1829
  %v1945 = vpop.f32.mrb[0].mxu0
  %v1946 = vpop.f32.mrb[0].mxu0
  %1947 = vmatprep.mubr.f32.mxu0 0.0
  %1948 = vmatmul.mubr.f32.gmra.mrb[0].mxu0 %v1832
  %v1949 = vpop.f32.mrb[0].mxu0
  %v1950 = vadd.f32 0.0, %v1949
  %v1951 = vpop.f32.mrb[0].mxu0
  %v1952 = vadd.f32 0.0, %v1951
  %1953 = vmatprep.mubr.f32.mxu0 0.0
  %1954 = vmatmul.mubr.f32.gmra.mrb[0].mxu0 %v1835
  %v1955 = vpop.f32.mrb[0].mxu0
  %v1956 = vpop.f32.mrb[0].mxu0
  %1957 = vmatprep.mubr.f32.mxu0 0.0
  %1958 = vmatmul.mubr.f32.gmra.mrb[0].mxu0 %v1838
  %v1959 = vpop.f32.mrb[0].mxu0
  %v1960 = vadd.f32 0.0, %v1959
  %v1961 = vpop.f32.mrb[0].mxu0
  %v1962 = vadd.f32 0.0, %v1961
  %1963 = vmatprep.mubr.f32.mxu0 0.0
  %1964 = vmatmul.mubr.f32.gmra.mrb[0].mxu0 %v1841
  %v1965 = vpop.f32.mrb[0].mxu0
  %v1966 = vpop.f32.mrb[0].mxu0
  %1967 = vmatprep.mubr.f32.mxu0 0.0
  %1968 = vmatmul.mubr.f32.gmra.mrb[0].mxu0 %v1844
  %v1969 = vpop.f32.mrb[0].mxu0
  %v1970 = vadd.f32 0.0, %v1969
  %v1971 = vpop.f32.mrb[0].mxu0
  %v1972 = vadd.f32 0.0, %v1971
  %1973 = vmatprep.mubr.f32.mxu0 0.0
  %1974 = vmatmul.mubr.f32.gmra.mrb[0].mxu0 %v1847
  %v1975 = vpop.f32.mrb[0].mxu0
  %v1976 = vpop.f32.mrb[0].mxu0
  %1977 = vmatprep.mubr.f32.mxu0 0.0
  %1978 = vmatmul.mubr.f32.gmra.mrb[0].mxu0 %v1850
  %v1979 = vpop.f32.mrb[0].mxu0
  %v1980 = vadd.f32 0.0, %v1979
  %v1981 = vpop.f32.mrb[0].mxu0
  %v1982 = vadd.f32 0.0, %v1981
  %1983 = vmatprep.mubr.f32.mxu0 0.0
  %1984 = vmatmul.mubr.f32.gmra.mrb[0].mxu0 %v1853
  %v1985 = vpop.f32.mrb[0].mxu0
  %v1986 = vpop.f32.mrb[0].mxu0
  %1987 = vmatprep.mubr.f32.mxu0 0.0
  %1988 = vmatmul.mubr.f32.gmra.mrb[0].mxu0 %v1856
  %v1989 = vpop.f32.mrb[0].mxu0
  %v1990 = vadd.f32 0.0, %v1989
  %v1991 = vpop.f32.mrb[0].mxu0
  %v1992 = vadd.f32 0.0, %v1991
  %1993 = vmatprep.mubr.f32.mxu0 0.0
  %1994 = vmatmul.mubr.f32.gmra.mrb[0].mxu0 %v1859
  %v1995 = vpop.f32.mrb[0].mxu0
  %v1996 = vpop.f32.mrb[0].mxu0
  %1997 = vmatprep.mubr.f32.mxu0 0.0
  %1998 = vmatmul.mubr.f32.gmra.mrb[0].mxu0 %v1862
  %v1999 = vpop.f32.mrb[0].mxu0
  %v2000 = vadd.f32 0.0, %v1999
  %v2001 = vpop.f32.mrb[0].mxu0
  %v2002 = vadd.f32 0.0, %v2001
  %2003 = vmatprep.mubr.f32.mxu0 0.0
  %2004 = vmatmul.mubr.f32.gmra.mrb[0].mxu0 %v1865
  %v2005 = vpop.f32.mrb[0].mxu0
  %v2006 = vpop.f32.mrb[0].mxu0
  %2007 = vmatprep.mubr.f32.mxu0 0.0
  %2008 = vmatmul.mubr.f32.gmra.mrb[0].mxu0 %v1868
  %v2009 = vpop.f32.mrb[0].mxu0
  %v2010 = vadd.f32 0.0, %v2009
  %v2011 = vpop.f32.mrb[0].mxu0
  %v2012 = vadd.f32 0.0, %v2011
  %2013 = vmatprep.mubr.f32.mxu0 0.0
  %2014 = vmatmul.mubr.f32.gmra.mrb[0].mxu0 %v1871
  %v2015 = vpop.f32.mrb[0].mxu0
  %v2016 = vpop.f32.mrb[0].mxu0
  %2017 = vdwg.mxu0
  %2018 = vmatprep.subr.mxu0 %v32
  %2019 = vmatpush1.msra.mxu0 %v31
  %2020 = vmatprep.subr.mxu0 %v42
  %2021 = vmatpush1.msra.mxu0 %v41
  %2022 = vmatprep.subr.mxu0 %v52
  %2023 = vmatpush1.msra.mxu0 %v51
  %2024 = vmatprep.subr.mxu0 %v145
  %2025 = vmatpush1.msra.mxu0 %v142
  %2026 = vmatprep.subr.mxu0 0.0
  %2027 = vmatpush1.msra.mxu0 0.0
  %2028 = vmatprep.subr.mxu0 0.0
  %2029 = vmatpush1.msra.mxu0 0.0
  %2030 = vmatprep.subr.mxu0 0.0
  %2031 = vmatpush1.msra.mxu0 0.0
  %2032 = vmatprep.subr.mxu0 0.0
  %2033 = vmatpush1.msra.mxu0 0.0
  %2034 = vmatprep.subr.mxu0 0.0
  %2035 = vmatpush1.msra.mxu0 0.0
  %2036 = vmatprep.subr.mxu0 0.0
  %2037 = vmatpush1.msra.mxu0 0.0
  %2038 = vmatprep.subr.mxu0 0.0
  %2039 = vmatpush1.msra.mxu0 0.0
  %2040 = vmatprep.subr.mxu0 0.0
  %2041 = vmatpush1.msra.mxu0 0.0
  %2042 = vmatprep.subr.mxu0 0.0
  %2043 = vmatpush1.msra.mxu0 0.0
  %2044 = vmatprep.subr.mxu0 0.0
  %2045 = vmatpush1.msra.mxu0 0.0
  %2046 = vmatprep.subr.mxu0 0.0
  %2047 = vmatpush1.msra.mxu0 0.0
  %2048 = vmatprep.subr.mxu0 0.0
  %2049 = vmatpush1.msra.mxu0 0.0
  %2050 = vmatprep.subr.mxu0 0.0
  %2051 = vmatpush1.msra.mxu0 0.0
  %2052 = vmatprep.subr.mxu0 0.0
  %2053 = vmatpush1.msra.mxu0 0.0
  %2054 = vmatprep.subr.mxu0 0.0
  %2055 = vmatpush1.msra.mxu0 0.0
  %2056 = vmatprep.subr.mxu0 0.0
  %2057 = vmatpush1.msra.mxu0 0.0
  %2058 = vmatprep.subr.mxu0 0.0
  %2059 = vmatpush1.msra.mxu0 0.0
  %2060 = vmatprep.subr.mxu0 0.0
  %2061 = vmatpush1.msra.mxu0 0.0
  %2062 = vmatprep.subr.mxu0 0.0
  %2063 = vmatpush1.msra.mxu0 0.0
  %2064 = vmatprep.subr.mxu0 0.0
  %2065 = vmatpush1.msra.mxu0 0.0
  %2066 = vmatprep.subr.mxu0 0.0
  %2067 = vmatpush1.msra.mxu0 0.0
  %2068 = vmatprep.subr.mxu0 0.0
  %2069 = vmatpush1.msra.mxu0 0.0
  %2070 = vmatprep.subr.mxu0 0.0
  %2071 = vmatpush1.msra.mxu0 0.0
  %2072 = vmatprep.subr.mxu0 0.0
  %2073 = vmatpush1.msra.mxu0 0.0
  %2074 = vmatprep.subr.mxu0 0.0
  %2075 = vmatpush1.msra.mxu0 0.0
  %2076 = vmatprep.subr.mxu0 0.0
  %2077 = vmatpush1.msra.mxu0 0.0
  %2078 = vmatprep.subr.mxu0 0.0
  %2079 = vmatpush1.msra.mxu0 0.0
  %2080 = vmatprep.subr.mxu0 0.0
  %2081 = vmatpush1.msra.mxu0 0.0
  %2082 = vmatprep.mubr.f32.mxu0 0.0
  %2083 = vmatmul.mubr.f32.gmra.mrb[0].mxu0 %v1826
  %v2084 = vpop.f32.mrb[0].mxu0
  %v2085 = vadd.f32 0.0, %v2084
  %v2086 = vpop.f32.mrb[0].mxu0
  %v2087 = vadd.f32 0.0, %v2086
  %2088 = vmatprep.mubr.f32.mxu0 0.0
  %2089 = vmatmul.mubr.f32.gmra.mrb[0].mxu0 %v1829
  %v2090 = vpop.f32.mrb[0].mxu0
  %v2091 = vpop.f32.mrb[0].mxu0
  %2092 = vmatprep.mubr.f32.mxu0 0.0
  %2093 = vmatmul.mubr.f32.gmra.mrb[0].mxu0 %v1832
  %v2094 = vpop.f32.mrb[0].mxu0
  %v2095 = vadd.f32 0.0, %v2094
  %v2096 = vpop.f32.mrb[0].mxu0
  %v2097 = vadd.f32 0.0, %v2096
  %2098 = vmatprep.mubr.f32.mxu0 0.0
  %2099 = vmatmul.mubr.f32.gmra.mrb[0].mxu0 %v1835
  %v2100 = vpop.f32.mrb[0].mxu0
  %v2101 = vpop.f32.mrb[0].mxu0
  %2102 = vmatprep.mubr.f32.mxu0 0.0
  %2103 = vmatmul.mubr.f32.gmra.mrb[0].mxu0 %v1838
  %v2104 = vpop.f32.mrb[0].mxu0
  %v2105 = vadd.f32 0.0, %v2104
  %v2106 = vpop.f32.mrb[0].mxu0
  %v2107 = vadd.f32 0.0, %v2106
  %2108 = vmatprep.mubr.f32.mxu0 0.0
  %2109 = vmatmul.mubr.f32.gmra.mrb[0].mxu0 %v1841
  %v2110 = vpop.f32.mrb[0].mxu0
  %v2111 = vpop.f32.mrb[0].mxu0
  %2112 = vmatprep.mubr.f32.mxu0 0.0
  %2113 = vmatmul.mubr.f32.gmra.mrb[0].mxu0 %v1844
  %v2114 = vpop.f32.mrb[0].mxu0
  %v2115 = vadd.f32 0.0, %v2114
  %v2116 = vpop.f32.mrb[0].mxu0
  %v2117 = vadd.f32 0.0, %v2116
  %2118 = vmatprep.mubr.f32.mxu0 0.0
  %2119 = vmatmul.mubr.f32.gmra.mrb[0].mxu0 %v1847
  %v2120 = vpop.f32.mrb[0].mxu0
  %v2121 = vpop.f32.mrb[0].mxu0
  %2122 = vmatprep.mubr.f32.mxu0 0.0
  %2123 = vmatmul.mubr.f32.gmra.mrb[0].mxu0 %v1850
  %v2124 = vpop.f32.mrb[0].mxu0
  %v2125 = vadd.f32 0.0, %v2124
  %v2126 = vpop.f32.mrb[0].mxu0
  %v2127 = vadd.f32 0.0, %v2126
  %2128 = vmatprep.mubr.f32.mxu0 0.0
  %2129 = vmatmul.mubr.f32.gmra.mrb[0].mxu0 %v1853
  %v2130 = vpop.f32.mrb[0].mxu0
  %v2131 = vpop.f32.mrb[0].mxu0
  %2132 = vmatprep.mubr.f32.mxu0 0.0
  %2133 = vmatmul.mubr.f32.gmra.mrb[0].mxu0 %v1856
  %v2134 = vpop.f32.mrb[0].mxu0
  %v2135 = vadd.f32 0.0, %v2134
  %v2136 = vpop.f32.mrb[0].mxu0
  %v2137 = vadd.f32 0.0, %v2136
  %2138 = vmatprep.mubr.f32.mxu0 0.0
  %2139 = vmatmul.mubr.f32.gmra.mrb[0].mxu0 %v1859
  %v2140 = vpop.f32.mrb[0].mxu0
  %v2141 = vpop.f32.mrb[0].mxu0
  %2142 = vmatprep.mubr.f32.mxu0 0.0
  %2143 = vmatmul.mubr.f32.gmra.mrb[0].mxu0 %v1862
  %v2144 = vpop.f32.mrb[0].mxu0
  %v2145 = vadd.f32 0.0, %v2144
  %v2146 = vpop.f32.mrb[0].mxu0
  %v2147 = vadd.f32 0.0, %v2146
  %2148 = vmatprep.mubr.f32.mxu0 0.0
  %2149 = vmatmul.mubr.f32.gmra.mrb[0].mxu0 %v1865
  %v2150 = vpop.f32.mrb[0].mxu0
  %v2151 = vpop.f32.mrb[0].mxu0
  %2152 = vmatprep.mubr.f32.mxu0 0.0
  %2153 = vmatmul.mubr.f32.gmra.mrb[0].mxu0 %v1868
  %v2154 = vpop.f32.mrb[0].mxu0
  %v2155 = vadd.f32 0.0, %v2154
  %v2156 = vpop.f32.mrb[0].mxu0
  %v2157 = vadd.f32 0.0, %v2156
  %2158 = vmatprep.mubr.f32.mxu0 0.0
  %2159 = vmatmul.mubr.f32.gmra.mrb[0].mxu0 %v1871
  %v2160 = vpop.f32.mrb[0].mxu0
  %v2161 = vpop.f32.mrb[0].mxu0
  %2162 = vdwg.mxu0
  %2163 = vmatprep.subr.mxu0 %v34
  %2164 = vmatpush1.msra.mxu0 %v33
  %2165 = vmatprep.subr.mxu0 %v44
  %2166 = vmatpush1.msra.mxu0 %v43
  %2167 = vmatprep.subr.mxu0 %v54
  %2168 = vmatpush1.msra.mxu0 %v53
  %2169 = vmatprep.subr.mxu0 %v151
  %2170 = vmatpush1.msra.mxu0 %v148
  %2171 = vmatprep.subr.mxu0 0.0
  %2172 = vmatpush1.msra.mxu0 0.0
  %2173 = vmatprep.subr.mxu0 0.0
  %2174 = vmatpush1.msra.mxu0 0.0
  %2175 = vmatprep.subr.mxu0 0.0
  %2176 = vmatpush1.msra.mxu0 0.0
  %2177 = vmatprep.subr.mxu0 0.0
  %2178 = vmatpush1.msra.mxu0 0.0
  %2179 = vmatprep.subr.mxu0 0.0
  %2180 = vmatpush1.msra.mxu0 0.0
  %2181 = vmatprep.subr.mxu0 0.0
  %2182 = vmatpush1.msra.mxu0 0.0
  %2183 = vmatprep.subr.mxu0 0.0
  %2184 = vmatpush1.msra.mxu0 0.0
  %2185 = vmatprep.subr.mxu0 0.0
  %2186 = vmatpush1.msra.mxu0 0.0
  %2187 = vmatprep.subr.mxu0 0.0
  %2188 = vmatpush1.msra.mxu0 0.0
  %2189 = vmatprep.subr.mxu0 0.0
  %2190 = vmatpush1.msra.mxu0 0.0
  %2191 = vmatprep.subr.mxu0 0.0
  %2192 = vmatpush1.msra.mxu0 0.0
  %2193 = vmatprep.subr.mxu0 0.0
  %2194 = vmatpush1.msra.mxu0 0.0
  %2195 = vmatprep.subr.mxu0 0.0
  %2196 = vmatpush1.msra.mxu0 0.0
  %2197 = vmatprep.subr.mxu0 0.0
  %2198 = vmatpush1.msra.mxu0 0.0
  %2199 = vmatprep.subr.mxu0 0.0
  %2200 = vmatpush1.msra.mxu0 0.0
  %2201 = vmatprep.subr.mxu0 0.0
  %2202 = vmatpush1.msra.mxu0 0.0
  %2203 = vmatprep.subr.mxu0 0.0
  %2204 = vmatpush1.msra.mxu0 0.0
  %2205 = vmatprep.subr.mxu0 0.0
  %2206 = vmatpush1.msra.mxu0 0.0
  %2207 = vmatprep.subr.mxu0 0.0
  %2208 = vmatpush1.msra.mxu0 0.0
  %2209 = vmatprep.subr.mxu0 0.0
  %2210 = vmatpush1.msra.mxu0 0.0
  %2211 = vmatprep.subr.mxu0 0.0
  %2212 = vmatpush1.msra.mxu0 0.0
  %2213 = vmatprep.subr.mxu0 0.0
  %2214 = vmatpush1.msra.mxu0 0.0
  %2215 = vmatprep.subr.mxu0 0.0
  %2216 = vmatpush1.msra.mxu0 0.0
  %2217 = vmatprep.subr.mxu0 0.0
  %2218 = vmatpush1.msra.mxu0 0.0
  %2219 = vmatprep.subr.mxu0 0.0
  %2220 = vmatpush1.msra.mxu0 0.0
  %2221 = vmatprep.subr.mxu0 0.0
  %2222 = vmatpush1.msra.mxu0 0.0
  %2223 = vmatprep.subr.mxu0 0.0
  %2224 = vmatpush1.msra.mxu0 0.0
  %2225 = vmatprep.subr.mxu0 0.0
  %2226 = vmatpush1.msra.mxu0 0.0
  %2227 = vmatprep.mubr.f32.mxu0 0.0
  %2228 = vmatmul.mubr.f32.gmra.mrb[0].mxu0 %v1826
  %v2229 = vpop.f32.mrb[0].mxu0
  %v2230 = vadd.f32 0.0, %v2229
  %v2231 = vpop.f32.mrb[0].mxu0
  %v2232 = vadd.f32 0.0, %v2231
  %2233 = vmatprep.mubr.f32.mxu0 0.0
  %2234 = vmatmul.mubr.f32.gmra.mrb[0].mxu0 %v1829
  %v2235 = vpop.f32.mrb[0].mxu0
  %v2236 = vpop.f32.mrb[0].mxu0
  %v2237 = vadd.f32 0.0, %v2236
  %2238 = vmatprep.mubr.f32.mxu0 0.0
  %2239 = vmatmul.mubr.f32.gmra.mrb[0].mxu0 %v1832
  %v2240 = vpop.f32.mrb[0].mxu0
  %v2241 = vadd.f32 0.0, %v2240
  %v2242 = vpop.f32.mrb[0].mxu0
  %v2243 = vadd.f32 0.0, %v2242
  %2244 = vmatprep.mubr.f32.mxu0 0.0
  %2245 = vmatmul.mubr.f32.gmra.mrb[0].mxu0 %v1835
  %v2246 = vpop.f32.mrb[0].mxu0
  %v2247 = vpop.f32.mrb[0].mxu0
  %v2248 = vadd.f32 0.0, %v2247
  %2249 = vmatprep.mubr.f32.mxu0 0.0
  %2250 = vmatmul.mubr.f32.gmra.mrb[0].mxu0 %v1838
  %v2251 = vpop.f32.mrb[0].mxu0
  %v2252 = vadd.f32 0.0, %v2251
  %v2253 = vpop.f32.mrb[0].mxu0
  %v2254 = vadd.f32 0.0, %v2253
  %2255 = vmatprep.mubr.f32.mxu0 0.0
  %2256 = vmatmul.mubr.f32.gmra.mrb[0].mxu0 %v1841
  %v2257 = vpop.f32.mrb[0].mxu0
  %v2258 = vpop.f32.mrb[0].mxu0
  %v2259 = vadd.f32 0.0, %v2258
  %2260 = vmatprep.mubr.f32.mxu0 0.0
  %2261 = vmatmul.mubr.f32.gmra.mrb[0].mxu0 %v1844
  %v2262 = vpop.f32.mrb[0].mxu0
  %v2263 = vadd.f32 0.0, %v2262
  %v2264 = vpop.f32.mrb[0].mxu0
  %v2265 = vadd.f32 0.0, %v2264
  %2266 = vmatprep.mubr.f32.mxu0 0.0
  %2267 = vmatmul.mubr.f32.gmra.mrb[0].mxu0 %v1847
  %v2268 = vpop.f32.mrb[0].mxu0
  %v2269 = vpop.f32.mrb[0].mxu0
  %v2270 = vadd.f32 0.0, %v2269
  %2271 = vmatprep.mubr.f32.mxu0 0.0
  %2272 = vmatmul.mubr.f32.gmra.mrb[0].mxu0 %v1850
  %v2273 = vpop.f32.mrb[0].mxu0
  %v2274 = vadd.f32 0.0, %v2273
  %v2275 = vpop.f32.mrb[0].mxu0
  %v2276 = vadd.f32 0.0, %v2275
  %2277 = vmatprep.mubr.f32.mxu0 0.0
  %2278 = vmatmul.mubr.f32.gmra.mrb[0].mxu0 %v1853
  %v2279 = vpop.f32.mrb[0].mxu0
  %v2280 = vpop.f32.mrb[0].mxu0
  %v2281 = vadd.f32 0.0, %v2280
  %2282 = vmatprep.mubr.f32.mxu0 0.0
  %2283 = vmatmul.mubr.f32.gmra.mrb[0].mxu0 %v1856
  %v2284 = vpop.f32.mrb[0].mxu0
  %v2285 = vadd.f32 0.0, %v2284
  %v2286 = vpop.f32.mrb[0].mxu0
  %v2287 = vadd.f32 0.0, %v2286
  %2288 = vmatprep.mubr.f32.mxu0 0.0
  %2289 = vmatmul.mubr.f32.gmra.mrb[0].mxu0 %v1859
  %v2290 = vpop.f32.mrb[0].mxu0
  %v2291 = vpop.f32.mrb[0].mxu0
  %v2292 = vadd.f32 0.0, %v2291
  %2293 = vmatprep.mubr.f32.mxu0 0.0
  %2294 = vmatmul.mubr.f32.gmra.mrb[0].mxu0 %v1862
  %v2295 = vpop.f32.mrb[0].mxu0
  %v2296 = vadd.f32 0.0, %v2295
  %v2297 = vpop.f32.mrb[0].mxu0
  %v2298 = vadd.f32 0.0, %v2297
  %2299 = vmatprep.mubr.f32.mxu0 0.0
  %2300 = vmatmul.mubr.f32.gmra.mrb[0].mxu0 %v1865
  %v2301 = vpop.f32.mrb[0].mxu0
  %v2302 = vpop.f32.mrb[0].mxu0
  %v2303 = vadd.f32 0.0, %v2302
  %2304 = vmatprep.mubr.f32.mxu0 0.0
  %2305 = vmatmul.mubr.f32.gmra.mrb[0].mxu0 %v1868
  %v2306 = vpop.f32.mrb[0].mxu0
  %v2307 = vadd.f32 0.0, %v2306
  %v2308 = vpop.f32.mrb[0].mxu0
  %v2309 = vadd.f32 0.0, %v2308
  %2310 = vmatprep.mubr.f32.mxu0 0.0
  %2311 = vmatmul.mubr.f32.gmra.mrb[0].mxu0 %v1871
  %v2312 = vpop.f32.mrb[0].mxu0
  %v2313 = vpop.f32.mrb[0].mxu0
  %v2314 = vadd.f32 0.0, %v2313
  %2315 = vdwg.mxu0
  %2316 = vmatprep.subr.mxu0 %v36
  %2317 = vmatpush1.msra.mxu0 %v35
  %2318 = vmatprep.subr.mxu0 %v46
  %2319 = vmatpush1.msra.mxu0 %v45
  %2320 = vmatprep.subr.mxu0 %v56
  %2321 = vmatpush1.msra.mxu0 %v55
  %2322 = vmatprep.subr.mxu0 %v157
  %2323 = vmatpush1.msra.mxu0 %v154
  %2324 = vmatprep.subr.mxu0 0.0
  %2325 = vmatpush1.msra.mxu0 0.0
  %2326 = vmatprep.subr.mxu0 0.0
  %2327 = vmatpush1.msra.mxu0 0.0
  %2328 = vmatprep.subr.mxu0 0.0
  %2329 = vmatpush1.msra.mxu0 0.0
  %2330 = vmatprep.subr.mxu0 0.0
  %2331 = vmatpush1.msra.mxu0 0.0
  %2332 = vmatprep.subr.mxu0 0.0
  %2333 = vmatpush1.msra.mxu0 0.0
  %2334 = vmatprep.subr.mxu0 0.0
  %2335 = vmatpush1.msra.mxu0 0.0
  %2336 = vmatprep.subr.mxu0 0.0
  %2337 = vmatpush1.msra.mxu0 0.0
  %2338 = vmatprep.subr.mxu0 0.0
  %2339 = vmatpush1.msra.mxu0 0.0
  %2340 = vmatprep.subr.mxu0 0.0
  %2341 = vmatpush1.msra.mxu0 0.0
  %2342 = vmatprep.subr.mxu0 0.0
  %2343 = vmatpush1.msra.mxu0 0.0
  %2344 = vmatprep.subr.mxu0 0.0
  %2345 = vmatpush1.msra.mxu0 0.0
  %2346 = vmatprep.subr.mxu0 0.0
  %2347 = vmatpush1.msra.mxu0 0.0
  %2348 = vmatprep.subr.mxu0 0.0
  %2349 = vmatpush1.msra.mxu0 0.0
  %2350 = vmatprep.subr.mxu0 0.0
  %2351 = vmatpush1.msra.mxu0 0.0
  %2352 = vmatprep.subr.mxu0 0.0
  %2353 = vmatpush1.msra.mxu0 0.0
  %2354 = vmatprep.subr.mxu0 0.0
  %2355 = vmatpush1.msra.mxu0 0.0
  %2356 = vmatprep.subr.mxu0 0.0
  %2357 = vmatpush1.msra.mxu0 0.0
  %2358 = vmatprep.subr.mxu0 0.0
  %2359 = vmatpush1.msra.mxu0 0.0
  %2360 = vmatprep.subr.mxu0 0.0
  %2361 = vmatpush1.msra.mxu0 0.0
  %2362 = vmatprep.subr.mxu0 0.0
  %2363 = vmatpush1.msra.mxu0 0.0
  %2364 = vmatprep.subr.mxu0 0.0
  %2365 = vmatpush1.msra.mxu0 0.0
  %2366 = vmatprep.subr.mxu0 0.0
  %2367 = vmatpush1.msra.mxu0 0.0
  %2368 = vmatprep.subr.mxu0 0.0
  %2369 = vmatpush1.msra.mxu0 0.0
  %2370 = vmatprep.subr.mxu0 0.0
  %2371 = vmatpush1.msra.mxu0 0.0
  %2372 = vmatprep.subr.mxu0 0.0
  %2373 = vmatpush1.msra.mxu0 0.0
  %2374 = vmatprep.subr.mxu0 0.0
  %2375 = vmatpush1.msra.mxu0 0.0
  %2376 = vmatprep.subr.mxu0 0.0
  %2377 = vmatpush1.msra.mxu0 0.0
  %2378 = vmatprep.subr.mxu0 0.0
  %2379 = vmatpush1.msra.mxu0 0.0
  %2380 = vmatprep.mubr.f32.mxu0 0.0
  %2381 = vmatmul.mubr.f32.gmra.mrb[0].mxu0 %v1826
  %v2382 = vpop.f32.mrb[0].mxu0
  %v2383 = vadd.f32 0.0, %v2382
  %v2384 = vpop.f32.mrb[0].mxu0
  %v2385 = vadd.f32 0.0, %v2384
  %2386 = vmatprep.mubr.f32.mxu0 0.0
  %2387 = vmatmul.mubr.f32.gmra.mrb[0].mxu0 %v1829
  %v2388 = vpop.f32.mrb[0].mxu0
  %v2389 = vadd.f32 0.0, %v2388
  %v2390 = vpop.f32.mrb[0].mxu0
  %v2391 = vadd.f32 0.0, %v2390
  %2392 = vmatprep.mubr.f32.mxu0 0.0
  %2393 = vmatmul.mubr.f32.gmra.mrb[0].mxu0 %v1832
  %v2394 = vpop.f32.mrb[0].mxu0
  %v2395 = vadd.f32 0.0, %v2394
  %v2396 = vpop.f32.mrb[0].mxu0
  %v2397 = vadd.f32 0.0, %v2396
  %2398 = vmatprep.mubr.f32.mxu0 0.0
  %2399 = vmatmul.mubr.f32.gmra.mrb[0].mxu0 %v1835
  %v2400 = vpop.f32.mrb[0].mxu0
  %v2401 = vadd.f32 0.0, %v2400
  %v2402 = vpop.f32.mrb[0].mxu0
  %v2403 = vadd.f32 0.0, %v2402
  %2404 = vmatprep.mubr.f32.mxu0 0.0
  %2405 = vmatmul.mubr.f32.gmra.mrb[0].mxu0 %v1838
  %v2406 = vpop.f32.mrb[0].mxu0
  %v2407 = vadd.f32 0.0, %v2406
  %v2408 = vpop.f32.mrb[0].mxu0
  %v2409 = vadd.f32 0.0, %v2408
  %2410 = vmatprep.mubr.f32.mxu0 0.0
  %2411 = vmatmul.mubr.f32.gmra.mrb[0].mxu0 %v1841
  %v2412 = vpop.f32.mrb[0].mxu0
  %v2413 = vadd.f32 0.0, %v2412
  %v2414 = vpop.f32.mrb[0].mxu0
  %v2415 = vadd.f32 0.0, %v2414
  %2416 = vmatprep.mubr.f32.mxu0 0.0
  %2417 = vmatmul.mubr.f32.gmra.mrb[0].mxu0 %v1844
  %v2418 = vpop.f32.mrb[0].mxu0
  %v2419 = vadd.f32 0.0, %v2418
  %v2420 = vpop.f32.mrb[0].mxu0
  %v2421 = vadd.f32 0.0, %v2420
  %2422 = vmatprep.mubr.f32.mxu0 0.0
  %2423 = vmatmul.mubr.f32.gmra.mrb[0].mxu0 %v1847
  %v2424 = vpop.f32.mrb[0].mxu0
  %v2425 = vadd.f32 0.0, %v2424
  %v2426 = vpop.f32.mrb[0].mxu0
  %v2427 = vadd.f32 0.0, %v2426
  %2428 = vmatprep.mubr.f32.mxu0 0.0
  %2429 = vmatmul.mubr.f32.gmra.mrb[0].mxu0 %v1850
  %v2430 = vpop.f32.mrb[0].mxu0
  %v2431 = vadd.f32 0.0, %v2430
  %v2432 = vpop.f32.mrb[0].mxu0
  %v2433 = vadd.f32 0.0, %v2432
  %2434 = vmatprep.mubr.f32.mxu0 0.0
  %2435 = vmatmul.mubr.f32.gmra.mrb[0].mxu0 %v1853
  %v2436 = vpop.f32.mrb[0].mxu0
  %v2437 = vadd.f32 0.0, %v2436
  %v2438 = vpop.f32.mrb[0].mxu0
  %v2439 = vadd.f32 0.0, %v2438
  %2440 = vmatprep.mubr.f32.mxu0 0.0
  %2441 = vmatmul.mubr.f32.gmra.mrb[0].mxu0 %v1856
  %v2442 = vpop.f32.mrb[0].mxu0
  %v2443 = vadd.f32 0.0, %v2442
  %v2444 = vpop.f32.mrb[0].mxu0
  %v2445 = vadd.f32 0.0, %v2444
  %2446 = vmatprep.mubr.f32.mxu0 0.0
  %2447 = vmatmul.mubr.f32.gmra.mrb[0].mxu0 %v1859
  %v2448 = vpop.f32.mrb[0].mxu0
  %v2449 = vadd.f32 0.0, %v2448
  %v2450 = vpop.f32.mrb[0].mxu0
  %v2451 = vadd.f32 0.0, %v2450
  %2452 = vmatprep.mubr.f32.mxu0 0.0
  %2453 = vmatmul.mubr.f32.gmra.mrb[0].mxu0 %v1862
  %v2454 = vpop.f32.mrb[0].mxu0
  %v2455 = vadd.f32 0.0, %v2454
  %v2456 = vpop.f32.mrb[0].mxu0
  %v2457 = vadd.f32 0.0, %v2456
  %2458 = vmatprep.mubr.f32.mxu0 0.0
  %2459 = vmatmul.mubr.f32.gmra.mrb[0].mxu0 %v1865
  %v2460 = vpop.f32.mrb[0].mxu0
  %v2461 = vadd.f32 0.0, %v2460
  %v2462 = vpop.f32.mrb[0].mxu0
  %v2463 = vadd.f32 0.0, %v2462
  %2464 = vmatprep.mubr.f32.mxu0 0.0
  %2465 = vmatmul.mubr.f32.gmra.mrb[0].mxu0 %v1868
  %v2466 = vpop.f32.mrb[0].mxu0
  %v2467 = vadd.f32 0.0, %v2466
  %v2468 = vpop.f32.mrb[0].mxu0
  %v2469 = vadd.f32 0.0, %v2468
  %2470 = vmatprep.mubr.f32.mxu0 0.0
  %2471 = vmatmul.mubr.f32.gmra.mrb[0].mxu0 %v1871
  %v2472 = vpop.f32.mrb[0].mxu0
  %v2473 = vadd.f32 0.0, %v2472
  %v2474 = vpop.f32.mrb[0].mxu0
  %v2475 = vadd.f32 0.0, %v2474
  %2476 = vdwg.mxu0
  %2477 = vmatprep.subr.mxu0 %v38
  %2478 = vmatpush1.msra.mxu0 %v37
  %2479 = vmatprep.subr.mxu0 %v48
  %2480 = vmatpush1.msra.mxu0 %v47
  %2481 = vmatprep.subr.mxu0 %v58
  %2482 = vmatpush1.msra.mxu0 %v57
  %2483 = vmatprep.subr.mxu0 %v163
  %2484 = vmatpush1.msra.mxu0 %v160
  %2485 = vmatprep.subr.mxu0 0.0
  %2486 = vmatpush1.msra.mxu0 0.0
  %2487 = vmatprep.subr.mxu0 0.0
  %2488 = vmatpush1.msra.mxu0 0.0
  %2489 = vmatprep.subr.mxu0 0.0
  %2490 = vmatpush1.msra.mxu0 0.0
  %2491 = vmatprep.subr.mxu0 0.0
  %2492 = vmatpush1.msra.mxu0 0.0
  %2493 = vmatprep.subr.mxu0 0.0
  %2494 = vmatpush1.msra.mxu0 0.0
  %2495 = vmatprep.subr.mxu0 0.0
  %2496 = vmatpush1.msra.mxu0 0.0
  %2497 = vmatprep.subr.mxu0 0.0
  %2498 = vmatpush1.msra.mxu0 0.0
  %2499 = vmatprep.subr.mxu0 0.0
  %2500 = vmatpush1.msra.mxu0 0.0
  %2501 = vmatprep.subr.mxu0 0.0
  %2502 = vmatpush1.msra.mxu0 0.0
  %2503 = vmatprep.subr.mxu0 0.0
  %2504 = vmatpush1.msra.mxu0 0.0
  %2505 = vmatprep.subr.mxu0 0.0
  %2506 = vmatpush1.msra.mxu0 0.0
  %2507 = vmatprep.subr.mxu0 0.0
  %2508 = vmatpush1.msra.mxu0 0.0
  %2509 = vmatprep.subr.mxu0 0.0
  %2510 = vmatpush1.msra.mxu0 0.0
  %2511 = vmatprep.subr.mxu0 0.0
  %2512 = vmatpush1.msra.mxu0 0.0
  %2513 = vmatprep.subr.mxu0 0.0
  %2514 = vmatpush1.msra.mxu0 0.0
  %2515 = vmatprep.subr.mxu0 0.0
  %2516 = vmatpush1.msra.mxu0 0.0
  %2517 = vmatprep.subr.mxu0 0.0
  %2518 = vmatpush1.msra.mxu0 0.0
  %2519 = vmatprep.subr.mxu0 0.0
  %2520 = vmatpush1.msra.mxu0 0.0
  %2521 = vmatprep.subr.mxu0 0.0
  %2522 = vmatpush1.msra.mxu0 0.0
  %2523 = vmatprep.subr.mxu0 0.0
  %2524 = vmatpush1.msra.mxu0 0.0
  %2525 = vmatprep.subr.mxu0 0.0
  %2526 = vmatpush1.msra.mxu0 0.0
  %2527 = vmatprep.subr.mxu0 0.0
  %2528 = vmatpush1.msra.mxu0 0.0
  %2529 = vmatprep.subr.mxu0 0.0
  %2530 = vmatpush1.msra.mxu0 0.0
  %2531 = vmatprep.subr.mxu0 0.0
  %2532 = vmatpush1.msra.mxu0 0.0
  %2533 = vmatprep.subr.mxu0 0.0
  %2534 = vmatpush1.msra.mxu0 0.0
  %2535 = vmatprep.subr.mxu0 0.0
  %2536 = vmatpush1.msra.mxu0 0.0
  %2537 = vmatprep.subr.mxu0 0.0
  %2538 = vmatpush1.msra.mxu0 0.0
  %2539 = vmatprep.subr.mxu0 0.0
  %2540 = vmatpush1.msra.mxu0 0.0
  %2541 = vmatprep.mubr.f32.mxu0 0.0
  %2542 = vmatmul.mubr.f32.gmra.mrb[0].mxu0 %v1826
  %v2543 = vpop.f32.mrb[0].mxu0
  %v2544 = vadd.f32 0.0, %v2543
  %v2545 = vpop.f32.mrb[0].mxu0
  %v2546 = vadd.f32 0.0, %v2545
  %2547 = vmatprep.mubr.f32.mxu0 0.0
  %2548 = vmatmul.mubr.f32.gmra.mrb[0].mxu0 %v1829
  %v2549 = vpop.f32.mrb[0].mxu0
  %v2550 = vadd.f32 0.0, %v2549
  %v2551 = vpop.f32.mrb[0].mxu0
  %v2552 = vadd.f32 0.0, %v2551
  %2553 = vmatprep.mubr.f32.mxu0 0.0
  %2554 = vmatmul.mubr.f32.gmra.mrb[0].mxu0 %v1832
  %v2555 = vpop.f32.mrb[0].mxu0
  %v2556 = vadd.f32 0.0, %v2555
  %v2557 = vpop.f32.mrb[0].mxu0
  %v2558 = vadd.f32 0.0, %v2557
  %2559 = vmatprep.mubr.f32.mxu0 0.0
  %2560 = vmatmul.mubr.f32.gmra.mrb[0].mxu0 %v1835
  %v2561 = vpop.f32.mrb[0].mxu0
  %v2562 = vadd.f32 0.0, %v2561
  %v2563 = vpop.f32.mrb[0].mxu0
  %v2564 = vadd.f32 0.0, %v2563
  %2565 = vmatprep.mubr.f32.mxu0 0.0
  %2566 = vmatmul.mubr.f32.gmra.mrb[0].mxu0 %v1838
  %v2567 = vpop.f32.mrb[0].mxu0
  %v2568 = vadd.f32 0.0, %v2567
  %v2569 = vpop.f32.mrb[0].mxu0
  %v2570 = vadd.f32 0.0, %v2569
  %2571 = vmatprep.mubr.f32.mxu0 0.0
  %2572 = vmatmul.mubr.f32.gmra.mrb[0].mxu0 %v1841
  %v2573 = vpop.f32.mrb[0].mxu0
  %v2574 = vadd.f32 0.0, %v2573
  %v2575 = vpop.f32.mrb[0].mxu0
  %v2576 = vadd.f32 0.0, %v2575
  %2577 = vmatprep.mubr.f32.mxu0 0.0
  %2578 = vmatmul.mubr.f32.gmra.mrb[0].mxu0 %v1844
  %v2579 = vpop.f32.mrb[0].mxu0
  %v2580 = vadd.f32 0.0, %v2579
  %v2581 = vpop.f32.mrb[0].mxu0
  %v2582 = vadd.f32 0.0, %v2581
  %2583 = vmatprep.mubr.f32.mxu0 0.0
  %2584 = vmatmul.mubr.f32.gmra.mrb[0].mxu0 %v1847
  %v2585 = vpop.f32.mrb[0].mxu0
  %v2586 = vadd.f32 0.0, %v2585
  %v2587 = vpop.f32.mrb[0].mxu0
  %v2588 = vadd.f32 0.0, %v2587
  %2589 = vmatprep.mubr.f32.mxu0 0.0
  %2590 = vmatmul.mubr.f32.gmra.mrb[0].mxu0 %v1850
  %v2591 = vpop.f32.mrb[0].mxu0
  %v2592 = vadd.f32 0.0, %v2591
  %v2593 = vpop.f32.mrb[0].mxu0
  %v2594 = vadd.f32 0.0, %v2593
  %2595 = vmatprep.mubr.f32.mxu0 0.0
  %2596 = vmatmul.mubr.f32.gmra.mrb[0].mxu0 %v1853
  %v2597 = vpop.f32.mrb[0].mxu0
  %v2598 = vadd.f32 0.0, %v2597
  %v2599 = vpop.f32.mrb[0].mxu0
  %v2600 = vadd.f32 0.0, %v2599
  %2601 = vmatprep.mubr.f32.mxu0 0.0
  %2602 = vmatmul.mubr.f32.gmra.mrb[0].mxu0 %v1856
  %v2603 = vpop.f32.mrb[0].mxu0
  %v2604 = vadd.f32 0.0, %v2603
  %v2605 = vpop.f32.mrb[0].mxu0
  %v2606 = vadd.f32 0.0, %v2605
  %2607 = vmatprep.mubr.f32.mxu0 0.0
  %2608 = vmatmul.mubr.f32.gmra.mrb[0].mxu0 %v1859
  %v2609 = vpop.f32.mrb[0].mxu0
  %v2610 = vadd.f32 0.0, %v2609
  %v2611 = vpop.f32.mrb[0].mxu0
  %v2612 = vadd.f32 0.0, %v2611
  %2613 = vmatprep.mubr.f32.mxu0 0.0
  %2614 = vmatmul.mubr.f32.gmra.mrb[0].mxu0 %v1862
  %v2615 = vpop.f32.mrb[0].mxu0
  %v2616 = vadd.f32 0.0, %v2615
  %v2617 = vpop.f32.mrb[0].mxu0
  %v2618 = vadd.f32 0.0, %v2617
  %2619 = vmatprep.mubr.f32.mxu0 0.0
  %2620 = vmatmul.mubr.f32.gmra.mrb[0].mxu0 %v1865
  %v2621 = vpop.f32.mrb[0].mxu0
  %v2622 = vadd.f32 0.0, %v2621
  %v2623 = vpop.f32.mrb[0].mxu0
  %v2624 = vadd.f32 0.0, %v2623
  %2625 = vmatprep.mubr.f32.mxu0 0.0
  %2626 = vmatmul.mubr.f32.gmra.mrb[0].mxu0 %v1868
  %v2627 = vpop.f32.mrb[0].mxu0
  %v2628 = vadd.f32 0.0, %v2627
  %v2629 = vpop.f32.mrb[0].mxu0
  %v2630 = vadd.f32 0.0, %v2629
  %2631 = vmatprep.mubr.f32.mxu0 0.0
  %2632 = vmatmul.mubr.f32.gmra.mrb[0].mxu0 %v1871
  %v2633 = vpop.f32.mrb[0].mxu0
  %v2634 = vadd.f32 0.0, %v2633
  %v2635 = vpop.f32.mrb[0].mxu0
  %v2636 = vadd.f32 0.0, %v2635
  %2637 = vdwg.mxu0
  %s2638 = scalar_lea.vmem %s0, 384
  %v2639 = vld [vmem:[%s2638] sm:$0xff]
  %v2640 = vld [vmem:[%s2638 + $0x8] sm:$0xff]
  %v2641 = vld [vmem:[%s2638 + $0x10] sm:$0xff]
  %v2642 = vld [vmem:[%s2638 + $0x18] sm:$0xff]
  %v2643 = vld [vmem:[%s2638 + $0x20] sm:$0xff]
  %v2644 = vld [vmem:[%s2638 + $0x28] sm:$0xff]
  %v2645 = vld [vmem:[%s2638 + $0x30] sm:$0xff]
  %v2646 = vld [vmem:[%s2638 + $0x38] sm:$0xff]
  %v2647 = vld [vmem:[%s2638 + $0x40] sm:$0xff]
  %v2648 = vld [vmem:[%s2638 + $0x48] sm:$0xff]
  %v2649 = vld [vmem:[%s2638 + $0x50] sm:$0xff]
  %v2650 = vld [vmem:[%s2638 + $0x58] sm:$0xff]
  %v2651 = vld [vmem:[%s2638 + $0x60] sm:$0xff]
  %v2652 = vld [vmem:[%s2638 + $0x68] sm:$0xff]
  %v2653 = vld [vmem:[%s2638 + $0x70] sm:$0xff]
  %v2654 = vld [vmem:[%s2638 + $0x78] sm:$0xff]
  %v2656 = vsel %vm85, %v2639, 0
  %v2659 = vsel %vm85, %v2640, 0
  %v2662 = vsel %vm85, %v2641, 0
  %v2665 = vsel %vm85, %v2642, 0
  %v2668 = vsel %vm85, %v2643, 0
  %v2671 = vsel %vm85, %v2644, 0
  %v2674 = vsel %vm85, %v2645, 0
  %v2677 = vsel %vm85, %v2646, 0
  %v2680 = vsel %vm85, %v2647, 0
  %v2683 = vsel %vm85, %v2648, 0
  %v2686 = vsel %vm85, %v2649, 0
  %v2689 = vsel %vm85, %v2650, 0
  %v2692 = vsel %vm85, %v2651, 0
  %v2695 = vsel %vm85, %v2652, 0
  %v2698 = vsel %vm85, %v2653, 0
  %v2701 = vsel %vm85, %v2654, 0
  %2703 = vmatprep.subr.mxu0 %v30
  %2704 = vmatpush1.msra.mxu0 %v29
  %2705 = vmatprep.subr.mxu0 %v40
  %2706 = vmatpush1.msra.mxu0 %v39
  %2707 = vmatprep.subr.mxu0 %v50
  %2708 = vmatpush1.msra.mxu0 %v49
  %2709 = vmatprep.subr.mxu0 %v139
  %2710 = vmatpush1.msra.mxu0 %v136
  %2711 = vmatprep.subr.mxu0 0.0
  %2712 = vmatpush1.msra.mxu0 0.0
  %2713 = vmatprep.subr.mxu0 0.0
  %2714 = vmatpush1.msra.mxu0 0.0
  %2715 = vmatprep.subr.mxu0 0.0
  %2716 = vmatpush1.msra.mxu0 0.0
  %2717 = vmatprep.subr.mxu0 0.0
  %2718 = vmatpush1.msra.mxu0 0.0
  %2719 = vmatprep.subr.mxu0 0.0
  %2720 = vmatpush1.msra.mxu0 0.0
  %2721 = vmatprep.subr.mxu0 0.0
  %2722 = vmatpush1.msra.mxu0 0.0
  %2723 = vmatprep.subr.mxu0 0.0
  %2724 = vmatpush1.msra.mxu0 0.0
  %2725 = vmatprep.subr.mxu0 0.0
  %2726 = vmatpush1.msra.mxu0 0.0
  %2727 = vmatprep.subr.mxu0 0.0
  %2728 = vmatpush1.msra.mxu0 0.0
  %2729 = vmatprep.subr.mxu0 0.0
  %2730 = vmatpush1.msra.mxu0 0.0
  %2731 = vmatprep.subr.mxu0 0.0
  %2732 = vmatpush1.msra.mxu0 0.0
  %2733 = vmatprep.subr.mxu0 0.0
  %2734 = vmatpush1.msra.mxu0 0.0
  %2735 = vmatprep.subr.mxu0 0.0
  %2736 = vmatpush1.msra.mxu0 0.0
  %2737 = vmatprep.subr.mxu0 0.0
  %2738 = vmatpush1.msra.mxu0 0.0
  %2739 = vmatprep.subr.mxu0 0.0
  %2740 = vmatpush1.msra.mxu0 0.0
  %2741 = vmatprep.subr.mxu0 0.0
  %2742 = vmatpush1.msra.mxu0 0.0
  %2743 = vmatprep.subr.mxu0 0.0
  %2744 = vmatpush1.msra.mxu0 0.0
  %2745 = vmatprep.subr.mxu0 0.0
  %2746 = vmatpush1.msra.mxu0 0.0
  %2747 = vmatprep.subr.mxu0 0.0
  %2748 = vmatpush1.msra.mxu0 0.0
  %2749 = vmatprep.subr.mxu0 0.0
  %2750 = vmatpush1.msra.mxu0 0.0
  %2751 = vmatprep.subr.mxu0 0.0
  %2752 = vmatpush1.msra.mxu0 0.0
  %2753 = vmatprep.subr.mxu0 0.0
  %2754 = vmatpush1.msra.mxu0 0.0
  %2755 = vmatprep.subr.mxu0 0.0
  %2756 = vmatpush1.msra.mxu0 0.0
  %2757 = vmatprep.subr.mxu0 0.0
  %2758 = vmatpush1.msra.mxu0 0.0
  %2759 = vmatprep.subr.mxu0 0.0
  %2760 = vmatpush1.msra.mxu0 0.0
  %2761 = vmatprep.subr.mxu0 0.0
  %2762 = vmatpush1.msra.mxu0 0.0
  %2763 = vmatprep.subr.mxu0 0.0
  %2764 = vmatpush1.msra.mxu0 0.0
  %2765 = vmatprep.subr.mxu0 0.0
  %2766 = vmatpush1.msra.mxu0 0.0
  %2767 = vmatprep.mubr.f32.mxu0 0.0
  %2768 = vmatmul.mubr.f32.gmra.mrb[0].mxu0 %v2656
  %v2769 = vpop.f32.mrb[0].mxu0
  %v2770 = vadd.f32 0.0, %v2769
  %v2771 = vpop.f32.mrb[0].mxu0
  %v2772 = vadd.f32 0.0, %v2771
  %2773 = vmatprep.mubr.f32.mxu0 0.0
  %2774 = vmatmul.mubr.f32.gmra.mrb[0].mxu0 %v2659
  %v2775 = vpop.f32.mrb[0].mxu0
  %v2776 = vpop.f32.mrb[0].mxu0
  %2777 = vmatprep.mubr.f32.mxu0 0.0
  %2778 = vmatmul.mubr.f32.gmra.mrb[0].mxu0 %v2662
  %v2779 = vpop.f32.mrb[0].mxu0
  %v2780 = vadd.f32 0.0, %v2779
  %v2781 = vpop.f32.mrb[0].mxu0
  %v2782 = vadd.f32 0.0, %v2781
  %2783 = vmatprep.mubr.f32.mxu0 0.0
  %2784 = vmatmul.mubr.f32.gmra.mrb[0].mxu0 %v2665
  %v2785 = vpop.f32.mrb[0].mxu0
  %v2786 = vpop.f32.mrb[0].mxu0
  %2787 = vmatprep.mubr.f32.mxu0 0.0
  %2788 = vmatmul.mubr.f32.gmra.mrb[0].mxu0 %v2668
  %v2789 = vpop.f32.mrb[0].mxu0
  %v2790 = vadd.f32 0.0, %v2789
  %v2791 = vpop.f32.mrb[0].mxu0
  %v2792 = vadd.f32 0.0, %v2791
  %2793 = vmatprep.mubr.f32.mxu0 0.0
  %2794 = vmatmul.mubr.f32.gmra.mrb[0].mxu0 %v2671
  %v2795 = vpop.f32.mrb[0].mxu0
  %v2796 = vpop.f32.mrb[0].mxu0
  %2797 = vmatprep.mubr.f32.mxu0 0.0
  %2798 = vmatmul.mubr.f32.gmra.mrb[0].mxu0 %v2674
  %v2799 = vpop.f32.mrb[0].mxu0
  %v2800 = vadd.f32 0.0, %v2799
  %v2801 = vpop.f32.mrb[0].mxu0
  %v2802 = vadd.f32 0.0, %v2801
  %2803 = vmatprep.mubr.f32.mxu0 0.0
  %2804 = vmatmul.mubr.f32.gmra.mrb[0].mxu0 %v2677
  %v2805 = vpop.f32.mrb[0].mxu0
  %v2806 = vpop.f32.mrb[0].mxu0
  %2807 = vmatprep.mubr.f32.mxu0 0.0
  %2808 = vmatmul.mubr.f32.gmra.mrb[0].mxu0 %v2680
  %v2809 = vpop.f32.mrb[0].mxu0
  %v2810 = vadd.f32 0.0, %v2809
  %v2811 = vpop.f32.mrb[0].mxu0
  %v2812 = vadd.f32 0.0, %v2811
  %2813 = vmatprep.mubr.f32.mxu0 0.0
  %2814 = vmatmul.mubr.f32.gmra.mrb[0].mxu0 %v2683
  %v2815 = vpop.f32.mrb[0].mxu0
  %v2816 = vpop.f32.mrb[0].mxu0
  %2817 = vmatprep.mubr.f32.mxu0 0.0
  %2818 = vmatmul.mubr.f32.gmra.mrb[0].mxu0 %v2686
  %v2819 = vpop.f32.mrb[0].mxu0
  %v2820 = vadd.f32 0.0, %v2819
  %v2821 = vpop.f32.mrb[0].mxu0
  %v2822 = vadd.f32 0.0, %v2821
  %2823 = vmatprep.mubr.f32.mxu0 0.0
  %2824 = vmatmul.mubr.f32.gmra.mrb[0].mxu0 %v2689
  %v2825 = vpop.f32.mrb[0].mxu0
  %v2826 = vpop.f32.mrb[0].mxu0
  %2827 = vmatprep.mubr.f32.mxu0 0.0
  %2828 = vmatmul.mubr.f32.gmra.mrb[0].mxu0 %v2692
  %v2829 = vpop.f32.mrb[0].mxu0
  %v2830 = vadd.f32 0.0, %v2829
  %v2831 = vpop.f32.mrb[0].mxu0
  %v2832 = vadd.f32 0.0, %v2831
  %2833 = vmatprep.mubr.f32.mxu0 0.0
  %2834 = vmatmul.mubr.f32.gmra.mrb[0].mxu0 %v2695
  %v2835 = vpop.f32.mrb[0].mxu0
  %v2836 = vpop.f32.mrb[0].mxu0
  %2837 = vmatprep.mubr.f32.mxu0 0.0
  %2838 = vmatmul.mubr.f32.gmra.mrb[0].mxu0 %v2698
  %v2839 = vpop.f32.mrb[0].mxu0
  %v2840 = vadd.f32 0.0, %v2839
  %v2841 = vpop.f32.mrb[0].mxu0
  %v2842 = vadd.f32 0.0, %v2841
  %2843 = vmatprep.mubr.f32.mxu0 0.0
  %2844 = vmatmul.mubr.f32.gmra.mrb[0].mxu0 %v2701
  %v2845 = vpop.f32.mrb[0].mxu0
  %v2846 = vpop.f32.mrb[0].mxu0
  %2847 = vdwg.mxu0
  %2848 = vmatprep.subr.mxu0 %v32
  %2849 = vmatpush1.msra.mxu0 %v31
  %2850 = vmatprep.subr.mxu0 %v42
  %2851 = vmatpush1.msra.mxu0 %v41
  %2852 = vmatprep.subr.mxu0 %v52
  %2853 = vmatpush1.msra.mxu0 %v51
  %2854 = vmatprep.subr.mxu0 %v145
  %2855 = vmatpush1.msra.mxu0 %v142
  %2856 = vmatprep.subr.mxu0 0.0
  %2857 = vmatpush1.msra.mxu0 0.0
  %2858 = vmatprep.subr.mxu0 0.0
  %2859 = vmatpush1.msra.mxu0 0.0
  %2860 = vmatprep.subr.mxu0 0.0
  %2861 = vmatpush1.msra.mxu0 0.0
  %2862 = vmatprep.subr.mxu0 0.0
  %2863 = vmatpush1.msra.mxu0 0.0
  %2864 = vmatprep.subr.mxu0 0.0
  %2865 = vmatpush1.msra.mxu0 0.0
  %2866 = vmatprep.subr.mxu0 0.0
  %2867 = vmatpush1.msra.mxu0 0.0
  %2868 = vmatprep.subr.mxu0 0.0
  %2869 = vmatpush1.msra.mxu0 0.0
  %2870 = vmatprep.subr.mxu0 0.0
  %2871 = vmatpush1.msra.mxu0 0.0
  %2872 = vmatprep.subr.mxu0 0.0
  %2873 = vmatpush1.msra.mxu0 0.0
  %2874 = vmatprep.subr.mxu0 0.0
  %2875 = vmatpush1.msra.mxu0 0.0
  %2876 = vmatprep.subr.mxu0 0.0
  %2877 = vmatpush1.msra.mxu0 0.0
  %2878 = vmatprep.subr.mxu0 0.0
  %2879 = vmatpush1.msra.mxu0 0.0
  %2880 = vmatprep.subr.mxu0 0.0
  %2881 = vmatpush1.msra.mxu0 0.0
  %2882 = vmatprep.subr.mxu0 0.0
  %2883 = vmatpush1.msra.mxu0 0.0
  %2884 = vmatprep.subr.mxu0 0.0
  %2885 = vmatpush1.msra.mxu0 0.0
  %2886 = vmatprep.subr.mxu0 0.0
  %2887 = vmatpush1.msra.mxu0 0.0
  %2888 = vmatprep.subr.mxu0 0.0
  %2889 = vmatpush1.msra.mxu0 0.0
  %2890 = vmatprep.subr.mxu0 0.0
  %2891 = vmatpush1.msra.mxu0 0.0
  %2892 = vmatprep.subr.mxu0 0.0
  %2893 = vmatpush1.msra.mxu0 0.0
  %2894 = vmatprep.subr.mxu0 0.0
  %2895 = vmatpush1.msra.mxu0 0.0
  %2896 = vmatprep.subr.mxu0 0.0
  %2897 = vmatpush1.msra.mxu0 0.0
  %2898 = vmatprep.subr.mxu0 0.0
  %2899 = vmatpush1.msra.mxu0 0.0
  %2900 = vmatprep.subr.mxu0 0.0
  %2901 = vmatpush1.msra.mxu0 0.0
  %2902 = vmatprep.subr.mxu0 0.0
  %2903 = vmatpush1.msra.mxu0 0.0
  %2904 = vmatprep.subr.mxu0 0.0
  %2905 = vmatpush1.msra.mxu0 0.0
  %2906 = vmatprep.subr.mxu0 0.0
  %2907 = vmatpush1.msra.mxu0 0.0
  %2908 = vmatprep.subr.mxu0 0.0
  %2909 = vmatpush1.msra.mxu0 0.0
  %2910 = vmatprep.subr.mxu0 0.0
  %2911 = vmatpush1.msra.mxu0 0.0
  %2912 = vmatprep.mubr.f32.mxu0 0.0
  %2913 = vmatmul.mubr.f32.gmra.mrb[0].mxu0 %v2656
  %v2914 = vpop.f32.mrb[0].mxu0
  %v2915 = vadd.f32 0.0, %v2914
  %v2916 = vpop.f32.mrb[0].mxu0
  %v2917 = vadd.f32 0.0, %v2916
  %2918 = vmatprep.mubr.f32.mxu0 0.0
  %2919 = vmatmul.mubr.f32.gmra.mrb[0].mxu0 %v2659
  %v2920 = vpop.f32.mrb[0].mxu0
  %v2921 = vpop.f32.mrb[0].mxu0
  %2922 = vmatprep.mubr.f32.mxu0 0.0
  %2923 = vmatmul.mubr.f32.gmra.mrb[0].mxu0 %v2662
  %v2924 = vpop.f32.mrb[0].mxu0
  %v2925 = vadd.f32 0.0, %v2924
  %v2926 = vpop.f32.mrb[0].mxu0
  %v2927 = vadd.f32 0.0, %v2926
  %2928 = vmatprep.mubr.f32.mxu0 0.0
  %2929 = vmatmul.mubr.f32.gmra.mrb[0].mxu0 %v2665
  %v2930 = vpop.f32.mrb[0].mxu0
  %v2931 = vpop.f32.mrb[0].mxu0
  %2932 = vmatprep.mubr.f32.mxu0 0.0
  %2933 = vmatmul.mubr.f32.gmra.mrb[0].mxu0 %v2668
  %v2934 = vpop.f32.mrb[0].mxu0
  %v2935 = vadd.f32 0.0, %v2934
  %v2936 = vpop.f32.mrb[0].mxu0
  %v2937 = vadd.f32 0.0, %v2936
  %2938 = vmatprep.mubr.f32.mxu0 0.0
  %2939 = vmatmul.mubr.f32.gmra.mrb[0].mxu0 %v2671
  %v2940 = vpop.f32.mrb[0].mxu0
  %v2941 = vpop.f32.mrb[0].mxu0
  %2942 = vmatprep.mubr.f32.mxu0 0.0
  %2943 = vmatmul.mubr.f32.gmra.mrb[0].mxu0 %v2674
  %v2944 = vpop.f32.mrb[0].mxu0
  %v2945 = vadd.f32 0.0, %v2944
  %v2946 = vpop.f32.mrb[0].mxu0
  %v2947 = vadd.f32 0.0, %v2946
  %2948 = vmatprep.mubr.f32.mxu0 0.0
  %2949 = vmatmul.mubr.f32.gmra.mrb[0].mxu0 %v2677
  %v2950 = vpop.f32.mrb[0].mxu0
  %v2951 = vpop.f32.mrb[0].mxu0
  %2952 = vmatprep.mubr.f32.mxu0 0.0
  %2953 = vmatmul.mubr.f32.gmra.mrb[0].mxu0 %v2680
  %v2954 = vpop.f32.mrb[0].mxu0
  %v2955 = vadd.f32 0.0, %v2954
  %v2956 = vpop.f32.mrb[0].mxu0
  %v2957 = vadd.f32 0.0, %v2956
  %2958 = vmatprep.mubr.f32.mxu0 0.0
  %2959 = vmatmul.mubr.f32.gmra.mrb[0].mxu0 %v2683
  %v2960 = vpop.f32.mrb[0].mxu0
  %v2961 = vpop.f32.mrb[0].mxu0
  %2962 = vmatprep.mubr.f32.mxu0 0.0
  %2963 = vmatmul.mubr.f32.gmra.mrb[0].mxu0 %v2686
  %v2964 = vpop.f32.mrb[0].mxu0
  %v2965 = vadd.f32 0.0, %v2964
  %v2966 = vpop.f32.mrb[0].mxu0
  %v2967 = vadd.f32 0.0, %v2966
  %2968 = vmatprep.mubr.f32.mxu0 0.0
  %2969 = vmatmul.mubr.f32.gmra.mrb[0].mxu0 %v2689
  %v2970 = vpop.f32.mrb[0].mxu0
  %v2971 = vpop.f32.mrb[0].mxu0
  %2972 = vmatprep.mubr.f32.mxu0 0.0
  %2973 = vmatmul.mubr.f32.gmra.mrb[0].mxu0 %v2692
  %v2974 = vpop.f32.mrb[0].mxu0
  %v2975 = vadd.f32 0.0, %v2974
  %v2976 = vpop.f32.mrb[0].mxu0
  %v2977 = vadd.f32 0.0, %v2976
  %2978 = vmatprep.mubr.f32.mxu0 0.0
  %2979 = vmatmul.mubr.f32.gmra.mrb[0].mxu0 %v2695
  %v2980 = vpop.f32.mrb[0].mxu0
  %v2981 = vpop.f32.mrb[0].mxu0
  %2982 = vmatprep.mubr.f32.mxu0 0.0
  %2983 = vmatmul.mubr.f32.gmra.mrb[0].mxu0 %v2698
  %v2984 = vpop.f32.mrb[0].mxu0
  %v2985 = vadd.f32 0.0, %v2984
  %v2986 = vpop.f32.mrb[0].mxu0
  %v2987 = vadd.f32 0.0, %v2986
  %2988 = vmatprep.mubr.f32.mxu0 0.0
  %2989 = vmatmul.mubr.f32.gmra.mrb[0].mxu0 %v2701
  %v2990 = vpop.f32.mrb[0].mxu0
  %v2991 = vpop.f32.mrb[0].mxu0
  %2992 = vdwg.mxu0
  %2993 = vmatprep.subr.mxu0 %v34
  %2994 = vmatpush1.msra.mxu0 %v33
  %2995 = vmatprep.subr.mxu0 %v44
  %2996 = vmatpush1.msra.mxu0 %v43
  %2997 = vmatprep.subr.mxu0 %v54
  %2998 = vmatpush1.msra.mxu0 %v53
  %2999 = vmatprep.subr.mxu0 %v151
  %3000 = vmatpush1.msra.mxu0 %v148
  %3001 = vmatprep.subr.mxu0 0.0
  %3002 = vmatpush1.msra.mxu0 0.0
  %3003 = vmatprep.subr.mxu0 0.0
  %3004 = vmatpush1.msra.mxu0 0.0
  %3005 = vmatprep.subr.mxu0 0.0
  %3006 = vmatpush1.msra.mxu0 0.0
  %3007 = vmatprep.subr.mxu0 0.0
  %3008 = vmatpush1.msra.mxu0 0.0
  %3009 = vmatprep.subr.mxu0 0.0
  %3010 = vmatpush1.msra.mxu0 0.0
  %3011 = vmatprep.subr.mxu0 0.0
  %3012 = vmatpush1.msra.mxu0 0.0
  %3013 = vmatprep.subr.mxu0 0.0
  %3014 = vmatpush1.msra.mxu0 0.0
  %3015 = vmatprep.subr.mxu0 0.0
  %3016 = vmatpush1.msra.mxu0 0.0
  %3017 = vmatprep.subr.mxu0 0.0
  %3018 = vmatpush1.msra.mxu0 0.0
  %3019 = vmatprep.subr.mxu0 0.0
  %3020 = vmatpush1.msra.mxu0 0.0
  %3021 = vmatprep.subr.mxu0 0.0
  %3022 = vmatpush1.msra.mxu0 0.0
  %3023 = vmatprep.subr.mxu0 0.0
  %3024 = vmatpush1.msra.mxu0 0.0
  %3025 = vmatprep.subr.mxu0 0.0
  %3026 = vmatpush1.msra.mxu0 0.0
  %3027 = vmatprep.subr.mxu0 0.0
  %3028 = vmatpush1.msra.mxu0 0.0
  %3029 = vmatprep.subr.mxu0 0.0
  %3030 = vmatpush1.msra.mxu0 0.0
  %3031 = vmatprep.subr.mxu0 0.0
  %3032 = vmatpush1.msra.mxu0 0.0
  %3033 = vmatprep.subr.mxu0 0.0
  %3034 = vmatpush1.msra.mxu0 0.0
  %3035 = vmatprep.subr.mxu0 0.0
  %3036 = vmatpush1.msra.mxu0 0.0
  %3037 = vmatprep.subr.mxu0 0.0
  %3038 = vmatpush1.msra.mxu0 0.0
  %3039 = vmatprep.subr.mxu0 0.0
  %3040 = vmatpush1.msra.mxu0 0.0
  %3041 = vmatprep.subr.mxu0 0.0
  %3042 = vmatpush1.msra.mxu0 0.0
  %3043 = vmatprep.subr.mxu0 0.0
  %3044 = vmatpush1.msra.mxu0 0.0
  %3045 = vmatprep.subr.mxu0 0.0
  %3046 = vmatpush1.msra.mxu0 0.0
  %3047 = vmatprep.subr.mxu0 0.0
  %3048 = vmatpush1.msra.mxu0 0.0
  %3049 = vmatprep.subr.mxu0 0.0
  %3050 = vmatpush1.msra.mxu0 0.0
  %3051 = vmatprep.subr.mxu0 0.0
  %3052 = vmatpush1.msra.mxu0 0.0
  %3053 = vmatprep.subr.mxu0 0.0
  %3054 = vmatpush1.msra.mxu0 0.0
  %3055 = vmatprep.subr.mxu0 0.0
  %3056 = vmatpush1.msra.mxu0 0.0
  %3057 = vmatprep.mubr.f32.mxu0 0.0
  %3058 = vmatmul.mubr.f32.gmra.mrb[0].mxu0 %v2656
  %v3059 = vpop.f32.mrb[0].mxu0
  %v3060 = vadd.f32 0.0, %v3059
  %v3061 = vpop.f32.mrb[0].mxu0
  %v3062 = vadd.f32 0.0, %v3061
  %3063 = vmatprep.mubr.f32.mxu0 0.0
  %3064 = vmatmul.mubr.f32.gmra.mrb[0].mxu0 %v2659
  %v3065 = vpop.f32.mrb[0].mxu0
  %v3066 = vpop.f32.mrb[0].mxu0
  %3067 = vmatprep.mubr.f32.mxu0 0.0
  %3068 = vmatmul.mubr.f32.gmra.mrb[0].mxu0 %v2662
  %v3069 = vpop.f32.mrb[0].mxu0
  %v3070 = vadd.f32 0.0, %v3069
  %v3071 = vpop.f32.mrb[0].mxu0
  %v3072 = vadd.f32 0.0, %v3071
  %3073 = vmatprep.mubr.f32.mxu0 0.0
  %3074 = vmatmul.mubr.f32.gmra.mrb[0].mxu0 %v2665
  %v3075 = vpop.f32.mrb[0].mxu0
  %v3076 = vpop.f32.mrb[0].mxu0
  %3077 = vmatprep.mubr.f32.mxu0 0.0
  %3078 = vmatmul.mubr.f32.gmra.mrb[0].mxu0 %v2668
  %v3079 = vpop.f32.mrb[0].mxu0
  %v3080 = vadd.f32 0.0, %v3079
  %v3081 = vpop.f32.mrb[0].mxu0
  %v3082 = vadd.f32 0.0, %v3081
  %3083 = vmatprep.mubr.f32.mxu0 0.0
  %3084 = vmatmul.mubr.f32.gmra.mrb[0].mxu0 %v2671
  %v3085 = vpop.f32.mrb[0].mxu0
  %v3086 = vpop.f32.mrb[0].mxu0
  %3087 = vmatprep.mubr.f32.mxu0 0.0
  %3088 = vmatmul.mubr.f32.gmra.mrb[0].mxu0 %v2674
  %v3089 = vpop.f32.mrb[0].mxu0
  %v3090 = vadd.f32 0.0, %v3089
  %v3091 = vpop.f32.mrb[0].mxu0
  %v3092 = vadd.f32 0.0, %v3091
  %3093 = vmatprep.mubr.f32.mxu0 0.0
  %3094 = vmatmul.mubr.f32.gmra.mrb[0].mxu0 %v2677
  %v3095 = vpop.f32.mrb[0].mxu0
  %v3096 = vpop.f32.mrb[0].mxu0
  %3097 = vmatprep.mubr.f32.mxu0 0.0
  %3098 = vmatmul.mubr.f32.gmra.mrb[0].mxu0 %v2680
  %v3099 = vpop.f32.mrb[0].mxu0
  %v3100 = vadd.f32 0.0, %v3099
  %v3101 = vpop.f32.mrb[0].mxu0
  %v3102 = vadd.f32 0.0, %v3101
  %3103 = vmatprep.mubr.f32.mxu0 0.0
  %3104 = vmatmul.mubr.f32.gmra.mrb[0].mxu0 %v2683
  %v3105 = vpop.f32.mrb[0].mxu0
  %v3106 = vpop.f32.mrb[0].mxu0
  %3107 = vmatprep.mubr.f32.mxu0 0.0
  %3108 = vmatmul.mubr.f32.gmra.mrb[0].mxu0 %v2686
  %v3109 = vpop.f32.mrb[0].mxu0
  %v3110 = vadd.f32 0.0, %v3109
  %v3111 = vpop.f32.mrb[0].mxu0
  %v3112 = vadd.f32 0.0, %v3111
  %3113 = vmatprep.mubr.f32.mxu0 0.0
  %3114 = vmatmul.mubr.f32.gmra.mrb[0].mxu0 %v2689
  %v3115 = vpop.f32.mrb[0].mxu0
  %v3116 = vpop.f32.mrb[0].mxu0
  %3117 = vmatprep.mubr.f32.mxu0 0.0
  %3118 = vmatmul.mubr.f32.gmra.mrb[0].mxu0 %v2692
  %v3119 = vpop.f32.mrb[0].mxu0
  %v3120 = vadd.f32 0.0, %v3119
  %v3121 = vpop.f32.mrb[0].mxu0
  %v3122 = vadd.f32 0.0, %v3121
  %3123 = vmatprep.mubr.f32.mxu0 0.0
  %3124 = vmatmul.mubr.f32.gmra.mrb[0].mxu0 %v2695
  %v3125 = vpop.f32.mrb[0].mxu0
  %v3126 = vpop.f32.mrb[0].mxu0
  %3127 = vmatprep.mubr.f32.mxu0 0.0
  %3128 = vmatmul.mubr.f32.gmra.mrb[0].mxu0 %v2698
  %v3129 = vpop.f32.mrb[0].mxu0
  %v3130 = vadd.f32 0.0, %v3129
  %v3131 = vpop.f32.mrb[0].mxu0
  %v3132 = vadd.f32 0.0, %v3131
  %3133 = vmatprep.mubr.f32.mxu0 0.0
  %3134 = vmatmul.mubr.f32.gmra.mrb[0].mxu0 %v2701
  %v3135 = vpop.f32.mrb[0].mxu0
  %v3136 = vpop.f32.mrb[0].mxu0
  %3137 = vdwg.mxu0
  %3138 = vmatprep.subr.mxu0 %v36
  %3139 = vmatpush1.msra.mxu0 %v35
  %3140 = vmatprep.subr.mxu0 %v46
  %3141 = vmatpush1.msra.mxu0 %v45
  %3142 = vmatprep.subr.mxu0 %v56
  %3143 = vmatpush1.msra.mxu0 %v55
  %3144 = vmatprep.subr.mxu0 %v157
  %3145 = vmatpush1.msra.mxu0 %v154
  %3146 = vmatprep.subr.mxu0 0.0
  %3147 = vmatpush1.msra.mxu0 0.0
  %3148 = vmatprep.subr.mxu0 0.0
  %3149 = vmatpush1.msra.mxu0 0.0
  %3150 = vmatprep.subr.mxu0 0.0
  %3151 = vmatpush1.msra.mxu0 0.0
  %3152 = vmatprep.subr.mxu0 0.0
  %3153 = vmatpush1.msra.mxu0 0.0
  %3154 = vmatprep.subr.mxu0 0.0
  %3155 = vmatpush1.msra.mxu0 0.0
  %3156 = vmatprep.subr.mxu0 0.0
  %3157 = vmatpush1.msra.mxu0 0.0
  %3158 = vmatprep.subr.mxu0 0.0
  %3159 = vmatpush1.msra.mxu0 0.0
  %3160 = vmatprep.subr.mxu0 0.0
  %3161 = vmatpush1.msra.mxu0 0.0
  %3162 = vmatprep.subr.mxu0 0.0
  %3163 = vmatpush1.msra.mxu0 0.0
  %3164 = vmatprep.subr.mxu0 0.0
  %3165 = vmatpush1.msra.mxu0 0.0
  %3166 = vmatprep.subr.mxu0 0.0
  %3167 = vmatpush1.msra.mxu0 0.0
  %3168 = vmatprep.subr.mxu0 0.0
  %3169 = vmatpush1.msra.mxu0 0.0
  %3170 = vmatprep.subr.mxu0 0.0
  %3171 = vmatpush1.msra.mxu0 0.0
  %3172 = vmatprep.subr.mxu0 0.0
  %3173 = vmatpush1.msra.mxu0 0.0
  %3174 = vmatprep.subr.mxu0 0.0
  %3175 = vmatpush1.msra.mxu0 0.0
  %3176 = vmatprep.subr.mxu0 0.0
  %3177 = vmatpush1.msra.mxu0 0.0
  %3178 = vmatprep.subr.mxu0 0.0
  %3179 = vmatpush1.msra.mxu0 0.0
  %3180 = vmatprep.subr.mxu0 0.0
  %3181 = vmatpush1.msra.mxu0 0.0
  %3182 = vmatprep.subr.mxu0 0.0
  %3183 = vmatpush1.msra.mxu0 0.0
  %3184 = vmatprep.subr.mxu0 0.0
  %3185 = vmatpush1.msra.mxu0 0.0
  %3186 = vmatprep.subr.mxu0 0.0
  %3187 = vmatpush1.msra.mxu0 0.0
  %3188 = vmatprep.subr.mxu0 0.0
  %3189 = vmatpush1.msra.mxu0 0.0
  %3190 = vmatprep.subr.mxu0 0.0
  %3191 = vmatpush1.msra.mxu0 0.0
  %3192 = vmatprep.subr.mxu0 0.0
  %3193 = vmatpush1.msra.mxu0 0.0
  %3194 = vmatprep.subr.mxu0 0.0
  %3195 = vmatpush1.msra.mxu0 0.0
  %3196 = vmatprep.subr.mxu0 0.0
  %3197 = vmatpush1.msra.mxu0 0.0
  %3198 = vmatprep.subr.mxu0 0.0
  %3199 = vmatpush1.msra.mxu0 0.0
  %3200 = vmatprep.subr.mxu0 0.0
  %3201 = vmatpush1.msra.mxu0 0.0
  %3202 = vmatprep.mubr.f32.mxu0 0.0
  %3203 = vmatmul.mubr.f32.gmra.mrb[0].mxu0 %v2656
  %v3204 = vpop.f32.mrb[0].mxu0
  %v3205 = vadd.f32 0.0, %v3204
  %v3206 = vpop.f32.mrb[0].mxu0
  %v3207 = vadd.f32 0.0, %v3206
  %3208 = vmatprep.mubr.f32.mxu0 0.0
  %3209 = vmatmul.mubr.f32.gmra.mrb[0].mxu0 %v2659
  %v3210 = vpop.f32.mrb[0].mxu0
  %v3211 = vpop.f32.mrb[0].mxu0
  %v3212 = vadd.f32 0.0, %v3211
  %3213 = vmatprep.mubr.f32.mxu0 0.0
  %3214 = vmatmul.mubr.f32.gmra.mrb[0].mxu0 %v2662
  %v3215 = vpop.f32.mrb[0].mxu0
  %v3216 = vadd.f32 0.0, %v3215
  %v3217 = vpop.f32.mrb[0].mxu0
  %v3218 = vadd.f32 0.0, %v3217
  %3219 = vmatprep.mubr.f32.mxu0 0.0
  %3220 = vmatmul.mubr.f32.gmra.mrb[0].mxu0 %v2665
  %v3221 = vpop.f32.mrb[0].mxu0
  %v3222 = vpop.f32.mrb[0].mxu0
  %v3223 = vadd.f32 0.0, %v3222
  %3224 = vmatprep.mubr.f32.mxu0 0.0
  %3225 = vmatmul.mubr.f32.gmra.mrb[0].mxu0 %v2668
  %v3226 = vpop.f32.mrb[0].mxu0
  %v3227 = vadd.f32 0.0, %v3226
  %v3228 = vpop.f32.mrb[0].mxu0
  %v3229 = vadd.f32 0.0, %v3228
  %3230 = vmatprep.mubr.f32.mxu0 0.0
  %3231 = vmatmul.mubr.f32.gmra.mrb[0].mxu0 %v2671
  %v3232 = vpop.f32.mrb[0].mxu0
  %v3233 = vpop.f32.mrb[0].mxu0
  %v3234 = vadd.f32 0.0, %v3233
  %3235 = vmatprep.mubr.f32.mxu0 0.0
  %3236 = vmatmul.mubr.f32.gmra.mrb[0].mxu0 %v2674
  %v3237 = vpop.f32.mrb[0].mxu0
  %v3238 = vadd.f32 0.0, %v3237
  %v3239 = vpop.f32.mrb[0].mxu0
  %v3240 = vadd.f32 0.0, %v3239
  %3241 = vmatprep.mubr.f32.mxu0 0.0
  %3242 = vmatmul.mubr.f32.gmra.mrb[0].mxu0 %v2677
  %v3243 = vpop.f32.mrb[0].mxu0
  %v3244 = vpop.f32.mrb[0].mxu0
  %v3245 = vadd.f32 0.0, %v3244
  %3246 = vmatprep.mubr.f32.mxu0 0.0
  %3247 = vmatmul.mubr.f32.gmra.mrb[0].mxu0 %v2680
  %v3248 = vpop.f32.mrb[0].mxu0
  %v3249 = vadd.f32 0.0, %v3248
  %v3250 = vpop.f32.mrb[0].mxu0
  %v3251 = vadd.f32 0.0, %v3250
  %3252 = vmatprep.mubr.f32.mxu0 0.0
  %3253 = vmatmul.mubr.f32.gmra.mrb[0].mxu0 %v2683
  %v3254 = vpop.f32.mrb[0].mxu0
  %v3255 = vpop.f32.mrb[0].mxu0
  %v3256 = vadd.f32 0.0, %v3255
  %3257 = vmatprep.mubr.f32.mxu0 0.0
  %3258 = vmatmul.mubr.f32.gmra.mrb[0].mxu0 %v2686
  %v3259 = vpop.f32.mrb[0].mxu0
  %v3260 = vadd.f32 0.0, %v3259
  %v3261 = vpop.f32.mrb[0].mxu0
  %v3262 = vadd.f32 0.0, %v3261
  %3263 = vmatprep.mubr.f32.mxu0 0.0
  %3264 = vmatmul.mubr.f32.gmra.mrb[0].mxu0 %v2689
  %v3265 = vpop.f32.mrb[0].mxu0
  %v3266 = vpop.f32.mrb[0].mxu0
  %v3267 = vadd.f32 0.0, %v3266
  %3268 = vmatprep.mubr.f32.mxu0 0.0
  %3269 = vmatmul.mubr.f32.gmra.mrb[0].mxu0 %v2692
  %v3270 = vpop.f32.mrb[0].mxu0
  %v3271 = vadd.f32 0.0, %v3270
  %v3272 = vpop.f32.mrb[0].mxu0
  %v3273 = vadd.f32 0.0, %v3272
  %3274 = vmatprep.mubr.f32.mxu0 0.0
  %3275 = vmatmul.mubr.f32.gmra.mrb[0].mxu0 %v2695
  %v3276 = vpop.f32.mrb[0].mxu0
  %v3277 = vpop.f32.mrb[0].mxu0
  %v3278 = vadd.f32 0.0, %v3277
  %3279 = vmatprep.mubr.f32.mxu0 0.0
  %3280 = vmatmul.mubr.f32.gmra.mrb[0].mxu0 %v2698
  %v3281 = vpop.f32.mrb[0].mxu0
  %v3282 = vadd.f32 0.0, %v3281
  %v3283 = vpop.f32.mrb[0].mxu0
  %v3284 = vadd.f32 0.0, %v3283
  %3285 = vmatprep.mubr.f32.mxu0 0.0
  %3286 = vmatmul.mubr.f32.gmra.mrb[0].mxu0 %v2701
  %v3287 = vpop.f32.mrb[0].mxu0
  %v3288 = vpop.f32.mrb[0].mxu0
  %v3289 = vadd.f32 0.0, %v3288
  %3290 = vdwg.mxu0
  %3291 = vmatprep.subr.mxu0 %v38
  %3292 = vmatpush1.msra.mxu0 %v37
  %3293 = vmatprep.subr.mxu0 %v48
  %3294 = vmatpush1.msra.mxu0 %v47
  %3295 = vmatprep.subr.mxu0 %v58
  %3296 = vmatpush1.msra.mxu0 %v57
  %3297 = vmatprep.subr.mxu0 %v163
  %3298 = vmatpush1.msra.mxu0 %v160
  %3299 = vmatprep.subr.mxu0 0.0
  %3300 = vmatpush1.msra.mxu0 0.0
  %3301 = vmatprep.subr.mxu0 0.0
  %3302 = vmatpush1.msra.mxu0 0.0
  %3303 = vmatprep.subr.mxu0 0.0
  %3304 = vmatpush1.msra.mxu0 0.0
  %3305 = vmatprep.subr.mxu0 0.0
  %3306 = vmatpush1.msra.mxu0 0.0
  %3307 = vmatprep.subr.mxu0 0.0
  %3308 = vmatpush1.msra.mxu0 0.0
  %3309 = vmatprep.subr.mxu0 0.0
  %3310 = vmatpush1.msra.mxu0 0.0
  %3311 = vmatprep.subr.mxu0 0.0
  %3312 = vmatpush1.msra.mxu0 0.0
  %3313 = vmatprep.subr.mxu0 0.0
  %3314 = vmatpush1.msra.mxu0 0.0
  %3315 = vmatprep.subr.mxu0 0.0
  %3316 = vmatpush1.msra.mxu0 0.0
  %3317 = vmatprep.subr.mxu0 0.0
  %3318 = vmatpush1.msra.mxu0 0.0
  %3319 = vmatprep.subr.mxu0 0.0
  %3320 = vmatpush1.msra.mxu0 0.0
  %3321 = vmatprep.subr.mxu0 0.0
  %3322 = vmatpush1.msra.mxu0 0.0
  %3323 = vmatprep.subr.mxu0 0.0
  %3324 = vmatpush1.msra.mxu0 0.0
  %3325 = vmatprep.subr.mxu0 0.0
  %3326 = vmatpush1.msra.mxu0 0.0
  %3327 = vmatprep.subr.mxu0 0.0
  %3328 = vmatpush1.msra.mxu0 0.0
  %3329 = vmatprep.subr.mxu0 0.0
  %3330 = vmatpush1.msra.mxu0 0.0
  %3331 = vmatprep.subr.mxu0 0.0
  %3332 = vmatpush1.msra.mxu0 0.0
  %3333 = vmatprep.subr.mxu0 0.0
  %3334 = vmatpush1.msra.mxu0 0.0
  %3335 = vmatprep.subr.mxu0 0.0
  %3336 = vmatpush1.msra.mxu0 0.0
  %3337 = vmatprep.subr.mxu0 0.0
  %3338 = vmatpush1.msra.mxu0 0.0
  %3339 = vmatprep.subr.mxu0 0.0
  %3340 = vmatpush1.msra.mxu0 0.0
  %3341 = vmatprep.subr.mxu0 0.0
  %3342 = vmatpush1.msra.mxu0 0.0
  %3343 = vmatprep.subr.mxu0 0.0
  %3344 = vmatpush1.msra.mxu0 0.0
  %3345 = vmatprep.subr.mxu0 0.0
  %3346 = vmatpush1.msra.mxu0 0.0
  %3347 = vmatprep.subr.mxu0 0.0
  %3348 = vmatpush1.msra.mxu0 0.0
  %3349 = vmatprep.subr.mxu0 0.0
  %3350 = vmatpush1.msra.mxu0 0.0
  %3351 = vmatprep.subr.mxu0 0.0
  %3352 = vmatpush1.msra.mxu0 0.0
  %3353 = vmatprep.subr.mxu0 0.0
  %3354 = vmatpush1.msra.mxu0 0.0
  %3355 = vmatprep.mubr.f32.mxu0 0.0
  %3356 = vmatmul.mubr.f32.gmra.mrb[0].mxu0 %v2656
  %v3357 = vpop.f32.mrb[0].mxu0
  %v3358 = vadd.f32 0.0, %v3357
  %v3359 = vpop.f32.mrb[0].mxu0
  %v3360 = vadd.f32 0.0, %v3359
  %3361 = vmatprep.mubr.f32.mxu0 0.0
  %3362 = vmatmul.mubr.f32.gmra.mrb[0].mxu0 %v2659
  %v3363 = vpop.f32.mrb[0].mxu0
  %v3364 = vadd.f32 0.0, %v3363
  %v3365 = vpop.f32.mrb[0].mxu0
  %v3366 = vadd.f32 0.0, %v3365
  %3367 = vmatprep.mubr.f32.mxu0 0.0
  %3368 = vmatmul.mubr.f32.gmra.mrb[0].mxu0 %v2662
  %v3369 = vpop.f32.mrb[0].mxu0
  %v3370 = vadd.f32 0.0, %v3369
  %v3371 = vpop.f32.mrb[0].mxu0
  %v3372 = vadd.f32 0.0, %v3371
  %3373 = vmatprep.mubr.f32.mxu0 0.0
  %3374 = vmatmul.mubr.f32.gmra.mrb[0].mxu0 %v2665
  %v3375 = vpop.f32.mrb[0].mxu0
  %v3376 = vadd.f32 0.0, %v3375
  %v3377 = vpop.f32.mrb[0].mxu0
  %v3378 = vadd.f32 0.0, %v3377
  %3379 = vmatprep.mubr.f32.mxu0 0.0
  %3380 = vmatmul.mubr.f32.gmra.mrb[0].mxu0 %v2668
  %v3381 = vpop.f32.mrb[0].mxu0
  %v3382 = vadd.f32 0.0, %v3381
  %v3383 = vpop.f32.mrb[0].mxu0
  %v3384 = vadd.f32 0.0, %v3383
  %3385 = vmatprep.mubr.f32.mxu0 0.0
  %3386 = vmatmul.mubr.f32.gmra.mrb[0].mxu0 %v2671
  %v3387 = vpop.f32.mrb[0].mxu0
  %v3388 = vadd.f32 0.0, %v3387
  %v3389 = vpop.f32.mrb[0].mxu0
  %v3390 = vadd.f32 0.0, %v3389
  %3391 = vmatprep.mubr.f32.mxu0 0.0
  %3392 = vmatmul.mubr.f32.gmra.mrb[0].mxu0 %v2674
  %v3393 = vpop.f32.mrb[0].mxu0
  %v3394 = vadd.f32 0.0, %v3393
  %v3395 = vpop.f32.mrb[0].mxu0
  %v3396 = vadd.f32 0.0, %v3395
  %3397 = vmatprep.mubr.f32.mxu0 0.0
  %3398 = vmatmul.mubr.f32.gmra.mrb[0].mxu0 %v2677
  %v3399 = vpop.f32.mrb[0].mxu0
  %v3400 = vadd.f32 0.0, %v3399
  %v3401 = vpop.f32.mrb[0].mxu0
  %v3402 = vadd.f32 0.0, %v3401
  %3403 = vmatprep.mubr.f32.mxu0 0.0
  %3404 = vmatmul.mubr.f32.gmra.mrb[0].mxu0 %v2680
  %v3405 = vpop.f32.mrb[0].mxu0
  %v3406 = vadd.f32 0.0, %v3405
  %v3407 = vpop.f32.mrb[0].mxu0
  %v3408 = vadd.f32 0.0, %v3407
  %3409 = vmatprep.mubr.f32.mxu0 0.0
  %3410 = vmatmul.mubr.f32.gmra.mrb[0].mxu0 %v2683
  %v3411 = vpop.f32.mrb[0].mxu0
  %v3412 = vadd.f32 0.0, %v3411
  %v3413 = vpop.f32.mrb[0].mxu0
  %v3414 = vadd.f32 0.0, %v3413
  %3415 = vmatprep.mubr.f32.mxu0 0.0
  %3416 = vmatmul.mubr.f32.gmra.mrb[0].mxu0 %v2686
  %v3417 = vpop.f32.mrb[0].mxu0
  %v3418 = vadd.f32 0.0, %v3417
  %v3419 = vpop.f32.mrb[0].mxu0
  %v3420 = vadd.f32 0.0, %v3419
  %3421 = vmatprep.mubr.f32.mxu0 0.0
  %3422 = vmatmul.mubr.f32.gmra.mrb[0].mxu0 %v2689
  %v3423 = vpop.f32.mrb[0].mxu0
  %v3424 = vadd.f32 0.0, %v3423
  %v3425 = vpop.f32.mrb[0].mxu0
  %v3426 = vadd.f32 0.0, %v3425
  %3427 = vmatprep.mubr.f32.mxu0 0.0
  %3428 = vmatmul.mubr.f32.gmra.mrb[0].mxu0 %v2692
  %v3429 = vpop.f32.mrb[0].mxu0
  %v3430 = vadd.f32 0.0, %v3429
  %v3431 = vpop.f32.mrb[0].mxu0
  %v3432 = vadd.f32 0.0, %v3431
  %3433 = vmatprep.mubr.f32.mxu0 0.0
  %3434 = vmatmul.mubr.f32.gmra.mrb[0].mxu0 %v2695
  %v3435 = vpop.f32.mrb[0].mxu0
  %v3436 = vadd.f32 0.0, %v3435
  %v3437 = vpop.f32.mrb[0].mxu0
  %v3438 = vadd.f32 0.0, %v3437
  %3439 = vmatprep.mubr.f32.mxu0 0.0
  %3440 = vmatmul.mubr.f32.gmra.mrb[0].mxu0 %v2698
  %v3441 = vpop.f32.mrb[0].mxu0
  %v3442 = vadd.f32 0.0, %v3441
  %v3443 = vpop.f32.mrb[0].mxu0
  %v3444 = vadd.f32 0.0, %v3443
  %3445 = vmatprep.mubr.f32.mxu0 0.0
  %3446 = vmatmul.mubr.f32.gmra.mrb[0].mxu0 %v2701
  %v3447 = vpop.f32.mrb[0].mxu0
  %v3448 = vadd.f32 0.0, %v3447
  %v3449 = vpop.f32.mrb[0].mxu0
  %v3450 = vadd.f32 0.0, %v3449
  %3451 = vdwg.mxu0
  %3468 = vrot.lane.b32.xlu0 %v1096, 16
  %v3469 = vpop.permute.xlu0 %3468
  %3470 = vrot.lane.b32.xlu0 %v1239, 16
  %v3471 = vpop.permute.xlu0 %3470
  %3472 = vrot.lane.b32.xlu0 %v1106, 16
  %v3473 = vpop.permute.xlu0 %3472
  %3474 = vrot.lane.b32.xlu0 %v1250, 16
  %v3475 = vpop.permute.xlu0 %3474
  %3476 = vrot.lane.b32.xlu0 %v1116, 16
  %v3477 = vpop.permute.xlu0 %3476
  %3478 = vrot.lane.b32.xlu0 %v1261, 16
  %v3479 = vpop.permute.xlu0 %3478
  %3480 = vrot.lane.b32.xlu0 %v1126, 16
  %v3481 = vpop.permute.xlu0 %3480
  %3482 = vrot.lane.b32.xlu0 %v1272, 16
  %v3483 = vpop.permute.xlu0 %3482
  %3484 = vrot.lane.b32.xlu0 %v1136, 16
  %v3485 = vpop.permute.xlu0 %3484
  %3486 = vrot.lane.b32.xlu0 %v1283, 16
  %v3487 = vpop.permute.xlu0 %3486
  %3488 = vrot.lane.b32.xlu0 %v1146, 16
  %v3489 = vpop.permute.xlu0 %3488
  %3490 = vrot.lane.b32.xlu0 %v1294, 16
  %v3491 = vpop.permute.xlu0 %3490
  %3492 = vrot.lane.b32.xlu0 %v1156, 16
  %v3493 = vpop.permute.xlu0 %3492
  %3494 = vrot.lane.b32.xlu0 %v1305, 16
  %v3495 = vpop.permute.xlu0 %3494
  %3496 = vrot.lane.b32.xlu0 %v1166, 16
  %v3497 = vpop.permute.xlu0 %3496
  %3498 = vrot.lane.b32.xlu0 %v1316, 16
  %v3499 = vpop.permute.xlu0 %3498
  %vm3500 = vcmask 130048
  %v3501 = vsel %vm3500, %v3469, %v3471
  %v3502 = vsel %vm3500, %v3473, %v3475
  %v3503 = vsel %vm3500, %v3477, %v3479
  %v3504 = vsel %vm3500, %v3481, %v3483
  %v3505 = vsel %vm3500, %v3485, %v3487
  %v3506 = vsel %vm3500, %v3489, %v3491
  %v3507 = vsel %vm3500, %v3493, %v3495
  %v3508 = vsel %vm3500, %v3497, %v3499
  %v3517 = vadd.f32 %v232, %v3501
  %v3518 = vadd.f32 %v243, %v3502
  %v3519 = vadd.f32 %v254, %v3503
  %v3520 = vadd.f32 %v265, %v3504
  %v3521 = vadd.f32 %v276, %v3505
  %v3522 = vadd.f32 %v287, %v3506
  %v3523 = vadd.f32 %v298, %v3507
  %v3524 = vadd.f32 %v309, %v3508
  %3541 = vrot.lane.b32.xlu0 %v2087, 32
  %v3542 = vpop.permute.xlu0 %3541
  %3543 = vrot.lane.b32.xlu0 %v2230, 32
  %v3544 = vpop.permute.xlu0 %3543
  %3545 = vrot.lane.b32.xlu0 %v2097, 32
  %v3546 = vpop.permute.xlu0 %3545
  %3547 = vrot.lane.b32.xlu0 %v2241, 32
  %v3548 = vpop.permute.xlu0 %3547
  %3549 = vrot.lane.b32.xlu0 %v2107, 32
  %v3550 = vpop.permute.xlu0 %3549
  %3551 = vrot.lane.b32.xlu0 %v2252, 32
  %v3552 = vpop.permute.xlu0 %3551
  %3553 = vrot.lane.b32.xlu0 %v2117, 32
  %v3554 = vpop.permute.xlu0 %3553
  %3555 = vrot.lane.b32.xlu0 %v2263, 32
  %v3556 = vpop.permute.xlu0 %3555
  %3557 = vrot.lane.b32.xlu0 %v2127, 32
  %v3558 = vpop.permute.xlu0 %3557
  %3559 = vrot.lane.b32.xlu0 %v2274, 32
  %v3560 = vpop.permute.xlu0 %3559
  %3561 = vrot.lane.b32.xlu0 %v2137, 32
  %v3562 = vpop.permute.xlu0 %3561
  %3563 = vrot.lane.b32.xlu0 %v2285, 32
  %v3564 = vpop.permute.xlu0 %3563
  %3565 = vrot.lane.b32.xlu0 %v2147, 32
  %v3566 = vpop.permute.xlu0 %3565
  %3567 = vrot.lane.b32.xlu0 %v2296, 32
  %v3568 = vpop.permute.xlu0 %3567
  %3569 = vrot.lane.b32.xlu0 %v2157, 32
  %v3570 = vpop.permute.xlu0 %3569
  %3571 = vrot.lane.b32.xlu0 %v2307, 32
  %v3572 = vpop.permute.xlu0 %3571
  %vm3573 = vcmask 261120
  %v3574 = vsel %vm3573, %v3542, %v3544
  %v3575 = vsel %vm3573, %v3546, %v3548
  %v3576 = vsel %vm3573, %v3550, %v3552
  %v3577 = vsel %vm3573, %v3554, %v3556
  %v3578 = vsel %vm3573, %v3558, %v3560
  %v3579 = vsel %vm3573, %v3562, %v3564
  %v3580 = vsel %vm3573, %v3566, %v3568
  %v3581 = vsel %vm3573, %v3570, %v3572
  %v3590 = vadd.f32 %v3517, %v3574
  %v3591 = vadd.f32 %v3518, %v3575
  %v3592 = vadd.f32 %v3519, %v3576
  %v3593 = vadd.f32 %v3520, %v3577
  %v3594 = vadd.f32 %v3521, %v3578
  %v3595 = vadd.f32 %v3522, %v3579
  %v3596 = vadd.f32 %v3523, %v3580
  %v3597 = vadd.f32 %v3524, %v3581
  %3614 = vrot.lane.b32.xlu0 %v3062, 48
  %v3615 = vpop.permute.xlu0 %3614
  %3616 = vrot.lane.b32.xlu0 %v3205, 48
  %v3617 = vpop.permute.xlu0 %3616
  %3618 = vrot.lane.b32.xlu0 %v3072, 48
  %v3619 = vpop.permute.xlu0 %3618
  %3620 = vrot.lane.b32.xlu0 %v3216, 48
  %v3621 = vpop.permute.xlu0 %3620
  %3622 = vrot.lane.b32.xlu0 %v3082, 48
  %v3623 = vpop.permute.xlu0 %3622
  %3624 = vrot.lane.b32.xlu0 %v3227, 48
  %v3625 = vpop.permute.xlu0 %3624
  %3626 = vrot.lane.b32.xlu0 %v3092, 48
  %v3627 = vpop.permute.xlu0 %3626
  %3628 = vrot.lane.b32.xlu0 %v3238, 48
  %v3629 = vpop.permute.xlu0 %3628
  %3630 = vrot.lane.b32.xlu0 %v3102, 48
  %v3631 = vpop.permute.xlu0 %3630
  %3632 = vrot.lane.b32.xlu0 %v3249, 48
  %v3633 = vpop.permute.xlu0 %3632
  %3634 = vrot.lane.b32.xlu0 %v3112, 48
  %v3635 = vpop.permute.xlu0 %3634
  %3636 = vrot.lane.b32.xlu0 %v3260, 48
  %v3637 = vpop.permute.xlu0 %3636
  %3638 = vrot.lane.b32.xlu0 %v3122, 48
  %v3639 = vpop.permute.xlu0 %3638
  %3640 = vrot.lane.b32.xlu0 %v3271, 48
  %v3641 = vpop.permute.xlu0 %3640
  %3642 = vrot.lane.b32.xlu0 %v3132, 48
  %v3643 = vpop.permute.xlu0 %3642
  %3644 = vrot.lane.b32.xlu0 %v3282, 48
  %v3645 = vpop.permute.xlu0 %3644
  %vm3646 = vcmask 392192
  %v3647 = vsel %vm3646, %v3615, %v3617
  %v3648 = vsel %vm3646, %v3619, %v3621
  %v3649 = vsel %vm3646, %v3623, %v3625
  %v3650 = vsel %vm3646, %v3627, %v3629
  %v3651 = vsel %vm3646, %v3631, %v3633
  %v3652 = vsel %vm3646, %v3635, %v3637
  %v3653 = vsel %vm3646, %v3639, %v3641
  %v3654 = vsel %vm3646, %v3643, %v3645
  %v3663 = vadd.f32 %v3590, %v3647
  %v3664 = vadd.f32 %v3591, %v3648
  %v3665 = vadd.f32 %v3592, %v3649
  %v3666 = vadd.f32 %v3593, %v3650
  %v3667 = vadd.f32 %v3594, %v3651
  %v3668 = vadd.f32 %v3595, %v3652
  %v3669 = vadd.f32 %v3596, %v3653
  %v3670 = vadd.f32 %v3597, %v3654
  %vm3703 = vcmask 1046528
  %v3704 = vrot.slane %v709, 1
  %v3705 = vrot.slane %v715, 1
  %v3706 = vsel %vm3703, %v3704, %v3705
  %v3707 = vrot.slane %v868, 1
  %v3708 = vrot.slane %v874, 1
  %v3709 = vsel %vm3703, %v3707, %v3708
  %v3710 = vrot.slane %v721, 1
  %v3711 = vrot.slane %v727, 1
  %v3712 = vsel %vm3703, %v3710, %v3711
  %v3713 = vrot.slane %v880, 1
  %v3714 = vrot.slane %v886, 1
  %v3715 = vsel %vm3703, %v3713, %v3714
  %v3716 = vrot.slane %v733, 1
  %v3717 = vrot.slane %v739, 1
  %v3718 = vsel %vm3703, %v3716, %v3717
  %v3719 = vrot.slane %v892, 1
  %v3720 = vrot.slane %v898, 1
  %v3721 = vsel %vm3703, %v3719, %v3720
  %v3722 = vrot.slane %v745, 1
  %v3723 = vrot.slane %v751, 1
  %v3724 = vsel %vm3703, %v3722, %v3723
  %v3725 = vrot.slane %v904, 1
  %v3726 = vrot.slane %v910, 1
  %v3727 = vsel %vm3703, %v3725, %v3726
  %v3728 = vrot.slane %v757, 1
  %v3729 = vrot.slane %v763, 1
  %v3730 = vsel %vm3703, %v3728, %v3729
  %v3731 = vrot.slane %v916, 1
  %v3732 = vrot.slane %v922, 1
  %v3733 = vsel %vm3703, %v3731, %v3732
  %v3734 = vrot.slane %v769, 1
  %v3735 = vrot.slane %v775, 1
  %v3736 = vsel %vm3703, %v3734, %v3735
  %v3737 = vrot.slane %v928, 1
  %v3738 = vrot.slane %v934, 1
  %v3739 = vsel %vm3703, %v3737, %v3738
  %v3740 = vrot.slane %v781, 1
  %v3741 = vrot.slane %v787, 1
  %v3742 = vsel %vm3703, %v3740, %v3741
  %v3743 = vrot.slane %v940, 1
  %v3744 = vrot.slane %v946, 1
  %v3745 = vsel %vm3703, %v3743, %v3744
  %v3746 = vrot.slane %v793, 1
  %v3747 = vrot.slane %v799, 1
  %v3748 = vsel %vm3703, %v3746, %v3747
  %v3749 = vrot.slane %v952, 1
  %v3750 = vrot.slane %v958, 1
  %v3751 = vsel %vm3703, %v3749, %v3750
  %3752 = vrot.lane.b32.xlu0 %v3706, 64
  %v3753 = vpop.permute.xlu0 %3752
  %3754 = vrot.lane.b32.xlu0 %v3709, 64
  %v3755 = vpop.permute.xlu0 %3754
  %3756 = vrot.lane.b32.xlu0 %v3712, 64
  %v3757 = vpop.permute.xlu0 %3756
  %3758 = vrot.lane.b32.xlu0 %v3715, 64
  %v3759 = vpop.permute.xlu0 %3758
  %3760 = vrot.lane.b32.xlu0 %v3718, 64
  %v3761 = vpop.permute.xlu0 %3760
  %3762 = vrot.lane.b32.xlu0 %v3721, 64
  %v3763 = vpop.permute.xlu0 %3762
  %3764 = vrot.lane.b32.xlu0 %v3724, 64
  %v3765 = vpop.permute.xlu0 %3764
  %3766 = vrot.lane.b32.xlu0 %v3727, 64
  %v3767 = vpop.permute.xlu0 %3766
  %3768 = vrot.lane.b32.xlu0 %v3730, 64
  %v3769 = vpop.permute.xlu0 %3768
  %3770 = vrot.lane.b32.xlu0 %v3733, 64
  %v3771 = vpop.permute.xlu0 %3770
  %3772 = vrot.lane.b32.xlu0 %v3736, 64
  %v3773 = vpop.permute.xlu0 %3772
  %3774 = vrot.lane.b32.xlu0 %v3739, 64
  %v3775 = vpop.permute.xlu0 %3774
  %3776 = vrot.lane.b32.xlu0 %v3742, 64
  %v3777 = vpop.permute.xlu0 %3776
  %3778 = vrot.lane.b32.xlu0 %v3745, 64
  %v3779 = vpop.permute.xlu0 %3778
  %3780 = vrot.lane.b32.xlu0 %v3748, 64
  %v3781 = vpop.permute.xlu0 %3780
  %3782 = vrot.lane.b32.xlu0 %v3751, 64
  %v3783 = vpop.permute.xlu0 %3782
  %vm3784 = vcmask 523264
  %v3785 = vsel %vm3784, %v3753, %v3755
  %v3786 = vsel %vm3784, %v3757, %v3759
  %v3787 = vsel %vm3784, %v3761, %v3763
  %v3788 = vsel %vm3784, %v3765, %v3767
  %v3789 = vsel %vm3784, %v3769, %v3771
  %v3790 = vsel %vm3784, %v3773, %v3775
  %v3791 = vsel %vm3784, %v3777, %v3779
  %v3792 = vsel %vm3784, %v3781, %v3783
  %v3801 = vadd.f32 %v3663, %v3785
  %v3802 = vadd.f32 %v3664, %v3786
  %v3803 = vadd.f32 %v3665, %v3787
  %v3804 = vadd.f32 %v3666, %v3788
  %v3805 = vadd.f32 %v3667, %v3789
  %v3806 = vadd.f32 %v3668, %v3790
  %v3807 = vadd.f32 %v3669, %v3791
  %v3808 = vadd.f32 %v3670, %v3792
  %3817 = vrot.lane.b32.xlu0 %v1241, 16
  %v3818 = vpop.permute.xlu0 %3817
  %3819 = vrot.lane.b32.xlu0 %v1252, 16
  %v3820 = vpop.permute.xlu0 %3819
  %3821 = vrot.lane.b32.xlu0 %v1263, 16
  %v3822 = vpop.permute.xlu0 %3821
  %3823 = vrot.lane.b32.xlu0 %v1274, 16
  %v3824 = vpop.permute.xlu0 %3823
  %3825 = vrot.lane.b32.xlu0 %v1285, 16
  %v3826 = vpop.permute.xlu0 %3825
  %3827 = vrot.lane.b32.xlu0 %v1296, 16
  %v3828 = vpop.permute.xlu0 %3827
  %3829 = vrot.lane.b32.xlu0 %v1307, 16
  %v3830 = vpop.permute.xlu0 %3829
  %3831 = vrot.lane.b32.xlu0 %v1318, 16
  %v3832 = vpop.permute.xlu0 %3831
  %v3833 = vsel %vm3500, %v3471, %v3818
  %v3834 = vsel %vm3500, %v3475, %v3820
  %v3835 = vsel %vm3500, %v3479, %v3822
  %v3836 = vsel %vm3500, %v3483, %v3824
  %v3837 = vsel %vm3500, %v3487, %v3826
  %v3838 = vsel %vm3500, %v3491, %v3828
  %v3839 = vsel %vm3500, %v3495, %v3830
  %v3840 = vsel %vm3500, %v3499, %v3832
  %v3857 = vadd.f32 %v232, %v3471
  %v3858 = vadd.f32 %v234, %v3833
  %v3859 = vadd.f32 %v243, %v3475
  %v3860 = vadd.f32 %v245, %v3834
  %v3861 = vadd.f32 %v254, %v3479
  %v3862 = vadd.f32 %v256, %v3835
  %v3863 = vadd.f32 %v265, %v3483
  %v3864 = vadd.f32 %v267, %v3836
  %v3865 = vadd.f32 %v276, %v3487
  %v3866 = vadd.f32 %v278, %v3837
  %v3867 = vadd.f32 %v287, %v3491
  %v3868 = vadd.f32 %v289, %v3838
  %v3869 = vadd.f32 %v298, %v3495
  %v3870 = vadd.f32 %v300, %v3839
  %v3871 = vadd.f32 %v309, %v3499
  %v3872 = vadd.f32 %v311, %v3840
  %3881 = vrot.lane.b32.xlu0 %v2232, 32
  %v3882 = vpop.permute.xlu0 %3881
  %3883 = vrot.lane.b32.xlu0 %v2243, 32
  %v3884 = vpop.permute.xlu0 %3883
  %3885 = vrot.lane.b32.xlu0 %v2254, 32
  %v3886 = vpop.permute.xlu0 %3885
  %3887 = vrot.lane.b32.xlu0 %v2265, 32
  %v3888 = vpop.permute.xlu0 %3887
  %3889 = vrot.lane.b32.xlu0 %v2276, 32
  %v3890 = vpop.permute.xlu0 %3889
  %3891 = vrot.lane.b32.xlu0 %v2287, 32
  %v3892 = vpop.permute.xlu0 %3891
  %3893 = vrot.lane.b32.xlu0 %v2298, 32
  %v3894 = vpop.permute.xlu0 %3893
  %3895 = vrot.lane.b32.xlu0 %v2309, 32
  %v3896 = vpop.permute.xlu0 %3895
  %v3897 = vsel %vm3573, %v3544, %v3882
  %v3898 = vsel %vm3573, %v3548, %v3884
  %v3899 = vsel %vm3573, %v3552, %v3886
  %v3900 = vsel %vm3573, %v3556, %v3888
  %v3901 = vsel %vm3573, %v3560, %v3890
  %v3902 = vsel %vm3573, %v3564, %v3892
  %v3903 = vsel %vm3573, %v3568, %v3894
  %v3904 = vsel %vm3573, %v3572, %v3896
  %v3921 = vadd.f32 %v3857, %v3544
  %v3922 = vadd.f32 %v3858, %v3897
  %v3923 = vadd.f32 %v3859, %v3548
  %v3924 = vadd.f32 %v3860, %v3898
  %v3925 = vadd.f32 %v3861, %v3552
  %v3926 = vadd.f32 %v3862, %v3899
  %v3927 = vadd.f32 %v3863, %v3556
  %v3928 = vadd.f32 %v3864, %v3900
  %v3929 = vadd.f32 %v3865, %v3560
  %v3930 = vadd.f32 %v3866, %v3901
  %v3931 = vadd.f32 %v3867, %v3564
  %v3932 = vadd.f32 %v3868, %v3902
  %v3933 = vadd.f32 %v3869, %v3568
  %v3934 = vadd.f32 %v3870, %v3903
  %v3935 = vadd.f32 %v3871, %v3572
  %v3936 = vadd.f32 %v3872, %v3904
  %3945 = vrot.lane.b32.xlu0 %v3207, 48
  %v3946 = vpop.permute.xlu0 %3945
  %3947 = vrot.lane.b32.xlu0 %v3218, 48
  %v3948 = vpop.permute.xlu0 %3947
  %3949 = vrot.lane.b32.xlu0 %v3229, 48
  %v3950 = vpop.permute.xlu0 %3949
  %3951 = vrot.lane.b32.xlu0 %v3240, 48
  %v3952 = vpop.permute.xlu0 %3951
  %3953 = vrot.lane.b32.xlu0 %v3251, 48
  %v3954 = vpop.permute.xlu0 %3953
  %3955 = vrot.lane.b32.xlu0 %v3262, 48
  %v3956 = vpop.permute.xlu0 %3955
  %3957 = vrot.lane.b32.xlu0 %v3273, 48
  %v3958 = vpop.permute.xlu0 %3957
  %3959 = vrot.lane.b32.xlu0 %v3284, 48
  %v3960 = vpop.permute.xlu0 %3959
  %v3961 = vsel %vm3646, %v3617, %v3946
  %v3962 = vsel %vm3646, %v3621, %v3948
  %v3963 = vsel %vm3646, %v3625, %v3950
  %v3964 = vsel %vm3646, %v3629, %v3952
  %v3965 = vsel %vm3646, %v3633, %v3954
  %v3966 = vsel %vm3646, %v3637, %v3956
  %v3967 = vsel %vm3646, %v3641, %v3958
  %v3968 = vsel %vm3646, %v3645, %v3960
  %v3985 = vadd.f32 %v3921, %v3617
  %v3986 = vadd.f32 %v3922, %v3961
  %v3987 = vadd.f32 %v3923, %v3621
  %v3988 = vadd.f32 %v3924, %v3962
  %v3989 = vadd.f32 %v3925, %v3625
  %v3990 = vadd.f32 %v3926, %v3963
  %v3991 = vadd.f32 %v3927, %v3629
  %v3992 = vadd.f32 %v3928, %v3964
  %v3993 = vadd.f32 %v3929, %v3633
  %v3994 = vadd.f32 %v3930, %v3965
  %v3995 = vadd.f32 %v3931, %v3637
  %v3996 = vadd.f32 %v3932, %v3966
  %v3997 = vadd.f32 %v3933, %v3641
  %v3998 = vadd.f32 %v3934, %v3967
  %v3999 = vadd.f32 %v3935, %v3645
  %v4000 = vadd.f32 %v3936, %v3968
  %v4017 = vrot.slane %v870, 1
  %v4018 = vrot.slane %v876, 1
  %v4019 = vsel %vm3703, %v4017, %v4018
  %v4020 = vrot.slane %v882, 1
  %v4021 = vrot.slane %v888, 1
  %v4022 = vsel %vm3703, %v4020, %v4021
  %v4023 = vrot.slane %v894, 1
  %v4024 = vrot.slane %v900, 1
  %v4025 = vsel %vm3703, %v4023, %v4024
  %v4026 = vrot.slane %v906, 1
  %v4027 = vrot.slane %v912, 1
  %v4028 = vsel %vm3703, %v4026, %v4027
  %v4029 = vrot.slane %v918, 1
  %v4030 = vrot.slane %v924, 1
  %v4031 = vsel %vm3703, %v4029, %v4030
  %v4032 = vrot.slane %v930, 1
  %v4033 = vrot.slane %v936, 1
  %v4034 = vsel %vm3703, %v4032, %v4033
  %v4035 = vrot.slane %v942, 1
  %v4036 = vrot.slane %v948, 1
  %v4037 = vsel %vm3703, %v4035, %v4036
  %v4038 = vrot.slane %v954, 1
  %v4039 = vrot.slane %v960, 1
  %v4040 = vsel %vm3703, %v4038, %v4039
  %4041 = vrot.lane.b32.xlu0 %v4019, 64
  %v4042 = vpop.permute.xlu0 %4041
  %4043 = vrot.lane.b32.xlu0 %v4022, 64
  %v4044 = vpop.permute.xlu0 %4043
  %4045 = vrot.lane.b32.xlu0 %v4025, 64
  %v4046 = vpop.permute.xlu0 %4045
  %4047 = vrot.lane.b32.xlu0 %v4028, 64
  %v4048 = vpop.permute.xlu0 %4047
  %4049 = vrot.lane.b32.xlu0 %v4031, 64
  %v4050 = vpop.permute.xlu0 %4049
  %4051 = vrot.lane.b32.xlu0 %v4034, 64
  %v4052 = vpop.permute.xlu0 %4051
  %4053 = vrot.lane.b32.xlu0 %v4037, 64
  %v4054 = vpop.permute.xlu0 %4053
  %4055 = vrot.lane.b32.xlu0 %v4040, 64
  %v4056 = vpop.permute.xlu0 %4055
  %v4057 = vsel %vm3784, %v3755, %v4042
  %v4058 = vsel %vm3784, %v3759, %v4044
  %v4059 = vsel %vm3784, %v3763, %v4046
  %v4060 = vsel %vm3784, %v3767, %v4048
  %v4061 = vsel %vm3784, %v3771, %v4050
  %v4062 = vsel %vm3784, %v3775, %v4052
  %v4063 = vsel %vm3784, %v3779, %v4054
  %v4064 = vsel %vm3784, %v3783, %v4056
  %v4081 = vadd.f32 %v3985, %v3755
  %v4082 = vadd.f32 %v3986, %v4057
  %v4083 = vadd.f32 %v3987, %v3759
  %v4084 = vadd.f32 %v3988, %v4058
  %v4085 = vadd.f32 %v3989, %v3763
  %v4086 = vadd.f32 %v3990, %v4059
  %v4087 = vadd.f32 %v3991, %v3767
  %v4088 = vadd.f32 %v3992, %v4060
  %v4089 = vadd.f32 %v3993, %v3771
  %v4090 = vadd.f32 %v3994, %v4061
  %v4091 = vadd.f32 %v3995, %v3775
  %v4092 = vadd.f32 %v3996, %v4062
  %v4093 = vadd.f32 %v3997, %v3779
  %v4094 = vadd.f32 %v3998, %v4063
  %v4095 = vadd.f32 %v3999, %v3783
  %v4096 = vadd.f32 %v4000, %v4064
  %4113 = vrot.lane.b32.xlu0 %v1942, 16
  %v4114 = vpop.permute.xlu0 %4113
  %4115 = vrot.lane.b32.xlu0 %v2085, 16
  %v4116 = vpop.permute.xlu0 %4115
  %4117 = vrot.lane.b32.xlu0 %v1952, 16
  %v4118 = vpop.permute.xlu0 %4117
  %4119 = vrot.lane.b32.xlu0 %v2095, 16
  %v4120 = vpop.permute.xlu0 %4119
  %4121 = vrot.lane.b32.xlu0 %v1962, 16
  %v4122 = vpop.permute.xlu0 %4121
  %4123 = vrot.lane.b32.xlu0 %v2105, 16
  %v4124 = vpop.permute.xlu0 %4123
  %4125 = vrot.lane.b32.xlu0 %v1972, 16
  %v4126 = vpop.permute.xlu0 %4125
  %4127 = vrot.lane.b32.xlu0 %v2115, 16
  %v4128 = vpop.permute.xlu0 %4127
  %4129 = vrot.lane.b32.xlu0 %v1982, 16
  %v4130 = vpop.permute.xlu0 %4129
  %4131 = vrot.lane.b32.xlu0 %v2125, 16
  %v4132 = vpop.permute.xlu0 %4131
  %4133 = vrot.lane.b32.xlu0 %v1992, 16
  %v4134 = vpop.permute.xlu0 %4133
  %4135 = vrot.lane.b32.xlu0 %v2135, 16
  %v4136 = vpop.permute.xlu0 %4135
  %4137 = vrot.lane.b32.xlu0 %v2002, 16
  %v4138 = vpop.permute.xlu0 %4137
  %4139 = vrot.lane.b32.xlu0 %v2145, 16
  %v4140 = vpop.permute.xlu0 %4139
  %4141 = vrot.lane.b32.xlu0 %v2012, 16
  %v4142 = vpop.permute.xlu0 %4141
  %4143 = vrot.lane.b32.xlu0 %v2155, 16
  %v4144 = vpop.permute.xlu0 %4143
  %v4145 = vsel %vm3500, %v4114, %v4116
  %v4146 = vsel %vm3500, %v4118, %v4120
  %v4147 = vsel %vm3500, %v4122, %v4124
  %v4148 = vsel %vm3500, %v4126, %v4128
  %v4149 = vsel %vm3500, %v4130, %v4132
  %v4150 = vsel %vm3500, %v4134, %v4136
  %v4151 = vsel %vm3500, %v4138, %v4140
  %v4152 = vsel %vm3500, %v4142, %v4144
  %v4161 = vadd.f32 %v1094, %v4145
  %v4162 = vadd.f32 %v1104, %v4146
  %v4163 = vadd.f32 %v1114, %v4147
  %v4164 = vadd.f32 %v1124, %v4148
  %v4165 = vadd.f32 %v1134, %v4149
  %v4166 = vadd.f32 %v1144, %v4150
  %v4167 = vadd.f32 %v1154, %v4151
  %v4168 = vadd.f32 %v1164, %v4152
  %4185 = vrot.lane.b32.xlu0 %v2917, 32
  %v4186 = vpop.permute.xlu0 %4185
  %4187 = vrot.lane.b32.xlu0 %v3060, 32
  %v4188 = vpop.permute.xlu0 %4187
  %4189 = vrot.lane.b32.xlu0 %v2927, 32
  %v4190 = vpop.permute.xlu0 %4189
  %4191 = vrot.lane.b32.xlu0 %v3070, 32
  %v4192 = vpop.permute.xlu0 %4191
  %4193 = vrot.lane.b32.xlu0 %v2937, 32
  %v4194 = vpop.permute.xlu0 %4193
  %4195 = vrot.lane.b32.xlu0 %v3080, 32
  %v4196 = vpop.permute.xlu0 %4195
  %4197 = vrot.lane.b32.xlu0 %v2947, 32
  %v4198 = vpop.permute.xlu0 %4197
  %4199 = vrot.lane.b32.xlu0 %v3090, 32
  %v4200 = vpop.permute.xlu0 %4199
  %4201 = vrot.lane.b32.xlu0 %v2957, 32
  %v4202 = vpop.permute.xlu0 %4201
  %4203 = vrot.lane.b32.xlu0 %v3100, 32
  %v4204 = vpop.permute.xlu0 %4203
  %4205 = vrot.lane.b32.xlu0 %v2967, 32
  %v4206 = vpop.permute.xlu0 %4205
  %4207 = vrot.lane.b32.xlu0 %v3110, 32
  %v4208 = vpop.permute.xlu0 %4207
  %4209 = vrot.lane.b32.xlu0 %v2977, 32
  %v4210 = vpop.permute.xlu0 %4209
  %4211 = vrot.lane.b32.xlu0 %v3120, 32
  %v4212 = vpop.permute.xlu0 %4211
  %4213 = vrot.lane.b32.xlu0 %v2987, 32
  %v4214 = vpop.permute.xlu0 %4213
  %4215 = vrot.lane.b32.xlu0 %v3130, 32
  %v4216 = vpop.permute.xlu0 %4215
  %v4217 = vsel %vm3573, %v4186, %v4188
  %v4218 = vsel %vm3573, %v4190, %v4192
  %v4219 = vsel %vm3573, %v4194, %v4196
  %v4220 = vsel %vm3573, %v4198, %v4200
  %v4221 = vsel %vm3573, %v4202, %v4204
  %v4222 = vsel %vm3573, %v4206, %v4208
  %v4223 = vsel %vm3573, %v4210, %v4212
  %v4224 = vsel %vm3573, %v4214, %v4216
  %v4233 = vadd.f32 %v4161, %v4217
  %v4234 = vadd.f32 %v4162, %v4218
  %v4235 = vadd.f32 %v4163, %v4219
  %v4236 = vadd.f32 %v4164, %v4220
  %v4237 = vadd.f32 %v4165, %v4221
  %v4238 = vadd.f32 %v4166, %v4222
  %v4239 = vadd.f32 %v4167, %v4223
  %v4240 = vadd.f32 %v4168, %v4224
  %v4273 = vrot.slane %v548, 1
  %v4274 = vrot.slane %v554, 1
  %v4275 = vsel %vm3703, %v4273, %v4274
  %v4276 = vrot.slane %v707, 1
  %v4277 = vrot.slane %v713, 1
  %v4278 = vsel %vm3703, %v4276, %v4277
  %v4279 = vrot.slane %v560, 1
  %v4280 = vrot.slane %v566, 1
  %v4281 = vsel %vm3703, %v4279, %v4280
  %v4282 = vrot.slane %v719, 1
  %v4283 = vrot.slane %v725, 1
  %v4284 = vsel %vm3703, %v4282, %v4283
  %v4285 = vrot.slane %v572, 1
  %v4286 = vrot.slane %v578, 1
  %v4287 = vsel %vm3703, %v4285, %v4286
  %v4288 = vrot.slane %v731, 1
  %v4289 = vrot.slane %v737, 1
  %v4290 = vsel %vm3703, %v4288, %v4289
  %v4291 = vrot.slane %v584, 1
  %v4292 = vrot.slane %v590, 1
  %v4293 = vsel %vm3703, %v4291, %v4292
  %v4294 = vrot.slane %v743, 1
  %v4295 = vrot.slane %v749, 1
  %v4296 = vsel %vm3703, %v4294, %v4295
  %v4297 = vrot.slane %v596, 1
  %v4298 = vrot.slane %v602, 1
  %v4299 = vsel %vm3703, %v4297, %v4298
  %v4300 = vrot.slane %v755, 1
  %v4301 = vrot.slane %v761, 1
  %v4302 = vsel %vm3703, %v4300, %v4301
  %v4303 = vrot.slane %v608, 1
  %v4304 = vrot.slane %v614, 1
  %v4305 = vsel %vm3703, %v4303, %v4304
  %v4306 = vrot.slane %v767, 1
  %v4307 = vrot.slane %v773, 1
  %v4308 = vsel %vm3703, %v4306, %v4307
  %v4309 = vrot.slane %v620, 1
  %v4310 = vrot.slane %v626, 1
  %v4311 = vsel %vm3703, %v4309, %v4310
  %v4312 = vrot.slane %v779, 1
  %v4313 = vrot.slane %v785, 1
  %v4314 = vsel %vm3703, %v4312, %v4313
  %v4315 = vrot.slane %v632, 1
  %v4316 = vrot.slane %v638, 1
  %v4317 = vsel %vm3703, %v4315, %v4316
  %v4318 = vrot.slane %v791, 1
  %v4319 = vrot.slane %v797, 1
  %v4320 = vsel %vm3703, %v4318, %v4319
  %4321 = vrot.lane.b32.xlu0 %v4275, 48
  %v4322 = vpop.permute.xlu0 %4321
  %4323 = vrot.lane.b32.xlu0 %v4278, 48
  %v4324 = vpop.permute.xlu0 %4323
  %4325 = vrot.lane.b32.xlu0 %v4281, 48
  %v4326 = vpop.permute.xlu0 %4325
  %4327 = vrot.lane.b32.xlu0 %v4284, 48
  %v4328 = vpop.permute.xlu0 %4327
  %4329 = vrot.lane.b32.xlu0 %v4287, 48
  %v4330 = vpop.permute.xlu0 %4329
  %4331 = vrot.lane.b32.xlu0 %v4290, 48
  %v4332 = vpop.permute.xlu0 %4331
  %4333 = vrot.lane.b32.xlu0 %v4293, 48
  %v4334 = vpop.permute.xlu0 %4333
  %4335 = vrot.lane.b32.xlu0 %v4296, 48
  %v4336 = vpop.permute.xlu0 %4335
  %4337 = vrot.lane.b32.xlu0 %v4299, 48
  %v4338 = vpop.permute.xlu0 %4337
  %4339 = vrot.lane.b32.xlu0 %v4302, 48
  %v4340 = vpop.permute.xlu0 %4339
  %4341 = vrot.lane.b32.xlu0 %v4305, 48
  %v4342 = vpop.permute.xlu0 %4341
  %4343 = vrot.lane.b32.xlu0 %v4308, 48
  %v4344 = vpop.permute.xlu0 %4343
  %4345 = vrot.lane.b32.xlu0 %v4311, 48
  %v4346 = vpop.permute.xlu0 %4345
  %4347 = vrot.lane.b32.xlu0 %v4314, 48
  %v4348 = vpop.permute.xlu0 %4347
  %4349 = vrot.lane.b32.xlu0 %v4317, 48
  %v4350 = vpop.permute.xlu0 %4349
  %4351 = vrot.lane.b32.xlu0 %v4320, 48
  %v4352 = vpop.permute.xlu0 %4351
  %v4353 = vsel %vm3646, %v4322, %v4324
  %v4354 = vsel %vm3646, %v4326, %v4328
  %v4355 = vsel %vm3646, %v4330, %v4332
  %v4356 = vsel %vm3646, %v4334, %v4336
  %v4357 = vsel %vm3646, %v4338, %v4340
  %v4358 = vsel %vm3646, %v4342, %v4344
  %v4359 = vsel %vm3646, %v4346, %v4348
  %v4360 = vsel %vm3646, %v4350, %v4352
  %v4369 = vadd.f32 %v4233, %v4353
  %v4370 = vadd.f32 %v4234, %v4354
  %v4371 = vadd.f32 %v4235, %v4355
  %v4372 = vadd.f32 %v4236, %v4356
  %v4373 = vadd.f32 %v4237, %v4357
  %v4374 = vadd.f32 %v4238, %v4358
  %v4375 = vadd.f32 %v4239, %v4359
  %v4376 = vadd.f32 %v4240, %v4360
  %v4409 = vrot.slane %v1555, 1
  %v4410 = vrot.slane %v1561, 1
  %v4411 = vsel %vm3703, %v4409, %v4410
  %v4412 = vrot.slane %v1714, 1
  %v4413 = vrot.slane %v1720, 1
  %v4414 = vsel %vm3703, %v4412, %v4413
  %v4415 = vrot.slane %v1567, 1
  %v4416 = vrot.slane %v1573, 1
  %v4417 = vsel %vm3703, %v4415, %v4416
  %v4418 = vrot.slane %v1726, 1
  %v4419 = vrot.slane %v1732, 1
  %v4420 = vsel %vm3703, %v4418, %v4419
  %v4421 = vrot.slane %v1579, 1
  %v4422 = vrot.slane %v1585, 1
  %v4423 = vsel %vm3703, %v4421, %v4422
  %v4424 = vrot.slane %v1738, 1
  %v4425 = vrot.slane %v1744, 1
  %v4426 = vsel %vm3703, %v4424, %v4425
  %v4427 = vrot.slane %v1591, 1
  %v4428 = vrot.slane %v1597, 1
  %v4429 = vsel %vm3703, %v4427, %v4428
  %v4430 = vrot.slane %v1750, 1
  %v4431 = vrot.slane %v1756, 1
  %v4432 = vsel %vm3703, %v4430, %v4431
  %v4433 = vrot.slane %v1603, 1
  %v4434 = vrot.slane %v1609, 1
  %v4435 = vsel %vm3703, %v4433, %v4434
  %v4436 = vrot.slane %v1762, 1
  %v4437 = vrot.slane %v1768, 1
  %v4438 = vsel %vm3703, %v4436, %v4437
  %v4439 = vrot.slane %v1615, 1
  %v4440 = vrot.slane %v1621, 1
  %v4441 = vsel %vm3703, %v4439, %v4440
  %v4442 = vrot.slane %v1774, 1
  %v4443 = vrot.slane %v1780, 1
  %v4444 = vsel %vm3703, %v4442, %v4443
  %v4445 = vrot.slane %v1627, 1
  %v4446 = vrot.slane %v1633, 1
  %v4447 = vsel %vm3703, %v4445, %v4446
  %v4448 = vrot.slane %v1786, 1
  %v4449 = vrot.slane %v1792, 1
  %v4450 = vsel %vm3703, %v4448, %v4449
  %v4451 = vrot.slane %v1639, 1
  %v4452 = vrot.slane %v1645, 1
  %v4453 = vsel %vm3703, %v4451, %v4452
  %v4454 = vrot.slane %v1798, 1
  %v4455 = vrot.slane %v1804, 1
  %v4456 = vsel %vm3703, %v4454, %v4455
  %4457 = vrot.lane.b32.xlu0 %v4411, 64
  %v4458 = vpop.permute.xlu0 %4457
  %4459 = vrot.lane.b32.xlu0 %v4414, 64
  %v4460 = vpop.permute.xlu0 %4459
  %4461 = vrot.lane.b32.xlu0 %v4417, 64
  %v4462 = vpop.permute.xlu0 %4461
  %4463 = vrot.lane.b32.xlu0 %v4420, 64
  %v4464 = vpop.permute.xlu0 %4463
  %4465 = vrot.lane.b32.xlu0 %v4423, 64
  %v4466 = vpop.permute.xlu0 %4465
  %4467 = vrot.lane.b32.xlu0 %v4426, 64
  %v4468 = vpop.permute.xlu0 %4467
  %4469 = vrot.lane.b32.xlu0 %v4429, 64
  %v4470 = vpop.permute.xlu0 %4469
  %4471 = vrot.lane.b32.xlu0 %v4432, 64
  %v4472 = vpop.permute.xlu0 %4471
  %4473 = vrot.lane.b32.xlu0 %v4435, 64
  %v4474 = vpop.permute.xlu0 %4473
  %4475 = vrot.lane.b32.xlu0 %v4438, 64
  %v4476 = vpop.permute.xlu0 %4475
  %4477 = vrot.lane.b32.xlu0 %v4441, 64
  %v4478 = vpop.permute.xlu0 %4477
  %4479 = vrot.lane.b32.xlu0 %v4444, 64
  %v4480 = vpop.permute.xlu0 %4479
  %4481 = vrot.lane.b32.xlu0 %v4447, 64
  %v4482 = vpop.permute.xlu0 %4481
  %4483 = vrot.lane.b32.xlu0 %v4450, 64
  %v4484 = vpop.permute.xlu0 %4483
  %4485 = vrot.lane.b32.xlu0 %v4453, 64
  %v4486 = vpop.permute.xlu0 %4485
  %4487 = vrot.lane.b32.xlu0 %v4456, 64
  %v4488 = vpop.permute.xlu0 %4487
  %v4489 = vsel %vm3784, %v4458, %v4460
  %v4490 = vsel %vm3784, %v4462, %v4464
  %v4491 = vsel %vm3784, %v4466, %v4468
  %v4492 = vsel %vm3784, %v4470, %v4472
  %v4493 = vsel %vm3784, %v4474, %v4476
  %v4494 = vsel %vm3784, %v4478, %v4480
  %v4495 = vsel %vm3784, %v4482, %v4484
  %v4496 = vsel %vm3784, %v4486, %v4488
  %v4505 = vadd.f32 %v4369, %v4489
  %v4506 = vadd.f32 %v4370, %v4490
  %v4507 = vadd.f32 %v4371, %v4491
  %v4508 = vadd.f32 %v4372, %v4492
  %v4509 = vadd.f32 %v4373, %v4493
  %v4510 = vadd.f32 %v4374, %v4494
  %v4511 = vadd.f32 %v4375, %v4495
  %v4512 = vadd.f32 %v4376, %v4496
  %4513 = vrot.lane.b32.xlu0 %v2087, 16
  %v4514 = vpop.permute.xlu0 %4513
  %4515 = vrot.lane.b32.xlu0 %v2097, 16
  %v4516 = vpop.permute.xlu0 %4515
  %4517 = vrot.lane.b32.xlu0 %v2107, 16
  %v4518 = vpop.permute.xlu0 %4517
  %4519 = vrot.lane.b32.xlu0 %v2117, 16
  %v4520 = vpop.permute.xlu0 %4519
  %4521 = vrot.lane.b32.xlu0 %v2127, 16
  %v4522 = vpop.permute.xlu0 %4521
  %4523 = vrot.lane.b32.xlu0 %v2137, 16
  %v4524 = vpop.permute.xlu0 %4523
  %4525 = vrot.lane.b32.xlu0 %v2147, 16
  %v4526 = vpop.permute.xlu0 %4525
  %4527 = vrot.lane.b32.xlu0 %v2157, 16
  %v4528 = vpop.permute.xlu0 %4527
  %v4529 = vsel %vm3500, %v4116, %v4514
  %v4530 = vsel %vm3500, %v4120, %v4516
  %v4531 = vsel %vm3500, %v4124, %v4518
  %v4532 = vsel %vm3500, %v4128, %v4520
  %v4533 = vsel %vm3500, %v4132, %v4522
  %v4534 = vsel %vm3500, %v4136, %v4524
  %v4535 = vsel %vm3500, %v4140, %v4526
  %v4536 = vsel %vm3500, %v4144, %v4528
  %v4553 = vadd.f32 %v1094, %v4116
  %v4554 = vadd.f32 %v1096, %v4529
  %v4555 = vadd.f32 %v1104, %v4120
  %v4556 = vadd.f32 %v1106, %v4530
  %v4557 = vadd.f32 %v1114, %v4124
  %v4558 = vadd.f32 %v1116, %v4531
  %v4559 = vadd.f32 %v1124, %v4128
  %v4560 = vadd.f32 %v1126, %v4532
  %v4561 = vadd.f32 %v1134, %v4132
  %v4562 = vadd.f32 %v1136, %v4533
  %v4563 = vadd.f32 %v1144, %v4136
  %v4564 = vadd.f32 %v1146, %v4534
  %v4565 = vadd.f32 %v1154, %v4140
  %v4566 = vadd.f32 %v1156, %v4535
  %v4567 = vadd.f32 %v1164, %v4144
  %v4568 = vadd.f32 %v1166, %v4536
  %4569 = vrot.lane.b32.xlu0 %v3062, 32
  %v4570 = vpop.permute.xlu0 %4569
  %4571 = vrot.lane.b32.xlu0 %v3072, 32
  %v4572 = vpop.permute.xlu0 %4571
  %4573 = vrot.lane.b32.xlu0 %v3082, 32
  %v4574 = vpop.permute.xlu0 %4573
  %4575 = vrot.lane.b32.xlu0 %v3092, 32
  %v4576 = vpop.permute.xlu0 %4575
  %4577 = vrot.lane.b32.xlu0 %v3102, 32
  %v4578 = vpop.permute.xlu0 %4577
  %4579 = vrot.lane.b32.xlu0 %v3112, 32
  %v4580 = vpop.permute.xlu0 %4579
  %4581 = vrot.lane.b32.xlu0 %v3122, 32
  %v4582 = vpop.permute.xlu0 %4581
  %4583 = vrot.lane.b32.xlu0 %v3132, 32
  %v4584 = vpop.permute.xlu0 %4583
  %v4585 = vsel %vm3573, %v4188, %v4570
  %v4586 = vsel %vm3573, %v4192, %v4572
  %v4587 = vsel %vm3573, %v4196, %v4574
  %v4588 = vsel %vm3573, %v4200, %v4576
  %v4589 = vsel %vm3573, %v4204, %v4578
  %v4590 = vsel %vm3573, %v4208, %v4580
  %v4591 = vsel %vm3573, %v4212, %v4582
  %v4592 = vsel %vm3573, %v4216, %v4584
  %v4609 = vadd.f32 %v4553, %v4188
  %v4610 = vadd.f32 %v4554, %v4585
  %v4611 = vadd.f32 %v4555, %v4192
  %v4612 = vadd.f32 %v4556, %v4586
  %v4613 = vadd.f32 %v4557, %v4196
  %v4614 = vadd.f32 %v4558, %v4587
  %v4615 = vadd.f32 %v4559, %v4200
  %v4616 = vadd.f32 %v4560, %v4588
  %v4617 = vadd.f32 %v4561, %v4204
  %v4618 = vadd.f32 %v4562, %v4589
  %v4619 = vadd.f32 %v4563, %v4208
  %v4620 = vadd.f32 %v4564, %v4590
  %v4621 = vadd.f32 %v4565, %v4212
  %v4622 = vadd.f32 %v4566, %v4591
  %v4623 = vadd.f32 %v4567, %v4216
  %v4624 = vadd.f32 %v4568, %v4592
  %4625 = vrot.lane.b32.xlu0 %v3706, 48
  %v4626 = vpop.permute.xlu0 %4625
  %4627 = vrot.lane.b32.xlu0 %v3712, 48
  %v4628 = vpop.permute.xlu0 %4627
  %4629 = vrot.lane.b32.xlu0 %v3718, 48
  %v4630 = vpop.permute.xlu0 %4629
  %4631 = vrot.lane.b32.xlu0 %v3724, 48
  %v4632 = vpop.permute.xlu0 %4631
  %4633 = vrot.lane.b32.xlu0 %v3730, 48
  %v4634 = vpop.permute.xlu0 %4633
  %4635 = vrot.lane.b32.xlu0 %v3736, 48
  %v4636 = vpop.permute.xlu0 %4635
  %4637 = vrot.lane.b32.xlu0 %v3742, 48
  %v4638 = vpop.permute.xlu0 %4637
  %4639 = vrot.lane.b32.xlu0 %v3748, 48
  %v4640 = vpop.permute.xlu0 %4639
  %v4641 = vsel %vm3646, %v4324, %v4626
  %v4642 = vsel %vm3646, %v4328, %v4628
  %v4643 = vsel %vm3646, %v4332, %v4630
  %v4644 = vsel %vm3646, %v4336, %v4632
  %v4645 = vsel %vm3646, %v4340, %v4634
  %v4646 = vsel %vm3646, %v4344, %v4636
  %v4647 = vsel %vm3646, %v4348, %v4638
  %v4648 = vsel %vm3646, %v4352, %v4640
  %v4665 = vadd.f32 %v4609, %v4324
  %v4666 = vadd.f32 %v4610, %v4641
  %v4667 = vadd.f32 %v4611, %v4328
  %v4668 = vadd.f32 %v4612, %v4642
  %v4669 = vadd.f32 %v4613, %v4332
  %v4670 = vadd.f32 %v4614, %v4643
  %v4671 = vadd.f32 %v4615, %v4336
  %v4672 = vadd.f32 %v4616, %v4644
  %v4673 = vadd.f32 %v4617, %v4340
  %v4674 = vadd.f32 %v4618, %v4645
  %v4675 = vadd.f32 %v4619, %v4344
  %v4676 = vadd.f32 %v4620, %v4646
  %v4677 = vadd.f32 %v4621, %v4348
  %v4678 = vadd.f32 %v4622, %v4647
  %v4679 = vadd.f32 %v4623, %v4352
  %v4680 = vadd.f32 %v4624, %v4648
  %v4697 = vrot.slane %v1716, 1
  %v4698 = vrot.slane %v1722, 1
  %v4699 = vsel %vm3703, %v4697, %v4698
  %v4700 = vrot.slane %v1728, 1
  %v4701 = vrot.slane %v1734, 1
  %v4702 = vsel %vm3703, %v4700, %v4701
  %v4703 = vrot.slane %v1740, 1
  %v4704 = vrot.slane %v1746, 1
  %v4705 = vsel %vm3703, %v4703, %v4704
  %v4706 = vrot.slane %v1752, 1
  %v4707 = vrot.slane %v1758, 1
  %v4708 = vsel %vm3703, %v4706, %v4707
  %v4709 = vrot.slane %v1764, 1
  %v4710 = vrot.slane %v1770, 1
  %v4711 = vsel %vm3703, %v4709, %v4710
  %v4712 = vrot.slane %v1776, 1
  %v4713 = vrot.slane %v1782, 1
  %v4714 = vsel %vm3703, %v4712, %v4713
  %v4715 = vrot.slane %v1788, 1
  %v4716 = vrot.slane %v1794, 1
  %v4717 = vsel %vm3703, %v4715, %v4716
  %v4718 = vrot.slane %v1800, 1
  %v4719 = vrot.slane %v1806, 1
  %v4720 = vsel %vm3703, %v4718, %v4719
  %4721 = vrot.lane.b32.xlu0 %v4699, 64
  %v4722 = vpop.permute.xlu0 %4721
  %4723 = vrot.lane.b32.xlu0 %v4702, 64
  %v4724 = vpop.permute.xlu0 %4723
  %4725 = vrot.lane.b32.xlu0 %v4705, 64
  %v4726 = vpop.permute.xlu0 %4725
  %4727 = vrot.lane.b32.xlu0 %v4708, 64
  %v4728 = vpop.permute.xlu0 %4727
  %4729 = vrot.lane.b32.xlu0 %v4711, 64
  %v4730 = vpop.permute.xlu0 %4729
  %4731 = vrot.lane.b32.xlu0 %v4714, 64
  %v4732 = vpop.permute.xlu0 %4731
  %4733 = vrot.lane.b32.xlu0 %v4717, 64
  %v4734 = vpop.permute.xlu0 %4733
  %4735 = vrot.lane.b32.xlu0 %v4720, 64
  %v4736 = vpop.permute.xlu0 %4735
  %v4737 = vsel %vm3784, %v4460, %v4722
  %v4738 = vsel %vm3784, %v4464, %v4724
  %v4739 = vsel %vm3784, %v4468, %v4726
  %v4740 = vsel %vm3784, %v4472, %v4728
  %v4741 = vsel %vm3784, %v4476, %v4730
  %v4742 = vsel %vm3784, %v4480, %v4732
  %v4743 = vsel %vm3784, %v4484, %v4734
  %v4744 = vsel %vm3784, %v4488, %v4736
  %v4761 = vadd.f32 %v4665, %v4460
  %v4762 = vadd.f32 %v4666, %v4737
  %v4763 = vadd.f32 %v4667, %v4464
  %v4764 = vadd.f32 %v4668, %v4738
  %v4765 = vadd.f32 %v4669, %v4468
  %v4766 = vadd.f32 %v4670, %v4739
  %v4767 = vadd.f32 %v4671, %v4472
  %v4768 = vadd.f32 %v4672, %v4740
  %v4769 = vadd.f32 %v4673, %v4476
  %v4770 = vadd.f32 %v4674, %v4741
  %v4771 = vadd.f32 %v4675, %v4480
  %v4772 = vadd.f32 %v4676, %v4742
  %v4773 = vadd.f32 %v4677, %v4484
  %v4774 = vadd.f32 %v4678, %v4743
  %v4775 = vadd.f32 %v4679, %v4488
  %v4776 = vadd.f32 %v4680, %v4744
  %4793 = vrot.lane.b32.xlu0 %v4081, 8
  %v4794 = vpop.permute.xlu0 %4793
  %4795 = vrot.lane.b32.xlu0 %v4082, 8
  %v4796 = vpop.permute.xlu0 %4795
  %4797 = vrot.lane.b32.xlu0 %v4083, 8
  %v4798 = vpop.permute.xlu0 %4797
  %4799 = vrot.lane.b32.xlu0 %v4084, 8
  %v4800 = vpop.permute.xlu0 %4799
  %4801 = vrot.lane.b32.xlu0 %v4085, 8
  %v4802 = vpop.permute.xlu0 %4801
  %4803 = vrot.lane.b32.xlu0 %v4086, 8
  %v4804 = vpop.permute.xlu0 %4803
  %4805 = vrot.lane.b32.xlu0 %v4087, 8
  %v4806 = vpop.permute.xlu0 %4805
  %4807 = vrot.lane.b32.xlu0 %v4088, 8
  %v4808 = vpop.permute.xlu0 %4807
  %4809 = vrot.lane.b32.xlu0 %v4089, 8
  %v4810 = vpop.permute.xlu0 %4809
  %4811 = vrot.lane.b32.xlu0 %v4090, 8
  %v4812 = vpop.permute.xlu0 %4811
  %4813 = vrot.lane.b32.xlu0 %v4091, 8
  %v4814 = vpop.permute.xlu0 %4813
  %4815 = vrot.lane.b32.xlu0 %v4092, 8
  %v4816 = vpop.permute.xlu0 %4815
  %4817 = vrot.lane.b32.xlu0 %v4093, 8
  %v4818 = vpop.permute.xlu0 %4817
  %4819 = vrot.lane.b32.xlu0 %v4094, 8
  %v4820 = vpop.permute.xlu0 %4819
  %4821 = vrot.lane.b32.xlu0 %v4095, 8
  %v4822 = vpop.permute.xlu0 %4821
  %4823 = vrot.lane.b32.xlu0 %v4096, 8
  %v4824 = vpop.permute.xlu0 %4823
  %vm4825 = vcmask 64512
  %v4826 = vsel %vm4825, %v4794, %v4796
  %v4827 = vsel %vm4825, %v4798, %v4800
  %v4828 = vsel %vm4825, %v4802, %v4804
  %v4829 = vsel %vm4825, %v4806, %v4808
  %v4830 = vsel %vm4825, %v4810, %v4812
  %v4831 = vsel %vm4825, %v4814, %v4816
  %v4832 = vsel %vm4825, %v4818, %v4820
  %v4833 = vsel %vm4825, %v4822, %v4824
  %v4842 = vmax.f32 %v3801, %v4826
  %v4843 = vmax.f32 %v3802, %v4827
  %v4844 = vmax.f32 %v3803, %v4828
  %v4845 = vmax.f32 %v3804, %v4829
  %v4846 = vmax.f32 %v3805, %v4830
  %v4847 = vmax.f32 %v3806, %v4831
  %v4848 = vmax.f32 %v3807, %v4832
  %v4849 = vmax.f32 %v3808, %v4833
  %4866 = vrot.lane.b32.xlu0 %v4761, 8
  %v4867 = vpop.permute.xlu0 %4866
  %4868 = vrot.lane.b32.xlu0 %v4762, 8
  %v4869 = vpop.permute.xlu0 %4868
  %4870 = vrot.lane.b32.xlu0 %v4763, 8
  %v4871 = vpop.permute.xlu0 %4870
  %4872 = vrot.lane.b32.xlu0 %v4764, 8
  %v4873 = vpop.permute.xlu0 %4872
  %4874 = vrot.lane.b32.xlu0 %v4765, 8
  %v4875 = vpop.permute.xlu0 %4874
  %4876 = vrot.lane.b32.xlu0 %v4766, 8
  %v4877 = vpop.permute.xlu0 %4876
  %4878 = vrot.lane.b32.xlu0 %v4767, 8
  %v4879 = vpop.permute.xlu0 %4878
  %4880 = vrot.lane.b32.xlu0 %v4768, 8
  %v4881 = vpop.permute.xlu0 %4880
  %4882 = vrot.lane.b32.xlu0 %v4769, 8
  %v4883 = vpop.permute.xlu0 %4882
  %4884 = vrot.lane.b32.xlu0 %v4770, 8
  %v4885 = vpop.permute.xlu0 %4884
  %4886 = vrot.lane.b32.xlu0 %v4771, 8
  %v4887 = vpop.permute.xlu0 %4886
  %4888 = vrot.lane.b32.xlu0 %v4772, 8
  %v4889 = vpop.permute.xlu0 %4888
  %4890 = vrot.lane.b32.xlu0 %v4773, 8
  %v4891 = vpop.permute.xlu0 %4890
  %4892 = vrot.lane.b32.xlu0 %v4774, 8
  %v4893 = vpop.permute.xlu0 %4892
  %4894 = vrot.lane.b32.xlu0 %v4775, 8
  %v4895 = vpop.permute.xlu0 %4894
  %4896 = vrot.lane.b32.xlu0 %v4776, 8
  %v4897 = vpop.permute.xlu0 %4896
  %v4898 = vsel %vm4825, %v4867, %v4869
  %v4899 = vsel %vm4825, %v4871, %v4873
  %v4900 = vsel %vm4825, %v4875, %v4877
  %v4901 = vsel %vm4825, %v4879, %v4881
  %v4902 = vsel %vm4825, %v4883, %v4885
  %v4903 = vsel %vm4825, %v4887, %v4889
  %v4904 = vsel %vm4825, %v4891, %v4893
  %v4905 = vsel %vm4825, %v4895, %v4897
  %v4914 = vmax.f32 %v4505, %v4898
  %v4915 = vmax.f32 %v4506, %v4899
  %v4916 = vmax.f32 %v4507, %v4900
  %v4917 = vmax.f32 %v4508, %v4901
  %v4918 = vmax.f32 %v4509, %v4902
  %v4919 = vmax.f32 %v4510, %v4903
  %v4920 = vmax.f32 %v4511, %v4904
  %v4921 = vmax.f32 %v4512, %v4905
  %v4922 = vmax.f32 %v4842, %v4914
  %v4923 = vmax.f32 %v4843, %v4915
  %v4924 = vmax.f32 %v4844, %v4916
  %v4925 = vmax.f32 %v4845, %v4917
  %v4926 = vmax.f32 %v4846, %v4918
  %v4927 = vmax.f32 %v4847, %v4919
  %v4928 = vmax.f32 %v4848, %v4920
  %v4929 = vmax.f32 %v4849, %v4921
  %v4930 = vmax.f32 %v4922, 0.0
  %v4931 = vmax.f32 %v4923, 0.0
  %v4932 = vmax.f32 %v4924, 0.0
  %v4933 = vmax.f32 %v4925, 0.0
  %v4934 = vmax.f32 %v4926, 0.0
  %v4935 = vmax.f32 %v4927, 0.0
  %v4936 = vmax.f32 %v4928, 0.0
  %v4937 = vmax.f32 %v4929, 0.0
  %4954 = vrot.lane.b32.xlu0 %v2772, 16
  %v4955 = vpop.permute.xlu0 %4954
  %4956 = vrot.lane.b32.xlu0 %v2915, 16
  %v4957 = vpop.permute.xlu0 %4956
  %4958 = vrot.lane.b32.xlu0 %v2782, 16
  %v4959 = vpop.permute.xlu0 %4958
  %4960 = vrot.lane.b32.xlu0 %v2925, 16
  %v4961 = vpop.permute.xlu0 %4960
  %4962 = vrot.lane.b32.xlu0 %v2792, 16
  %v4963 = vpop.permute.xlu0 %4962
  %4964 = vrot.lane.b32.xlu0 %v2935, 16
  %v4965 = vpop.permute.xlu0 %4964
  %4966 = vrot.lane.b32.xlu0 %v2802, 16
  %v4967 = vpop.permute.xlu0 %4966
  %4968 = vrot.lane.b32.xlu0 %v2945, 16
  %v4969 = vpop.permute.xlu0 %4968
  %4970 = vrot.lane.b32.xlu0 %v2812, 16
  %v4971 = vpop.permute.xlu0 %4970
  %4972 = vrot.lane.b32.xlu0 %v2955, 16
  %v4973 = vpop.permute.xlu0 %4972
  %4974 = vrot.lane.b32.xlu0 %v2822, 16
  %v4975 = vpop.permute.xlu0 %4974
  %4976 = vrot.lane.b32.xlu0 %v2965, 16
  %v4977 = vpop.permute.xlu0 %4976
  %4978 = vrot.lane.b32.xlu0 %v2832, 16
  %v4979 = vpop.permute.xlu0 %4978
  %4980 = vrot.lane.b32.xlu0 %v2975, 16
  %v4981 = vpop.permute.xlu0 %4980
  %4982 = vrot.lane.b32.xlu0 %v2842, 16
  %v4983 = vpop.permute.xlu0 %4982
  %4984 = vrot.lane.b32.xlu0 %v2985, 16
  %v4985 = vpop.permute.xlu0 %4984
  %v4986 = vsel %vm3500, %v4955, %v4957
  %v4987 = vsel %vm3500, %v4959, %v4961
  %v4988 = vsel %vm3500, %v4963, %v4965
  %v4989 = vsel %vm3500, %v4967, %v4969
  %v4990 = vsel %vm3500, %v4971, %v4973
  %v4991 = vsel %vm3500, %v4975, %v4977
  %v4992 = vsel %vm3500, %v4979, %v4981
  %v4993 = vsel %vm3500, %v4983, %v4985
  %v5002 = vadd.f32 %v1940, %v4986
  %v5003 = vadd.f32 %v1950, %v4987
  %v5004 = vadd.f32 %v1960, %v4988
  %v5005 = vadd.f32 %v1970, %v4989
  %v5006 = vadd.f32 %v1980, %v4990
  %v5007 = vadd.f32 %v1990, %v4991
  %v5008 = vadd.f32 %v2000, %v4992
  %v5009 = vadd.f32 %v2010, %v4993
  %v5042 = vrot.slane %v387, 1
  %v5043 = vrot.slane %v393, 1
  %v5044 = vsel %vm3703, %v5042, %v5043
  %v5045 = vrot.slane %v546, 1
  %v5046 = vrot.slane %v552, 1
  %v5047 = vsel %vm3703, %v5045, %v5046
  %v5048 = vrot.slane %v399, 1
  %v5049 = vrot.slane %v405, 1
  %v5050 = vsel %vm3703, %v5048, %v5049
  %v5051 = vrot.slane %v558, 1
  %v5052 = vrot.slane %v564, 1
  %v5053 = vsel %vm3703, %v5051, %v5052
  %v5054 = vrot.slane %v411, 1
  %v5055 = vrot.slane %v417, 1
  %v5056 = vsel %vm3703, %v5054, %v5055
  %v5057 = vrot.slane %v570, 1
  %v5058 = vrot.slane %v576, 1
  %v5059 = vsel %vm3703, %v5057, %v5058
  %v5060 = vrot.slane %v423, 1
  %v5061 = vrot.slane %v429, 1
  %v5062 = vsel %vm3703, %v5060, %v5061
  %v5063 = vrot.slane %v582, 1
  %v5064 = vrot.slane %v588, 1
  %v5065 = vsel %vm3703, %v5063, %v5064
  %v5066 = vrot.slane %v435, 1
  %v5067 = vrot.slane %v441, 1
  %v5068 = vsel %vm3703, %v5066, %v5067
  %v5069 = vrot.slane %v594, 1
  %v5070 = vrot.slane %v600, 1
  %v5071 = vsel %vm3703, %v5069, %v5070
  %v5072 = vrot.slane %v447, 1
  %v5073 = vrot.slane %v453, 1
  %v5074 = vsel %vm3703, %v5072, %v5073
  %v5075 = vrot.slane %v606, 1
  %v5076 = vrot.slane %v612, 1
  %v5077 = vsel %vm3703, %v5075, %v5076
  %v5078 = vrot.slane %v459, 1
  %v5079 = vrot.slane %v465, 1
  %v5080 = vsel %vm3703, %v5078, %v5079
  %v5081 = vrot.slane %v618, 1
  %v5082 = vrot.slane %v624, 1
  %v5083 = vsel %vm3703, %v5081, %v5082
  %v5084 = vrot.slane %v471, 1
  %v5085 = vrot.slane %v477, 1
  %v5086 = vsel %vm3703, %v5084, %v5085
  %v5087 = vrot.slane %v630, 1
  %v5088 = vrot.slane %v636, 1
  %v5089 = vsel %vm3703, %v5087, %v5088
  %5090 = vrot.lane.b32.xlu0 %v5044, 32
  %v5091 = vpop.permute.xlu0 %5090
  %5092 = vrot.lane.b32.xlu0 %v5047, 32
  %v5093 = vpop.permute.xlu0 %5092
  %5094 = vrot.lane.b32.xlu0 %v5050, 32
  %v5095 = vpop.permute.xlu0 %5094
  %5096 = vrot.lane.b32.xlu0 %v5053, 32
  %v5097 = vpop.permute.xlu0 %5096
  %5098 = vrot.lane.b32.xlu0 %v5056, 32
  %v5099 = vpop.permute.xlu0 %5098
  %5100 = vrot.lane.b32.xlu0 %v5059, 32
  %v5101 = vpop.permute.xlu0 %5100
  %5102 = vrot.lane.b32.xlu0 %v5062, 32
  %v5103 = vpop.permute.xlu0 %5102
  %5104 = vrot.lane.b32.xlu0 %v5065, 32
  %v5105 = vpop.permute.xlu0 %5104
  %5106 = vrot.lane.b32.xlu0 %v5068, 32
  %v5107 = vpop.permute.xlu0 %5106
  %5108 = vrot.lane.b32.xlu0 %v5071, 32
  %v5109 = vpop.permute.xlu0 %5108
  %5110 = vrot.lane.b32.xlu0 %v5074, 32
  %v5111 = vpop.permute.xlu0 %5110
  %5112 = vrot.lane.b32.xlu0 %v5077, 32
  %v5113 = vpop.permute.xlu0 %5112
  %5114 = vrot.lane.b32.xlu0 %v5080, 32
  %v5115 = vpop.permute.xlu0 %5114
  %5116 = vrot.lane.b32.xlu0 %v5083, 32
  %v5117 = vpop.permute.xlu0 %5116
  %5118 = vrot.lane.b32.xlu0 %v5086, 32
  %v5119 = vpop.permute.xlu0 %5118
  %5120 = vrot.lane.b32.xlu0 %v5089, 32
  %v5121 = vpop.permute.xlu0 %5120
  %v5122 = vsel %vm3573, %v5091, %v5093
  %v5123 = vsel %vm3573, %v5095, %v5097
  %v5124 = vsel %vm3573, %v5099, %v5101
  %v5125 = vsel %vm3573, %v5103, %v5105
  %v5126 = vsel %vm3573, %v5107, %v5109
  %v5127 = vsel %vm3573, %v5111, %v5113
  %v5128 = vsel %vm3573, %v5115, %v5117
  %v5129 = vsel %vm3573, %v5119, %v5121
  %v5138 = vadd.f32 %v5002, %v5122
  %v5139 = vadd.f32 %v5003, %v5123
  %v5140 = vadd.f32 %v5004, %v5124
  %v5141 = vadd.f32 %v5005, %v5125
  %v5142 = vadd.f32 %v5006, %v5126
  %v5143 = vadd.f32 %v5007, %v5127
  %v5144 = vadd.f32 %v5008, %v5128
  %v5145 = vadd.f32 %v5009, %v5129
  %v5178 = vrot.slane %v1394, 1
  %v5179 = vrot.slane %v1400, 1
  %v5180 = vsel %vm3703, %v5178, %v5179
  %v5181 = vrot.slane %v1553, 1
  %v5182 = vrot.slane %v1559, 1
  %v5183 = vsel %vm3703, %v5181, %v5182
  %v5184 = vrot.slane %v1406, 1
  %v5185 = vrot.slane %v1412, 1
  %v5186 = vsel %vm3703, %v5184, %v5185
  %v5187 = vrot.slane %v1565, 1
  %v5188 = vrot.slane %v1571, 1
  %v5189 = vsel %vm3703, %v5187, %v5188
  %v5190 = vrot.slane %v1418, 1
  %v5191 = vrot.slane %v1424, 1
  %v5192 = vsel %vm3703, %v5190, %v5191
  %v5193 = vrot.slane %v1577, 1
  %v5194 = vrot.slane %v1583, 1
  %v5195 = vsel %vm3703, %v5193, %v5194
  %v5196 = vrot.slane %v1430, 1
  %v5197 = vrot.slane %v1436, 1
  %v5198 = vsel %vm3703, %v5196, %v5197
  %v5199 = vrot.slane %v1589, 1
  %v5200 = vrot.slane %v1595, 1
  %v5201 = vsel %vm3703, %v5199, %v5200
  %v5202 = vrot.slane %v1442, 1
  %v5203 = vrot.slane %v1448, 1
  %v5204 = vsel %vm3703, %v5202, %v5203
  %v5205 = vrot.slane %v1601, 1
  %v5206 = vrot.slane %v1607, 1
  %v5207 = vsel %vm3703, %v5205, %v5206
  %v5208 = vrot.slane %v1454, 1
  %v5209 = vrot.slane %v1460, 1
  %v5210 = vsel %vm3703, %v5208, %v5209
  %v5211 = vrot.slane %v1613, 1
  %v5212 = vrot.slane %v1619, 1
  %v5213 = vsel %vm3703, %v5211, %v5212
  %v5214 = vrot.slane %v1466, 1
  %v5215 = vrot.slane %v1472, 1
  %v5216 = vsel %vm3703, %v5214, %v5215
  %v5217 = vrot.slane %v1625, 1
  %v5218 = vrot.slane %v1631, 1
  %v5219 = vsel %vm3703, %v5217, %v5218
  %v5220 = vrot.slane %v1478, 1
  %v5221 = vrot.slane %v1484, 1
  %v5222 = vsel %vm3703, %v5220, %v5221
  %v5223 = vrot.slane %v1637, 1
  %v5224 = vrot.slane %v1643, 1
  %v5225 = vsel %vm3703, %v5223, %v5224
  %5226 = vrot.lane.b32.xlu0 %v5180, 48
  %v5227 = vpop.permute.xlu0 %5226
  %5228 = vrot.lane.b32.xlu0 %v5183, 48
  %v5229 = vpop.permute.xlu0 %5228
  %5230 = vrot.lane.b32.xlu0 %v5186, 48
  %v5231 = vpop.permute.xlu0 %5230
  %5232 = vrot.lane.b32.xlu0 %v5189, 48
  %v5233 = vpop.permute.xlu0 %5232
  %5234 = vrot.lane.b32.xlu0 %v5192, 48
  %v5235 = vpop.permute.xlu0 %5234
  %5236 = vrot.lane.b32.xlu0 %v5195, 48
  %v5237 = vpop.permute.xlu0 %5236
  %5238 = vrot.lane.b32.xlu0 %v5198, 48
  %v5239 = vpop.permute.xlu0 %5238
  %5240 = vrot.lane.b32.xlu0 %v5201, 48
  %v5241 = vpop.permute.xlu0 %5240
  %5242 = vrot.lane.b32.xlu0 %v5204, 48
  %v5243 = vpop.permute.xlu0 %5242
  %5244 = vrot.lane.b32.xlu0 %v5207, 48
  %v5245 = vpop.permute.xlu0 %5244
  %5246 = vrot.lane.b32.xlu0 %v5210, 48
  %v5247 = vpop.permute.xlu0 %5246
  %5248 = vrot.lane.b32.xlu0 %v5213, 48
  %v5249 = vpop.permute.xlu0 %5248
  %5250 = vrot.lane.b32.xlu0 %v5216, 48
  %v5251 = vpop.permute.xlu0 %5250
  %5252 = vrot.lane.b32.xlu0 %v5219, 48
  %v5253 = vpop.permute.xlu0 %5252
  %5254 = vrot.lane.b32.xlu0 %v5222, 48
  %v5255 = vpop.permute.xlu0 %5254
  %5256 = vrot.lane.b32.xlu0 %v5225, 48
  %v5257 = vpop.permute.xlu0 %5256
  %v5258 = vsel %vm3646, %v5227, %v5229
  %v5259 = vsel %vm3646, %v5231, %v5233
  %v5260 = vsel %vm3646, %v5235, %v5237
  %v5261 = vsel %vm3646, %v5239, %v5241
  %v5262 = vsel %vm3646, %v5243, %v5245
  %v5263 = vsel %vm3646, %v5247, %v5249
  %v5264 = vsel %vm3646, %v5251, %v5253
  %v5265 = vsel %vm3646, %v5255, %v5257
  %v5274 = vadd.f32 %v5138, %v5258
  %v5275 = vadd.f32 %v5139, %v5259
  %v5276 = vadd.f32 %v5140, %v5260
  %v5277 = vadd.f32 %v5141, %v5261
  %v5278 = vadd.f32 %v5142, %v5262
  %v5279 = vadd.f32 %v5143, %v5263
  %v5280 = vadd.f32 %v5144, %v5264
  %v5281 = vadd.f32 %v5145, %v5265
  %v5314 = vrot.slane %v2385, 1
  %v5315 = vrot.slane %v2391, 1
  %v5316 = vsel %vm3703, %v5314, %v5315
  %v5317 = vrot.slane %v2544, 1
  %v5318 = vrot.slane %v2550, 1
  %v5319 = vsel %vm3703, %v5317, %v5318
  %v5320 = vrot.slane %v2397, 1
  %v5321 = vrot.slane %v2403, 1
  %v5322 = vsel %vm3703, %v5320, %v5321
  %v5323 = vrot.slane %v2556, 1
  %v5324 = vrot.slane %v2562, 1
  %v5325 = vsel %vm3703, %v5323, %v5324
  %v5326 = vrot.slane %v2409, 1
  %v5327 = vrot.slane %v2415, 1
  %v5328 = vsel %vm3703, %v5326, %v5327
  %v5329 = vrot.slane %v2568, 1
  %v5330 = vrot.slane %v2574, 1
  %v5331 = vsel %vm3703, %v5329, %v5330
  %v5332 = vrot.slane %v2421, 1
  %v5333 = vrot.slane %v2427, 1
  %v5334 = vsel %vm3703, %v5332, %v5333
  %v5335 = vrot.slane %v2580, 1
  %v5336 = vrot.slane %v2586, 1
  %v5337 = vsel %vm3703, %v5335, %v5336
  %v5338 = vrot.slane %v2433, 1
  %v5339 = vrot.slane %v2439, 1
  %v5340 = vsel %vm3703, %v5338, %v5339
  %v5341 = vrot.slane %v2592, 1
  %v5342 = vrot.slane %v2598, 1
  %v5343 = vsel %vm3703, %v5341, %v5342
  %v5344 = vrot.slane %v2445, 1
  %v5345 = vrot.slane %v2451, 1
  %v5346 = vsel %vm3703, %v5344, %v5345
  %v5347 = vrot.slane %v2604, 1
  %v5348 = vrot.slane %v2610, 1
  %v5349 = vsel %vm3703, %v5347, %v5348
  %v5350 = vrot.slane %v2457, 1
  %v5351 = vrot.slane %v2463, 1
  %v5352 = vsel %vm3703, %v5350, %v5351
  %v5353 = vrot.slane %v2616, 1
  %v5354 = vrot.slane %v2622, 1
  %v5355 = vsel %vm3703, %v5353, %v5354
  %v5356 = vrot.slane %v2469, 1
  %v5357 = vrot.slane %v2475, 1
  %v5358 = vsel %vm3703, %v5356, %v5357
  %v5359 = vrot.slane %v2628, 1
  %v5360 = vrot.slane %v2634, 1
  %v5361 = vsel %vm3703, %v5359, %v5360
  %5362 = vrot.lane.b32.xlu0 %v5316, 64
  %v5363 = vpop.permute.xlu0 %5362
  %5364 = vrot.lane.b32.xlu0 %v5319, 64
  %v5365 = vpop.permute.xlu0 %5364
  %5366 = vrot.lane.b32.xlu0 %v5322, 64
  %v5367 = vpop.permute.xlu0 %5366
  %5368 = vrot.lane.b32.xlu0 %v5325, 64
  %v5369 = vpop.permute.xlu0 %5368
  %5370 = vrot.lane.b32.xlu0 %v5328, 64
  %v5371 = vpop.permute.xlu0 %5370
  %5372 = vrot.lane.b32.xlu0 %v5331, 64
  %v5373 = vpop.permute.xlu0 %5372
  %5374 = vrot.lane.b32.xlu0 %v5334, 64
  %v5375 = vpop.permute.xlu0 %5374
  %5376 = vrot.lane.b32.xlu0 %v5337, 64
  %v5377 = vpop.permute.xlu0 %5376
  %5378 = vrot.lane.b32.xlu0 %v5340, 64
  %v5379 = vpop.permute.xlu0 %5378
  %5380 = vrot.lane.b32.xlu0 %v5343, 64
  %v5381 = vpop.permute.xlu0 %5380
  %5382 = vrot.lane.b32.xlu0 %v5346, 64
  %v5383 = vpop.permute.xlu0 %5382
  %5384 = vrot.lane.b32.xlu0 %v5349, 64
  %v5385 = vpop.permute.xlu0 %5384
  %5386 = vrot.lane.b32.xlu0 %v5352, 64
  %v5387 = vpop.permute.xlu0 %5386
  %5388 = vrot.lane.b32.xlu0 %v5355, 64
  %v5389 = vpop.permute.xlu0 %5388
  %5390 = vrot.lane.b32.xlu0 %v5358, 64
  %v5391 = vpop.permute.xlu0 %5390
  %5392 = vrot.lane.b32.xlu0 %v5361, 64
  %v5393 = vpop.permute.xlu0 %5392
  %v5394 = vsel %vm3784, %v5363, %v5365
  %v5395 = vsel %vm3784, %v5367, %v5369
  %v5396 = vsel %vm3784, %v5371, %v5373
  %v5397 = vsel %vm3784, %v5375, %v5377
  %v5398 = vsel %vm3784, %v5379, %v5381
  %v5399 = vsel %vm3784, %v5383, %v5385
  %v5400 = vsel %vm3784, %v5387, %v5389
  %v5401 = vsel %vm3784, %v5391, %v5393
  %v5410 = vadd.f32 %v5274, %v5394
  %v5411 = vadd.f32 %v5275, %v5395
  %v5412 = vadd.f32 %v5276, %v5396
  %v5413 = vadd.f32 %v5277, %v5397
  %v5414 = vadd.f32 %v5278, %v5398
  %v5415 = vadd.f32 %v5279, %v5399
  %v5416 = vadd.f32 %v5280, %v5400
  %v5417 = vadd.f32 %v5281, %v5401
  %5418 = vrot.lane.b32.xlu0 %v2917, 16
  %v5419 = vpop.permute.xlu0 %5418
  %5420 = vrot.lane.b32.xlu0 %v2927, 16
  %v5421 = vpop.permute.xlu0 %5420
  %5422 = vrot.lane.b32.xlu0 %v2937, 16
  %v5423 = vpop.permute.xlu0 %5422
  %5424 = vrot.lane.b32.xlu0 %v2947, 16
  %v5425 = vpop.permute.xlu0 %5424
  %5426 = vrot.lane.b32.xlu0 %v2957, 16
  %v5427 = vpop.permute.xlu0 %5426
  %5428 = vrot.lane.b32.xlu0 %v2967, 16
  %v5429 = vpop.permute.xlu0 %5428
  %5430 = vrot.lane.b32.xlu0 %v2977, 16
  %v5431 = vpop.permute.xlu0 %5430
  %5432 = vrot.lane.b32.xlu0 %v2987, 16
  %v5433 = vpop.permute.xlu0 %5432
  %v5434 = vsel %vm3500, %v4957, %v5419
  %v5435 = vsel %vm3500, %v4961, %v5421
  %v5436 = vsel %vm3500, %v4965, %v5423
  %v5437 = vsel %vm3500, %v4969, %v5425
  %v5438 = vsel %vm3500, %v4973, %v5427
  %v5439 = vsel %vm3500, %v4977, %v5429
  %v5440 = vsel %vm3500, %v4981, %v5431
  %v5441 = vsel %vm3500, %v4985, %v5433
  %v5458 = vadd.f32 %v1940, %v4957
  %v5459 = vadd.f32 %v1942, %v5434
  %v5460 = vadd.f32 %v1950, %v4961
  %v5461 = vadd.f32 %v1952, %v5435
  %v5462 = vadd.f32 %v1960, %v4965
  %v5463 = vadd.f32 %v1962, %v5436
  %v5464 = vadd.f32 %v1970, %v4969
  %v5465 = vadd.f32 %v1972, %v5437
  %v5466 = vadd.f32 %v1980, %v4973
  %v5467 = vadd.f32 %v1982, %v5438
  %v5468 = vadd.f32 %v1990, %v4977
  %v5469 = vadd.f32 %v1992, %v5439
  %v5470 = vadd.f32 %v2000, %v4981
  %v5471 = vadd.f32 %v2002, %v5440
  %v5472 = vadd.f32 %v2010, %v4985
  %v5473 = vadd.f32 %v2012, %v5441
  %5474 = vrot.lane.b32.xlu0 %v4275, 32
  %v5475 = vpop.permute.xlu0 %5474
  %5476 = vrot.lane.b32.xlu0 %v4281, 32
  %v5477 = vpop.permute.xlu0 %5476
  %5478 = vrot.lane.b32.xlu0 %v4287, 32
  %v5479 = vpop.permute.xlu0 %5478
  %5480 = vrot.lane.b32.xlu0 %v4293, 32
  %v5481 = vpop.permute.xlu0 %5480
  %5482 = vrot.lane.b32.xlu0 %v4299, 32
  %v5483 = vpop.permute.xlu0 %5482
  %5484 = vrot.lane.b32.xlu0 %v4305, 32
  %v5485 = vpop.permute.xlu0 %5484
  %5486 = vrot.lane.b32.xlu0 %v4311, 32
  %v5487 = vpop.permute.xlu0 %5486
  %5488 = vrot.lane.b32.xlu0 %v4317, 32
  %v5489 = vpop.permute.xlu0 %5488
  %v5490 = vsel %vm3573, %v5093, %v5475
  %v5491 = vsel %vm3573, %v5097, %v5477
  %v5492 = vsel %vm3573, %v5101, %v5479
  %v5493 = vsel %vm3573, %v5105, %v5481
  %v5494 = vsel %vm3573, %v5109, %v5483
  %v5495 = vsel %vm3573, %v5113, %v5485
  %v5496 = vsel %vm3573, %v5117, %v5487
  %v5497 = vsel %vm3573, %v5121, %v5489
  %v5514 = vadd.f32 %v5458, %v5093
  %v5515 = vadd.f32 %v5459, %v5490
  %v5516 = vadd.f32 %v5460, %v5097
  %v5517 = vadd.f32 %v5461, %v5491
  %v5518 = vadd.f32 %v5462, %v5101
  %v5519 = vadd.f32 %v5463, %v5492
  %v5520 = vadd.f32 %v5464, %v5105
  %v5521 = vadd.f32 %v5465, %v5493
  %v5522 = vadd.f32 %v5466, %v5109
  %v5523 = vadd.f32 %v5467, %v5494
  %v5524 = vadd.f32 %v5468, %v5113
  %v5525 = vadd.f32 %v5469, %v5495
  %v5526 = vadd.f32 %v5470, %v5117
  %v5527 = vadd.f32 %v5471, %v5496
  %v5528 = vadd.f32 %v5472, %v5121
  %v5529 = vadd.f32 %v5473, %v5497
  %5530 = vrot.lane.b32.xlu0 %v4411, 48
  %v5531 = vpop.permute.xlu0 %5530
  %5532 = vrot.lane.b32.xlu0 %v4417, 48
  %v5533 = vpop.permute.xlu0 %5532
  %5534 = vrot.lane.b32.xlu0 %v4423, 48
  %v5535 = vpop.permute.xlu0 %5534
  %5536 = vrot.lane.b32.xlu0 %v4429, 48
  %v5537 = vpop.permute.xlu0 %5536
  %5538 = vrot.lane.b32.xlu0 %v4435, 48
  %v5539 = vpop.permute.xlu0 %5538
  %5540 = vrot.lane.b32.xlu0 %v4441, 48
  %v5541 = vpop.permute.xlu0 %5540
  %5542 = vrot.lane.b32.xlu0 %v4447, 48
  %v5543 = vpop.permute.xlu0 %5542
  %5544 = vrot.lane.b32.xlu0 %v4453, 48
  %v5545 = vpop.permute.xlu0 %5544
  %v5546 = vsel %vm3646, %v5229, %v5531
  %v5547 = vsel %vm3646, %v5233, %v5533
  %v5548 = vsel %vm3646, %v5237, %v5535
  %v5549 = vsel %vm3646, %v5241, %v5537
  %v5550 = vsel %vm3646, %v5245, %v5539
  %v5551 = vsel %vm3646, %v5249, %v5541
  %v5552 = vsel %vm3646, %v5253, %v5543
  %v5553 = vsel %vm3646, %v5257, %v5545
  %v5570 = vadd.f32 %v5514, %v5229
  %v5571 = vadd.f32 %v5515, %v5546
  %v5572 = vadd.f32 %v5516, %v5233
  %v5573 = vadd.f32 %v5517, %v5547
  %v5574 = vadd.f32 %v5518, %v5237
  %v5575 = vadd.f32 %v5519, %v5548
  %v5576 = vadd.f32 %v5520, %v5241
  %v5577 = vadd.f32 %v5521, %v5549
  %v5578 = vadd.f32 %v5522, %v5245
  %v5579 = vadd.f32 %v5523, %v5550
  %v5580 = vadd.f32 %v5524, %v5249
  %v5581 = vadd.f32 %v5525, %v5551
  %v5582 = vadd.f32 %v5526, %v5253
  %v5583 = vadd.f32 %v5527, %v5552
  %v5584 = vadd.f32 %v5528, %v5257
  %v5585 = vadd.f32 %v5529, %v5553
  %v5602 = vrot.slane %v2546, 1
  %v5603 = vrot.slane %v2552, 1
  %v5604 = vsel %vm3703, %v5602, %v5603
  %v5605 = vrot.slane %v2558, 1
  %v5606 = vrot.slane %v2564, 1
  %v5607 = vsel %vm3703, %v5605, %v5606
  %v5608 = vrot.slane %v2570, 1
  %v5609 = vrot.slane %v2576, 1
  %v5610 = vsel %vm3703, %v5608, %v5609
  %v5611 = vrot.slane %v2582, 1
  %v5612 = vrot.slane %v2588, 1
  %v5613 = vsel %vm3703, %v5611, %v5612
  %v5614 = vrot.slane %v2594, 1
  %v5615 = vrot.slane %v2600, 1
  %v5616 = vsel %vm3703, %v5614, %v5615
  %v5617 = vrot.slane %v2606, 1
  %v5618 = vrot.slane %v2612, 1
  %v5619 = vsel %vm3703, %v5617, %v5618
  %v5620 = vrot.slane %v2618, 1
  %v5621 = vrot.slane %v2624, 1
  %v5622 = vsel %vm3703, %v5620, %v5621
  %v5623 = vrot.slane %v2630, 1
  %v5624 = vrot.slane %v2636, 1
  %v5625 = vsel %vm3703, %v5623, %v5624
  %5626 = vrot.lane.b32.xlu0 %v5604, 64
  %v5627 = vpop.permute.xlu0 %5626
  %5628 = vrot.lane.b32.xlu0 %v5607, 64
  %v5629 = vpop.permute.xlu0 %5628
  %5630 = vrot.lane.b32.xlu0 %v5610, 64
  %v5631 = vpop.permute.xlu0 %5630
  %5632 = vrot.lane.b32.xlu0 %v5613, 64
  %v5633 = vpop.permute.xlu0 %5632
  %5634 = vrot.lane.b32.xlu0 %v5616, 64
  %v5635 = vpop.permute.xlu0 %5634
  %5636 = vrot.lane.b32.xlu0 %v5619, 64
  %v5637 = vpop.permute.xlu0 %5636
  %5638 = vrot.lane.b32.xlu0 %v5622, 64
  %v5639 = vpop.permute.xlu0 %5638
  %5640 = vrot.lane.b32.xlu0 %v5625, 64
  %v5641 = vpop.permute.xlu0 %5640
  %v5642 = vsel %vm3784, %v5365, %v5627
  %v5643 = vsel %vm3784, %v5369, %v5629
  %v5644 = vsel %vm3784, %v5373, %v5631
  %v5645 = vsel %vm3784, %v5377, %v5633
  %v5646 = vsel %vm3784, %v5381, %v5635
  %v5647 = vsel %vm3784, %v5385, %v5637
  %v5648 = vsel %vm3784, %v5389, %v5639
  %v5649 = vsel %vm3784, %v5393, %v5641
  %v5666 = vadd.f32 %v5570, %v5365
  %v5667 = vadd.f32 %v5571, %v5642
  %v5668 = vadd.f32 %v5572, %v5369
  %v5669 = vadd.f32 %v5573, %v5643
  %v5670 = vadd.f32 %v5574, %v5373
  %v5671 = vadd.f32 %v5575, %v5644
  %v5672 = vadd.f32 %v5576, %v5377
  %v5673 = vadd.f32 %v5577, %v5645
  %v5674 = vadd.f32 %v5578, %v5381
  %v5675 = vadd.f32 %v5579, %v5646
  %v5676 = vadd.f32 %v5580, %v5385
  %v5677 = vadd.f32 %v5581, %v5647
  %v5678 = vadd.f32 %v5582, %v5389
  %v5679 = vadd.f32 %v5583, %v5648
  %v5680 = vadd.f32 %v5584, %v5393
  %v5681 = vadd.f32 %v5585, %v5649
  %v5714 = vrot.slane %v234, 1
  %v5715 = vrot.slane %v239, 1
  %v5716 = vsel %vm3703, %v5714, %v5715
  %v5717 = vrot.slane %v385, 1
  %v5718 = vrot.slane %v391, 1
  %v5719 = vsel %vm3703, %v5717, %v5718
  %v5720 = vrot.slane %v245, 1
  %v5721 = vrot.slane %v250, 1
  %v5722 = vsel %vm3703, %v5720, %v5721
  %v5723 = vrot.slane %v397, 1
  %v5724 = vrot.slane %v403, 1
  %v5725 = vsel %vm3703, %v5723, %v5724
  %v5726 = vrot.slane %v256, 1
  %v5727 = vrot.slane %v261, 1
  %v5728 = vsel %vm3703, %v5726, %v5727
  %v5729 = vrot.slane %v409, 1
  %v5730 = vrot.slane %v415, 1
  %v5731 = vsel %vm3703, %v5729, %v5730
  %v5732 = vrot.slane %v267, 1
  %v5733 = vrot.slane %v272, 1
  %v5734 = vsel %vm3703, %v5732, %v5733
  %v5735 = vrot.slane %v421, 1
  %v5736 = vrot.slane %v427, 1
  %v5737 = vsel %vm3703, %v5735, %v5736
  %v5738 = vrot.slane %v278, 1
  %v5739 = vrot.slane %v283, 1
  %v5740 = vsel %vm3703, %v5738, %v5739
  %v5741 = vrot.slane %v433, 1
  %v5742 = vrot.slane %v439, 1
  %v5743 = vsel %vm3703, %v5741, %v5742
  %v5744 = vrot.slane %v289, 1
  %v5745 = vrot.slane %v294, 1
  %v5746 = vsel %vm3703, %v5744, %v5745
  %v5747 = vrot.slane %v445, 1
  %v5748 = vrot.slane %v451, 1
  %v5749 = vsel %vm3703, %v5747, %v5748
  %v5750 = vrot.slane %v300, 1
  %v5751 = vrot.slane %v305, 1
  %v5752 = vsel %vm3703, %v5750, %v5751
  %v5753 = vrot.slane %v457, 1
  %v5754 = vrot.slane %v463, 1
  %v5755 = vsel %vm3703, %v5753, %v5754
  %v5756 = vrot.slane %v311, 1
  %v5757 = vrot.slane %v316, 1
  %v5758 = vsel %vm3703, %v5756, %v5757
  %v5759 = vrot.slane %v469, 1
  %v5760 = vrot.slane %v475, 1
  %v5761 = vsel %vm3703, %v5759, %v5760
  %5762 = vrot.lane.b32.xlu0 %v5716, 16
  %v5763 = vpop.permute.xlu0 %5762
  %5764 = vrot.lane.b32.xlu0 %v5719, 16
  %v5765 = vpop.permute.xlu0 %5764
  %5766 = vrot.lane.b32.xlu0 %v5722, 16
  %v5767 = vpop.permute.xlu0 %5766
  %5768 = vrot.lane.b32.xlu0 %v5725, 16
  %v5769 = vpop.permute.xlu0 %5768
  %5770 = vrot.lane.b32.xlu0 %v5728, 16
  %v5771 = vpop.permute.xlu0 %5770
  %5772 = vrot.lane.b32.xlu0 %v5731, 16
  %v5773 = vpop.permute.xlu0 %5772
  %5774 = vrot.lane.b32.xlu0 %v5734, 16
  %v5775 = vpop.permute.xlu0 %5774
  %5776 = vrot.lane.b32.xlu0 %v5737, 16
  %v5777 = vpop.permute.xlu0 %5776
  %5778 = vrot.lane.b32.xlu0 %v5740, 16
  %v5779 = vpop.permute.xlu0 %5778
  %5780 = vrot.lane.b32.xlu0 %v5743, 16
  %v5781 = vpop.permute.xlu0 %5780
  %5782 = vrot.lane.b32.xlu0 %v5746, 16
  %v5783 = vpop.permute.xlu0 %5782
  %5784 = vrot.lane.b32.xlu0 %v5749, 16
  %v5785 = vpop.permute.xlu0 %5784
  %5786 = vrot.lane.b32.xlu0 %v5752, 16
  %v5787 = vpop.permute.xlu0 %5786
  %5788 = vrot.lane.b32.xlu0 %v5755, 16
  %v5789 = vpop.permute.xlu0 %5788
  %5790 = vrot.lane.b32.xlu0 %v5758, 16
  %v5791 = vpop.permute.xlu0 %5790
  %5792 = vrot.lane.b32.xlu0 %v5761, 16
  %v5793 = vpop.permute.xlu0 %5792
  %v5794 = vsel %vm3500, %v5763, %v5765
  %v5795 = vsel %vm3500, %v5767, %v5769
  %v5796 = vsel %vm3500, %v5771, %v5773
  %v5797 = vsel %vm3500, %v5775, %v5777
  %v5798 = vsel %vm3500, %v5779, %v5781
  %v5799 = vsel %vm3500, %v5783, %v5785
  %v5800 = vsel %vm3500, %v5787, %v5789
  %v5801 = vsel %vm3500, %v5791, %v5793
  %v5810 = vadd.f32 %v2770, %v5794
  %v5811 = vadd.f32 %v2780, %v5795
  %v5812 = vadd.f32 %v2790, %v5796
  %v5813 = vadd.f32 %v2800, %v5797
  %v5814 = vadd.f32 %v2810, %v5798
  %v5815 = vadd.f32 %v2820, %v5799
  %v5816 = vadd.f32 %v2830, %v5800
  %v5817 = vadd.f32 %v2840, %v5801
  %v5842 = vrot.slane %v1241, 1
  %v5843 = vrot.slane %v1246, 1
  %v5844 = vsel %vm3703, %v5842, %v5843
  %v5845 = vrot.slane %v1392, 1
  %v5846 = vrot.slane %v1398, 1
  %v5847 = vsel %vm3703, %v5845, %v5846
  %v5848 = vrot.slane %v1252, 1
  %v5849 = vrot.slane %v1257, 1
  %v5850 = vsel %vm3703, %v5848, %v5849
  %v5851 = vrot.slane %v1404, 1
  %v5852 = vrot.slane %v1410, 1
  %v5853 = vsel %vm3703, %v5851, %v5852
  %v5854 = vrot.slane %v1263, 1
  %v5855 = vrot.slane %v1268, 1
  %v5856 = vsel %vm3703, %v5854, %v5855
  %v5857 = vrot.slane %v1416, 1
  %v5858 = vrot.slane %v1422, 1
  %v5859 = vsel %vm3703, %v5857, %v5858
  %v5860 = vrot.slane %v1274, 1
  %v5861 = vrot.slane %v1279, 1
  %v5862 = vsel %vm3703, %v5860, %v5861
  %v5863 = vrot.slane %v1428, 1
  %v5864 = vrot.slane %v1434, 1
  %v5865 = vsel %vm3703, %v5863, %v5864
  %v5866 = vrot.slane %v1285, 1
  %v5867 = vrot.slane %v1290, 1
  %v5868 = vsel %vm3703, %v5866, %v5867
  %v5869 = vrot.slane %v1440, 1
  %v5870 = vrot.slane %v1446, 1
  %v5871 = vsel %vm3703, %v5869, %v5870
  %v5872 = vrot.slane %v1296, 1
  %v5873 = vrot.slane %v1301, 1
  %v5874 = vsel %vm3703, %v5872, %v5873
  %v5875 = vrot.slane %v1452, 1
  %v5876 = vrot.slane %v1458, 1
  %v5877 = vsel %vm3703, %v5875, %v5876
  %v5878 = vrot.slane %v1307, 1
  %v5879 = vrot.slane %v1312, 1
  %v5880 = vsel %vm3703, %v5878, %v5879
  %v5881 = vrot.slane %v1464, 1
  %v5882 = vrot.slane %v1470, 1
  %v5883 = vsel %vm3703, %v5881, %v5882
  %v5884 = vrot.slane %v1318, 1
  %v5885 = vrot.slane %v1323, 1
  %v5886 = vsel %vm3703, %v5884, %v5885
  %v5887 = vrot.slane %v1476, 1
  %v5888 = vrot.slane %v1482, 1
  %v5889 = vsel %vm3703, %v5887, %v5888
  %5890 = vrot.lane.b32.xlu0 %v5844, 32
  %v5891 = vpop.permute.xlu0 %5890
  %5892 = vrot.lane.b32.xlu0 %v5847, 32
  %v5893 = vpop.permute.xlu0 %5892
  %5894 = vrot.lane.b32.xlu0 %v5850, 32
  %v5895 = vpop.permute.xlu0 %5894
  %5896 = vrot.lane.b32.xlu0 %v5853, 32
  %v5897 = vpop.permute.xlu0 %5896
  %5898 = vrot.lane.b32.xlu0 %v5856, 32
  %v5899 = vpop.permute.xlu0 %5898
  %5900 = vrot.lane.b32.xlu0 %v5859, 32
  %v5901 = vpop.permute.xlu0 %5900
  %5902 = vrot.lane.b32.xlu0 %v5862, 32
  %v5903 = vpop.permute.xlu0 %5902
  %5904 = vrot.lane.b32.xlu0 %v5865, 32
  %v5905 = vpop.permute.xlu0 %5904
  %5906 = vrot.lane.b32.xlu0 %v5868, 32
  %v5907 = vpop.permute.xlu0 %5906
  %5908 = vrot.lane.b32.xlu0 %v5871, 32
  %v5909 = vpop.permute.xlu0 %5908
  %5910 = vrot.lane.b32.xlu0 %v5874, 32
  %v5911 = vpop.permute.xlu0 %5910
  %5912 = vrot.lane.b32.xlu0 %v5877, 32
  %v5913 = vpop.permute.xlu0 %5912
  %5914 = vrot.lane.b32.xlu0 %v5880, 32
  %v5915 = vpop.permute.xlu0 %5914
  %5916 = vrot.lane.b32.xlu0 %v5883, 32
  %v5917 = vpop.permute.xlu0 %5916
  %5918 = vrot.lane.b32.xlu0 %v5886, 32
  %v5919 = vpop.permute.xlu0 %5918
  %5920 = vrot.lane.b32.xlu0 %v5889, 32
  %v5921 = vpop.permute.xlu0 %5920
  %v5922 = vsel %vm3573, %v5891, %v5893
  %v5923 = vsel %vm3573, %v5895, %v5897
  %v5924 = vsel %vm3573, %v5899, %v5901
  %v5925 = vsel %vm3573, %v5903, %v5905
  %v5926 = vsel %vm3573, %v5907, %v5909
  %v5927 = vsel %vm3573, %v5911, %v5913
  %v5928 = vsel %vm3573, %v5915, %v5917
  %v5929 = vsel %vm3573, %v5919, %v5921
  %v5938 = vadd.f32 %v5810, %v5922
  %v5939 = vadd.f32 %v5811, %v5923
  %v5940 = vadd.f32 %v5812, %v5924
  %v5941 = vadd.f32 %v5813, %v5925
  %v5942 = vadd.f32 %v5814, %v5926
  %v5943 = vadd.f32 %v5815, %v5927
  %v5944 = vadd.f32 %v5816, %v5928
  %v5945 = vadd.f32 %v5817, %v5929
  %v5970 = vrot.slane %v2232, 1
  %v5971 = vrot.slane %v2237, 1
  %v5972 = vsel %vm3703, %v5970, %v5971
  %v5973 = vrot.slane %v2383, 1
  %v5974 = vrot.slane %v2389, 1
  %v5975 = vsel %vm3703, %v5973, %v5974
  %v5976 = vrot.slane %v2243, 1
  %v5977 = vrot.slane %v2248, 1
  %v5978 = vsel %vm3703, %v5976, %v5977
  %v5979 = vrot.slane %v2395, 1
  %v5980 = vrot.slane %v2401, 1
  %v5981 = vsel %vm3703, %v5979, %v5980
  %v5982 = vrot.slane %v2254, 1
  %v5983 = vrot.slane %v2259, 1
  %v5984 = vsel %vm3703, %v5982, %v5983
  %v5985 = vrot.slane %v2407, 1
  %v5986 = vrot.slane %v2413, 1
  %v5987 = vsel %vm3703, %v5985, %v5986
  %v5988 = vrot.slane %v2265, 1
  %v5989 = vrot.slane %v2270, 1
  %v5990 = vsel %vm3703, %v5988, %v5989
  %v5991 = vrot.slane %v2419, 1
  %v5992 = vrot.slane %v2425, 1
  %v5993 = vsel %vm3703, %v5991, %v5992
  %v5994 = vrot.slane %v2276, 1
  %v5995 = vrot.slane %v2281, 1
  %v5996 = vsel %vm3703, %v5994, %v5995
  %v5997 = vrot.slane %v2431, 1
  %v5998 = vrot.slane %v2437, 1
  %v5999 = vsel %vm3703, %v5997, %v5998
  %v6000 = vrot.slane %v2287, 1
  %v6001 = vrot.slane %v2292, 1
  %v6002 = vsel %vm3703, %v6000, %v6001
  %v6003 = vrot.slane %v2443, 1
  %v6004 = vrot.slane %v2449, 1
  %v6005 = vsel %vm3703, %v6003, %v6004
  %v6006 = vrot.slane %v2298, 1
  %v6007 = vrot.slane %v2303, 1
  %v6008 = vsel %vm3703, %v6006, %v6007
  %v6009 = vrot.slane %v2455, 1
  %v6010 = vrot.slane %v2461, 1
  %v6011 = vsel %vm3703, %v6009, %v6010
  %v6012 = vrot.slane %v2309, 1
  %v6013 = vrot.slane %v2314, 1
  %v6014 = vsel %vm3703, %v6012, %v6013
  %v6015 = vrot.slane %v2467, 1
  %v6016 = vrot.slane %v2473, 1
  %v6017 = vsel %vm3703, %v6015, %v6016
  %6018 = vrot.lane.b32.xlu0 %v5972, 48
  %v6019 = vpop.permute.xlu0 %6018
  %6020 = vrot.lane.b32.xlu0 %v5975, 48
  %v6021 = vpop.permute.xlu0 %6020
  %6022 = vrot.lane.b32.xlu0 %v5978, 48
  %v6023 = vpop.permute.xlu0 %6022
  %6024 = vrot.lane.b32.xlu0 %v5981, 48
  %v6025 = vpop.permute.xlu0 %6024
  %6026 = vrot.lane.b32.xlu0 %v5984, 48
  %v6027 = vpop.permute.xlu0 %6026
  %6028 = vrot.lane.b32.xlu0 %v5987, 48
  %v6029 = vpop.permute.xlu0 %6028
  %6030 = vrot.lane.b32.xlu0 %v5990, 48
  %v6031 = vpop.permute.xlu0 %6030
  %6032 = vrot.lane.b32.xlu0 %v5993, 48
  %v6033 = vpop.permute.xlu0 %6032
  %6034 = vrot.lane.b32.xlu0 %v5996, 48
  %v6035 = vpop.permute.xlu0 %6034
  %6036 = vrot.lane.b32.xlu0 %v5999, 48
  %v6037 = vpop.permute.xlu0 %6036
  %6038 = vrot.lane.b32.xlu0 %v6002, 48
  %v6039 = vpop.permute.xlu0 %6038
  %6040 = vrot.lane.b32.xlu0 %v6005, 48
  %v6041 = vpop.permute.xlu0 %6040
  %6042 = vrot.lane.b32.xlu0 %v6008, 48
  %v6043 = vpop.permute.xlu0 %6042
  %6044 = vrot.lane.b32.xlu0 %v6011, 48
  %v6045 = vpop.permute.xlu0 %6044
  %6046 = vrot.lane.b32.xlu0 %v6014, 48
  %v6047 = vpop.permute.xlu0 %6046
  %6048 = vrot.lane.b32.xlu0 %v6017, 48
  %v6049 = vpop.permute.xlu0 %6048
  %v6050 = vsel %vm3646, %v6019, %v6021
  %v6051 = vsel %vm3646, %v6023, %v6025
  %v6052 = vsel %vm3646, %v6027, %v6029
  %v6053 = vsel %vm3646, %v6031, %v6033
  %v6054 = vsel %vm3646, %v6035, %v6037
  %v6055 = vsel %vm3646, %v6039, %v6041
  %v6056 = vsel %vm3646, %v6043, %v6045
  %v6057 = vsel %vm3646, %v6047, %v6049
  %v6066 = vadd.f32 %v5938, %v6050
  %v6067 = vadd.f32 %v5939, %v6051
  %v6068 = vadd.f32 %v5940, %v6052
  %v6069 = vadd.f32 %v5941, %v6053
  %v6070 = vadd.f32 %v5942, %v6054
  %v6071 = vadd.f32 %v5943, %v6055
  %v6072 = vadd.f32 %v5944, %v6056
  %v6073 = vadd.f32 %v5945, %v6057
  %v6098 = vrot.slane %v3207, 1
  %v6099 = vrot.slane %v3212, 1
  %v6100 = vsel %vm3703, %v6098, %v6099
  %v6101 = vrot.slane %v3358, 1
  %v6102 = vrot.slane %v3364, 1
  %v6103 = vsel %vm3703, %v6101, %v6102
  %v6104 = vrot.slane %v3218, 1
  %v6105 = vrot.slane %v3223, 1
  %v6106 = vsel %vm3703, %v6104, %v6105
  %v6107 = vrot.slane %v3370, 1
  %v6108 = vrot.slane %v3376, 1
  %v6109 = vsel %vm3703, %v6107, %v6108
  %v6110 = vrot.slane %v3229, 1
  %v6111 = vrot.slane %v3234, 1
  %v6112 = vsel %vm3703, %v6110, %v6111
  %v6113 = vrot.slane %v3382, 1
  %v6114 = vrot.slane %v3388, 1
  %v6115 = vsel %vm3703, %v6113, %v6114
  %v6116 = vrot.slane %v3240, 1
  %v6117 = vrot.slane %v3245, 1
  %v6118 = vsel %vm3703, %v6116, %v6117
  %v6119 = vrot.slane %v3394, 1
  %v6120 = vrot.slane %v3400, 1
  %v6121 = vsel %vm3703, %v6119, %v6120
  %v6122 = vrot.slane %v3251, 1
  %v6123 = vrot.slane %v3256, 1
  %v6124 = vsel %vm3703, %v6122, %v6123
  %v6125 = vrot.slane %v3406, 1
  %v6126 = vrot.slane %v3412, 1
  %v6127 = vsel %vm3703, %v6125, %v6126
  %v6128 = vrot.slane %v3262, 1
  %v6129 = vrot.slane %v3267, 1
  %v6130 = vsel %vm3703, %v6128, %v6129
  %v6131 = vrot.slane %v3418, 1
  %v6132 = vrot.slane %v3424, 1
  %v6133 = vsel %vm3703, %v6131, %v6132
  %v6134 = vrot.slane %v3273, 1
  %v6135 = vrot.slane %v3278, 1
  %v6136 = vsel %vm3703, %v6134, %v6135
  %v6137 = vrot.slane %v3430, 1
  %v6138 = vrot.slane %v3436, 1
  %v6139 = vsel %vm3703, %v6137, %v6138
  %v6140 = vrot.slane %v3284, 1
  %v6141 = vrot.slane %v3289, 1
  %v6142 = vsel %vm3703, %v6140, %v6141
  %v6143 = vrot.slane %v3442, 1
  %v6144 = vrot.slane %v3448, 1
  %v6145 = vsel %vm3703, %v6143, %v6144
  %6146 = vrot.lane.b32.xlu0 %v6100, 64
  %v6147 = vpop.permute.xlu0 %6146
  %6148 = vrot.lane.b32.xlu0 %v6103, 64
  %v6149 = vpop.permute.xlu0 %6148
  %6150 = vrot.lane.b32.xlu0 %v6106, 64
  %v6151 = vpop.permute.xlu0 %6150
  %6152 = vrot.lane.b32.xlu0 %v6109, 64
  %v6153 = vpop.permute.xlu0 %6152
  %6154 = vrot.lane.b32.xlu0 %v6112, 64
  %v6155 = vpop.permute.xlu0 %6154
  %6156 = vrot.lane.b32.xlu0 %v6115, 64
  %v6157 = vpop.permute.xlu0 %6156
  %6158 = vrot.lane.b32.xlu0 %v6118, 64
  %v6159 = vpop.permute.xlu0 %6158
  %6160 = vrot.lane.b32.xlu0 %v6121, 64
  %v6161 = vpop.permute.xlu0 %6160
  %6162 = vrot.lane.b32.xlu0 %v6124, 64
  %v6163 = vpop.permute.xlu0 %6162
  %6164 = vrot.lane.b32.xlu0 %v6127, 64
  %v6165 = vpop.permute.xlu0 %6164
  %6166 = vrot.lane.b32.xlu0 %v6130, 64
  %v6167 = vpop.permute.xlu0 %6166
  %6168 = vrot.lane.b32.xlu0 %v6133, 64
  %v6169 = vpop.permute.xlu0 %6168
  %6170 = vrot.lane.b32.xlu0 %v6136, 64
  %v6171 = vpop.permute.xlu0 %6170
  %6172 = vrot.lane.b32.xlu0 %v6139, 64
  %v6173 = vpop.permute.xlu0 %6172
  %6174 = vrot.lane.b32.xlu0 %v6142, 64
  %v6175 = vpop.permute.xlu0 %6174
  %6176 = vrot.lane.b32.xlu0 %v6145, 64
  %v6177 = vpop.permute.xlu0 %6176
  %v6178 = vsel %vm3784, %v6147, %v6149
  %v6179 = vsel %vm3784, %v6151, %v6153
  %v6180 = vsel %vm3784, %v6155, %v6157
  %v6181 = vsel %vm3784, %v6159, %v6161
  %v6182 = vsel %vm3784, %v6163, %v6165
  %v6183 = vsel %vm3784, %v6167, %v6169
  %v6184 = vsel %vm3784, %v6171, %v6173
  %v6185 = vsel %vm3784, %v6175, %v6177
  %v6194 = vadd.f32 %v6066, %v6178
  %v6195 = vadd.f32 %v6067, %v6179
  %v6196 = vadd.f32 %v6068, %v6180
  %v6197 = vadd.f32 %v6069, %v6181
  %v6198 = vadd.f32 %v6070, %v6182
  %v6199 = vadd.f32 %v6071, %v6183
  %v6200 = vadd.f32 %v6072, %v6184
  %v6201 = vadd.f32 %v6073, %v6185
  %6202 = vrot.lane.b32.xlu0 %v5044, 16
  %v6203 = vpop.permute.xlu0 %6202
  %6204 = vrot.lane.b32.xlu0 %v5050, 16
  %v6205 = vpop.permute.xlu0 %6204
  %6206 = vrot.lane.b32.xlu0 %v5056, 16
  %v6207 = vpop.permute.xlu0 %6206
  %6208 = vrot.lane.b32.xlu0 %v5062, 16
  %v6209 = vpop.permute.xlu0 %6208
  %6210 = vrot.lane.b32.xlu0 %v5068, 16
  %v6211 = vpop.permute.xlu0 %6210
  %6212 = vrot.lane.b32.xlu0 %v5074, 16
  %v6213 = vpop.permute.xlu0 %6212
  %6214 = vrot.lane.b32.xlu0 %v5080, 16
  %v6215 = vpop.permute.xlu0 %6214
  %6216 = vrot.lane.b32.xlu0 %v5086, 16
  %v6217 = vpop.permute.xlu0 %6216
  %v6218 = vsel %vm3500, %v5765, %v6203
  %v6219 = vsel %vm3500, %v5769, %v6205
  %v6220 = vsel %vm3500, %v5773, %v6207
  %v6221 = vsel %vm3500, %v5777, %v6209
  %v6222 = vsel %vm3500, %v5781, %v6211
  %v6223 = vsel %vm3500, %v5785, %v6213
  %v6224 = vsel %vm3500, %v5789, %v6215
  %v6225 = vsel %vm3500, %v5793, %v6217
  %v6242 = vadd.f32 %v2770, %v5765
  %v6243 = vadd.f32 %v2772, %v6218
  %v6244 = vadd.f32 %v2780, %v5769
  %v6245 = vadd.f32 %v2782, %v6219
  %v6246 = vadd.f32 %v2790, %v5773
  %v6247 = vadd.f32 %v2792, %v6220
  %v6248 = vadd.f32 %v2800, %v5777
  %v6249 = vadd.f32 %v2802, %v6221
  %v6250 = vadd.f32 %v2810, %v5781
  %v6251 = vadd.f32 %v2812, %v6222
  %v6252 = vadd.f32 %v2820, %v5785
  %v6253 = vadd.f32 %v2822, %v6223
  %v6254 = vadd.f32 %v2830, %v5789
  %v6255 = vadd.f32 %v2832, %v6224
  %v6256 = vadd.f32 %v2840, %v5793
  %v6257 = vadd.f32 %v2842, %v6225
  %6258 = vrot.lane.b32.xlu0 %v5180, 32
  %v6259 = vpop.permute.xlu0 %6258
  %6260 = vrot.lane.b32.xlu0 %v5186, 32
  %v6261 = vpop.permute.xlu0 %6260
  %6262 = vrot.lane.b32.xlu0 %v5192, 32
  %v6263 = vpop.permute.xlu0 %6262
  %6264 = vrot.lane.b32.xlu0 %v5198, 32
  %v6265 = vpop.permute.xlu0 %6264
  %6266 = vrot.lane.b32.xlu0 %v5204, 32
  %v6267 = vpop.permute.xlu0 %6266
  %6268 = vrot.lane.b32.xlu0 %v5210, 32
  %v6269 = vpop.permute.xlu0 %6268
  %6270 = vrot.lane.b32.xlu0 %v5216, 32
  %v6271 = vpop.permute.xlu0 %6270
  %6272 = vrot.lane.b32.xlu0 %v5222, 32
  %v6273 = vpop.permute.xlu0 %6272
  %v6274 = vsel %vm3573, %v5893, %v6259
  %v6275 = vsel %vm3573, %v5897, %v6261
  %v6276 = vsel %vm3573, %v5901, %v6263
  %v6277 = vsel %vm3573, %v5905, %v6265
  %v6278 = vsel %vm3573, %v5909, %v6267
  %v6279 = vsel %vm3573, %v5913, %v6269
  %v6280 = vsel %vm3573, %v5917, %v6271
  %v6281 = vsel %vm3573, %v5921, %v6273
  %v6298 = vadd.f32 %v6242, %v5893
  %v6299 = vadd.f32 %v6243, %v6274
  %v6300 = vadd.f32 %v6244, %v5897
  %v6301 = vadd.f32 %v6245, %v6275
  %v6302 = vadd.f32 %v6246, %v5901
  %v6303 = vadd.f32 %v6247, %v6276
  %v6304 = vadd.f32 %v6248, %v5905
  %v6305 = vadd.f32 %v6249, %v6277
  %v6306 = vadd.f32 %v6250, %v5909
  %v6307 = vadd.f32 %v6251, %v6278
  %v6308 = vadd.f32 %v6252, %v5913
  %v6309 = vadd.f32 %v6253, %v6279
  %v6310 = vadd.f32 %v6254, %v5917
  %v6311 = vadd.f32 %v6255, %v6280
  %v6312 = vadd.f32 %v6256, %v5921
  %v6313 = vadd.f32 %v6257, %v6281
  %6314 = vrot.lane.b32.xlu0 %v5316, 48
  %v6315 = vpop.permute.xlu0 %6314
  %6316 = vrot.lane.b32.xlu0 %v5322, 48
  %v6317 = vpop.permute.xlu0 %6316
  %6318 = vrot.lane.b32.xlu0 %v5328, 48
  %v6319 = vpop.permute.xlu0 %6318
  %6320 = vrot.lane.b32.xlu0 %v5334, 48
  %v6321 = vpop.permute.xlu0 %6320
  %6322 = vrot.lane.b32.xlu0 %v5340, 48
  %v6323 = vpop.permute.xlu0 %6322
  %6324 = vrot.lane.b32.xlu0 %v5346, 48
  %v6325 = vpop.permute.xlu0 %6324
  %6326 = vrot.lane.b32.xlu0 %v5352, 48
  %v6327 = vpop.permute.xlu0 %6326
  %6328 = vrot.lane.b32.xlu0 %v5358, 48
  %v6329 = vpop.permute.xlu0 %6328
  %v6330 = vsel %vm3646, %v6021, %v6315
  %v6331 = vsel %vm3646, %v6025, %v6317
  %v6332 = vsel %vm3646, %v6029, %v6319
  %v6333 = vsel %vm3646, %v6033, %v6321
  %v6334 = vsel %vm3646, %v6037, %v6323
  %v6335 = vsel %vm3646, %v6041, %v6325
  %v6336 = vsel %vm3646, %v6045, %v6327
  %v6337 = vsel %vm3646, %v6049, %v6329
  %v6354 = vadd.f32 %v6298, %v6021
  %v6355 = vadd.f32 %v6299, %v6330
  %v6356 = vadd.f32 %v6300, %v6025
  %v6357 = vadd.f32 %v6301, %v6331
  %v6358 = vadd.f32 %v6302, %v6029
  %v6359 = vadd.f32 %v6303, %v6332
  %v6360 = vadd.f32 %v6304, %v6033
  %v6361 = vadd.f32 %v6305, %v6333
  %v6362 = vadd.f32 %v6306, %v6037
  %v6363 = vadd.f32 %v6307, %v6334
  %v6364 = vadd.f32 %v6308, %v6041
  %v6365 = vadd.f32 %v6309, %v6335
  %v6366 = vadd.f32 %v6310, %v6045
  %v6367 = vadd.f32 %v6311, %v6336
  %v6368 = vadd.f32 %v6312, %v6049
  %v6369 = vadd.f32 %v6313, %v6337
  %v6386 = vrot.slane %v3360, 1
  %v6387 = vrot.slane %v3366, 1
  %v6388 = vsel %vm3703, %v6386, %v6387
  %v6389 = vrot.slane %v3372, 1
  %v6390 = vrot.slane %v3378, 1
  %v6391 = vsel %vm3703, %v6389, %v6390
  %v6392 = vrot.slane %v3384, 1
  %v6393 = vrot.slane %v3390, 1
  %v6394 = vsel %vm3703, %v6392, %v6393
  %v6395 = vrot.slane %v3396, 1
  %v6396 = vrot.slane %v3402, 1
  %v6397 = vsel %vm3703, %v6395, %v6396
  %v6398 = vrot.slane %v3408, 1
  %v6399 = vrot.slane %v3414, 1
  %v6400 = vsel %vm3703, %v6398, %v6399
  %v6401 = vrot.slane %v3420, 1
  %v6402 = vrot.slane %v3426, 1
  %v6403 = vsel %vm3703, %v6401, %v6402
  %v6404 = vrot.slane %v3432, 1
  %v6405 = vrot.slane %v3438, 1
  %v6406 = vsel %vm3703, %v6404, %v6405
  %v6407 = vrot.slane %v3444, 1
  %v6408 = vrot.slane %v3450, 1
  %v6409 = vsel %vm3703, %v6407, %v6408
  %6410 = vrot.lane.b32.xlu0 %v6388, 64
  %v6411 = vpop.permute.xlu0 %6410
  %6412 = vrot.lane.b32.xlu0 %v6391, 64
  %v6413 = vpop.permute.xlu0 %6412
  %6414 = vrot.lane.b32.xlu0 %v6394, 64
  %v6415 = vpop.permute.xlu0 %6414
  %6416 = vrot.lane.b32.xlu0 %v6397, 64
  %v6417 = vpop.permute.xlu0 %6416
  %6418 = vrot.lane.b32.xlu0 %v6400, 64
  %v6419 = vpop.permute.xlu0 %6418
  %6420 = vrot.lane.b32.xlu0 %v6403, 64
  %v6421 = vpop.permute.xlu0 %6420
  %6422 = vrot.lane.b32.xlu0 %v6406, 64
  %v6423 = vpop.permute.xlu0 %6422
  %6424 = vrot.lane.b32.xlu0 %v6409, 64
  %v6425 = vpop.permute.xlu0 %6424
  %v6426 = vsel %vm3784, %v6149, %v6411
  %v6427 = vsel %vm3784, %v6153, %v6413
  %v6428 = vsel %vm3784, %v6157, %v6415
  %v6429 = vsel %vm3784, %v6161, %v6417
  %v6430 = vsel %vm3784, %v6165, %v6419
  %v6431 = vsel %vm3784, %v6169, %v6421
  %v6432 = vsel %vm3784, %v6173, %v6423
  %v6433 = vsel %vm3784, %v6177, %v6425
  %v6450 = vadd.f32 %v6354, %v6149
  %v6451 = vadd.f32 %v6355, %v6426
  %v6452 = vadd.f32 %v6356, %v6153
  %v6453 = vadd.f32 %v6357, %v6427
  %v6454 = vadd.f32 %v6358, %v6157
  %v6455 = vadd.f32 %v6359, %v6428
  %v6456 = vadd.f32 %v6360, %v6161
  %v6457 = vadd.f32 %v6361, %v6429
  %v6458 = vadd.f32 %v6362, %v6165
  %v6459 = vadd.f32 %v6363, %v6430
  %v6460 = vadd.f32 %v6364, %v6169
  %v6461 = vadd.f32 %v6365, %v6431
  %v6462 = vadd.f32 %v6366, %v6173
  %v6463 = vadd.f32 %v6367, %v6432
  %v6464 = vadd.f32 %v6368, %v6177
  %v6465 = vadd.f32 %v6369, %v6433
  %6482 = vrot.lane.b32.xlu0 %v5666, 8
  %v6483 = vpop.permute.xlu0 %6482
  %6484 = vrot.lane.b32.xlu0 %v5667, 8
  %v6485 = vpop.permute.xlu0 %6484
  %6486 = vrot.lane.b32.xlu0 %v5668, 8
  %v6487 = vpop.permute.xlu0 %6486
  %6488 = vrot.lane.b32.xlu0 %v5669, 8
  %v6489 = vpop.permute.xlu0 %6488
  %6490 = vrot.lane.b32.xlu0 %v5670, 8
  %v6491 = vpop.permute.xlu0 %6490
  %6492 = vrot.lane.b32.xlu0 %v5671, 8
  %v6493 = vpop.permute.xlu0 %6492
  %6494 = vrot.lane.b32.xlu0 %v5672, 8
  %v6495 = vpop.permute.xlu0 %6494
  %6496 = vrot.lane.b32.xlu0 %v5673, 8
  %v6497 = vpop.permute.xlu0 %6496
  %6498 = vrot.lane.b32.xlu0 %v5674, 8
  %v6499 = vpop.permute.xlu0 %6498
  %6500 = vrot.lane.b32.xlu0 %v5675, 8
  %v6501 = vpop.permute.xlu0 %6500
  %6502 = vrot.lane.b32.xlu0 %v5676, 8
  %v6503 = vpop.permute.xlu0 %6502
  %6504 = vrot.lane.b32.xlu0 %v5677, 8
  %v6505 = vpop.permute.xlu0 %6504
  %6506 = vrot.lane.b32.xlu0 %v5678, 8
  %v6507 = vpop.permute.xlu0 %6506
  %6508 = vrot.lane.b32.xlu0 %v5679, 8
  %v6509 = vpop.permute.xlu0 %6508
  %6510 = vrot.lane.b32.xlu0 %v5680, 8
  %v6511 = vpop.permute.xlu0 %6510
  %6512 = vrot.lane.b32.xlu0 %v5681, 8
  %v6513 = vpop.permute.xlu0 %6512
  %v6514 = vsel %vm4825, %v6483, %v6485
  %v6515 = vsel %vm4825, %v6487, %v6489
  %v6516 = vsel %vm4825, %v6491, %v6493
  %v6517 = vsel %vm4825, %v6495, %v6497
  %v6518 = vsel %vm4825, %v6499, %v6501
  %v6519 = vsel %vm4825, %v6503, %v6505
  %v6520 = vsel %vm4825, %v6507, %v6509
  %v6521 = vsel %vm4825, %v6511, %v6513
  %v6530 = vmax.f32 %v5410, %v6514
  %v6531 = vmax.f32 %v5411, %v6515
  %v6532 = vmax.f32 %v5412, %v6516
  %v6533 = vmax.f32 %v5413, %v6517
  %v6534 = vmax.f32 %v5414, %v6518
  %v6535 = vmax.f32 %v5415, %v6519
  %v6536 = vmax.f32 %v5416, %v6520
  %v6537 = vmax.f32 %v5417, %v6521
  %6554 = vrot.lane.b32.xlu0 %v6450, 8
  %v6555 = vpop.permute.xlu0 %6554
  %6556 = vrot.lane.b32.xlu0 %v6451, 8
  %v6557 = vpop.permute.xlu0 %6556
  %6558 = vrot.lane.b32.xlu0 %v6452, 8
  %v6559 = vpop.permute.xlu0 %6558
  %6560 = vrot.lane.b32.xlu0 %v6453, 8
  %v6561 = vpop.permute.xlu0 %6560
  %6562 = vrot.lane.b32.xlu0 %v6454, 8
  %v6563 = vpop.permute.xlu0 %6562
  %6564 = vrot.lane.b32.xlu0 %v6455, 8
  %v6565 = vpop.permute.xlu0 %6564
  %6566 = vrot.lane.b32.xlu0 %v6456, 8
  %v6567 = vpop.permute.xlu0 %6566
  %6568 = vrot.lane.b32.xlu0 %v6457, 8
  %v6569 = vpop.permute.xlu0 %6568
  %6570 = vrot.lane.b32.xlu0 %v6458, 8
  %v6571 = vpop.permute.xlu0 %6570
  %6572 = vrot.lane.b32.xlu0 %v6459, 8
  %v6573 = vpop.permute.xlu0 %6572
  %6574 = vrot.lane.b32.xlu0 %v6460, 8
  %v6575 = vpop.permute.xlu0 %6574
  %6576 = vrot.lane.b32.xlu0 %v6461, 8
  %v6577 = vpop.permute.xlu0 %6576
  %6578 = vrot.lane.b32.xlu0 %v6462, 8
  %v6579 = vpop.permute.xlu0 %6578
  %6580 = vrot.lane.b32.xlu0 %v6463, 8
  %v6581 = vpop.permute.xlu0 %6580
  %6582 = vrot.lane.b32.xlu0 %v6464, 8
  %v6583 = vpop.permute.xlu0 %6582
  %6584 = vrot.lane.b32.xlu0 %v6465, 8
  %v6585 = vpop.permute.xlu0 %6584
  %v6586 = vsel %vm4825, %v6555, %v6557
  %v6587 = vsel %vm4825, %v6559, %v6561
  %v6588 = vsel %vm4825, %v6563, %v6565
  %v6589 = vsel %vm4825, %v6567, %v6569
  %v6590 = vsel %vm4825, %v6571, %v6573
  %v6591 = vsel %vm4825, %v6575, %v6577
  %v6592 = vsel %vm4825, %v6579, %v6581
  %v6593 = vsel %vm4825, %v6583, %v6585
  %v6602 = vmax.f32 %v6194, %v6586
  %v6603 = vmax.f32 %v6195, %v6587
  %v6604 = vmax.f32 %v6196, %v6588
  %v6605 = vmax.f32 %v6197, %v6589
  %v6606 = vmax.f32 %v6198, %v6590
  %v6607 = vmax.f32 %v6199, %v6591
  %v6608 = vmax.f32 %v6200, %v6592
  %v6609 = vmax.f32 %v6201, %v6593
  %v6610 = vmax.f32 %v6530, %v6602
  %v6611 = vmax.f32 %v6531, %v6603
  %v6612 = vmax.f32 %v6532, %v6604
  %v6613 = vmax.f32 %v6533, %v6605
  %v6614 = vmax.f32 %v6534, %v6606
  %v6615 = vmax.f32 %v6535, %v6607
  %v6616 = vmax.f32 %v6536, %v6608
  %v6617 = vmax.f32 %v6537, %v6609
  %v6618 = vmax.f32 %v6610, 0.0
  %v6619 = vmax.f32 %v6611, 0.0
  %v6620 = vmax.f32 %v6612, 0.0
  %v6621 = vmax.f32 %v6613, 0.0
  %v6622 = vmax.f32 %v6614, 0.0
  %v6623 = vmax.f32 %v6615, 0.0
  %v6624 = vmax.f32 %v6616, 0.0
  %v6625 = vmax.f32 %v6617, 0.0
  %v6626 = vld [vmem:[%s2] sm:$0xff]
  %v6627 = vld [vmem:[%s2 + $0x8] sm:$0xff]
  %v6628 = vld [vmem:[%s2 + $0x10] sm:$0xff]
  %v6629 = vld [vmem:[%s2 + $0x18] sm:$0xff]
  %v6630 = vld [vmem:[%s2 + $0x20] sm:$0xff]
  %v6631 = vld [vmem:[%s2 + $0x28] sm:$0xff]
  %v6632 = vld [vmem:[%s2 + $0x30] sm:$0xff]
  %v6633 = vld [vmem:[%s2 + $0x38] sm:$0xff]
  %v6634 = vld [vmem:[%s2 + $0x40] sm:$0xff]
  %v6635 = vld [vmem:[%s2 + $0x48] sm:$0xff]
  %v6636 = vld [vmem:[%s2 + $0x50] sm:$0xff]
  %v6637 = vld [vmem:[%s2 + $0x58] sm:$0xff]
  %v6638 = vld [vmem:[%s2 + $0x60] sm:$0xff]
  %v6639 = vld [vmem:[%s2 + $0x68] sm:$0xff]
  %v6640 = vld [vmem:[%s2 + $0x70] sm:$0xff]
  %v6641 = vld [vmem:[%s2 + $0x78] sm:$0xff]
  %v6642 = vld [vmem:[%s2 + $0x80] sm:$0xff]
  %v6643 = vld [vmem:[%s2 + $0x88] sm:$0xff]
  %v6644 = vld [vmem:[%s2 + $0x90] sm:$0xff]
  %v6645 = vld [vmem:[%s2 + $0x98] sm:$0xff]
  %v6646 = vld [vmem:[%s2 + $0xa0] sm:$0xff]
  %v6647 = vld [vmem:[%s2 + $0xa8] sm:$0xff]
  %v6648 = vld [vmem:[%s2 + $0xb0] sm:$0xff]
  %v6649 = vld [vmem:[%s2 + $0xb8] sm:$0xff]
  %v6650 = vld [vmem:[%s2 + $0xc0] sm:$0xff]
  %v6651 = vld [vmem:[%s2 + $0xc8] sm:$0xff]
  %v6652 = vld [vmem:[%s2 + $0xd0] sm:$0xff]
  %v6653 = vld [vmem:[%s2 + $0xd8] sm:$0xff]
  %v6654 = vld [vmem:[%s2 + $0xe0] sm:$0xff]
  %v6655 = vld [vmem:[%s2 + $0xe8] sm:$0xff]
  %v6656 = vld [vmem:[%s2 + $0xf0] sm:$0xff]
  %v6657 = vld [vmem:[%s2 + $0xf8] sm:$0xff]
  %v6658 = vld [vmem:[%s2 + $0x100] sm:$0xff]
  %v6659 = vld [vmem:[%s2 + $0x108] sm:$0xff]
  %v6660 = vld [vmem:[%s2 + $0x110] sm:$0xff]
  %v6661 = vld [vmem:[%s2 + $0x118] sm:$0xff]
  %v6662 = vld [vmem:[%s2 + $0x120] sm:$0xff]
  %v6663 = vld [vmem:[%s2 + $0x128] sm:$0xff]
  %v6664 = vld [vmem:[%s2 + $0x130] sm:$0xff]
  %v6665 = vld [vmem:[%s2 + $0x138] sm:$0xff]
  %v6666 = vld [vmem:[%s2 + $0x140] sm:$0xff]
  %v6667 = vld [vmem:[%s2 + $0x148] sm:$0xff]
  %v6668 = vld [vmem:[%s2 + $0x150] sm:$0xff]
  %v6669 = vld [vmem:[%s2 + $0x158] sm:$0xff]
  %v6670 = vld [vmem:[%s2 + $0x160] sm:$0xff]
  %v6671 = vld [vmem:[%s2 + $0x168] sm:$0xff]
  %v6672 = vld [vmem:[%s2 + $0x170] sm:$0xff]
  %v6673 = vld [vmem:[%s2 + $0x178] sm:$0xff]
  %v6674 = vld [vmem:[%s2 + $0x180] sm:$0xff]
  %v6675 = vld [vmem:[%s2 + $0x188] sm:$0xff]
  %v6676 = vld [vmem:[%s2 + $0x190] sm:$0xff]
  %v6677 = vld [vmem:[%s2 + $0x198] sm:$0xff]
  %v6678 = vld [vmem:[%s2 + $0x1a0] sm:$0xff]
  %v6679 = vld [vmem:[%s2 + $0x1a8] sm:$0xff]
  %v6680 = vld [vmem:[%s2 + $0x1b0] sm:$0xff]
  %v6681 = vld [vmem:[%s2 + $0x1b8] sm:$0xff]
  %v6682 = vld [vmem:[%s2 + $0x1c0] sm:$0xff]
  %v6683 = vld [vmem:[%s2 + $0x1c8] sm:$0xff]
  %v6684 = vld [vmem:[%s2 + $0x1d0] sm:$0xff]
  %v6685 = vld [vmem:[%s2 + $0x1d8] sm:$0xff]
  %v6686 = vld [vmem:[%s2 + $0x1e0] sm:$0xff]
  %v6687 = vld [vmem:[%s2 + $0x1e8] sm:$0xff]
  %v6688 = vld [vmem:[%s2 + $0x1f0] sm:$0xff]
  %v6689 = vld [vmem:[%s2 + $0x1f8] sm:$0xff]
  %v6690 = vld [vmem:[%s2 + $0x200] sm:$0xff]
  %v6691 = vld [vmem:[%s2 + $0x208] sm:$0xff]
  %v6692 = vld [vmem:[%s2 + $0x210] sm:$0xff]
  %v6693 = vld [vmem:[%s2 + $0x218] sm:$0xff]
  %v6694 = vld [vmem:[%s2 + $0x220] sm:$0xff]
  %v6695 = vld [vmem:[%s2 + $0x228] sm:$0xff]
  %v6696 = vld [vmem:[%s2 + $0x230] sm:$0xff]
  %v6697 = vld [vmem:[%s2 + $0x238] sm:$0xff]
  %v6698 = vld [vmem:[%s2 + $0x240] sm:$0xff]
  %v6699 = vld [vmem:[%s2 + $0x248] sm:$0xff]
  %v6700 = vld [vmem:[%s2 + $0x250] sm:$0xff]
  %v6701 = vld [vmem:[%s2 + $0x258] sm:$0xff]
  %v6702 = vld [vmem:[%s2 + $0x260] sm:$0xff]
  %v6703 = vld [vmem:[%s2 + $0x268] sm:$0xff]
  %v6704 = vld [vmem:[%s2 + $0x270] sm:$0xff]
  %v6705 = vld [vmem:[%s2 + $0x278] sm:$0xff]
  %v6706 = vld [vmem:[%s2 + $0x280] sm:$0xff]
  %v6707 = vld [vmem:[%s2 + $0x288] sm:$0xff]
  %v6708 = vld [vmem:[%s2 + $0x290] sm:$0xff]
  %v6709 = vld [vmem:[%s2 + $0x298] sm:$0xff]
  %v6710 = vld [vmem:[%s2 + $0x2a0] sm:$0xff]
  %v6711 = vld [vmem:[%s2 + $0x2a8] sm:$0xff]
  %v6712 = vld [vmem:[%s2 + $0x2b0] sm:$0xff]
  %v6713 = vld [vmem:[%s2 + $0x2b8] sm:$0xff]
  %v6714 = vld [vmem:[%s2 + $0x2c0] sm:$0xff]
  %v6715 = vld [vmem:[%s2 + $0x2c8] sm:$0xff]
  %v6716 = vld [vmem:[%s2 + $0x2d0] sm:$0xff]
  %v6717 = vld [vmem:[%s2 + $0x2d8] sm:$0xff]
  %v6718 = vld [vmem:[%s2 + $0x2e0] sm:$0xff]
  %v6719 = vld [vmem:[%s2 + $0x2e8] sm:$0xff]
  %v6720 = vld [vmem:[%s2 + $0x2f0] sm:$0xff]
  %v6721 = vld [vmem:[%s2 + $0x2f8] sm:$0xff]
  %v6722 = vld [vmem:[%s2 + $0x300] sm:$0xff]
  %v6723 = vld [vmem:[%s2 + $0x308] sm:$0xff]
  %v6724 = vld [vmem:[%s2 + $0x310] sm:$0xff]
  %v6725 = vld [vmem:[%s2 + $0x318] sm:$0xff]
  %v6726 = vld [vmem:[%s2 + $0x320] sm:$0xff]
  %v6727 = vld [vmem:[%s2 + $0x328] sm:$0xff]
  %v6728 = vld [vmem:[%s2 + $0x330] sm:$0xff]
  %v6729 = vld [vmem:[%s2 + $0x338] sm:$0xff]
  %v6730 = vld [vmem:[%s2 + $0x340] sm:$0xff]
  %vm6731 = vcmask 982016
  %v6733 = vsel %vm6731, %v4930, 0
  %v6736 = vsel %vm6731, %v4931, 0
  %v6739 = vsel %vm6731, %v4932, 0
  %v6742 = vsel %vm6731, %v4933, 0
  %v6745 = vsel %vm6731, %v4934, 0
  %v6748 = vsel %vm6731, %v4935, 0
  %v6751 = vsel %vm6731, %v4936, 0
  %v6754 = vsel %vm6731, %v4937, 0
  %6756 = vmatprep.subr.mxu0 %v6627
  %6757 = vmatpush1.msra.mxu0 %v6626
  %6758 = vmatprep.subr.mxu0 %v6634
  %6759 = vmatpush1.msra.mxu0 %v6633
  %6760 = vmatprep.subr.mxu0 %v6641
  %6761 = vmatpush1.msra.mxu0 %v6640
  %6762 = vmatprep.subr.mxu0 %v6648
  %6763 = vmatpush1.msra.mxu0 %v6647
  %6764 = vmatprep.subr.mxu0 %v6655
  %6765 = vmatpush1.msra.mxu0 %v6654
  %6766 = vmatprep.subr.mxu0 %v6662
  %6767 = vmatpush1.msra.mxu0 %v6661
  %6768 = vmatprep.subr.mxu0 %v6669
  %6769 = vmatpush1.msra.mxu0 %v6668
  %6770 = vmatprep.subr.mxu0 %v6676
  %6771 = vmatpush1.msra.mxu0 %v6675
  %6772 = vmatprep.subr.mxu0 %v6683
  %6773 = vmatpush1.msra.mxu0 %v6682
  %6774 = vmatprep.subr.mxu0 %v6690
  %6775 = vmatpush1.msra.mxu0 %v6689
  %6776 = vmatprep.subr.mxu0 %v6697
  %6777 = vmatpush1.msra.mxu0 %v6696
  %6778 = vmatprep.subr.mxu0 %v6704
  %6779 = vmatpush1.msra.mxu0 %v6703
  %6780 = vmatprep.subr.mxu0 %v6711
  %6781 = vmatpush1.msra.mxu0 %v6710
  %6782 = vmatprep.subr.mxu0 %v6718
  %6783 = vmatpush1.msra.mxu0 %v6717
  %6784 = vmatprep.subr.mxu0 %v6725
  %6785 = vmatpush1.msra.mxu0 %v6724
  %6786 = vmatprep.subr.mxu0 0.0
  %6787 = vmatpush1.msra.mxu0 0.0
  %6788 = vmatprep.subr.mxu0 0.0
  %6789 = vmatpush1.msra.mxu0 0.0
  %6790 = vmatprep.subr.mxu0 0.0
  %6791 = vmatpush1.msra.mxu0 0.0
  %6792 = vmatprep.subr.mxu0 0.0
  %6793 = vmatpush1.msra.mxu0 0.0
  %6794 = vmatprep.subr.mxu0 0.0
  %6795 = vmatpush1.msra.mxu0 0.0
  %6796 = vmatprep.subr.mxu0 0.0
  %6797 = vmatpush1.msra.mxu0 0.0
  %6798 = vmatprep.subr.mxu0 0.0
  %6799 = vmatpush1.msra.mxu0 0.0
  %6800 = vmatprep.subr.mxu0 0.0
  %6801 = vmatpush1.msra.mxu0 0.0
  %6802 = vmatprep.subr.mxu0 0.0
  %6803 = vmatpush1.msra.mxu0 0.0
  %6804 = vmatprep.subr.mxu0 0.0
  %6805 = vmatpush1.msra.mxu0 0.0
  %6806 = vmatprep.subr.mxu0 0.0
  %6807 = vmatpush1.msra.mxu0 0.0
  %6808 = vmatprep.subr.mxu0 0.0
  %6809 = vmatpush1.msra.mxu0 0.0
  %6810 = vmatprep.subr.mxu0 0.0
  %6811 = vmatpush1.msra.mxu0 0.0
  %6812 = vmatprep.subr.mxu0 0.0
  %6813 = vmatpush1.msra.mxu0 0.0
  %6814 = vmatprep.subr.mxu0 0.0
  %6815 = vmatpush1.msra.mxu0 0.0
  %6816 = vmatprep.subr.mxu0 0.0
  %6817 = vmatpush1.msra.mxu0 0.0
  %6818 = vmatprep.subr.mxu0 0.0
  %6819 = vmatpush1.msra.mxu0 0.0
  %6820 = vmatprep.mubr.f32.mxu0 0.0
  %6821 = vmatmul.mubr.f32.gmra.mrb[0].mxu0 %v6733
  %v6822 = vpop.f32.mrb[0].mxu0
  %v6823 = vadd.f32 0.0, %v6822
  %v6824 = vpop.f32.mrb[0].mxu0
  %v6825 = vadd.f32 0.0, %v6824
  %6826 = vmatprep.mubr.f32.mxu0 0.0
  %6827 = vmatmul.mubr.f32.gmra.mrb[0].mxu0 %v6736
  %v6828 = vpop.f32.mrb[0].mxu0
  %v6829 = vadd.f32 0.0, %v6828
  %v6830 = vpop.f32.mrb[0].mxu0
  %v6831 = vadd.f32 0.0, %v6830
  %6832 = vmatprep.mubr.f32.mxu0 0.0
  %6833 = vmatmul.mubr.f32.gmra.mrb[0].mxu0 %v6739
  %v6834 = vpop.f32.mrb[0].mxu0
  %v6835 = vadd.f32 0.0, %v6834
  %v6836 = vpop.f32.mrb[0].mxu0
  %v6837 = vadd.f32 0.0, %v6836
  %6838 = vmatprep.mubr.f32.mxu0 0.0
  %6839 = vmatmul.mubr.f32.gmra.mrb[0].mxu0 %v6742
  %v6840 = vpop.f32.mrb[0].mxu0
  %v6841 = vadd.f32 0.0, %v6840
  %v6842 = vpop.f32.mrb[0].mxu0
  %v6843 = vadd.f32 0.0, %v6842
  %6844 = vmatprep.mubr.f32.mxu0 0.0
  %6845 = vmatmul.mubr.f32.gmra.mrb[0].mxu0 %v6745
  %v6846 = vpop.f32.mrb[0].mxu0
  %v6847 = vadd.f32 0.0, %v6846
  %v6848 = vpop.f32.mrb[0].mxu0
  %v6849 = vadd.f32 0.0, %v6848
  %6850 = vmatprep.mubr.f32.mxu0 0.0
  %6851 = vmatmul.mubr.f32.gmra.mrb[0].mxu0 %v6748
  %v6852 = vpop.f32.mrb[0].mxu0
  %v6853 = vadd.f32 0.0, %v6852
  %v6854 = vpop.f32.mrb[0].mxu0
  %v6855 = vadd.f32 0.0, %v6854
  %6856 = vmatprep.mubr.f32.mxu0 0.0
  %6857 = vmatmul.mubr.f32.gmra.mrb[0].mxu0 %v6751
  %v6858 = vpop.f32.mrb[0].mxu0
  %v6859 = vadd.f32 0.0, %v6858
  %v6860 = vpop.f32.mrb[0].mxu0
  %v6861 = vadd.f32 0.0, %v6860
  %6862 = vmatprep.mubr.f32.mxu0 0.0
  %6863 = vmatmul.mubr.f32.gmra.mrb[0].mxu0 %v6754
  %v6864 = vpop.f32.mrb[0].mxu0
  %v6865 = vadd.f32 0.0, %v6864
  %v6866 = vpop.f32.mrb[0].mxu0
  %v6867 = vadd.f32 0.0, %v6866
  %6868 = vdwg.mxu0
  %6869 = vmatprep.subr.mxu0 %v6629
  %6870 = vmatpush1.msra.mxu0 %v6628
  %6871 = vmatprep.subr.mxu0 %v6636
  %6872 = vmatpush1.msra.mxu0 %v6635
  %6873 = vmatprep.subr.mxu0 %v6643
  %6874 = vmatpush1.msra.mxu0 %v6642
  %6875 = vmatprep.subr.mxu0 %v6650
  %6876 = vmatpush1.msra.mxu0 %v6649
  %6877 = vmatprep.subr.mxu0 %v6657
  %6878 = vmatpush1.msra.mxu0 %v6656
  %6879 = vmatprep.subr.mxu0 %v6664
  %6880 = vmatpush1.msra.mxu0 %v6663
  %6881 = vmatprep.subr.mxu0 %v6671
  %6882 = vmatpush1.msra.mxu0 %v6670
  %6883 = vmatprep.subr.mxu0 %v6678
  %6884 = vmatpush1.msra.mxu0 %v6677
  %6885 = vmatprep.subr.mxu0 %v6685
  %6886 = vmatpush1.msra.mxu0 %v6684
  %6887 = vmatprep.subr.mxu0 %v6692
  %6888 = vmatpush1.msra.mxu0 %v6691
  %6889 = vmatprep.subr.mxu0 %v6699
  %6890 = vmatpush1.msra.mxu0 %v6698
  %6891 = vmatprep.subr.mxu0 %v6706
  %6892 = vmatpush1.msra.mxu0 %v6705
  %6893 = vmatprep.subr.mxu0 %v6713
  %6894 = vmatpush1.msra.mxu0 %v6712
  %6895 = vmatprep.subr.mxu0 %v6720
  %6896 = vmatpush1.msra.mxu0 %v6719
  %6897 = vmatprep.subr.mxu0 %v6727
  %6898 = vmatpush1.msra.mxu0 %v6726
  %6899 = vmatprep.subr.mxu0 0.0
  %6900 = vmatpush1.msra.mxu0 0.0
  %6901 = vmatprep.subr.mxu0 0.0
  %6902 = vmatpush1.msra.mxu0 0.0
  %6903 = vmatprep.subr.mxu0 0.0
  %6904 = vmatpush1.msra.mxu0 0.0
  %6905 = vmatprep.subr.mxu0 0.0
  %6906 = vmatpush1.msra.mxu0 0.0
  %6907 = vmatprep.subr.mxu0 0.0
  %6908 = vmatpush1.msra.mxu0 0.0
  %6909 = vmatprep.subr.mxu0 0.0
  %6910 = vmatpush1.msra.mxu0 0.0
  %6911 = vmatprep.subr.mxu0 0.0
  %6912 = vmatpush1.msra.mxu0 0.0
  %6913 = vmatprep.subr.mxu0 0.0
  %6914 = vmatpush1.msra.mxu0 0.0
  %6915 = vmatprep.subr.mxu0 0.0
  %6916 = vmatpush1.msra.mxu0 0.0
  %6917 = vmatprep.subr.mxu0 0.0
  %6918 = vmatpush1.msra.mxu0 0.0
  %6919 = vmatprep.subr.mxu0 0.0
  %6920 = vmatpush1.msra.mxu0 0.0
  %6921 = vmatprep.subr.mxu0 0.0
  %6922 = vmatpush1.msra.mxu0 0.0
  %6923 = vmatprep.subr.mxu0 0.0
  %6924 = vmatpush1.msra.mxu0 0.0
  %6925 = vmatprep.subr.mxu0 0.0
  %6926 = vmatpush1.msra.mxu0 0.0
  %6927 = vmatprep.subr.mxu0 0.0
  %6928 = vmatpush1.msra.mxu0 0.0
  %6929 = vmatprep.subr.mxu0 0.0
  %6930 = vmatpush1.msra.mxu0 0.0
  %6931 = vmatprep.subr.mxu0 0.0
  %6932 = vmatpush1.msra.mxu0 0.0
  %6933 = vmatprep.mubr.f32.mxu0 0.0
  %6934 = vmatmul.mubr.f32.gmra.mrb[0].mxu0 %v6733
  %v6935 = vpop.f32.mrb[0].mxu0
  %v6936 = vadd.f32 0.0, %v6935
  %v6937 = vpop.f32.mrb[0].mxu0
  %v6938 = vadd.f32 0.0, %v6937
  %6939 = vmatprep.mubr.f32.mxu0 0.0
  %6940 = vmatmul.mubr.f32.gmra.mrb[0].mxu0 %v6736
  %v6941 = vpop.f32.mrb[0].mxu0
  %v6942 = vadd.f32 0.0, %v6941
  %v6943 = vpop.f32.mrb[0].mxu0
  %v6944 = vadd.f32 0.0, %v6943
  %6945 = vmatprep.mubr.f32.mxu0 0.0
  %6946 = vmatmul.mubr.f32.gmra.mrb[0].mxu0 %v6739
  %v6947 = vpop.f32.mrb[0].mxu0
  %v6948 = vadd.f32 0.0, %v6947
  %v6949 = vpop.f32.mrb[0].mxu0
  %v6950 = vadd.f32 0.0, %v6949
  %6951 = vmatprep.mubr.f32.mxu0 0.0
  %6952 = vmatmul.mubr.f32.gmra.mrb[0].mxu0 %v6742
  %v6953 = vpop.f32.mrb[0].mxu0
  %v6954 = vadd.f32 0.0, %v6953
  %v6955 = vpop.f32.mrb[0].mxu0
  %v6956 = vadd.f32 0.0, %v6955
  %6957 = vmatprep.mubr.f32.mxu0 0.0
  %6958 = vmatmul.mubr.f32.gmra.mrb[0].mxu0 %v6745
  %v6959 = vpop.f32.mrb[0].mxu0
  %v6960 = vadd.f32 0.0, %v6959
  %v6961 = vpop.f32.mrb[0].mxu0
  %v6962 = vadd.f32 0.0, %v6961
  %6963 = vmatprep.mubr.f32.mxu0 0.0
  %6964 = vmatmul.mubr.f32.gmra.mrb[0].mxu0 %v6748
  %v6965 = vpop.f32.mrb[0].mxu0
  %v6966 = vadd.f32 0.0, %v6965
  %v6967 = vpop.f32.mrb[0].mxu0
  %v6968 = vadd.f32 0.0, %v6967
  %6969 = vmatprep.mubr.f32.mxu0 0.0
  %6970 = vmatmul.mubr.f32.gmra.mrb[0].mxu0 %v6751
  %v6971 = vpop.f32.mrb[0].mxu0
  %v6972 = vadd.f32 0.0, %v6971
  %v6973 = vpop.f32.mrb[0].mxu0
  %v6974 = vadd.f32 0.0, %v6973
  %6975 = vmatprep.mubr.f32.mxu0 0.0
  %6976 = vmatmul.mubr.f32.gmra.mrb[0].mxu0 %v6754
  %v6977 = vpop.f32.mrb[0].mxu0
  %v6978 = vadd.f32 0.0, %v6977
  %v6979 = vpop.f32.mrb[0].mxu0
  %v6980 = vadd.f32 0.0, %v6979
  %6981 = vdwg.mxu0
  %6982 = vmatprep.subr.mxu0 %v6631
  %6983 = vmatpush1.msra.mxu0 %v6630
  %6984 = vmatprep.subr.mxu0 %v6638
  %6985 = vmatpush1.msra.mxu0 %v6637
  %6986 = vmatprep.subr.mxu0 %v6645
  %6987 = vmatpush1.msra.mxu0 %v6644
  %6988 = vmatprep.subr.mxu0 %v6652
  %6989 = vmatpush1.msra.mxu0 %v6651
  %6990 = vmatprep.subr.mxu0 %v6659
  %6991 = vmatpush1.msra.mxu0 %v6658
  %6992 = vmatprep.subr.mxu0 %v6666
  %6993 = vmatpush1.msra.mxu0 %v6665
  %6994 = vmatprep.subr.mxu0 %v6673
  %6995 = vmatpush1.msra.mxu0 %v6672
  %6996 = vmatprep.subr.mxu0 %v6680
  %6997 = vmatpush1.msra.mxu0 %v6679
  %6998 = vmatprep.subr.mxu0 %v6687
  %6999 = vmatpush1.msra.mxu0 %v6686
  %7000 = vmatprep.subr.mxu0 %v6694
  %7001 = vmatpush1.msra.mxu0 %v6693
  %7002 = vmatprep.subr.mxu0 %v6701
  %7003 = vmatpush1.msra.mxu0 %v6700
  %7004 = vmatprep.subr.mxu0 %v6708
  %7005 = vmatpush1.msra.mxu0 %v6707
  %7006 = vmatprep.subr.mxu0 %v6715
  %7007 = vmatpush1.msra.mxu0 %v6714
  %7008 = vmatprep.subr.mxu0 %v6722
  %7009 = vmatpush1.msra.mxu0 %v6721
  %7010 = vmatprep.subr.mxu0 %v6729
  %7011 = vmatpush1.msra.mxu0 %v6728
  %7012 = vmatprep.subr.mxu0 0.0
  %7013 = vmatpush1.msra.mxu0 0.0
  %7014 = vmatprep.subr.mxu0 0.0
  %7015 = vmatpush1.msra.mxu0 0.0
  %7016 = vmatprep.subr.mxu0 0.0
  %7017 = vmatpush1.msra.mxu0 0.0
  %7018 = vmatprep.subr.mxu0 0.0
  %7019 = vmatpush1.msra.mxu0 0.0
  %7020 = vmatprep.subr.mxu0 0.0
  %7021 = vmatpush1.msra.mxu0 0.0
  %7022 = vmatprep.subr.mxu0 0.0
  %7023 = vmatpush1.msra.mxu0 0.0
  %7024 = vmatprep.subr.mxu0 0.0
  %7025 = vmatpush1.msra.mxu0 0.0
  %7026 = vmatprep.subr.mxu0 0.0
  %7027 = vmatpush1.msra.mxu0 0.0
  %7028 = vmatprep.subr.mxu0 0.0
  %7029 = vmatpush1.msra.mxu0 0.0
  %7030 = vmatprep.subr.mxu0 0.0
  %7031 = vmatpush1.msra.mxu0 0.0
  %7032 = vmatprep.subr.mxu0 0.0
  %7033 = vmatpush1.msra.mxu0 0.0
  %7034 = vmatprep.subr.mxu0 0.0
  %7035 = vmatpush1.msra.mxu0 0.0
  %7036 = vmatprep.subr.mxu0 0.0
  %7037 = vmatpush1.msra.mxu0 0.0
  %7038 = vmatprep.subr.mxu0 0.0
  %7039 = vmatpush1.msra.mxu0 0.0
  %7040 = vmatprep.subr.mxu0 0.0
  %7041 = vmatpush1.msra.mxu0 0.0
  %7042 = vmatprep.subr.mxu0 0.0
  %7043 = vmatpush1.msra.mxu0 0.0
  %7044 = vmatprep.subr.mxu0 0.0
  %7045 = vmatpush1.msra.mxu0 0.0
  %7046 = vmatprep.mubr.f32.mxu0 0.0
  %7047 = vmatmul.mubr.f32.gmra.mrb[0].mxu0 %v6733
  %v7048 = vpop.f32.mrb[0].mxu0
  %v7049 = vadd.f32 0.0, %v7048
  %v7050 = vpop.f32.mrb[0].mxu0
  %v7051 = vadd.f32 0.0, %v7050
  %7052 = vmatprep.mubr.f32.mxu0 0.0
  %7053 = vmatmul.mubr.f32.gmra.mrb[0].mxu0 %v6736
  %v7054 = vpop.f32.mrb[0].mxu0
  %v7055 = vadd.f32 0.0, %v7054
  %v7056 = vpop.f32.mrb[0].mxu0
  %v7057 = vadd.f32 0.0, %v7056
  %7058 = vmatprep.mubr.f32.mxu0 0.0
  %7059 = vmatmul.mubr.f32.gmra.mrb[0].mxu0 %v6739
  %v7060 = vpop.f32.mrb[0].mxu0
  %v7061 = vadd.f32 0.0, %v7060
  %v7062 = vpop.f32.mrb[0].mxu0
  %v7063 = vadd.f32 0.0, %v7062
  %7064 = vmatprep.mubr.f32.mxu0 0.0
  %7065 = vmatmul.mubr.f32.gmra.mrb[0].mxu0 %v6742
  %v7066 = vpop.f32.mrb[0].mxu0
  %v7067 = vadd.f32 0.0, %v7066
  %v7068 = vpop.f32.mrb[0].mxu0
  %v7069 = vadd.f32 0.0, %v7068
  %7070 = vmatprep.mubr.f32.mxu0 0.0
  %7071 = vmatmul.mubr.f32.gmra.mrb[0].mxu0 %v6745
  %v7072 = vpop.f32.mrb[0].mxu0
  %v7073 = vadd.f32 0.0, %v7072
  %v7074 = vpop.f32.mrb[0].mxu0
  %v7075 = vadd.f32 0.0, %v7074
  %7076 = vmatprep.mubr.f32.mxu0 0.0
  %7077 = vmatmul.mubr.f32.gmra.mrb[0].mxu0 %v6748
  %v7078 = vpop.f32.mrb[0].mxu0
  %v7079 = vadd.f32 0.0, %v7078
  %v7080 = vpop.f32.mrb[0].mxu0
  %v7081 = vadd.f32 0.0, %v7080
  %7082 = vmatprep.mubr.f32.mxu0 0.0
  %7083 = vmatmul.mubr.f32.gmra.mrb[0].mxu0 %v6751
  %v7084 = vpop.f32.mrb[0].mxu0
  %v7085 = vadd.f32 0.0, %v7084
  %v7086 = vpop.f32.mrb[0].mxu0
  %v7087 = vadd.f32 0.0, %v7086
  %7088 = vmatprep.mubr.f32.mxu0 0.0
  %7089 = vmatmul.mubr.f32.gmra.mrb[0].mxu0 %v6754
  %v7090 = vpop.f32.mrb[0].mxu0
  %v7091 = vadd.f32 0.0, %v7090
  %v7092 = vpop.f32.mrb[0].mxu0
  %v7093 = vadd.f32 0.0, %v7092
  %7094 = vdwg.mxu0
  %7095 = vmatprep.subr.mxu0 0.0
  %7096 = vmatpush1.msra.mxu0 %v6632
  %7097 = vmatprep.subr.mxu0 0.0
  %7098 = vmatpush1.msra.mxu0 %v6639
  %7099 = vmatprep.subr.mxu0 0.0
  %7100 = vmatpush1.msra.mxu0 %v6646
  %7101 = vmatprep.subr.mxu0 0.0
  %7102 = vmatpush1.msra.mxu0 %v6653
  %7103 = vmatprep.subr.mxu0 0.0
  %7104 = vmatpush1.msra.mxu0 %v6660
  %7105 = vmatprep.subr.mxu0 0.0
  %7106 = vmatpush1.msra.mxu0 %v6667
  %7107 = vmatprep.subr.mxu0 0.0
  %7108 = vmatpush1.msra.mxu0 %v6674
  %7109 = vmatprep.subr.mxu0 0.0
  %7110 = vmatpush1.msra.mxu0 %v6681
  %7111 = vmatprep.subr.mxu0 0.0
  %7112 = vmatpush1.msra.mxu0 %v6688
  %7113 = vmatprep.subr.mxu0 0.0
  %7114 = vmatpush1.msra.mxu0 %v6695
  %7115 = vmatprep.subr.mxu0 0.0
  %7116 = vmatpush1.msra.mxu0 %v6702
  %7117 = vmatprep.subr.mxu0 0.0
  %7118 = vmatpush1.msra.mxu0 %v6709
  %7119 = vmatprep.subr.mxu0 0.0
  %7120 = vmatpush1.msra.mxu0 %v6716
  %7121 = vmatprep.subr.mxu0 0.0
  %7122 = vmatpush1.msra.mxu0 %v6723
  %7123 = vmatprep.subr.mxu0 0.0
  %7124 = vmatpush1.msra.mxu0 %v6730
  %7125 = vmatprep.subr.mxu0 0.0
  %7126 = vmatpush1.msra.mxu0 0.0
  %7127 = vmatprep.subr.mxu0 0.0
  %7128 = vmatpush1.msra.mxu0 0.0
  %7129 = vmatprep.subr.mxu0 0.0
  %7130 = vmatpush1.msra.mxu0 0.0
  %7131 = vmatprep.subr.mxu0 0.0
  %7132 = vmatpush1.msra.mxu0 0.0
  %7133 = vmatprep.subr.mxu0 0.0
  %7134 = vmatpush1.msra.mxu0 0.0
  %7135 = vmatprep.subr.mxu0 0.0
  %7136 = vmatpush1.msra.mxu0 0.0
  %7137 = vmatprep.subr.mxu0 0.0
  %7138 = vmatpush1.msra.mxu0 0.0
  %7139 = vmatprep.subr.mxu0 0.0
  %7140 = vmatpush1.msra.mxu0 0.0
  %7141 = vmatprep.subr.mxu0 0.0
  %7142 = vmatpush1.msra.mxu0 0.0
  %7143 = vmatprep.subr.mxu0 0.0
  %7144 = vmatpush1.msra.mxu0 0.0
  %7145 = vmatprep.subr.mxu0 0.0
  %7146 = vmatpush1.msra.mxu0 0.0
  %7147 = vmatprep.subr.mxu0 0.0
  %7148 = vmatpush1.msra.mxu0 0.0
  %7149 = vmatprep.subr.mxu0 0.0
  %7150 = vmatpush1.msra.mxu0 0.0
  %7151 = vmatprep.subr.mxu0 0.0
  %7152 = vmatpush1.msra.mxu0 0.0
  %7153 = vmatprep.subr.mxu0 0.0
  %7154 = vmatpush1.msra.mxu0 0.0
  %7155 = vmatprep.subr.mxu0 0.0
  %7156 = vmatpush1.msra.mxu0 0.0
  %7157 = vmatprep.subr.mxu0 0.0
  %7158 = vmatpush1.msra.mxu0 0.0
  %7159 = vmatprep.mubr.f32.mxu0 0.0
  %7160 = vmatmul.mubr.f32.gmra.mrb[0].mxu0 %v6733
  %v7161 = vpop.f32.mrb[0].mxu0
  %v7162 = vadd.f32 0.0, %v7161
  %v7163 = vpop.f32.mrb[0].mxu0
  %7164 = vmatprep.mubr.f32.mxu0 0.0
  %7165 = vmatmul.mubr.f32.gmra.mrb[0].mxu0 %v6736
  %v7166 = vpop.f32.mrb[0].mxu0
  %v7167 = vadd.f32 0.0, %v7166
  %v7168 = vpop.f32.mrb[0].mxu0
  %7169 = vmatprep.mubr.f32.mxu0 0.0
  %7170 = vmatmul.mubr.f32.gmra.mrb[0].mxu0 %v6739
  %v7171 = vpop.f32.mrb[0].mxu0
  %v7172 = vadd.f32 0.0, %v7171
  %v7173 = vpop.f32.mrb[0].mxu0
  %7174 = vmatprep.mubr.f32.mxu0 0.0
  %7175 = vmatmul.mubr.f32.gmra.mrb[0].mxu0 %v6742
  %v7176 = vpop.f32.mrb[0].mxu0
  %v7177 = vadd.f32 0.0, %v7176
  %v7178 = vpop.f32.mrb[0].mxu0
  %7179 = vmatprep.mubr.f32.mxu0 0.0
  %7180 = vmatmul.mubr.f32.gmra.mrb[0].mxu0 %v6745
  %v7181 = vpop.f32.mrb[0].mxu0
  %v7182 = vadd.f32 0.0, %v7181
  %v7183 = vpop.f32.mrb[0].mxu0
  %7184 = vmatprep.mubr.f32.mxu0 0.0
  %7185 = vmatmul.mubr.f32.gmra.mrb[0].mxu0 %v6748
  %v7186 = vpop.f32.mrb[0].mxu0
  %v7187 = vadd.f32 0.0, %v7186
  %v7188 = vpop.f32.mrb[0].mxu0
  %7189 = vmatprep.mubr.f32.mxu0 0.0
  %7190 = vmatmul.mubr.f32.gmra.mrb[0].mxu0 %v6751
  %v7191 = vpop.f32.mrb[0].mxu0
  %v7192 = vadd.f32 0.0, %v7191
  %v7193 = vpop.f32.mrb[0].mxu0
  %7194 = vmatprep.mubr.f32.mxu0 0.0
  %7195 = vmatmul.mubr.f32.gmra.mrb[0].mxu0 %v6754
  %v7196 = vpop.f32.mrb[0].mxu0
  %v7197 = vadd.f32 0.0, %v7196
  %v7198 = vpop.f32.mrb[0].mxu0
  %7199 = vdwg.mxu0
  %v7201 = vsel %vm6731, %v6618, 0
  %v7204 = vsel %vm6731, %v6619, 0
  %v7207 = vsel %vm6731, %v6620, 0
  %v7210 = vsel %vm6731, %v6621, 0
  %v7213 = vsel %vm6731, %v6622, 0
  %v7216 = vsel %vm6731, %v6623, 0
  %v7219 = vsel %vm6731, %v6624, 0
  %v7222 = vsel %vm6731, %v6625, 0
  %7224 = vmatprep.subr.mxu0 %v6627
  %7225 = vmatpush1.msra.mxu0 %v6626
  %7226 = vmatprep.subr.mxu0 %v6634
  %7227 = vmatpush1.msra.mxu0 %v6633
  %7228 = vmatprep.subr.mxu0 %v6641
  %7229 = vmatpush1.msra.mxu0 %v6640
  %7230 = vmatprep.subr.mxu0 %v6648
  %7231 = vmatpush1.msra.mxu0 %v6647
  %7232 = vmatprep.subr.mxu0 %v6655
  %7233 = vmatpush1.msra.mxu0 %v6654
  %7234 = vmatprep.subr.mxu0 %v6662
  %7235 = vmatpush1.msra.mxu0 %v6661
  %7236 = vmatprep.subr.mxu0 %v6669
  %7237 = vmatpush1.msra.mxu0 %v6668
  %7238 = vmatprep.subr.mxu0 %v6676
  %7239 = vmatpush1.msra.mxu0 %v6675
  %7240 = vmatprep.subr.mxu0 %v6683
  %7241 = vmatpush1.msra.mxu0 %v6682
  %7242 = vmatprep.subr.mxu0 %v6690
  %7243 = vmatpush1.msra.mxu0 %v6689
  %7244 = vmatprep.subr.mxu0 %v6697
  %7245 = vmatpush1.msra.mxu0 %v6696
  %7246 = vmatprep.subr.mxu0 %v6704
  %7247 = vmatpush1.msra.mxu0 %v6703
  %7248 = vmatprep.subr.mxu0 %v6711
  %7249 = vmatpush1.msra.mxu0 %v6710
  %7250 = vmatprep.subr.mxu0 %v6718
  %7251 = vmatpush1.msra.mxu0 %v6717
  %7252 = vmatprep.subr.mxu0 %v6725
  %7253 = vmatpush1.msra.mxu0 %v6724
  %7254 = vmatprep.subr.mxu0 0.0
  %7255 = vmatpush1.msra.mxu0 0.0
  %7256 = vmatprep.subr.mxu0 0.0
  %7257 = vmatpush1.msra.mxu0 0.0
  %7258 = vmatprep.subr.mxu0 0.0
  %7259 = vmatpush1.msra.mxu0 0.0
  %7260 = vmatprep.subr.mxu0 0.0
  %7261 = vmatpush1.msra.mxu0 0.0
  %7262 = vmatprep.subr.mxu0 0.0
  %7263 = vmatpush1.msra.mxu0 0.0
  %7264 = vmatprep.subr.mxu0 0.0
  %7265 = vmatpush1.msra.mxu0 0.0
  %7266 = vmatprep.subr.mxu0 0.0
  %7267 = vmatpush1.msra.mxu0 0.0
  %7268 = vmatprep.subr.mxu0 0.0
  %7269 = vmatpush1.msra.mxu0 0.0
  %7270 = vmatprep.subr.mxu0 0.0
  %7271 = vmatpush1.msra.mxu0 0.0
  %7272 = vmatprep.subr.mxu0 0.0
  %7273 = vmatpush1.msra.mxu0 0.0
  %7274 = vmatprep.subr.mxu0 0.0
  %7275 = vmatpush1.msra.mxu0 0.0
  %7276 = vmatprep.subr.mxu0 0.0
  %7277 = vmatpush1.msra.mxu0 0.0
  %7278 = vmatprep.subr.mxu0 0.0
  %7279 = vmatpush1.msra.mxu0 0.0
  %7280 = vmatprep.subr.mxu0 0.0
  %7281 = vmatpush1.msra.mxu0 0.0
  %7282 = vmatprep.subr.mxu0 0.0
  %7283 = vmatpush1.msra.mxu0 0.0
  %7284 = vmatprep.subr.mxu0 0.0
  %7285 = vmatpush1.msra.mxu0 0.0
  %7286 = vmatprep.subr.mxu0 0.0
  %7287 = vmatpush1.msra.mxu0 0.0
  %7288 = vmatprep.mubr.f32.mxu0 0.0
  %7289 = vmatmul.mubr.f32.gmra.mrb[0].mxu0 %v7201
  %v7290 = vpop.f32.mrb[0].mxu0
  %v7291 = vadd.f32 0.0, %v7290
  %v7292 = vpop.f32.mrb[0].mxu0
  %v7293 = vadd.f32 0.0, %v7292
  %7294 = vmatprep.mubr.f32.mxu0 0.0
  %7295 = vmatmul.mubr.f32.gmra.mrb[0].mxu0 %v7204
  %v7296 = vpop.f32.mrb[0].mxu0
  %v7297 = vadd.f32 0.0, %v7296
  %v7298 = vpop.f32.mrb[0].mxu0
  %v7299 = vadd.f32 0.0, %v7298
  %7300 = vmatprep.mubr.f32.mxu0 0.0
  %7301 = vmatmul.mubr.f32.gmra.mrb[0].mxu0 %v7207
  %v7302 = vpop.f32.mrb[0].mxu0
  %v7303 = vadd.f32 0.0, %v7302
  %v7304 = vpop.f32.mrb[0].mxu0
  %v7305 = vadd.f32 0.0, %v7304
  %7306 = vmatprep.mubr.f32.mxu0 0.0
  %7307 = vmatmul.mubr.f32.gmra.mrb[0].mxu0 %v7210
  %v7308 = vpop.f32.mrb[0].mxu0
  %v7309 = vadd.f32 0.0, %v7308
  %v7310 = vpop.f32.mrb[0].mxu0
  %v7311 = vadd.f32 0.0, %v7310
  %7312 = vmatprep.mubr.f32.mxu0 0.0
  %7313 = vmatmul.mubr.f32.gmra.mrb[0].mxu0 %v7213
  %v7314 = vpop.f32.mrb[0].mxu0
  %v7315 = vadd.f32 0.0, %v7314
  %v7316 = vpop.f32.mrb[0].mxu0
  %v7317 = vadd.f32 0.0, %v7316
  %7318 = vmatprep.mubr.f32.mxu0 0.0
  %7319 = vmatmul.mubr.f32.gmra.mrb[0].mxu0 %v7216
  %v7320 = vpop.f32.mrb[0].mxu0
  %v7321 = vadd.f32 0.0, %v7320
  %v7322 = vpop.f32.mrb[0].mxu0
  %v7323 = vadd.f32 0.0, %v7322
  %7324 = vmatprep.mubr.f32.mxu0 0.0
  %7325 = vmatmul.mubr.f32.gmra.mrb[0].mxu0 %v7219
  %v7326 = vpop.f32.mrb[0].mxu0
  %v7327 = vadd.f32 0.0, %v7326
  %v7328 = vpop.f32.mrb[0].mxu0
  %v7329 = vadd.f32 0.0, %v7328
  %7330 = vmatprep.mubr.f32.mxu0 0.0
  %7331 = vmatmul.mubr.f32.gmra.mrb[0].mxu0 %v7222
  %v7332 = vpop.f32.mrb[0].mxu0
  %v7333 = vadd.f32 0.0, %v7332
  %v7334 = vpop.f32.mrb[0].mxu0
  %v7335 = vadd.f32 0.0, %v7334
  %7336 = vdwg.mxu0
  %7337 = vmatprep.subr.mxu0 %v6629
  %7338 = vmatpush1.msra.mxu0 %v6628
  %7339 = vmatprep.subr.mxu0 %v6636
  %7340 = vmatpush1.msra.mxu0 %v6635
  %7341 = vmatprep.subr.mxu0 %v6643
  %7342 = vmatpush1.msra.mxu0 %v6642
  %7343 = vmatprep.subr.mxu0 %v6650
  %7344 = vmatpush1.msra.mxu0 %v6649
  %7345 = vmatprep.subr.mxu0 %v6657
  %7346 = vmatpush1.msra.mxu0 %v6656
  %7347 = vmatprep.subr.mxu0 %v6664
  %7348 = vmatpush1.msra.mxu0 %v6663
  %7349 = vmatprep.subr.mxu0 %v6671
  %7350 = vmatpush1.msra.mxu0 %v6670
  %7351 = vmatprep.subr.mxu0 %v6678
  %7352 = vmatpush1.msra.mxu0 %v6677
  %7353 = vmatprep.subr.mxu0 %v6685
  %7354 = vmatpush1.msra.mxu0 %v6684
  %7355 = vmatprep.subr.mxu0 %v6692
  %7356 = vmatpush1.msra.mxu0 %v6691
  %7357 = vmatprep.subr.mxu0 %v6699
  %7358 = vmatpush1.msra.mxu0 %v6698
  %7359 = vmatprep.subr.mxu0 %v6706
  %7360 = vmatpush1.msra.mxu0 %v6705
  %7361 = vmatprep.subr.mxu0 %v6713
  %7362 = vmatpush1.msra.mxu0 %v6712
  %7363 = vmatprep.subr.mxu0 %v6720
  %7364 = vmatpush1.msra.mxu0 %v6719
  %7365 = vmatprep.subr.mxu0 %v6727
  %7366 = vmatpush1.msra.mxu0 %v6726
  %7367 = vmatprep.subr.mxu0 0.0
  %7368 = vmatpush1.msra.mxu0 0.0
  %7369 = vmatprep.subr.mxu0 0.0
  %7370 = vmatpush1.msra.mxu0 0.0
  %7371 = vmatprep.subr.mxu0 0.0
  %7372 = vmatpush1.msra.mxu0 0.0
  %7373 = vmatprep.subr.mxu0 0.0
  %7374 = vmatpush1.msra.mxu0 0.0
  %7375 = vmatprep.subr.mxu0 0.0
  %7376 = vmatpush1.msra.mxu0 0.0
  %7377 = vmatprep.subr.mxu0 0.0
  %7378 = vmatpush1.msra.mxu0 0.0
  %7379 = vmatprep.subr.mxu0 0.0
  %7380 = vmatpush1.msra.mxu0 0.0
  %7381 = vmatprep.subr.mxu0 0.0
  %7382 = vmatpush1.msra.mxu0 0.0
  %7383 = vmatprep.subr.mxu0 0.0
  %7384 = vmatpush1.msra.mxu0 0.0
  %7385 = vmatprep.subr.mxu0 0.0
  %7386 = vmatpush1.msra.mxu0 0.0
  %7387 = vmatprep.subr.mxu0 0.0
  %7388 = vmatpush1.msra.mxu0 0.0
  %7389 = vmatprep.subr.mxu0 0.0
  %7390 = vmatpush1.msra.mxu0 0.0
  %7391 = vmatprep.subr.mxu0 0.0
  %7392 = vmatpush1.msra.mxu0 0.0
  %7393 = vmatprep.subr.mxu0 0.0
  %7394 = vmatpush1.msra.mxu0 0.0
  %7395 = vmatprep.subr.mxu0 0.0
  %7396 = vmatpush1.msra.mxu0 0.0
  %7397 = vmatprep.subr.mxu0 0.0
  %7398 = vmatpush1.msra.mxu0 0.0
  %7399 = vmatprep.subr.mxu0 0.0
  %7400 = vmatpush1.msra.mxu0 0.0
  %7401 = vmatprep.mubr.f32.mxu0 0.0
  %7402 = vmatmul.mubr.f32.gmra.mrb[0].mxu0 %v7201
  %v7403 = vpop.f32.mrb[0].mxu0
  %v7404 = vadd.f32 0.0, %v7403
  %v7405 = vpop.f32.mrb[0].mxu0
  %v7406 = vadd.f32 0.0, %v7405
  %7407 = vmatprep.mubr.f32.mxu0 0.0
  %7408 = vmatmul.mubr.f32.gmra.mrb[0].mxu0 %v7204
  %v7409 = vpop.f32.mrb[0].mxu0
  %v7410 = vadd.f32 0.0, %v7409
  %v7411 = vpop.f32.mrb[0].mxu0
  %v7412 = vadd.f32 0.0, %v7411
  %7413 = vmatprep.mubr.f32.mxu0 0.0
  %7414 = vmatmul.mubr.f32.gmra.mrb[0].mxu0 %v7207
  %v7415 = vpop.f32.mrb[0].mxu0
  %v7416 = vadd.f32 0.0, %v7415
  %v7417 = vpop.f32.mrb[0].mxu0
  %v7418 = vadd.f32 0.0, %v7417
  %7419 = vmatprep.mubr.f32.mxu0 0.0
  %7420 = vmatmul.mubr.f32.gmra.mrb[0].mxu0 %v7210
  %v7421 = vpop.f32.mrb[0].mxu0
  %v7422 = vadd.f32 0.0, %v7421
  %v7423 = vpop.f32.mrb[0].mxu0
  %v7424 = vadd.f32 0.0, %v7423
  %7425 = vmatprep.mubr.f32.mxu0 0.0
  %7426 = vmatmul.mubr.f32.gmra.mrb[0].mxu0 %v7213
  %v7427 = vpop.f32.mrb[0].mxu0
  %v7428 = vadd.f32 0.0, %v7427
  %v7429 = vpop.f32.mrb[0].mxu0
  %v7430 = vadd.f32 0.0, %v7429
  %7431 = vmatprep.mubr.f32.mxu0 0.0
  %7432 = vmatmul.mubr.f32.gmra.mrb[0].mxu0 %v7216
  %v7433 = vpop.f32.mrb[0].mxu0
  %v7434 = vadd.f32 0.0, %v7433
  %v7435 = vpop.f32.mrb[0].mxu0
  %v7436 = vadd.f32 0.0, %v7435
  %7437 = vmatprep.mubr.f32.mxu0 0.0
  %7438 = vmatmul.mubr.f32.gmra.mrb[0].mxu0 %v7219
  %v7439 = vpop.f32.mrb[0].mxu0
  %v7440 = vadd.f32 0.0, %v7439
  %v7441 = vpop.f32.mrb[0].mxu0
  %v7442 = vadd.f32 0.0, %v7441
  %7443 = vmatprep.mubr.f32.mxu0 0.0
  %7444 = vmatmul.mubr.f32.gmra.mrb[0].mxu0 %v7222
  %v7445 = vpop.f32.mrb[0].mxu0
  %v7446 = vadd.f32 0.0, %v7445
  %v7447 = vpop.f32.mrb[0].mxu0
  %v7448 = vadd.f32 0.0, %v7447
  %7449 = vdwg.mxu0
  %7450 = vmatprep.subr.mxu0 %v6631
  %7451 = vmatpush1.msra.mxu0 %v6630
  %7452 = vmatprep.subr.mxu0 %v6638
  %7453 = vmatpush1.msra.mxu0 %v6637
  %7454 = vmatprep.subr.mxu0 %v6645
  %7455 = vmatpush1.msra.mxu0 %v6644
  %7456 = vmatprep.subr.mxu0 %v6652
  %7457 = vmatpush1.msra.mxu0 %v6651
  %7458 = vmatprep.subr.mxu0 %v6659
  %7459 = vmatpush1.msra.mxu0 %v6658
  %7460 = vmatprep.subr.mxu0 %v6666
  %7461 = vmatpush1.msra.mxu0 %v6665
  %7462 = vmatprep.subr.mxu0 %v6673
  %7463 = vmatpush1.msra.mxu0 %v6672
  %7464 = vmatprep.subr.mxu0 %v6680
  %7465 = vmatpush1.msra.mxu0 %v6679
  %7466 = vmatprep.subr.mxu0 %v6687
  %7467 = vmatpush1.msra.mxu0 %v6686
  %7468 = vmatprep.subr.mxu0 %v6694
  %7469 = vmatpush1.msra.mxu0 %v6693
  %7470 = vmatprep.subr.mxu0 %v6701
  %7471 = vmatpush1.msra.mxu0 %v6700
  %7472 = vmatprep.subr.mxu0 %v6708
  %7473 = vmatpush1.msra.mxu0 %v6707
  %7474 = vmatprep.subr.mxu0 %v6715
  %7475 = vmatpush1.msra.mxu0 %v6714
  %7476 = vmatprep.subr.mxu0 %v6722
  %7477 = vmatpush1.msra.mxu0 %v6721
  %7478 = vmatprep.subr.mxu0 %v6729
  %7479 = vmatpush1.msra.mxu0 %v6728
  %7480 = vmatprep.subr.mxu0 0.0
  %7481 = vmatpush1.msra.mxu0 0.0
  %7482 = vmatprep.subr.mxu0 0.0
  %7483 = vmatpush1.msra.mxu0 0.0
  %7484 = vmatprep.subr.mxu0 0.0
  %7485 = vmatpush1.msra.mxu0 0.0
  %7486 = vmatprep.subr.mxu0 0.0
  %7487 = vmatpush1.msra.mxu0 0.0
  %7488 = vmatprep.subr.mxu0 0.0
  %7489 = vmatpush1.msra.mxu0 0.0
  %7490 = vmatprep.subr.mxu0 0.0
  %7491 = vmatpush1.msra.mxu0 0.0
  %7492 = vmatprep.subr.mxu0 0.0
  %7493 = vmatpush1.msra.mxu0 0.0
  %7494 = vmatprep.subr.mxu0 0.0
  %7495 = vmatpush1.msra.mxu0 0.0
  %7496 = vmatprep.subr.mxu0 0.0
  %7497 = vmatpush1.msra.mxu0 0.0
  %7498 = vmatprep.subr.mxu0 0.0
  %7499 = vmatpush1.msra.mxu0 0.0
  %7500 = vmatprep.subr.mxu0 0.0
  %7501 = vmatpush1.msra.mxu0 0.0
  %7502 = vmatprep.subr.mxu0 0.0
  %7503 = vmatpush1.msra.mxu0 0.0
  %7504 = vmatprep.subr.mxu0 0.0
  %7505 = vmatpush1.msra.mxu0 0.0
  %7506 = vmatprep.subr.mxu0 0.0
  %7507 = vmatpush1.msra.mxu0 0.0
  %7508 = vmatprep.subr.mxu0 0.0
  %7509 = vmatpush1.msra.mxu0 0.0
  %7510 = vmatprep.subr.mxu0 0.0
  %7511 = vmatpush1.msra.mxu0 0.0
  %7512 = vmatprep.subr.mxu0 0.0
  %7513 = vmatpush1.msra.mxu0 0.0
  %7514 = vmatprep.mubr.f32.mxu0 0.0
  %7515 = vmatmul.mubr.f32.gmra.mrb[0].mxu0 %v7201
  %v7516 = vpop.f32.mrb[0].mxu0
  %v7517 = vadd.f32 0.0, %v7516
  %v7518 = vpop.f32.mrb[0].mxu0
  %v7519 = vadd.f32 0.0, %v7518
  %7520 = vmatprep.mubr.f32.mxu0 0.0
  %7521 = vmatmul.mubr.f32.gmra.mrb[0].mxu0 %v7204
  %v7522 = vpop.f32.mrb[0].mxu0
  %v7523 = vadd.f32 0.0, %v7522
  %v7524 = vpop.f32.mrb[0].mxu0
  %v7525 = vadd.f32 0.0, %v7524
  %7526 = vmatprep.mubr.f32.mxu0 0.0
  %7527 = vmatmul.mubr.f32.gmra.mrb[0].mxu0 %v7207
  %v7528 = vpop.f32.mrb[0].mxu0
  %v7529 = vadd.f32 0.0, %v7528
  %v7530 = vpop.f32.mrb[0].mxu0
  %v7531 = vadd.f32 0.0, %v7530
  %7532 = vmatprep.mubr.f32.mxu0 0.0
  %7533 = vmatmul.mubr.f32.gmra.mrb[0].mxu0 %v7210
  %v7534 = vpop.f32.mrb[0].mxu0
  %v7535 = vadd.f32 0.0, %v7534
  %v7536 = vpop.f32.mrb[0].mxu0
  %v7537 = vadd.f32 0.0, %v7536
  %7538 = vmatprep.mubr.f32.mxu0 0.0
  %7539 = vmatmul.mubr.f32.gmra.mrb[0].mxu0 %v7213
  %v7540 = vpop.f32.mrb[0].mxu0
  %v7541 = vadd.f32 0.0, %v7540
  %v7542 = vpop.f32.mrb[0].mxu0
  %v7543 = vadd.f32 0.0, %v7542
  %7544 = vmatprep.mubr.f32.mxu0 0.0
  %7545 = vmatmul.mubr.f32.gmra.mrb[0].mxu0 %v7216
  %v7546 = vpop.f32.mrb[0].mxu0
  %v7547 = vadd.f32 0.0, %v7546
  %v7548 = vpop.f32.mrb[0].mxu0
  %v7549 = vadd.f32 0.0, %v7548
  %7550 = vmatprep.mubr.f32.mxu0 0.0
  %7551 = vmatmul.mubr.f32.gmra.mrb[0].mxu0 %v7219
  %v7552 = vpop.f32.mrb[0].mxu0
  %v7553 = vadd.f32 0.0, %v7552
  %v7554 = vpop.f32.mrb[0].mxu0
  %v7555 = vadd.f32 0.0, %v7554
  %7556 = vmatprep.mubr.f32.mxu0 0.0
  %7557 = vmatmul.mubr.f32.gmra.mrb[0].mxu0 %v7222
  %v7558 = vpop.f32.mrb[0].mxu0
  %v7559 = vadd.f32 0.0, %v7558
  %v7560 = vpop.f32.mrb[0].mxu0
  %v7561 = vadd.f32 0.0, %v7560
  %7562 = vdwg.mxu0
  %7563 = vmatprep.subr.mxu0 0.0
  %7564 = vmatpush1.msra.mxu0 %v6632
  %7565 = vmatprep.subr.mxu0 0.0
  %7566 = vmatpush1.msra.mxu0 %v6639
  %7567 = vmatprep.subr.mxu0 0.0
  %7568 = vmatpush1.msra.mxu0 %v6646
  %7569 = vmatprep.subr.mxu0 0.0
  %7570 = vmatpush1.msra.mxu0 %v6653
  %7571 = vmatprep.subr.mxu0 0.0
  %7572 = vmatpush1.msra.mxu0 %v6660
  %7573 = vmatprep.subr.mxu0 0.0
  %7574 = vmatpush1.msra.mxu0 %v6667
  %7575 = vmatprep.subr.mxu0 0.0
  %7576 = vmatpush1.msra.mxu0 %v6674
  %7577 = vmatprep.subr.mxu0 0.0
  %7578 = vmatpush1.msra.mxu0 %v6681
  %7579 = vmatprep.subr.mxu0 0.0
  %7580 = vmatpush1.msra.mxu0 %v6688
  %7581 = vmatprep.subr.mxu0 0.0
  %7582 = vmatpush1.msra.mxu0 %v6695
  %7583 = vmatprep.subr.mxu0 0.0
  %7584 = vmatpush1.msra.mxu0 %v6702
  %7585 = vmatprep.subr.mxu0 0.0
  %7586 = vmatpush1.msra.mxu0 %v6709
  %7587 = vmatprep.subr.mxu0 0.0
  %7588 = vmatpush1.msra.mxu0 %v6716
  %7589 = vmatprep.subr.mxu0 0.0
  %7590 = vmatpush1.msra.mxu0 %v6723
  %7591 = vmatprep.subr.mxu0 0.0
  %7592 = vmatpush1.msra.mxu0 %v6730
  %7593 = vmatprep.subr.mxu0 0.0
  %7594 = vmatpush1.msra.mxu0 0.0
  %7595 = vmatprep.subr.mxu0 0.0
  %7596 = vmatpush1.msra.mxu0 0.0
  %7597 = vmatprep.subr.mxu0 0.0
  %7598 = vmatpush1.msra.mxu0 0.0
  %7599 = vmatprep.subr.mxu0 0.0
  %7600 = vmatpush1.msra.mxu0 0.0
  %7601 = vmatprep.subr.mxu0 0.0
  %7602 = vmatpush1.msra.mxu0 0.0
  %7603 = vmatprep.subr.mxu0 0.0
  %7604 = vmatpush1.msra.mxu0 0.0
  %7605 = vmatprep.subr.mxu0 0.0
  %7606 = vmatpush1.msra.mxu0 0.0
  %7607 = vmatprep.subr.mxu0 0.0
  %7608 = vmatpush1.msra.mxu0 0.0
  %7609 = vmatprep.subr.mxu0 0.0
  %7610 = vmatpush1.msra.mxu0 0.0
  %7611 = vmatprep.subr.mxu0 0.0
  %7612 = vmatpush1.msra.mxu0 0.0
  %7613 = vmatprep.subr.mxu0 0.0
  %7614 = vmatpush1.msra.mxu0 0.0
  %7615 = vmatprep.subr.mxu0 0.0
  %7616 = vmatpush1.msra.mxu0 0.0
  %7617 = vmatprep.subr.mxu0 0.0
  %7618 = vmatpush1.msra.mxu0 0.0
  %7619 = vmatprep.subr.mxu0 0.0
  %7620 = vmatpush1.msra.mxu0 0.0
  %7621 = vmatprep.subr.mxu0 0.0
  %7622 = vmatpush1.msra.mxu0 0.0
  %7623 = vmatprep.subr.mxu0 0.0
  %7624 = vmatpush1.msra.mxu0 0.0
  %7625 = vmatprep.subr.mxu0 0.0
  %7626 = vmatpush1.msra.mxu0 0.0
  %7627 = vmatprep.mubr.f32.mxu0 0.0
  %7628 = vmatmul.mubr.f32.gmra.mrb[0].mxu0 %v7201
  %v7629 = vpop.f32.mrb[0].mxu0
  %v7630 = vadd.f32 0.0, %v7629
  %v7631 = vpop.f32.mrb[0].mxu0
  %7632 = vmatprep.mubr.f32.mxu0 0.0
  %7633 = vmatmul.mubr.f32.gmra.mrb[0].mxu0 %v7204
  %v7634 = vpop.f32.mrb[0].mxu0
  %v7635 = vadd.f32 0.0, %v7634
  %v7636 = vpop.f32.mrb[0].mxu0
  %7637 = vmatprep.mubr.f32.mxu0 0.0
  %7638 = vmatmul.mubr.f32.gmra.mrb[0].mxu0 %v7207
  %v7639 = vpop.f32.mrb[0].mxu0
  %v7640 = vadd.f32 0.0, %v7639
  %v7641 = vpop.f32.mrb[0].mxu0
  %7642 = vmatprep.mubr.f32.mxu0 0.0
  %7643 = vmatmul.mubr.f32.gmra.mrb[0].mxu0 %v7210
  %v7644 = vpop.f32.mrb[0].mxu0
  %v7645 = vadd.f32 0.0, %v7644
  %v7646 = vpop.f32.mrb[0].mxu0
  %7647 = vmatprep.mubr.f32.mxu0 0.0
  %7648 = vmatmul.mubr.f32.gmra.mrb[0].mxu0 %v7213
  %v7649 = vpop.f32.mrb[0].mxu0
  %v7650 = vadd.f32 0.0, %v7649
  %v7651 = vpop.f32.mrb[0].mxu0
  %7652 = vmatprep.mubr.f32.mxu0 0.0
  %7653 = vmatmul.mubr.f32.gmra.mrb[0].mxu0 %v7216
  %v7654 = vpop.f32.mrb[0].mxu0
  %v7655 = vadd.f32 0.0, %v7654
  %v7656 = vpop.f32.mrb[0].mxu0
  %7657 = vmatprep.mubr.f32.mxu0 0.0
  %7658 = vmatmul.mubr.f32.gmra.mrb[0].mxu0 %v7219
  %v7659 = vpop.f32.mrb[0].mxu0
  %v7660 = vadd.f32 0.0, %v7659
  %v7661 = vpop.f32.mrb[0].mxu0
  %7662 = vmatprep.mubr.f32.mxu0 0.0
  %7663 = vmatmul.mubr.f32.gmra.mrb[0].mxu0 %v7222
  %v7664 = vpop.f32.mrb[0].mxu0
  %v7665 = vadd.f32 0.0, %v7664
  %v7666 = vpop.f32.mrb[0].mxu0
  %7667 = vdwg.mxu0
  %7676 = vrot.lane.b32.xlu0 %v7293, 96
  %v7677 = vpop.permute.xlu0 %7676
  %7678 = vrot.lane.b32.xlu0 %v7299, 96
  %v7679 = vpop.permute.xlu0 %7678
  %7680 = vrot.lane.b32.xlu0 %v7305, 96
  %v7681 = vpop.permute.xlu0 %7680
  %7682 = vrot.lane.b32.xlu0 %v7311, 96
  %v7683 = vpop.permute.xlu0 %7682
  %7684 = vrot.lane.b32.xlu0 %v7317, 96
  %v7685 = vpop.permute.xlu0 %7684
  %7686 = vrot.lane.b32.xlu0 %v7323, 96
  %v7687 = vpop.permute.xlu0 %7686
  %7688 = vrot.lane.b32.xlu0 %v7329, 96
  %v7689 = vpop.permute.xlu0 %7688
  %7690 = vrot.lane.b32.xlu0 %v7335, 96
  %v7691 = vpop.permute.xlu0 %7690
  %v7700 = vadd.f32 %v6823, %v7677
  %v7701 = vadd.f32 %v6829, %v7679
  %v7702 = vadd.f32 %v6835, %v7681
  %v7703 = vadd.f32 %v6841, %v7683
  %v7704 = vadd.f32 %v6847, %v7685
  %v7705 = vadd.f32 %v6853, %v7687
  %v7706 = vadd.f32 %v6859, %v7689
  %v7707 = vadd.f32 %v6865, %v7691
  %v7724 = vrot.slane %v6936, 1
  %v7725 = vrot.slane %v6938, 1
  %v7726 = vrot.slane %v6942, 1
  %v7727 = vrot.slane %v6944, 1
  %v7728 = vrot.slane %v6948, 1
  %v7729 = vrot.slane %v6950, 1
  %v7730 = vrot.slane %v6954, 1
  %v7731 = vrot.slane %v6956, 1
  %v7732 = vrot.slane %v6960, 1
  %v7733 = vrot.slane %v6962, 1
  %v7734 = vrot.slane %v6966, 1
  %v7735 = vrot.slane %v6968, 1
  %v7736 = vrot.slane %v6972, 1
  %v7737 = vrot.slane %v6974, 1
  %v7738 = vrot.slane %v6978, 1
  %v7739 = vrot.slane %v6980, 1
  %7740 = vrot.lane.b32.xlu0 %v7724, 64
  %v7741 = vpop.permute.xlu0 %7740
  %7742 = vrot.lane.b32.xlu0 %v7725, 64
  %v7743 = vpop.permute.xlu0 %7742
  %7744 = vrot.lane.b32.xlu0 %v7726, 64
  %v7745 = vpop.permute.xlu0 %7744
  %7746 = vrot.lane.b32.xlu0 %v7727, 64
  %v7747 = vpop.permute.xlu0 %7746
  %7748 = vrot.lane.b32.xlu0 %v7728, 64
  %v7749 = vpop.permute.xlu0 %7748
  %7750 = vrot.lane.b32.xlu0 %v7729, 64
  %v7751 = vpop.permute.xlu0 %7750
  %7752 = vrot.lane.b32.xlu0 %v7730, 64
  %v7753 = vpop.permute.xlu0 %7752
  %7754 = vrot.lane.b32.xlu0 %v7731, 64
  %v7755 = vpop.permute.xlu0 %7754
  %7756 = vrot.lane.b32.xlu0 %v7732, 64
  %v7757 = vpop.permute.xlu0 %7756
  %7758 = vrot.lane.b32.xlu0 %v7733, 64
  %v7759 = vpop.permute.xlu0 %7758
  %7760 = vrot.lane.b32.xlu0 %v7734, 64
  %v7761 = vpop.permute.xlu0 %7760
  %7762 = vrot.lane.b32.xlu0 %v7735, 64
  %v7763 = vpop.permute.xlu0 %7762
  %7764 = vrot.lane.b32.xlu0 %v7736, 64
  %v7765 = vpop.permute.xlu0 %7764
  %7766 = vrot.lane.b32.xlu0 %v7737, 64
  %v7767 = vpop.permute.xlu0 %7766
  %7768 = vrot.lane.b32.xlu0 %v7738, 64
  %v7769 = vpop.permute.xlu0 %7768
  %7770 = vrot.lane.b32.xlu0 %v7739, 64
  %v7771 = vpop.permute.xlu0 %7770
  %v7772 = vsel %vm3784, %v7741, %v7743
  %v7773 = vsel %vm3784, %v7745, %v7747
  %v7774 = vsel %vm3784, %v7749, %v7751
  %v7775 = vsel %vm3784, %v7753, %v7755
  %v7776 = vsel %vm3784, %v7757, %v7759
  %v7777 = vsel %vm3784, %v7761, %v7763
  %v7778 = vsel %vm3784, %v7765, %v7767
  %v7779 = vsel %vm3784, %v7769, %v7771
  %v7788 = vadd.f32 %v7700, %v7772
  %v7789 = vadd.f32 %v7701, %v7773
  %v7790 = vadd.f32 %v7702, %v7774
  %v7791 = vadd.f32 %v7703, %v7775
  %v7792 = vadd.f32 %v7704, %v7776
  %v7793 = vadd.f32 %v7705, %v7777
  %v7794 = vadd.f32 %v7706, %v7778
  %v7795 = vadd.f32 %v7707, %v7779
  %v7812 = vrot.slane %v7406, 1
  %v7813 = vrot.slane %v7517, 1
  %v7814 = vrot.slane %v7412, 1
  %v7815 = vrot.slane %v7523, 1
  %v7816 = vrot.slane %v7418, 1
  %v7817 = vrot.slane %v7529, 1
  %v7818 = vrot.slane %v7424, 1
  %v7819 = vrot.slane %v7535, 1
  %v7820 = vrot.slane %v7430, 1
  %v7821 = vrot.slane %v7541, 1
  %v7822 = vrot.slane %v7436, 1
  %v7823 = vrot.slane %v7547, 1
  %v7824 = vrot.slane %v7442, 1
  %v7825 = vrot.slane %v7553, 1
  %v7826 = vrot.slane %v7448, 1
  %v7827 = vrot.slane %v7559, 1
  %7828 = vrot.lane.b32.xlu0 %v7812, 32
  %v7829 = vpop.permute.xlu0 %7828
  %7830 = vrot.lane.b32.xlu0 %v7813, 32
  %v7831 = vpop.permute.xlu0 %7830
  %7832 = vrot.lane.b32.xlu0 %v7814, 32
  %v7833 = vpop.permute.xlu0 %7832
  %7834 = vrot.lane.b32.xlu0 %v7815, 32
  %v7835 = vpop.permute.xlu0 %7834
  %7836 = vrot.lane.b32.xlu0 %v7816, 32
  %v7837 = vpop.permute.xlu0 %7836
  %7838 = vrot.lane.b32.xlu0 %v7817, 32
  %v7839 = vpop.permute.xlu0 %7838
  %7840 = vrot.lane.b32.xlu0 %v7818, 32
  %v7841 = vpop.permute.xlu0 %7840
  %7842 = vrot.lane.b32.xlu0 %v7819, 32
  %v7843 = vpop.permute.xlu0 %7842
  %7844 = vrot.lane.b32.xlu0 %v7820, 32
  %v7845 = vpop.permute.xlu0 %7844
  %7846 = vrot.lane.b32.xlu0 %v7821, 32
  %v7847 = vpop.permute.xlu0 %7846
  %7848 = vrot.lane.b32.xlu0 %v7822, 32
  %v7849 = vpop.permute.xlu0 %7848
  %7850 = vrot.lane.b32.xlu0 %v7823, 32
  %v7851 = vpop.permute.xlu0 %7850
  %7852 = vrot.lane.b32.xlu0 %v7824, 32
  %v7853 = vpop.permute.xlu0 %7852
  %7854 = vrot.lane.b32.xlu0 %v7825, 32
  %v7855 = vpop.permute.xlu0 %7854
  %7856 = vrot.lane.b32.xlu0 %v7826, 32
  %v7857 = vpop.permute.xlu0 %7856
  %7858 = vrot.lane.b32.xlu0 %v7827, 32
  %v7859 = vpop.permute.xlu0 %7858
  %v7860 = vsel %vm3573, %v7829, %v7831
  %v7861 = vsel %vm3573, %v7833, %v7835
  %v7862 = vsel %vm3573, %v7837, %v7839
  %v7863 = vsel %vm3573, %v7841, %v7843
  %v7864 = vsel %vm3573, %v7845, %v7847
  %v7865 = vsel %vm3573, %v7849, %v7851
  %v7866 = vsel %vm3573, %v7853, %v7855
  %v7867 = vsel %vm3573, %v7857, %v7859
  %v7876 = vadd.f32 %v7788, %v7860
  %v7877 = vadd.f32 %v7789, %v7861
  %v7878 = vadd.f32 %v7790, %v7862
  %v7879 = vadd.f32 %v7791, %v7863
  %v7880 = vadd.f32 %v7792, %v7864
  %v7881 = vadd.f32 %v7793, %v7865
  %v7882 = vadd.f32 %v7794, %v7866
  %v7883 = vadd.f32 %v7795, %v7867
  %v7892 = vrot.slane %v7051, 2
  %v7893 = vrot.slane %v7057, 2
  %v7894 = vrot.slane %v7063, 2
  %v7895 = vrot.slane %v7069, 2
  %v7896 = vrot.slane %v7075, 2
  %v7897 = vrot.slane %v7081, 2
  %v7898 = vrot.slane %v7087, 2
  %v7899 = vrot.slane %v7093, 2
  %v7908 = vadd.f32 %v7876, %v7892
  %v7909 = vadd.f32 %v7877, %v7893
  %v7910 = vadd.f32 %v7878, %v7894
  %v7911 = vadd.f32 %v7879, %v7895
  %v7912 = vadd.f32 %v7880, %v7896
  %v7913 = vadd.f32 %v7881, %v7897
  %v7914 = vadd.f32 %v7882, %v7898
  %v7915 = vadd.f32 %v7883, %v7899
  %7924 = vrot.lane.b32.xlu0 %v7404, 96
  %v7925 = vpop.permute.xlu0 %7924
  %7926 = vrot.lane.b32.xlu0 %v7410, 96
  %v7927 = vpop.permute.xlu0 %7926
  %7928 = vrot.lane.b32.xlu0 %v7416, 96
  %v7929 = vpop.permute.xlu0 %7928
  %7930 = vrot.lane.b32.xlu0 %v7422, 96
  %v7931 = vpop.permute.xlu0 %7930
  %7932 = vrot.lane.b32.xlu0 %v7428, 96
  %v7933 = vpop.permute.xlu0 %7932
  %7934 = vrot.lane.b32.xlu0 %v7434, 96
  %v7935 = vpop.permute.xlu0 %7934
  %7936 = vrot.lane.b32.xlu0 %v7440, 96
  %v7937 = vpop.permute.xlu0 %7936
  %7938 = vrot.lane.b32.xlu0 %v7446, 96
  %v7939 = vpop.permute.xlu0 %7938
  %vm7940 = vcmask 785408
  %v7941 = vsel %vm7940, %v7677, %v7925
  %v7942 = vsel %vm7940, %v7679, %v7927
  %v7943 = vsel %vm7940, %v7681, %v7929
  %v7944 = vsel %vm7940, %v7683, %v7931
  %v7945 = vsel %vm7940, %v7685, %v7933
  %v7946 = vsel %vm7940, %v7687, %v7935
  %v7947 = vsel %vm7940, %v7689, %v7937
  %v7948 = vsel %vm7940, %v7691, %v7939
  %v7965 = vadd.f32 %v6823, %v7941
  %v7966 = vadd.f32 %v6825, %v7925
  %v7967 = vadd.f32 %v6829, %v7942
  %v7968 = vadd.f32 %v6831, %v7927
  %v7969 = vadd.f32 %v6835, %v7943
  %v7970 = vadd.f32 %v6837, %v7929
  %v7971 = vadd.f32 %v6841, %v7944
  %v7972 = vadd.f32 %v6843, %v7931
  %v7973 = vadd.f32 %v6847, %v7945
  %v7974 = vadd.f32 %v6849, %v7933
  %v7975 = vadd.f32 %v6853, %v7946
  %v7976 = vadd.f32 %v6855, %v7935
  %v7977 = vadd.f32 %v6859, %v7947
  %v7978 = vadd.f32 %v6861, %v7937
  %v7979 = vadd.f32 %v6865, %v7948
  %v7980 = vadd.f32 %v6867, %v7939
  %v7989 = vadd.f32 %v7965, %v7743
  %v7990 = vadd.f32 %v7966, %v7743
  %v7991 = vadd.f32 %v7967, %v7747
  %v7992 = vadd.f32 %v7968, %v7747
  %v7993 = vadd.f32 %v7969, %v7751
  %v7994 = vadd.f32 %v7970, %v7751
  %v7995 = vadd.f32 %v7971, %v7755
  %v7996 = vadd.f32 %v7972, %v7755
  %v7997 = vadd.f32 %v7973, %v7759
  %v7998 = vadd.f32 %v7974, %v7759
  %v7999 = vadd.f32 %v7975, %v7763
  %v8000 = vadd.f32 %v7976, %v7763
  %v8001 = vadd.f32 %v7977, %v7767
  %v8002 = vadd.f32 %v7978, %v7767
  %v8003 = vadd.f32 %v7979, %v7771
  %v8004 = vadd.f32 %v7980, %v7771
  %v8013 = vadd.f32 %v7989, %v7831
  %v8014 = vadd.f32 %v7990, %v7831
  %v8015 = vadd.f32 %v7991, %v7835
  %v8016 = vadd.f32 %v7992, %v7835
  %v8017 = vadd.f32 %v7993, %v7839
  %v8018 = vadd.f32 %v7994, %v7839
  %v8019 = vadd.f32 %v7995, %v7843
  %v8020 = vadd.f32 %v7996, %v7843
  %v8021 = vadd.f32 %v7997, %v7847
  %v8022 = vadd.f32 %v7998, %v7847
  %v8023 = vadd.f32 %v7999, %v7851
  %v8024 = vadd.f32 %v8000, %v7851
  %v8025 = vadd.f32 %v8001, %v7855
  %v8026 = vadd.f32 %v8002, %v7855
  %v8027 = vadd.f32 %v8003, %v7859
  %v8028 = vadd.f32 %v8004, %v7859
  %v8037 = vrot.slane %v7162, 2
  %v8038 = vrot.slane %v7167, 2
  %v8039 = vrot.slane %v7172, 2
  %v8040 = vrot.slane %v7177, 2
  %v8041 = vrot.slane %v7182, 2
  %v8042 = vrot.slane %v7187, 2
  %v8043 = vrot.slane %v7192, 2
  %v8044 = vrot.slane %v7197, 2
  %v8053 = vadd.f32 %v8013, %v7892
  %v8054 = vadd.f32 %v8014, %v8037
  %v8055 = vadd.f32 %v8015, %v7893
  %v8056 = vadd.f32 %v8016, %v8038
  %v8057 = vadd.f32 %v8017, %v7894
  %v8058 = vadd.f32 %v8018, %v8039
  %v8059 = vadd.f32 %v8019, %v7895
  %v8060 = vadd.f32 %v8020, %v8040
  %v8061 = vadd.f32 %v8021, %v7896
  %v8062 = vadd.f32 %v8022, %v8041
  %v8063 = vadd.f32 %v8023, %v7897
  %v8064 = vadd.f32 %v8024, %v8042
  %v8065 = vadd.f32 %v8025, %v7898
  %v8066 = vadd.f32 %v8026, %v8043
  %v8067 = vadd.f32 %v8027, %v7899
  %v8068 = vadd.f32 %v8028, %v8044
  %v8077 = vrot.slane %v6825, 1
  %v8078 = vrot.slane %v6831, 1
  %v8079 = vrot.slane %v6837, 1
  %v8080 = vrot.slane %v6843, 1
  %v8081 = vrot.slane %v6849, 1
  %v8082 = vrot.slane %v6855, 1
  %v8083 = vrot.slane %v6861, 1
  %v8084 = vrot.slane %v6867, 1
  %8085 = vrot.lane.b32.xlu0 %v8077, 96
  %v8086 = vpop.permute.xlu0 %8085
  %8087 = vrot.lane.b32.xlu0 %v8078, 96
  %v8088 = vpop.permute.xlu0 %8087
  %8089 = vrot.lane.b32.xlu0 %v8079, 96
  %v8090 = vpop.permute.xlu0 %8089
  %8091 = vrot.lane.b32.xlu0 %v8080, 96
  %v8092 = vpop.permute.xlu0 %8091
  %8093 = vrot.lane.b32.xlu0 %v8081, 96
  %v8094 = vpop.permute.xlu0 %8093
  %8095 = vrot.lane.b32.xlu0 %v8082, 96
  %v8096 = vpop.permute.xlu0 %8095
  %8097 = vrot.lane.b32.xlu0 %v8083, 96
  %v8098 = vpop.permute.xlu0 %8097
  %8099 = vrot.lane.b32.xlu0 %v8084, 96
  %v8100 = vpop.permute.xlu0 %8099
  %v8109 = vadd.f32 %v7291, %v8086
  %v8110 = vadd.f32 %v7297, %v8088
  %v8111 = vadd.f32 %v7303, %v8090
  %v8112 = vadd.f32 %v7309, %v8092
  %v8113 = vadd.f32 %v7315, %v8094
  %v8114 = vadd.f32 %v7321, %v8096
  %v8115 = vadd.f32 %v7327, %v8098
  %v8116 = vadd.f32 %v7333, %v8100
  %v8117 = vrot.slane %v7404, 1
  %v8118 = vrot.slane %v7410, 1
  %v8119 = vrot.slane %v7416, 1
  %v8120 = vrot.slane %v7422, 1
  %v8121 = vrot.slane %v7428, 1
  %v8122 = vrot.slane %v7434, 1
  %v8123 = vrot.slane %v7440, 1
  %v8124 = vrot.slane %v7446, 1
  %8125 = vrot.lane.b32.xlu0 %v8117, 64
  %v8126 = vpop.permute.xlu0 %8125
  %8127 = vrot.lane.b32.xlu0 %v7812, 64
  %v8128 = vpop.permute.xlu0 %8127
  %8129 = vrot.lane.b32.xlu0 %v8118, 64
  %v8130 = vpop.permute.xlu0 %8129
  %8131 = vrot.lane.b32.xlu0 %v7814, 64
  %v8132 = vpop.permute.xlu0 %8131
  %8133 = vrot.lane.b32.xlu0 %v8119, 64
  %v8134 = vpop.permute.xlu0 %8133
  %8135 = vrot.lane.b32.xlu0 %v7816, 64
  %v8136 = vpop.permute.xlu0 %8135
  %8137 = vrot.lane.b32.xlu0 %v8120, 64
  %v8138 = vpop.permute.xlu0 %8137
  %8139 = vrot.lane.b32.xlu0 %v7818, 64
  %v8140 = vpop.permute.xlu0 %8139
  %8141 = vrot.lane.b32.xlu0 %v8121, 64
  %v8142 = vpop.permute.xlu0 %8141
  %8143 = vrot.lane.b32.xlu0 %v7820, 64
  %v8144 = vpop.permute.xlu0 %8143
  %8145 = vrot.lane.b32.xlu0 %v8122, 64
  %v8146 = vpop.permute.xlu0 %8145
  %8147 = vrot.lane.b32.xlu0 %v7822, 64
  %v8148 = vpop.permute.xlu0 %8147
  %8149 = vrot.lane.b32.xlu0 %v8123, 64
  %v8150 = vpop.permute.xlu0 %8149
  %8151 = vrot.lane.b32.xlu0 %v7824, 64
  %v8152 = vpop.permute.xlu0 %8151
  %8153 = vrot.lane.b32.xlu0 %v8124, 64
  %v8154 = vpop.permute.xlu0 %8153
  %8155 = vrot.lane.b32.xlu0 %v7826, 64
  %v8156 = vpop.permute.xlu0 %8155
  %v8157 = vsel %vm3784, %v8126, %v8128
  %v8158 = vsel %vm3784, %v8130, %v8132
  %v8159 = vsel %vm3784, %v8134, %v8136
  %v8160 = vsel %vm3784, %v8138, %v8140
  %v8161 = vsel %vm3784, %v8142, %v8144
  %v8162 = vsel %vm3784, %v8146, %v8148
  %v8163 = vsel %vm3784, %v8150, %v8152
  %v8164 = vsel %vm3784, %v8154, %v8156
  %v8173 = vadd.f32 %v8109, %v8157
  %v8174 = vadd.f32 %v8110, %v8158
  %v8175 = vadd.f32 %v8111, %v8159
  %v8176 = vadd.f32 %v8112, %v8160
  %v8177 = vadd.f32 %v8113, %v8161
  %v8178 = vadd.f32 %v8114, %v8162
  %v8179 = vadd.f32 %v8115, %v8163
  %v8180 = vadd.f32 %v8116, %v8164
  %v8189 = vrot.slane %v6938, 2
  %v8190 = vrot.slane %v7049, 2
  %v8191 = vrot.slane %v6944, 2
  %v8192 = vrot.slane %v7055, 2
  %v8193 = vrot.slane %v6950, 2
  %v8194 = vrot.slane %v7061, 2
  %v8195 = vrot.slane %v6956, 2
  %v8196 = vrot.slane %v7067, 2
  %v8197 = vrot.slane %v6962, 2
  %v8198 = vrot.slane %v7073, 2
  %v8199 = vrot.slane %v6968, 2
  %v8200 = vrot.slane %v7079, 2
  %v8201 = vrot.slane %v6974, 2
  %v8202 = vrot.slane %v7085, 2
  %v8203 = vrot.slane %v6980, 2
  %v8204 = vrot.slane %v7091, 2
  %8205 = vrot.lane.b32.xlu0 %v8189, 32
  %v8206 = vpop.permute.xlu0 %8205
  %8207 = vrot.lane.b32.xlu0 %v8190, 32
  %v8208 = vpop.permute.xlu0 %8207
  %8209 = vrot.lane.b32.xlu0 %v8191, 32
  %v8210 = vpop.permute.xlu0 %8209
  %8211 = vrot.lane.b32.xlu0 %v8192, 32
  %v8212 = vpop.permute.xlu0 %8211
  %8213 = vrot.lane.b32.xlu0 %v8193, 32
  %v8214 = vpop.permute.xlu0 %8213
  %8215 = vrot.lane.b32.xlu0 %v8194, 32
  %v8216 = vpop.permute.xlu0 %8215
  %8217 = vrot.lane.b32.xlu0 %v8195, 32
  %v8218 = vpop.permute.xlu0 %8217
  %8219 = vrot.lane.b32.xlu0 %v8196, 32
  %v8220 = vpop.permute.xlu0 %8219
  %8221 = vrot.lane.b32.xlu0 %v8197, 32
  %v8222 = vpop.permute.xlu0 %8221
  %8223 = vrot.lane.b32.xlu0 %v8198, 32
  %v8224 = vpop.permute.xlu0 %8223
  %8225 = vrot.lane.b32.xlu0 %v8199, 32
  %v8226 = vpop.permute.xlu0 %8225
  %8227 = vrot.lane.b32.xlu0 %v8200, 32
  %v8228 = vpop.permute.xlu0 %8227
  %8229 = vrot.lane.b32.xlu0 %v8201, 32
  %v8230 = vpop.permute.xlu0 %8229
  %8231 = vrot.lane.b32.xlu0 %v8202, 32
  %v8232 = vpop.permute.xlu0 %8231
  %8233 = vrot.lane.b32.xlu0 %v8203, 32
  %v8234 = vpop.permute.xlu0 %8233
  %8235 = vrot.lane.b32.xlu0 %v8204, 32
  %v8236 = vpop.permute.xlu0 %8235
  %v8237 = vsel %vm3573, %v8206, %v8208
  %v8238 = vsel %vm3573, %v8210, %v8212
  %v8239 = vsel %vm3573, %v8214, %v8216
  %v8240 = vsel %vm3573, %v8218, %v8220
  %v8241 = vsel %vm3573, %v8222, %v8224
  %v8242 = vsel %vm3573, %v8226, %v8228
  %v8243 = vsel %vm3573, %v8230, %v8232
  %v8244 = vsel %vm3573, %v8234, %v8236
  %v8253 = vadd.f32 %v8173, %v8237
  %v8254 = vadd.f32 %v8174, %v8238
  %v8255 = vadd.f32 %v8175, %v8239
  %v8256 = vadd.f32 %v8176, %v8240
  %v8257 = vadd.f32 %v8177, %v8241
  %v8258 = vadd.f32 %v8178, %v8242
  %v8259 = vadd.f32 %v8179, %v8243
  %v8260 = vadd.f32 %v8180, %v8244
  %v8269 = vrot.slane %v7519, 2
  %v8270 = vrot.slane %v7525, 2
  %v8271 = vrot.slane %v7531, 2
  %v8272 = vrot.slane %v7537, 2
  %v8273 = vrot.slane %v7543, 2
  %v8274 = vrot.slane %v7549, 2
  %v8275 = vrot.slane %v7555, 2
  %v8276 = vrot.slane %v7561, 2
  %v8285 = vadd.f32 %v8253, %v8269
  %v8286 = vadd.f32 %v8254, %v8270
  %v8287 = vadd.f32 %v8255, %v8271
  %v8288 = vadd.f32 %v8256, %v8272
  %v8289 = vadd.f32 %v8257, %v8273
  %v8290 = vadd.f32 %v8258, %v8274
  %v8291 = vadd.f32 %v8259, %v8275
  %v8292 = vadd.f32 %v8260, %v8276
  %8293 = vrot.lane.b32.xlu0 %v7724, 96
  %v8294 = vpop.permute.xlu0 %8293
  %8295 = vrot.lane.b32.xlu0 %v7726, 96
  %v8296 = vpop.permute.xlu0 %8295
  %8297 = vrot.lane.b32.xlu0 %v7728, 96
  %v8298 = vpop.permute.xlu0 %8297
  %8299 = vrot.lane.b32.xlu0 %v7730, 96
  %v8300 = vpop.permute.xlu0 %8299
  %8301 = vrot.lane.b32.xlu0 %v7732, 96
  %v8302 = vpop.permute.xlu0 %8301
  %8303 = vrot.lane.b32.xlu0 %v7734, 96
  %v8304 = vpop.permute.xlu0 %8303
  %8305 = vrot.lane.b32.xlu0 %v7736, 96
  %v8306 = vpop.permute.xlu0 %8305
  %8307 = vrot.lane.b32.xlu0 %v7738, 96
  %v8308 = vpop.permute.xlu0 %8307
  %v8309 = vsel %vm7940, %v8086, %v8294
  %v8310 = vsel %vm7940, %v8088, %v8296
  %v8311 = vsel %vm7940, %v8090, %v8298
  %v8312 = vsel %vm7940, %v8092, %v8300
  %v8313 = vsel %vm7940, %v8094, %v8302
  %v8314 = vsel %vm7940, %v8096, %v8304
  %v8315 = vsel %vm7940, %v8098, %v8306
  %v8316 = vsel %vm7940, %v8100, %v8308
  %v8333 = vadd.f32 %v7291, %v8309
  %v8334 = vadd.f32 %v7293, %v8294
  %v8335 = vadd.f32 %v7297, %v8310
  %v8336 = vadd.f32 %v7299, %v8296
  %v8337 = vadd.f32 %v7303, %v8311
  %v8338 = vadd.f32 %v7305, %v8298
  %v8339 = vadd.f32 %v7309, %v8312
  %v8340 = vadd.f32 %v7311, %v8300
  %v8341 = vadd.f32 %v7315, %v8313
  %v8342 = vadd.f32 %v7317, %v8302
  %v8343 = vadd.f32 %v7321, %v8314
  %v8344 = vadd.f32 %v7323, %v8304
  %v8345 = vadd.f32 %v7327, %v8315
  %v8346 = vadd.f32 %v7329, %v8306
  %v8347 = vadd.f32 %v7333, %v8316
  %v8348 = vadd.f32 %v7335, %v8308
  %v8357 = vadd.f32 %v8333, %v8128
  %v8358 = vadd.f32 %v8334, %v8128
  %v8359 = vadd.f32 %v8335, %v8132
  %v8360 = vadd.f32 %v8336, %v8132
  %v8361 = vadd.f32 %v8337, %v8136
  %v8362 = vadd.f32 %v8338, %v8136
  %v8363 = vadd.f32 %v8339, %v8140
  %v8364 = vadd.f32 %v8340, %v8140
  %v8365 = vadd.f32 %v8341, %v8144
  %v8366 = vadd.f32 %v8342, %v8144
  %v8367 = vadd.f32 %v8343, %v8148
  %v8368 = vadd.f32 %v8344, %v8148
  %v8369 = vadd.f32 %v8345, %v8152
  %v8370 = vadd.f32 %v8346, %v8152
  %v8371 = vadd.f32 %v8347, %v8156
  %v8372 = vadd.f32 %v8348, %v8156
  %v8381 = vadd.f32 %v8357, %v8208
  %v8382 = vadd.f32 %v8358, %v8208
  %v8383 = vadd.f32 %v8359, %v8212
  %v8384 = vadd.f32 %v8360, %v8212
  %v8385 = vadd.f32 %v8361, %v8216
  %v8386 = vadd.f32 %v8362, %v8216
  %v8387 = vadd.f32 %v8363, %v8220
  %v8388 = vadd.f32 %v8364, %v8220
  %v8389 = vadd.f32 %v8365, %v8224
  %v8390 = vadd.f32 %v8366, %v8224
  %v8391 = vadd.f32 %v8367, %v8228
  %v8392 = vadd.f32 %v8368, %v8228
  %v8393 = vadd.f32 %v8369, %v8232
  %v8394 = vadd.f32 %v8370, %v8232
  %v8395 = vadd.f32 %v8371, %v8236
  %v8396 = vadd.f32 %v8372, %v8236
  %v8405 = vrot.slane %v7630, 2
  %v8406 = vrot.slane %v7635, 2
  %v8407 = vrot.slane %v7640, 2
  %v8408 = vrot.slane %v7645, 2
  %v8409 = vrot.slane %v7650, 2
  %v8410 = vrot.slane %v7655, 2
  %v8411 = vrot.slane %v7660, 2
  %v8412 = vrot.slane %v7665, 2
  %v8421 = vadd.f32 %v8381, %v8269
  %v8422 = vadd.f32 %v8382, %v8405
  %v8423 = vadd.f32 %v8383, %v8270
  %v8424 = vadd.f32 %v8384, %v8406
  %v8425 = vadd.f32 %v8385, %v8271
  %v8426 = vadd.f32 %v8386, %v8407
  %v8427 = vadd.f32 %v8387, %v8272
  %v8428 = vadd.f32 %v8388, %v8408
  %v8429 = vadd.f32 %v8389, %v8273
  %v8430 = vadd.f32 %v8390, %v8409
  %v8431 = vadd.f32 %v8391, %v8274
  %v8432 = vadd.f32 %v8392, %v8410
  %v8433 = vadd.f32 %v8393, %v8275
  %v8434 = vadd.f32 %v8394, %v8411
  %v8435 = vadd.f32 %v8395, %v8276
  %v8436 = vadd.f32 %v8396, %v8412
  %8453 = vrot.lane.b32.xlu0 %v8053, 48
  %v8454 = vpop.permute.xlu0 %8453
  %8455 = vrot.lane.b32.xlu0 %v8054, 48
  %v8456 = vpop.permute.xlu0 %8455
  %8457 = vrot.lane.b32.xlu0 %v8055, 48
  %v8458 = vpop.permute.xlu0 %8457
  %8459 = vrot.lane.b32.xlu0 %v8056, 48
  %v8460 = vpop.permute.xlu0 %8459
  %8461 = vrot.lane.b32.xlu0 %v8057, 48
  %v8462 = vpop.permute.xlu0 %8461
  %8463 = vrot.lane.b32.xlu0 %v8058, 48
  %v8464 = vpop.permute.xlu0 %8463
  %8465 = vrot.lane.b32.xlu0 %v8059, 48
  %v8466 = vpop.permute.xlu0 %8465
  %8467 = vrot.lane.b32.xlu0 %v8060, 48
  %v8468 = vpop.permute.xlu0 %8467
  %8469 = vrot.lane.b32.xlu0 %v8061, 48
  %v8470 = vpop.permute.xlu0 %8469
  %8471 = vrot.lane.b32.xlu0 %v8062, 48
  %v8472 = vpop.permute.xlu0 %8471
  %8473 = vrot.lane.b32.xlu0 %v8063, 48
  %v8474 = vpop.permute.xlu0 %8473
  %8475 = vrot.lane.b32.xlu0 %v8064, 48
  %v8476 = vpop.permute.xlu0 %8475
  %8477 = vrot.lane.b32.xlu0 %v8065, 48
  %v8478 = vpop.permute.xlu0 %8477
  %8479 = vrot.lane.b32.xlu0 %v8066, 48
  %v8480 = vpop.permute.xlu0 %8479
  %8481 = vrot.lane.b32.xlu0 %v8067, 48
  %v8482 = vpop.permute.xlu0 %8481
  %8483 = vrot.lane.b32.xlu0 %v8068, 48
  %v8484 = vpop.permute.xlu0 %8483
  %v8485 = vsel %vm3646, %v8454, %v8456
  %v8486 = vsel %vm3646, %v8458, %v8460
  %v8487 = vsel %vm3646, %v8462, %v8464
  %v8488 = vsel %vm3646, %v8466, %v8468
  %v8489 = vsel %vm3646, %v8470, %v8472
  %v8490 = vsel %vm3646, %v8474, %v8476
  %v8491 = vsel %vm3646, %v8478, %v8480
  %v8492 = vsel %vm3646, %v8482, %v8484
  %v8501 = vmax.f32 %v7908, %v8485
  %v8502 = vmax.f32 %v7909, %v8486
  %v8503 = vmax.f32 %v7910, %v8487
  %v8504 = vmax.f32 %v7911, %v8488
  %v8505 = vmax.f32 %v7912, %v8489
  %v8506 = vmax.f32 %v7913, %v8490
  %v8507 = vmax.f32 %v7914, %v8491
  %v8508 = vmax.f32 %v7915, %v8492
  %8525 = vrot.lane.b32.xlu0 %v8421, 48
  %v8526 = vpop.permute.xlu0 %8525
  %8527 = vrot.lane.b32.xlu0 %v8422, 48
  %v8528 = vpop.permute.xlu0 %8527
  %8529 = vrot.lane.b32.xlu0 %v8423, 48
  %v8530 = vpop.permute.xlu0 %8529
  %8531 = vrot.lane.b32.xlu0 %v8424, 48
  %v8532 = vpop.permute.xlu0 %8531
  %8533 = vrot.lane.b32.xlu0 %v8425, 48
  %v8534 = vpop.permute.xlu0 %8533
  %8535 = vrot.lane.b32.xlu0 %v8426, 48
  %v8536 = vpop.permute.xlu0 %8535
  %8537 = vrot.lane.b32.xlu0 %v8427, 48
  %v8538 = vpop.permute.xlu0 %8537
  %8539 = vrot.lane.b32.xlu0 %v8428, 48
  %v8540 = vpop.permute.xlu0 %8539
  %8541 = vrot.lane.b32.xlu0 %v8429, 48
  %v8542 = vpop.permute.xlu0 %8541
  %8543 = vrot.lane.b32.xlu0 %v8430, 48
  %v8544 = vpop.permute.xlu0 %8543
  %8545 = vrot.lane.b32.xlu0 %v8431, 48
  %v8546 = vpop.permute.xlu0 %8545
  %8547 = vrot.lane.b32.xlu0 %v8432, 48
  %v8548 = vpop.permute.xlu0 %8547
  %8549 = vrot.lane.b32.xlu0 %v8433, 48
  %v8550 = vpop.permute.xlu0 %8549
  %8551 = vrot.lane.b32.xlu0 %v8434, 48
  %v8552 = vpop.permute.xlu0 %8551
  %8553 = vrot.lane.b32.xlu0 %v8435, 48
  %v8554 = vpop.permute.xlu0 %8553
  %8555 = vrot.lane.b32.xlu0 %v8436, 48
  %v8556 = vpop.permute.xlu0 %8555
  %v8557 = vsel %vm3646, %v8526, %v8528
  %v8558 = vsel %vm3646, %v8530, %v8532
  %v8559 = vsel %vm3646, %v8534, %v8536
  %v8560 = vsel %vm3646, %v8538, %v8540
  %v8561 = vsel %vm3646, %v8542, %v8544
  %v8562 = vsel %vm3646, %v8546, %v8548
  %v8563 = vsel %vm3646, %v8550, %v8552
  %v8564 = vsel %vm3646, %v8554, %v8556
  %v8573 = vmax.f32 %v8285, %v8557
  %v8574 = vmax.f32 %v8286, %v8558
  %v8575 = vmax.f32 %v8287, %v8559
  %v8576 = vmax.f32 %v8288, %v8560
  %v8577 = vmax.f32 %v8289, %v8561
  %v8578 = vmax.f32 %v8290, %v8562
  %v8579 = vmax.f32 %v8291, %v8563
  %v8580 = vmax.f32 %v8292, %v8564
  %v8581 = vmax.f32 %v8501, %v8573
  %v8582 = vmax.f32 %v8502, %v8574
  %v8583 = vmax.f32 %v8503, %v8575
  %v8584 = vmax.f32 %v8504, %v8576
  %v8585 = vmax.f32 %v8505, %v8577
  %v8586 = vmax.f32 %v8506, %v8578
  %v8587 = vmax.f32 %v8507, %v8579
  %v8588 = vmax.f32 %v8508, %v8580
  %vm8589 = vcmask 650240
  %8590 = vst.msk [vmem:[#allocation2] sm:$0xf] %vm8589, %v8581
  %8591 = vst.msk [vmem:[#allocation2 + $0x4] sm:$0xf] %vm8589, %v8582
  %8592 = vst.msk [vmem:[#allocation2 + $0x8] sm:$0xf] %vm8589, %v8583
  %8593 = vst.msk [vmem:[#allocation2 + $0xc] sm:$0xf] %vm8589, %v8584
  %8594 = vst.msk [vmem:[#allocation2 + $0x10] sm:$0xf] %vm8589, %v8585
  %8595 = vst.msk [vmem:[#allocation2 + $0x14] sm:$0xf] %vm8589, %v8586
  %8596 = vst.msk [vmem:[#allocation2 + $0x18] sm:$0xf] %vm8589, %v8587
  %8597 = vst.msk [vmem:[#allocation2 + $0x1c] sm:$0xf] %vm8589, %v8588
  %v8598 = vld [vmem:[#allocation2] sm:$0x1]
  %v8599 = vld [vmem:[#allocation2 + $0x4] sm:$0x1]
  %v8600 = vld [vmem:[#allocation2 + $0x8] sm:$0x1]
  %v8601 = vld [vmem:[#allocation2 + $0xc] sm:$0x1]
  %v8602 = vld [vmem:[#allocation2 + $0x10] sm:$0x1]
  %v8603 = vld [vmem:[#allocation2 + $0x14] sm:$0x1]
  %v8604 = vld [vmem:[#allocation2 + $0x18] sm:$0x1]
  %v8605 = vld [vmem:[#allocation2 + $0x1c] sm:$0x1]
  %v8606 = vld [vmem:[#allocation2 + $0x1] sm:$0x1]
  %v8607 = vld [vmem:[#allocation2 + $0x5] sm:$0x1]
  %v8608 = vld [vmem:[#allocation2 + $0x9] sm:$0x1]
  %v8609 = vld [vmem:[#allocation2 + $0xd] sm:$0x1]
  %v8610 = vld [vmem:[#allocation2 + $0x11] sm:$0x1]
  %v8611 = vld [vmem:[#allocation2 + $0x15] sm:$0x1]
  %v8612 = vld [vmem:[#allocation2 + $0x19] sm:$0x1]
  %v8613 = vld [vmem:[#allocation2 + $0x1d] sm:$0x1]
  %v8614 = vld [vmem:[#allocation2 + $0x2] sm:$0x1]
  %v8615 = vld [vmem:[#allocation2 + $0x6] sm:$0x1]
  %v8616 = vld [vmem:[#allocation2 + $0xa] sm:$0x1]
  %v8617 = vld [vmem:[#allocation2 + $0xe] sm:$0x1]
  %v8618 = vld [vmem:[#allocation2 + $0x12] sm:$0x1]
  %v8619 = vld [vmem:[#allocation2 + $0x16] sm:$0x1]
  %v8620 = vld [vmem:[#allocation2 + $0x1a] sm:$0x1]
  %v8621 = vld [vmem:[#allocation2 + $0x1e] sm:$0x1]
  %v8622 = vld [vmem:[#allocation2 + $0x3] sm:$0x1]
  %v8623 = vld [vmem:[#allocation2 + $0x7] sm:$0x1]
  %v8624 = vld [vmem:[#allocation2 + $0xb] sm:$0x1]
  %v8625 = vld [vmem:[#allocation2 + $0xf] sm:$0x1]
  %v8626 = vld [vmem:[#allocation2 + $0x13] sm:$0x1]
  %v8627 = vld [vmem:[#allocation2 + $0x17] sm:$0x1]
  %v8628 = vld [vmem:[#allocation2 + $0x1b] sm:$0x1]
  %v8629 = vld [vmem:[#allocation2 + $0x1f] sm:$0x1]
  %v8638 = vrot.slane %v8599, 7
  %vm8639 = vcmask 1041409
  %v8640 = vsel %vm8639, %v8638, %v8598
  %v8641 = vrot.slane %v8600, 6
  %vm8642 = vcmask 1042434
  %v8643 = vsel %vm8642, %v8641, %v8640
  %v8644 = vrot.slane %v8601, 5
  %vm8645 = vcmask 1043459
  %v8646 = vsel %vm8645, %v8644, %v8643
  %v8647 = vrot.slane %v8602, 4
  %vm8648 = vcmask 1044484
  %v8649 = vsel %vm8648, %v8647, %v8646
  %v8650 = vrot.slane %v8603, 3
  %vm8651 = vcmask 1045509
  %v8652 = vsel %vm8651, %v8650, %v8649
  %v8653 = vrot.slane %v8604, 2
  %vm8654 = vcmask 1046534
  %v8655 = vsel %vm8654, %v8653, %v8652
  %v8656 = vrot.slane %v8605, 1
  %vm8657 = vcmask 1047559
  %v8658 = vsel %vm8657, %v8656, %v8655
  %v8668 = vrot.slane %v8607, 7
  %v8669 = vsel %vm8639, %v8668, %v8606
  %v8670 = vrot.slane %v8608, 6
  %v8671 = vsel %vm8642, %v8670, %v8669
  %v8672 = vrot.slane %v8609, 5
  %v8673 = vsel %vm8645, %v8672, %v8671
  %v8674 = vrot.slane %v8610, 4
  %v8675 = vsel %vm8648, %v8674, %v8673
  %v8676 = vrot.slane %v8611, 3
  %v8677 = vsel %vm8651, %v8676, %v8675
  %v8678 = vrot.slane %v8612, 2
  %v8679 = vsel %vm8654, %v8678, %v8677
  %v8680 = vrot.slane %v8613, 1
  %v8681 = vsel %vm8657, %v8680, %v8679
  %8682 = vrot.lane.b32.xlu0 %v8681, 80
  %v8683 = vpop.permute.xlu0 %8682
  %v8693 = vrot.slane %v8615, 7
  %v8694 = vsel %vm8639, %v8693, %v8614
  %v8695 = vrot.slane %v8616, 6
  %v8696 = vsel %vm8642, %v8695, %v8694
  %v8697 = vrot.slane %v8617, 5
  %v8698 = vsel %vm8645, %v8697, %v8696
  %v8699 = vrot.slane %v8618, 4
  %v8700 = vsel %vm8648, %v8699, %v8698
  %v8701 = vrot.slane %v8619, 3
  %v8702 = vsel %vm8651, %v8701, %v8700
  %v8703 = vrot.slane %v8620, 2
  %v8704 = vsel %vm8654, %v8703, %v8702
  %v8705 = vrot.slane %v8621, 1
  %v8706 = vsel %vm8657, %v8705, %v8704
  %8707 = vrot.lane.b32.xlu0 %v8706, 32
  %v8708 = vpop.permute.xlu0 %8707
  %v8718 = vrot.slane %v8623, 7
  %v8719 = vsel %vm8639, %v8718, %v8622
  %v8720 = vrot.slane %v8624, 6
  %v8721 = vsel %vm8642, %v8720, %v8719
  %v8722 = vrot.slane %v8625, 5
  %v8723 = vsel %vm8645, %v8722, %v8721
  %v8724 = vrot.slane %v8626, 4
  %v8725 = vsel %vm8648, %v8724, %v8723
  %v8726 = vrot.slane %v8627, 3
  %v8727 = vsel %vm8651, %v8726, %v8725
  %v8728 = vrot.slane %v8628, 2
  %v8729 = vsel %vm8654, %v8728, %v8727
  %v8730 = vrot.slane %v8629, 1
  %v8731 = vsel %vm8657, %v8730, %v8729
  %8732 = vrot.lane.b32.xlu0 %v8731, 112
  %v8733 = vpop.permute.xlu0 %8732
  %vm8735 = vcmask 654336
  %v8736 = vsel %vm8735, %v8658, %v8683
  %v8737 = vsel %vm3573, %v8683, %v8708
  %vm8738 = vcmask 916480
  %v8739 = vsel %vm8738, %v8737, %v8733
  %v8740 = vld [vmem:[%s3] sm:$0x7]
  %v8742 = vlaneseq
  %v8743 = vshrl.u32 %v8742, 7
  %v8744 = vsub.s32 0, %v8743
  %v8745 = vrot.slane %v8740, %v8744
  %v8746 = vlaneseq
  %v8747 = vshrl.u32 %v8746, 7
  %v8748 = vsub.s32 1, %v8747
  %v8749 = vrot.slane %v8740, %v8748
  %v8750 = vlaneseq
  %v8751 = vshrl.u32 %v8750, 7
  %v8752 = vsub.s32 2, %v8751
  %v8753 = vrot.slane %v8740, %v8752
  %v8757 = vadd.f32 %v8736, %v8745
  %v8758 = vadd.f32 %v8739, %v8749
  %v8759 = vadd.f32 %v8733, %v8753
  %v8760 = vmax.f32 %v8757, 0.0
  %v8761 = vmax.f32 %v8758, 0.0
  %v8762 = vmax.f32 %v8759, 0.0
  %v8763 = vld [vmem:[%s4] sm:$0xff]
  %v8764 = vld [vmem:[%s4 + $0x8] sm:$0xff]
  %v8765 = vld [vmem:[%s4 + $0x10] sm:$0xff]
  %v8766 = vld [vmem:[%s4 + $0x18] sm:$0xff]
  %v8767 = vld [vmem:[%s4 + $0x20] sm:$0xff]
  %v8768 = vld [vmem:[%s4 + $0x28] sm:$0xff]
  %v8769 = vld [vmem:[%s4 + $0x30] sm:$0xff]
  %v8770 = vld [vmem:[%s4 + $0x38] sm:$0xff]
  %v8771 = vld [vmem:[%s4 + $0x40] sm:$0xff]
  %v8772 = vld [vmem:[%s4 + $0x48] sm:$0xff]
  %v8773 = vld [vmem:[%s4 + $0x50] sm:$0xff]
  %v8774 = vld [vmem:[%s4 + $0x58] sm:$0xff]
  %v8775 = vld [vmem:[%s4 + $0x60] sm:$0xff]
  %v8776 = vld [vmem:[%s4 + $0x68] sm:$0xff]
  %v8777 = vld [vmem:[%s4 + $0x70] sm:$0xff]
  %v8778 = vld [vmem:[%s4 + $0x78] sm:$0xff]
  %v8779 = vld [vmem:[%s4 + $0x80] sm:$0xff]
  %v8780 = vld [vmem:[%s4 + $0x88] sm:$0xff]
  %v8781 = vld [vmem:[%s4 + $0x90] sm:$0xff]
  %v8782 = vld [vmem:[%s4 + $0x98] sm:$0xff]
  %v8783 = vld [vmem:[%s4 + $0xa0] sm:$0xff]
  %v8784 = vld [vmem:[%s4 + $0xa8] sm:$0xff]
  %v8785 = vld [vmem:[%s4 + $0xb0] sm:$0xff]
  %v8786 = vld [vmem:[%s4 + $0xb8] sm:$0xff]
  %v8787 = vld [vmem:[%s4 + $0xc0] sm:$0xff]
  %v8788 = vld [vmem:[%s4 + $0xc8] sm:$0xff]
  %v8789 = vld [vmem:[%s4 + $0xd0] sm:$0xff]
  %v8790 = vld [vmem:[%s4 + $0xd8] sm:$0xff]
  %v8791 = vld [vmem:[%s4 + $0xe0] sm:$0xff]
  %v8792 = vld [vmem:[%s4 + $0xe8] sm:$0xff]
  %v8793 = vld [vmem:[%s4 + $0xf0] sm:$0xff]
  %v8794 = vld [vmem:[%s4 + $0xf8] sm:$0xff]
  %v8795 = vld [vmem:[%s4 + $0x100] sm:$0xff]
  %v8796 = vld [vmem:[%s4 + $0x108] sm:$0xff]
  %v8797 = vld [vmem:[%s4 + $0x110] sm:$0xff]
  %v8798 = vld [vmem:[%s4 + $0x118] sm:$0xff]
  %v8799 = vld [vmem:[%s4 + $0x120] sm:$0xff]
  %v8800 = vld [vmem:[%s4 + $0x128] sm:$0xff]
  %v8801 = vld [vmem:[%s4 + $0x130] sm:$0xff]
  %v8802 = vld [vmem:[%s4 + $0x138] sm:$0xff]
  %v8803 = vld [vmem:[%s5] sm:$0x1]
  %v8805 = vlaneseq
  %v8806 = vshrl.u32 %v8805, 7
  %v8807 = vsub.s32 0, %v8806
  %v8808 = vrot.slane %v8803, %v8807
  %v8811 = vsel %vm3784, %v8762, 0
  %8813 = vmatprep.subr.mxu0 0.0
  %8814 = vmatpush1.msra.mxu0 %v8763
  %8815 = vmatprep.subr.mxu0 0.0
  %8816 = vmatpush1.msra.mxu0 %v8764
  %8817 = vmatprep.subr.mxu0 0.0
  %8818 = vmatpush1.msra.mxu0 %v8765
  %8819 = vmatprep.subr.mxu0 0.0
  %8820 = vmatpush1.msra.mxu0 %v8766
  %8821 = vmatprep.subr.mxu0 0.0
  %8822 = vmatpush1.msra.mxu0 %v8767
  %8823 = vmatprep.subr.mxu0 0.0
  %8824 = vmatpush1.msra.mxu0 %v8768
  %8825 = vmatprep.subr.mxu0 0.0
  %8826 = vmatpush1.msra.mxu0 %v8769
  %8827 = vmatprep.subr.mxu0 0.0
  %8828 = vmatpush1.msra.mxu0 %v8770
  %8829 = vmatprep.subr.mxu0 0.0
  %8830 = vmatpush1.msra.mxu0 %v8771
  %8831 = vmatprep.subr.mxu0 0.0
  %8832 = vmatpush1.msra.mxu0 %v8772
  %8833 = vmatprep.subr.mxu0 0.0
  %8834 = vmatpush1.msra.mxu0 %v8773
  %8835 = vmatprep.subr.mxu0 0.0
  %8836 = vmatpush1.msra.mxu0 %v8774
  %8837 = vmatprep.subr.mxu0 0.0
  %8838 = vmatpush1.msra.mxu0 %v8775
  %8839 = vmatprep.subr.mxu0 0.0
  %8840 = vmatpush1.msra.mxu0 %v8776
  %8841 = vmatprep.subr.mxu0 0.0
  %8842 = vmatpush1.msra.mxu0 %v8777
  %8843 = vmatprep.subr.mxu0 0.0
  %8844 = vmatpush1.msra.mxu0 %v8778
  %8845 = vmatprep.subr.mxu0 0.0
  %8846 = vmatpush1.msra.mxu0 %v8779
  %8847 = vmatprep.subr.mxu0 0.0
  %8848 = vmatpush1.msra.mxu0 %v8780
  %8849 = vmatprep.subr.mxu0 0.0
  %8850 = vmatpush1.msra.mxu0 %v8781
  %8851 = vmatprep.subr.mxu0 0.0
  %8852 = vmatpush1.msra.mxu0 %v8782
  %8853 = vmatprep.subr.mxu0 0.0
  %8854 = vmatpush1.msra.mxu0 %v8783
  %8855 = vmatprep.subr.mxu0 0.0
  %8856 = vmatpush1.msra.mxu0 %v8784
  %8857 = vmatprep.subr.mxu0 0.0
  %8858 = vmatpush1.msra.mxu0 %v8785
  %8859 = vmatprep.subr.mxu0 0.0
  %8860 = vmatpush1.msra.mxu0 %v8786
  %8861 = vmatprep.subr.mxu0 0.0
  %8862 = vmatpush1.msra.mxu0 %v8787
  %8863 = vmatprep.subr.mxu0 0.0
  %8864 = vmatpush1.msra.mxu0 %v8788
  %8865 = vmatprep.subr.mxu0 0.0
  %8866 = vmatpush1.msra.mxu0 %v8789
  %8867 = vmatprep.subr.mxu0 0.0
  %8868 = vmatpush1.msra.mxu0 %v8790
  %8869 = vmatprep.subr.mxu0 0.0
  %8870 = vmatpush1.msra.mxu0 %v8791
  %8871 = vmatprep.subr.mxu0 0.0
  %8872 = vmatpush1.msra.mxu0 %v8792
  %8873 = vmatprep.subr.mxu0 0.0
  %8874 = vmatpush1.msra.mxu0 %v8793
  %8875 = vmatprep.subr.mxu0 0.0
  %8876 = vmatpush1.msra.mxu0 %v8794
  %8877 = vmatprep.mubr.f32.mxu0 %v8761
  %8878 = vmatmul.mubr.f32.gmra.mrb[0].mxu0 %v8760
  %v8879 = vpop.f32.mrb[0].mxu0
  %v8880 = vadd.f32 %v8808, %v8879
  %v8881 = vpop.f32.mrb[0].mxu0
  %8882 = vdwg.mxu0
  %8883 = vmatprep.subr.mxu0 0.0
  %8884 = vmatpush1.msra.mxu0 %v8795
  %8885 = vmatprep.subr.mxu0 0.0
  %8886 = vmatpush1.msra.mxu0 %v8796
  %8887 = vmatprep.subr.mxu0 0.0
  %8888 = vmatpush1.msra.mxu0 %v8797
  %8889 = vmatprep.subr.mxu0 0.0
  %8890 = vmatpush1.msra.mxu0 %v8798
  %8891 = vmatprep.subr.mxu0 0.0
  %8892 = vmatpush1.msra.mxu0 %v8799
  %8893 = vmatprep.subr.mxu0 0.0
  %8894 = vmatpush1.msra.mxu0 %v8800
  %8895 = vmatprep.subr.mxu0 0.0
  %8896 = vmatpush1.msra.mxu0 %v8801
  %8897 = vmatprep.subr.mxu0 0.0
  %8898 = vmatpush1.msra.mxu0 %v8802
  %8899 = vmatprep.subr.mxu0 0.0
  %8900 = vmatpush1.msra.mxu0 0.0
  %8901 = vmatprep.subr.mxu0 0.0
  %8902 = vmatpush1.msra.mxu0 0.0
  %8903 = vmatprep.subr.mxu0 0.0
  %8904 = vmatpush1.msra.mxu0 0.0
  %8905 = vmatprep.subr.mxu0 0.0
  %8906 = vmatpush1.msra.mxu0 0.0
  %8907 = vmatprep.subr.mxu0 0.0
  %8908 = vmatpush1.msra.mxu0 0.0
  %8909 = vmatprep.subr.mxu0 0.0
  %8910 = vmatpush1.msra.mxu0 0.0
  %8911 = vmatprep.subr.mxu0 0.0
  %8912 = vmatpush1.msra.mxu0 0.0
  %8913 = vmatprep.subr.mxu0 0.0
  %8914 = vmatpush1.msra.mxu0 0.0
  %8915 = vmatprep.subr.mxu0 0.0
  %8916 = vmatpush1.msra.mxu0 0.0
  %8917 = vmatprep.subr.mxu0 0.0
  %8918 = vmatpush1.msra.mxu0 0.0
  %8919 = vmatprep.subr.mxu0 0.0
  %8920 = vmatpush1.msra.mxu0 0.0
  %8921 = vmatprep.subr.mxu0 0.0
  %8922 = vmatpush1.msra.mxu0 0.0
  %8923 = vmatprep.subr.mxu0 0.0
  %8924 = vmatpush1.msra.mxu0 0.0
  %8925 = vmatprep.subr.mxu0 0.0
  %8926 = vmatpush1.msra.mxu0 0.0
  %8927 = vmatprep.subr.mxu0 0.0
  %8928 = vmatpush1.msra.mxu0 0.0
  %8929 = vmatprep.subr.mxu0 0.0
  %8930 = vmatpush1.msra.mxu0 0.0
  %8931 = vmatprep.subr.mxu0 0.0
  %8932 = vmatpush1.msra.mxu0 0.0
  %8933 = vmatprep.subr.mxu0 0.0
  %8934 = vmatpush1.msra.mxu0 0.0
  %8935 = vmatprep.subr.mxu0 0.0
  %8936 = vmatpush1.msra.mxu0 0.0
  %8937 = vmatprep.subr.mxu0 0.0
  %8938 = vmatpush1.msra.mxu0 0.0
  %8939 = vmatprep.subr.mxu0 0.0
  %8940 = vmatpush1.msra.mxu0 0.0
  %8941 = vmatprep.subr.mxu0 0.0
  %8942 = vmatpush1.msra.mxu0 0.0
  %8943 = vmatprep.subr.mxu0 0.0
  %8944 = vmatpush1.msra.mxu0 0.0
  %8945 = vmatprep.subr.mxu0 0.0
  %8946 = vmatpush1.msra.mxu0 0.0
  %8947 = vmatprep.mubr.f32.mxu0 0.0
  %8948 = vmatmul.mubr.f32.gmra.mrb[0].mxu0 %v8811
  %v8949 = vpop.f32.mrb[0].mxu0
  %v8950 = vadd.f32 %v8880, %v8949
  %v8951 = vpop.f32.mrb[0].mxu0
  %8952 = vdwg.mxu0
  %v8953 = vmax.f32 %v8950, 0.0
  %v8954 = vld [vmem:[%s6] sm:$0xff]
  %v8955 = vld [vmem:[%s6 + $0x8] sm:$0xff]
  %v8956 = vld [vmem:[%s6 + $0x10] sm:$0xff]
  %v8957 = vld [vmem:[%s6 + $0x18] sm:$0xff]
  %v8958 = vld [vmem:[%s6 + $0x20] sm:$0xff]
  %v8959 = vld [vmem:[%s6 + $0x28] sm:$0xff]
  %v8960 = vld [vmem:[%s6 + $0x30] sm:$0x3]
  %v8961 = vld [vmem:[%s7] sm:$0x1]
  %v8963 = vlaneseq
  %v8964 = vshrl.u32 %v8963, 7
  %v8965 = vsub.s32 0, %v8964
  %v8966 = vrot.slane %v8961, %v8965
  %vm8968 = vcmask 408576
  %v8970 = vsel %vm8968, %v8953, 0
  %vm8972 = vcmask 1041408
  %v8974 = vsel %vm8972, %v8960, 0
  %8976 = vmatprep.subr.mxu0 0.0
  %8977 = vmatpush1.msra.mxu0 %v8954
  %8978 = vmatprep.subr.mxu0 0.0
  %8979 = vmatpush1.msra.mxu0 %v8955
  %8980 = vmatprep.subr.mxu0 0.0
  %8981 = vmatpush1.msra.mxu0 %v8956
  %8982 = vmatprep.subr.mxu0 0.0
  %8983 = vmatpush1.msra.mxu0 %v8957
  %8984 = vmatprep.subr.mxu0 0.0
  %8985 = vmatpush1.msra.mxu0 %v8958
  %8986 = vmatprep.subr.mxu0 0.0
  %8987 = vmatpush1.msra.mxu0 %v8959
  %8988 = vmatprep.subr.mxu0 0.0
  %8989 = vmatpush1.msra.mxu0 %v8974
  %8990 = vmatprep.subr.mxu0 0.0
  %8991 = vmatpush1.msra.mxu0 0.0
  %8992 = vmatprep.subr.mxu0 0.0
  %8993 = vmatpush1.msra.mxu0 0.0
  %8994 = vmatprep.subr.mxu0 0.0
  %8995 = vmatpush1.msra.mxu0 0.0
  %8996 = vmatprep.subr.mxu0 0.0
  %8997 = vmatpush1.msra.mxu0 0.0
  %8998 = vmatprep.subr.mxu0 0.0
  %8999 = vmatpush1.msra.mxu0 0.0
  %9000 = vmatprep.subr.mxu0 0.0
  %9001 = vmatpush1.msra.mxu0 0.0
  %9002 = vmatprep.subr.mxu0 0.0
  %9003 = vmatpush1.msra.mxu0 0.0
  %9004 = vmatprep.subr.mxu0 0.0
  %9005 = vmatpush1.msra.mxu0 0.0
  %9006 = vmatprep.subr.mxu0 0.0
  %9007 = vmatpush1.msra.mxu0 0.0
  %9008 = vmatprep.subr.mxu0 0.0
  %9009 = vmatpush1.msra.mxu0 0.0
  %9010 = vmatprep.subr.mxu0 0.0
  %9011 = vmatpush1.msra.mxu0 0.0
  %9012 = vmatprep.subr.mxu0 0.0
  %9013 = vmatpush1.msra.mxu0 0.0
  %9014 = vmatprep.subr.mxu0 0.0
  %9015 = vmatpush1.msra.mxu0 0.0
  %9016 = vmatprep.subr.mxu0 0.0
  %9017 = vmatpush1.msra.mxu0 0.0
  %9018 = vmatprep.subr.mxu0 0.0
  %9019 = vmatpush1.msra.mxu0 0.0
  %9020 = vmatprep.subr.mxu0 0.0
  %9021 = vmatpush1.msra.mxu0 0.0
  %9022 = vmatprep.subr.mxu0 0.0
  %9023 = vmatpush1.msra.mxu0 0.0
  %9024 = vmatprep.subr.mxu0 0.0
  %9025 = vmatpush1.msra.mxu0 0.0
  %9026 = vmatprep.subr.mxu0 0.0
  %9027 = vmatpush1.msra.mxu0 0.0
  %9028 = vmatprep.subr.mxu0 0.0
  %9029 = vmatpush1.msra.mxu0 0.0
  %9030 = vmatprep.subr.mxu0 0.0
  %9031 = vmatpush1.msra.mxu0 0.0
  %9032 = vmatprep.subr.mxu0 0.0
  %9033 = vmatpush1.msra.mxu0 0.0
  %9034 = vmatprep.subr.mxu0 0.0
  %9035 = vmatpush1.msra.mxu0 0.0
  %9036 = vmatprep.subr.mxu0 0.0
  %9037 = vmatpush1.msra.mxu0 0.0
  %9038 = vmatprep.subr.mxu0 0.0
  %9039 = vmatpush1.msra.mxu0 0.0
  %9040 = vmatprep.mubr.f32.mxu0 0.0
  %9041 = vmatmul.mubr.f32.gmra.mrb[0].mxu0 %v8970
  %v9042 = vpop.f32.mrb[0].mxu0
  %v9043 = vadd.f32 %v8966, %v9042
  %v9044 = vpop.f32.mrb[0].mxu0
  %9045 = vdwg.mxu0
  %vm9046 = vcmask 80896
  %v9047 = vsel %vm9046, %v9043, -inf
  %9048 = vmax.xlane.f32.xlu0 %v9047
  %v9049 = vpop.xlane.xlu0 %9048
  %v9050 = vsub.f32 %v9043, %v9049
  %v9051 = vmul.f32 %v9050, 1.442695
  %v9052 = vpow.pop %v9051
  %v9053 = vsel %vm9046, %v9052, 0.0
  %9054 = vadd.xlane.f32.xlu0 %v9053
  %v9055 = vpop.xlane.xlu0 %9054
  %v9056 = vlog2.pop %v9055
  %v9057 = vmul.f32 %v9056, 0.6931472
  %v9058 = vsub.f32 %v9050, %v9057
  %9059 = vst.msk [vmem:[%s8] sm:$0xff] %vm9046, %v9058
  // Predicated region
  $region34: #{mnist_comparator_forward.1} parent=0 // pred_check
    _
  $region35: #{mnist_comparator_forward.1} parent=0 // pred_check_branch
    %9061 = sbr.rel (0) target = $region37
  $region36: #{mnist_comparator_forward.1} parent=0 // pred_region
    _
  $region37: #{mnist_comparator_forward.1} parent=0 // pred_fallthru
    _
  // Predicated region
  $region38: #{mnist_comparator_forward.1} parent=0 // pred_check
    _
  $region39: #{mnist_comparator_forward.1} parent=0 // pred_check_branch
    %9063 = sbr.rel (0) target = $region41
  $region40: #{mnist_comparator_forward.1} parent=0 // pred_region
    _
  $region41: #{mnist_comparator_forward.1} parent=0 // pred_fallthru
    _

</llo_original>
